<compile_context>
chip_gen: v6e
topology: v6e:2x2x1
jax: 0.10.0
libtpu: 0.0.40
codegen_flags: <defaults>
</compile_context>

<pallas_src>
import functools

import jax
import jax.numpy as jnp
from jax import lax
from jax.experimental import pallas as pl
from jax.experimental.pallas import tpu as pltpu

C_IN = 512
C_MID = 256
C_G = 64                       # growth channels per dilated conv
C_OUT = 512
C2 = C_IN + C_G                # 576
C3 = C_IN + 2 * C_G            # 640
C4 = C_IN + 3 * C_G            # 704


def dense_spatial_kernel(x_ref,
                         wc1_ref, bc1_ref, wd1_ref, bd1_ref,
                         wc2_ref, bc2_ref, wd2_ref, bd2_ref,
                         wc3_ref, bc3_ref, wd3_ref, bd3_ref,
                         wc4_ref, bc4_ref,
                         z4_ref, sums_ref, xcat_ref,
                         *, hw, tp, padded):
    """One (batch, pixel-tile) grid step of DenseSpatialBlock, channels-major."""

    def mm(w_ref, a):                                   # MXU, f32 accumulation
        return jnp.dot(w_ref[...], a, preferred_element_type=jnp.float32)

    def relu(v):
        return jnp.maximum(v, 0.0)

    # Stage x (then z1/z2/z3) in a single (704, tp) bf16 scratch so the dense
    # concat skips become single wide-K MXU matmuls with unsplit weights.
    xcat_ref[0:C_IN, :] = x_ref[0].astype(jnp.bfloat16)

    # cconv1 -> dconv1
    h1 = relu(mm(wc1_ref, xcat_ref[0:C_IN, :]) + bc1_ref[...])     # (256,tp) f32
    z1 = relu(mm(wd1_ref, h1.astype(jnp.bfloat16)) + bd1_ref[...])
    xcat_ref[C_IN:C2, :] = z1.astype(jnp.bfloat16)

    # cconv2 on cat(x, z1) -> dconv2        (single K=576 matmul)
    h2 = relu(mm(wc2_ref, xcat_ref[0:C2, :]) + bc2_ref[...])
    z2 = relu(mm(wd2_ref, h2.astype(jnp.bfloat16)) + bd2_ref[...])
    xcat_ref[C2:C3, :] = z2.astype(jnp.bfloat16)

    # cconv3 on cat(x, z1, z2) -> dconv3    (single K=640 matmul)
    h3 = relu(mm(wc3_ref, xcat_ref[0:C3, :]) + bc3_ref[...])
    z3 = relu(mm(wd3_ref, h3.astype(jnp.bfloat16)) + bd3_ref[...])
    xcat_ref[C3:C4, :] = z3.astype(jnp.bfloat16)

    # cconv4 on cat(x, z1, z2, z3)          (single K=704 matmul)
    z4 = relu(mm(wc4_ref, xcat_ref[...]) + bc4_ref[...])           # (512,tp) f32

    # Stage z4 to HBM in bf16 (halves the write + the gate-pass re-read).
    z4_ref[0] = z4.astype(z4_ref.dtype)

    # Per-(batch, tile) GAP partial sums.  Written to a distinct block per grid
    # step so the pixel axis stays "parallel"; the tiny reduction over tiles is
    # finished in plain JAX.
    if padded:  # static: only when HW was zero-padded to a tile multiple
        col = pl.program_id(1) * tp + lax.broadcasted_iota(jnp.int32, (1, tp), 1)
        z4 = jnp.where(col < hw, z4, 0.0)
    sums_ref[0, 0] = jnp.sum(z4, axis=1, keepdims=True)


def gate_kernel(z_ref, g_ref, o_ref):
    # (512, tp) bf16 z4 * (512, 1) f32 channel gate, broadcast over lanes.
    o_ref[0] = z_ref[0].astype(jnp.float32) * g_ref[0]


def _vmem_capacity_bytes():
    try:
        return int(pltpu.get_tpu_info().vmem_capacity_bytes)
    except Exception:
        return 64 * 1024 * 1024          # conservative (v7x-sized) fallback


def _choose_tile_and_pad(hw, max_tile):
    """Pick the largest pixel tile dividing hw (no padding), else zero-pad hw
    up to a tile multiple.  Bounds VMEM even for large, oddly shaped maps."""
    candidates = [t for t in (2048, 1024, 512, 384, 256, 128) if t <= max_tile]
    for t in candidates:
        if hw % t == 0:
            return t, hw
    if hw <= max_tile:                   # single lane-padded tile
        hw_pad = -(-hw // 128) * 128
        return hw_pad, hw_pad
    t = candidates[0]
    return t, -(-hw // t) * t


@jax.jit
def spatial_block(x_nchw, conv_params, ca_params):
    """SpatialBlock forward.  x_nchw: (N, 512, H, W) f32 -> (N, 512, H, W) f32."""
    (wc1, bc1, wd1, bd1, wc2, bc2, wd2, bd2,
     wc3, bc3, wd3, bd3, wc4, bc4) = conv_params
    w1, b1, w2, b2 = ca_params

    N, C, H, W = x_nchw.shape
    assert C == C_IN
    HW = H * W

    vmem_cap = _vmem_capacity_bytes()
    small_vmem = vmem_cap <= 64 * 1024 * 1024       # v7x vs v5e/v6e
    vmem_limit = (48 if small_vmem else 96) * 1024 * 1024
    max_tile = 1024 if small_vmem else 2048

    tp, hw_pad = _choose_tile_and_pad(HW, max_tile)
    n_tiles = hw_pad // tp
    padded = hw_pad != HW
    grid = (N, n_tiles)

    # Channels-major pixel matrix: NCHW -> (N, C, H*W) is a free reshape.
    x3 = x_nchw.reshape(N, C_IN, HW)
    if padded:
        x3 = jnp.pad(x3, ((0, 0), (0, 0), (0, hw_pad - HW)))

    # bf16 matmul weights, f32 accumulation in-kernel.  (In a real model these
    # casts would be hoisted into one-time parameter preparation.)
    bf = lambda w: w.astype(jnp.bfloat16)

    full = lambda shape: pl.BlockSpec(shape, lambda b, p, _s=len(shape): (0,) * _s)

    kernel = functools.partial(dense_spatial_kernel, hw=HW, tp=tp, padded=padded)

    z4_flat, sums = pl.pallas_call(
        kernel,
        out_shape=(jax.ShapeDtypeStruct((N, C_OUT, hw_pad), jnp.bfloat16),
                   jax.ShapeDtypeStruct((N, n_tiles, C_OUT, 1), jnp.float32)),
        grid_spec=pltpu.PrefetchScalarGridSpec(
            num_scalar_prefetch=0,
            grid=grid,
            in_specs=[
                pl.BlockSpec((1, C_IN, tp), lambda b, p: (b, 0, p)),   # x
                full((C_MID, C_IN)), full((C_MID, 1)),                 # cconv1
                full((C_G, C_MID)), full((C_G, 1)),                    # dconv1
                full((C_MID, C2)), full((C_MID, 1)),                   # cconv2
                full((C_G, C_MID)), full((C_G, 1)),                    # dconv2
                full((C_MID, C3)), full((C_MID, 1)),                   # cconv3
                full((C_G, C_MID)), full((C_G, 1)),                    # dconv3
                full((C_OUT, C4)), full((C_OUT, 1)),                   # cconv4
            ],
            out_specs=[
                pl.BlockSpec((1, C_OUT, tp), lambda b, p: (b, 0, p)),       # z4 (bf16)
                pl.BlockSpec((1, 1, C_OUT, 1), lambda b, p: (b, p, 0, 0)),  # GAP partials
            ],
            scratch_shapes=[pltpu.VMEM((C4, tp), jnp.bfloat16)],
        ),
        compiler_params=pltpu.CompilerParams(
            dimension_semantics=("parallel", "parallel"),
            vmem_limit_bytes=vmem_limit,
        ),
    )(x3, bf(wc1), bc1, bf(wd1), bd1,
      bf(wc2), bc2, bf(wd2), bd2,
      bf(wc3), bc3, bf(wd3), bd3,
      bf(wc4), bc4)

    # TODO(synk): the squeeze-excite MLP is (N,512)->(N,256)->(N,512), a few
    # hundred KFLOP total — kept in plain JAX f32 rather than a Pallas kernel.
    gap = jnp.sum(sums[:, :, :, 0], axis=1) / float(HW)          # (N, 512)
    a = jnp.maximum(gap @ w1.T + b1, 0.0)
    gate = jax.nn.sigmoid(a @ w2.T + b2)                         # (N, 512)

    out_flat = pl.pallas_call(
        gate_kernel,
        out_shape=jax.ShapeDtypeStruct((N, C_OUT, hw_pad), jnp.float32),
        grid_spec=pltpu.PrefetchScalarGridSpec(
            num_scalar_prefetch=0,
            grid=grid,
            in_specs=[
                pl.BlockSpec((1, C_OUT, tp), lambda b, p: (b, 0, p)),
                pl.BlockSpec((1, C_OUT, 1), lambda b, p: (b, 0, 0)),
            ],
            out_specs=pl.BlockSpec((1, C_OUT, tp), lambda b, p: (b, 0, p)),
        ),
        compiler_params=pltpu.CompilerParams(
            dimension_semantics=("parallel", "parallel"),
            vmem_limit_bytes=vmem_limit,
        ),
    )(z4_flat, gate.reshape(N, C_OUT, 1))

    if padded:
        out_flat = out_flat[:, :, :HW]
    return out_flat.reshape(N, C_OUT, H, W)


def init_params(key):
    """Deterministic PyTorch-like init.  Conv weights (Cout, Cin), bias (Cout, 1)."""
    def conv(k, cout, cin):
        k1, k2 = jax.random.split(k)
        bound = 1.0 / (cin ** 0.5)
        w = jax.random.uniform(k1, (cout, cin), jnp.float32, -bound, bound)
        b = jax.random.uniform(k2, (cout, 1), jnp.float32, -bound, bound)
        return w, b

    def linear(k, cout, cin):
        k1, k2 = jax.random.split(k)
        bound = 1.0 / (cin ** 0.5)
        w = jax.random.uniform(k1, (cout, cin), jnp.float32, -bound, bound)
        b = jax.random.uniform(k2, (cout,), jnp.float32, -bound, bound)
        return w, b

    keys = jax.random.split(key, 9)
    wc1, bc1 = conv(keys[0], C_MID, C_IN)
    wd1, bd1 = conv(keys[1], C_G, C_MID)
    wc2, bc2 = conv(keys[2], C_MID, C2)
    wd2, bd2 = conv(keys[3], C_G, C_MID)
    wc3, bc3 = conv(keys[4], C_MID, C3)
    wd3, bd3 = conv(keys[5], C_G, C_MID)
    wc4, bc4 = conv(keys[6], C_OUT, C4)
    w1, b1 = linear(keys[7], 256, C_OUT)
    w2, b2 = linear(keys[8], 512, 256)
    conv_params = (wc1, bc1, wd1, bd1, wc2, bc2, wd2, bd2,
                   wc3, bc3, wd3, bd3, wc4, bc4)
    ca_params = (w1, b1, w2, b2)
    return conv_params, ca_params


def reference_forward(x_nchw, conv_params, ca_params):
    """Plain-JAX f32 reference matching the PyTorch SpatialBlock semantics."""
    (wc1, bc1, wd1, bd1, wc2, bc2, wd2, bd2,
     wc3, bc3, wd3, bd3, wc4, bc4) = conv_params
    w1, b1, w2, b2 = ca_params
    N, C, H, W = x_nchw.shape
    x = x_nchw.reshape(N, C, H * W)

    def conv_relu(w, b, a):                 # 1x1 conv + ReLU, channels-major
        return jnp.maximum(jnp.einsum('oi,nip->nop', w, a) + b[None], 0.0)

    z1 = conv_relu(wd1, bd1, conv_relu(wc1, bc1, x))
    z2 = conv_relu(wd2, bd2, conv_relu(wc2, bc2, jnp.concatenate([x, z1], 1)))
    z3 = conv_relu(wd3, bd3, conv_relu(wc3, bc3, jnp.concatenate([x, z1, z2], 1)))
    z4 = conv_relu(wc4, bc4, jnp.concatenate([x, z1, z2, z3], 1))

    gap = jnp.mean(z4, axis=2)                               # (N, 512)
    a = jnp.maximum(gap @ w1.T + b1, 0.0)
    gate = jax.nn.sigmoid(a @ w2.T + b2)
    return (z4 * gate[:, :, None]).reshape(N, C_OUT, H, W)


if __name__ == "__main__":
    key = jax.random.PRNGKey(0)
    kx, kp = jax.random.split(key)

    N, H, W = 2, 16, 16
    x = jax.random.normal(kx, (N, C_IN, H, W), jnp.float32)
    conv_params, ca_params = init_params(kp)

    out = spatial_block(x, conv_params, ca_params)
    out = jax.block_until_ready(out)

    ref = reference_forward(x, conv_params, ca_params)
    assert out.shape == (N, C_OUT, H, W)
    max_err = float(jnp.max(jnp.abs(out - ref)))
    # bf16 matmul inputs + bf16 z4 staging with f32 accumulation -> loose
    # tolerance vs the pure-f32 reference.
    assert jnp.allclose(out, ref, rtol=5e-2, atol=5e-2), max_err

    print("KERNEL_OK")
</pallas_src>

<mosaic_0001>
module attributes {stable_mosaic.version = 11 : i64} {
  func.func @dense_spatial_kernel(%arg0: i32, %arg1: i32, %arg2: memref<1x512x256xf32, #tpu.memory_space<vmem>>, %arg3: memref<256x512xbf16, #tpu.memory_space<vmem>>, %arg4: memref<256x1xf32, #tpu.memory_space<vmem>>, %arg5: memref<64x256xbf16, #tpu.memory_space<vmem>>, %arg6: memref<64x1xf32, #tpu.memory_space<vmem>>, %arg7: memref<256x576xbf16, #tpu.memory_space<vmem>>, %arg8: memref<256x1xf32, #tpu.memory_space<vmem>>, %arg9: memref<64x256xbf16, #tpu.memory_space<vmem>>, %arg10: memref<64x1xf32, #tpu.memory_space<vmem>>, %arg11: memref<256x640xbf16, #tpu.memory_space<vmem>>, %arg12: memref<256x1xf32, #tpu.memory_space<vmem>>, %arg13: memref<64x256xbf16, #tpu.memory_space<vmem>>, %arg14: memref<64x1xf32, #tpu.memory_space<vmem>>, %arg15: memref<512x704xbf16, #tpu.memory_space<vmem>>, %arg16: memref<512x1xf32, #tpu.memory_space<vmem>>, %arg17: memref<1x512x256xbf16, #tpu.memory_space<vmem>>, %arg18: memref<1x1x512x1xf32, #tpu.memory_space<vmem>>, %arg19: memref<704x256xbf16, #tpu.memory_space<vmem>>) attributes {dimension_semantics = [#tpu.dimension_semantics<parallel>, #tpu.dimension_semantics<parallel>], iteration_bounds = array<i64: 2, 1>, scalar_prefetch = 0 : i64, scratch_operands = 1 : i64, tpu.core_type = #tpu.core_type<tc>, window_params = [{transform_indices = @transform_0, window_bounds = array<i64: 1, 512, 256>}, {pipeline_mode = #tpu.pipeline_mode<synchronous>, transform_indices = @transform_1, window_bounds = array<i64: 256, 512>}, {pipeline_mode = #tpu.pipeline_mode<synchronous>, transform_indices = @transform_2, window_bounds = array<i64: 256, 1>}, {pipeline_mode = #tpu.pipeline_mode<synchronous>, transform_indices = @transform_3, window_bounds = array<i64: 64, 256>}, {pipeline_mode = #tpu.pipeline_mode<synchronous>, transform_indices = @transform_4, window_bounds = array<i64: 64, 1>}, {pipeline_mode = #tpu.pipeline_mode<synchronous>, transform_indices = @transform_5, window_bounds = array<i64: 256, 576>}, {pipeline_mode = #tpu.pipeline_mode<synchronous>, transform_indices = @transform_6, window_bounds = array<i64: 256, 1>}, {pipeline_mode = #tpu.pipeline_mode<synchronous>, transform_indices = @transform_7, window_bounds = array<i64: 64, 256>}, {pipeline_mode = #tpu.pipeline_mode<synchronous>, transform_indices = @transform_8, window_bounds = array<i64: 64, 1>}, {pipeline_mode = #tpu.pipeline_mode<synchronous>, transform_indices = @transform_9, window_bounds = array<i64: 256, 640>}, {pipeline_mode = #tpu.pipeline_mode<synchronous>, transform_indices = @transform_10, window_bounds = array<i64: 256, 1>}, {pipeline_mode = #tpu.pipeline_mode<synchronous>, transform_indices = @transform_11, window_bounds = array<i64: 64, 256>}, {pipeline_mode = #tpu.pipeline_mode<synchronous>, transform_indices = @transform_12, window_bounds = array<i64: 64, 1>}, {pipeline_mode = #tpu.pipeline_mode<synchronous>, transform_indices = @transform_13, window_bounds = array<i64: 512, 704>}, {pipeline_mode = #tpu.pipeline_mode<synchronous>, transform_indices = @transform_14, window_bounds = array<i64: 512, 1>}, {transform_indices = @transform_15, window_bounds = array<i64: 1, 512, 256>}, {transform_indices = @transform_16, window_bounds = array<i64: 1, 1, 512, 1>}]} {
    %c0 = arith.constant 0 : index
    %c0_0 = arith.constant 0 : index
    %c0_1 = arith.constant 0 : index
    %0 = vector.load %arg2[%c0, %c0_0, %c0_1] : memref<1x512x256xf32, #tpu.memory_space<vmem>>, vector<1x512x256xf32>
    %1 = vector.shape_cast %0 : vector<1x512x256xf32> to vector<512x256xf32>
    %2 = arith.truncf %1 : vector<512x256xf32> to vector<512x256xbf16>
    %c0_2 = arith.constant 0 : index
    %c0_3 = arith.constant 0 : index
    %3 = vector.load %arg19[%c0_2, %c0_3] : memref<704x256xbf16, #tpu.memory_space<vmem>>, vector<512x256xbf16>
    tpu.vector_store %arg19[%c0_2, %c0_3], %2 {strides = array<i32>} : memref<704x256xbf16, #tpu.memory_space<vmem>>, vector<512x256xbf16>,
    %c0_4 = arith.constant 0 : index
    %c0_5 = arith.constant 0 : index
    %4 = vector.load %arg19[%c0_4, %c0_5] : memref<704x256xbf16, #tpu.memory_space<vmem>>, vector<512x256xbf16>
    %c0_6 = arith.constant 0 : index
    %c0_7 = arith.constant 0 : index
    %5 = vector.load %arg3[%c0_6, %c0_7] : memref<256x512xbf16, #tpu.memory_space<vmem>>, vector<256x512xbf16>
    %cst = arith.constant dense<0.000000e+00> : vector<256x256xf32>
    %6 = tpu.matmul %5, %4, %cst {dimension_numbers = #tpu.dot_dimension_numbers<[1], [0], [0], [1], [0, 0, 1, 1], [], []>} : vector<256x512xbf16>, vector<512x256xbf16>, vector<256x256xf32> -> vector<256x256xf32>
    %c0_8 = arith.constant 0 : index
    %c0_9 = arith.constant 0 : index
    %7 = vector.load %arg4[%c0_8, %c0_9] : memref<256x1xf32, #tpu.memory_space<vmem>>, vector<256x1xf32>
    %8 = vector.broadcast %7 : vector<256x1xf32> to vector<256x256xf32>
    %9 = arith.addf %6, %8 : vector<256x256xf32>
    %cst_10 = arith.constant 0.000000e+00 : f32
    %10 = vector.broadcast %cst_10 : f32 to vector<256x256xf32>
    %11 = arith.maximumf %9, %10 : vector<256x256xf32>
    %12 = arith.truncf %11 : vector<256x256xf32> to vector<256x256xbf16>
    %c0_11 = arith.constant 0 : index
    %c0_12 = arith.constant 0 : index
    %13 = vector.load %arg5[%c0_11, %c0_12] : memref<64x256xbf16, #tpu.memory_space<vmem>>, vector<64x256xbf16>
    %cst_13 = arith.constant dense<0.000000e+00> : vector<64x256xf32>
    %14 = tpu.matmul %13, %12, %cst_13 {dimension_numbers = #tpu.dot_dimension_numbers<[1], [0], [0], [1], [0, 0, 1, 1], [], []>} : vector<64x256xbf16>, vector<256x256xbf16>, vector<64x256xf32> -> vector<64x256xf32>
    %c0_14 = arith.constant 0 : index
    %c0_15 = arith.constant 0 : index
    %15 = vector.load %arg6[%c0_14, %c0_15] : memref<64x1xf32, #tpu.memory_space<vmem>>, vector<64x1xf32>
    %16 = vector.broadcast %15 : vector<64x1xf32> to vector<64x256xf32>
    %17 = arith.addf %14, %16 : vector<64x256xf32>
    %cst_16 = arith.constant 0.000000e+00 : f32
    %18 = vector.broadcast %cst_16 : f32 to vector<64x256xf32>
    %19 = arith.maximumf %17, %18 : vector<64x256xf32>
    %20 = arith.truncf %19 : vector<64x256xf32> to vector<64x256xbf16>
    %c512 = arith.constant 512 : index
    %c0_17 = arith.constant 0 : index
    %21 = vector.load %arg19[%c512, %c0_17] : memref<704x256xbf16, #tpu.memory_space<vmem>>, vector<64x256xbf16>
    tpu.vector_store %arg19[%c512, %c0_17], %20 {strides = array<i32>} : memref<704x256xbf16, #tpu.memory_space<vmem>>, vector<64x256xbf16>,
    %c0_18 = arith.constant 0 : index
    %c0_19 = arith.constant 0 : index
    %22 = vector.load %arg19[%c0_18, %c0_19] : memref<704x256xbf16, #tpu.memory_space<vmem>>, vector<576x256xbf16>
    %c0_20 = arith.constant 0 : index
    %c0_21 = arith.constant 0 : index
    %23 = vector.load %arg7[%c0_20, %c0_21] : memref<256x576xbf16, #tpu.memory_space<vmem>>, vector<256x576xbf16>
    %cst_22 = arith.constant dense<0.000000e+00> : vector<256x256xf32>
    %24 = tpu.matmul %23, %22, %cst_22 {dimension_numbers = #tpu.dot_dimension_numbers<[1], [0], [0], [1], [0, 0, 1, 1], [], []>} : vector<256x576xbf16>, vector<576x256xbf16>, vector<256x256xf32> -> vector<256x256xf32>
    %c0_23 = arith.constant 0 : index
    %c0_24 = arith.constant 0 : index
    %25 = vector.load %arg8[%c0_23, %c0_24] : memref<256x1xf32, #tpu.memory_space<vmem>>, vector<256x1xf32>
    %26 = vector.broadcast %25 : vector<256x1xf32> to vector<256x256xf32>
    %27 = arith.addf %24, %26 : vector<256x256xf32>
    %cst_25 = arith.constant 0.000000e+00 : f32
    %28 = vector.broadcast %cst_25 : f32 to vector<256x256xf32>
    %29 = arith.maximumf %27, %28 : vector<256x256xf32>
    %30 = arith.truncf %29 : vector<256x256xf32> to vector<256x256xbf16>
    %c0_26 = arith.constant 0 : index
    %c0_27 = arith.constant 0 : index
    %31 = vector.load %arg9[%c0_26, %c0_27] : memref<64x256xbf16, #tpu.memory_space<vmem>>, vector<64x256xbf16>
    %cst_28 = arith.constant dense<0.000000e+00> : vector<64x256xf32>
    %32 = tpu.matmul %31, %30, %cst_28 {dimension_numbers = #tpu.dot_dimension_numbers<[1], [0], [0], [1], [0, 0, 1, 1], [], []>} : vector<64x256xbf16>, vector<256x256xbf16>, vector<64x256xf32> -> vector<64x256xf32>
    %c0_29 = arith.constant 0 : index
    %c0_30 = arith.constant 0 : index
    %33 = vector.load %arg10[%c0_29, %c0_30] : memref<64x1xf32, #tpu.memory_space<vmem>>, vector<64x1xf32>
    %34 = vector.broadcast %33 : vector<64x1xf32> to vector<64x256xf32>
    %35 = arith.addf %32, %34 : vector<64x256xf32>
    %cst_31 = arith.constant 0.000000e+00 : f32
    %36 = vector.broadcast %cst_31 : f32 to vector<64x256xf32>
    %37 = arith.maximumf %35, %36 : vector<64x256xf32>
    %38 = arith.truncf %37 : vector<64x256xf32> to vector<64x256xbf16>
    %c576 = arith.constant 576 : index
    %c0_32 = arith.constant 0 : index
    %39 = vector.load %arg19[%c576, %c0_32] : memref<704x256xbf16, #tpu.memory_space<vmem>>, vector<64x256xbf16>
    tpu.vector_store %arg19[%c576, %c0_32], %38 {strides = array<i32>} : memref<704x256xbf16, #tpu.memory_space<vmem>>, vector<64x256xbf16>,
    %c0_33 = arith.constant 0 : index
    %c0_34 = arith.constant 0 : index
    %40 = vector.load %arg19[%c0_33, %c0_34] : memref<704x256xbf16, #tpu.memory_space<vmem>>, vector<640x256xbf16>
    %c0_35 = arith.constant 0 : index
    %c0_36 = arith.constant 0 : index
    %41 = vector.load %arg11[%c0_35, %c0_36] : memref<256x640xbf16, #tpu.memory_space<vmem>>, vector<256x640xbf16>
    %cst_37 = arith.constant dense<0.000000e+00> : vector<256x256xf32>
    %42 = tpu.matmul %41, %40, %cst_37 {dimension_numbers = #tpu.dot_dimension_numbers<[1], [0], [0], [1], [0, 0, 1, 1], [], []>} : vector<256x640xbf16>, vector<640x256xbf16>, vector<256x256xf32> -> vector<256x256xf32>
    %c0_38 = arith.constant 0 : index
    %c0_39 = arith.constant 0 : index
    %43 = vector.load %arg12[%c0_38, %c0_39] : memref<256x1xf32, #tpu.memory_space<vmem>>, vector<256x1xf32>
    %44 = vector.broadcast %43 : vector<256x1xf32> to vector<256x256xf32>
    %45 = arith.addf %42, %44 : vector<256x256xf32>
    %cst_40 = arith.constant 0.000000e+00 : f32
    %46 = vector.broadcast %cst_40 : f32 to vector<256x256xf32>
    %47 = arith.maximumf %45, %46 : vector<256x256xf32>
    %48 = arith.truncf %47 : vector<256x256xf32> to vector<256x256xbf16>
    %c0_41 = arith.constant 0 : index
    %c0_42 = arith.constant 0 : index
    %49 = vector.load %arg13[%c0_41, %c0_42] : memref<64x256xbf16, #tpu.memory_space<vmem>>, vector<64x256xbf16>
    %cst_43 = arith.constant dense<0.000000e+00> : vector<64x256xf32>
    %50 = tpu.matmul %49, %48, %cst_43 {dimension_numbers = #tpu.dot_dimension_numbers<[1], [0], [0], [1], [0, 0, 1, 1], [], []>} : vector<64x256xbf16>, vector<256x256xbf16>, vector<64x256xf32> -> vector<64x256xf32>
    %c0_44 = arith.constant 0 : index
    %c0_45 = arith.constant 0 : index
    %51 = vector.load %arg14[%c0_44, %c0_45] : memref<64x1xf32, #tpu.memory_space<vmem>>, vector<64x1xf32>
    %52 = vector.broadcast %51 : vector<64x1xf32> to vector<64x256xf32>
    %53 = arith.addf %50, %52 : vector<64x256xf32>
    %cst_46 = arith.constant 0.000000e+00 : f32
    %54 = vector.broadcast %cst_46 : f32 to vector<64x256xf32>
    %55 = arith.maximumf %53, %54 : vector<64x256xf32>
    %56 = arith.truncf %55 : vector<64x256xf32> to vector<64x256xbf16>
    %c640 = arith.constant 640 : index
    %c0_47 = arith.constant 0 : index
    %57 = vector.load %arg19[%c640, %c0_47] : memref<704x256xbf16, #tpu.memory_space<vmem>>, vector<64x256xbf16>
    tpu.vector_store %arg19[%c640, %c0_47], %56 {strides = array<i32>} : memref<704x256xbf16, #tpu.memory_space<vmem>>, vector<64x256xbf16>,
    %c0_48 = arith.constant 0 : index
    %c0_49 = arith.constant 0 : index
    %58 = vector.load %arg19[%c0_48, %c0_49] : memref<704x256xbf16, #tpu.memory_space<vmem>>, vector<704x256xbf16>
    %c0_50 = arith.constant 0 : index
    %c0_51 = arith.constant 0 : index
    %59 = vector.load %arg15[%c0_50, %c0_51] : memref<512x704xbf16, #tpu.memory_space<vmem>>, vector<512x704xbf16>
    %cst_52 = arith.constant dense<0.000000e+00> : vector<512x256xf32>
    %60 = tpu.matmul %59, %58, %cst_52 {dimension_numbers = #tpu.dot_dimension_numbers<[1], [0], [0], [1], [0, 0, 1, 1], [], []>} : vector<512x704xbf16>, vector<704x256xbf16>, vector<512x256xf32> -> vector<512x256xf32>
    %c0_53 = arith.constant 0 : index
    %c0_54 = arith.constant 0 : index
    %61 = vector.load %arg16[%c0_53, %c0_54] : memref<512x1xf32, #tpu.memory_space<vmem>>, vector<512x1xf32>
    %62 = vector.broadcast %61 : vector<512x1xf32> to vector<512x256xf32>
    %63 = arith.addf %60, %62 : vector<512x256xf32>
    %cst_55 = arith.constant 0.000000e+00 : f32
    %64 = vector.broadcast %cst_55 : f32 to vector<512x256xf32>
    %65 = arith.maximumf %63, %64 : vector<512x256xf32>
    %66 = arith.truncf %65 : vector<512x256xf32> to vector<512x256xbf16>
    %c0_56 = arith.constant 0 : index
    %c0_57 = arith.constant 0 : index
    %c0_58 = arith.constant 0 : index
    %67 = vector.load %arg17[%c0_56, %c0_57, %c0_58] : memref<1x512x256xbf16, #tpu.memory_space<vmem>>, vector<1x512x256xbf16>
    %68 = vector.shape_cast %67 : vector<1x512x256xbf16> to vector<512x256xbf16>
    %69 = vector.shape_cast %66 : vector<512x256xbf16> to vector<1x512x256xbf16>
    tpu.vector_store %arg17[%c0_56, %c0_57, %c0_58], %69 {strides = array<i32>} : memref<1x512x256xbf16, #tpu.memory_space<vmem>>, vector<1x512x256xbf16>,
    %cst_59 = arith.constant dense<0.000000e+00> : vector<512xf32>
    %70 = vector.multi_reduction <add>, %65, %cst_59 [1] : vector<512x256xf32> to vector<512xf32>
    %71 = vector.shape_cast %70 : vector<512xf32> to vector<512x1xf32>
    %c0_60 = arith.constant 0 : index
    %c0_61 = arith.constant 0 : index
    %c0_62 = arith.constant 0 : index
    %c0_63 = arith.constant 0 : index
    %72 = vector.load %arg18[%c0_60, %c0_61, %c0_62, %c0_63] : memref<1x1x512x1xf32, #tpu.memory_space<vmem>>, vector<1x1x512x1xf32>
    %73 = vector.shape_cast %72 : vector<1x1x512x1xf32> to vector<512x1xf32>
    %74 = vector.shape_cast %71 : vector<512x1xf32> to vector<1x1x512x1xf32>
    tpu.vector_store %arg18[%c0_60, %c0_61, %c0_62, %c0_63], %74 {strides = array<i32>} : memref<1x1x512x1xf32, #tpu.memory_space<vmem>>, vector<1x1x512x1xf32>,
    return
  }
  func.func @transform_0(%arg0: i32, %arg1: i32) -> (i32, i32, i32) {
    %c0_i32 = arith.constant 0 : i32
    %c0_i32_0 = arith.constant 0 : i32
    return %arg0, %c0_i32, %arg1 : i32, i32, i32
  }
  func.func @transform_1(%arg0: i32, %arg1: i32) -> (i32, i32) {
    %c0_i32 = arith.constant 0 : i32
    %c0_i32_0 = arith.constant 0 : i32
    %c0_i32_1 = arith.constant 0 : i32
    return %c0_i32, %c0_i32_0 : i32, i32
  }
  func.func @transform_2(%arg0: i32, %arg1: i32) -> (i32, i32) {
    %c0_i32 = arith.constant 0 : i32
    %c0_i32_0 = arith.constant 0 : i32
    %c0_i32_1 = arith.constant 0 : i32
    return %c0_i32, %c0_i32_0 : i32, i32
  }
  func.func @transform_3(%arg0: i32, %arg1: i32) -> (i32, i32) {
    %c0_i32 = arith.constant 0 : i32
    %c0_i32_0 = arith.constant 0 : i32
    %c0_i32_1 = arith.constant 0 : i32
    return %c0_i32, %c0_i32_0 : i32, i32
  }
  func.func @transform_4(%arg0: i32, %arg1: i32) -> (i32, i32) {
    %c0_i32 = arith.constant 0 : i32
    %c0_i32_0 = arith.constant 0 : i32
    %c0_i32_1 = arith.constant 0 : i32
    return %c0_i32, %c0_i32_0 : i32, i32
  }
  func.func @transform_5(%arg0: i32, %arg1: i32) -> (i32, i32) {
    %c0_i32 = arith.constant 0 : i32
    %c0_i32_0 = arith.constant 0 : i32
    %c0_i32_1 = arith.constant 0 : i32
    return %c0_i32, %c0_i32_0 : i32, i32
  }
  func.func @transform_6(%arg0: i32, %arg1: i32) -> (i32, i32) {
    %c0_i32 = arith.constant 0 : i32
    %c0_i32_0 = arith.constant 0 : i32
    %c0_i32_1 = arith.constant 0 : i32
    return %c0_i32, %c0_i32_0 : i32, i32
  }
  func.func @transform_7(%arg0: i32, %arg1: i32) -> (i32, i32) {
    %c0_i32 = arith.constant 0 : i32
    %c0_i32_0 = arith.constant 0 : i32
    %c0_i32_1 = arith.constant 0 : i32
    return %c0_i32, %c0_i32_0 : i32, i32
  }
  func.func @transform_8(%arg0: i32, %arg1: i32) -> (i32, i32) {
    %c0_i32 = arith.constant 0 : i32
    %c0_i32_0 = arith.constant 0 : i32
    %c0_i32_1 = arith.constant 0 : i32
    return %c0_i32, %c0_i32_0 : i32, i32
  }
  func.func @transform_9(%arg0: i32, %arg1: i32) -> (i32, i32) {
    %c0_i32 = arith.constant 0 : i32
    %c0_i32_0 = arith.constant 0 : i32
    %c0_i32_1 = arith.constant 0 : i32
    return %c0_i32, %c0_i32_0 : i32, i32
  }
  func.func @transform_10(%arg0: i32, %arg1: i32) -> (i32, i32) {
    %c0_i32 = arith.constant 0 : i32
    %c0_i32_0 = arith.constant 0 : i32
    %c0_i32_1 = arith.constant 0 : i32
    return %c0_i32, %c0_i32_0 : i32, i32
  }
  func.func @transform_11(%arg0: i32, %arg1: i32) -> (i32, i32) {
    %c0_i32 = arith.constant 0 : i32
    %c0_i32_0 = arith.constant 0 : i32
    %c0_i32_1 = arith.constant 0 : i32
    return %c0_i32, %c0_i32_0 : i32, i32
  }
  func.func @transform_12(%arg0: i32, %arg1: i32) -> (i32, i32) {
    %c0_i32 = arith.constant 0 : i32
    %c0_i32_0 = arith.constant 0 : i32
    %c0_i32_1 = arith.constant 0 : i32
    return %c0_i32, %c0_i32_0 : i32, i32
  }
  func.func @transform_13(%arg0: i32, %arg1: i32) -> (i32, i32) {
    %c0_i32 = arith.constant 0 : i32
    %c0_i32_0 = arith.constant 0 : i32
    %c0_i32_1 = arith.constant 0 : i32
    return %c0_i32, %c0_i32_0 : i32, i32
  }
  func.func @transform_14(%arg0: i32, %arg1: i32) -> (i32, i32) {
    %c0_i32 = arith.constant 0 : i32
    %c0_i32_0 = arith.constant 0 : i32
    %c0_i32_1 = arith.constant 0 : i32
    return %c0_i32, %c0_i32_0 : i32, i32
  }
  func.func @transform_15(%arg0: i32, %arg1: i32) -> (i32, i32, i32) {
    %c0_i32 = arith.constant 0 : i32
    %c0_i32_0 = arith.constant 0 : i32
    return %arg0, %c0_i32, %arg1 : i32, i32, i32
  }
  func.func @transform_16(%arg0: i32, %arg1: i32) -> (i32, i32, i32, i32) {
    %c0_i32 = arith.constant 0 : i32
    %c0_i32_0 = arith.constant 0 : i32
    %c0_i32_1 = arith.constant 0 : i32
    return %arg0, %arg1, %c0_i32, %c0_i32_0 : i32, i32, i32, i32
  }
}

module attributes {stable_mosaic.version = 11 : i64} {
  func.func @gate_kernel(%arg0: i32, %arg1: i32, %arg2: memref<1x512x256xbf16, #tpu.memory_space<vmem>>, %arg3: memref<1x512x1xf32, #tpu.memory_space<vmem>>, %arg4: memref<1x512x256xf32, #tpu.memory_space<vmem>>) attributes {dimension_semantics = [#tpu.dimension_semantics<parallel>, #tpu.dimension_semantics<parallel>], iteration_bounds = array<i64: 2, 1>, scalar_prefetch = 0 : i64, scratch_operands = 0 : i64, tpu.core_type = #tpu.core_type<tc>, window_params = [{transform_indices = @transform_0, window_bounds = array<i64: 1, 512, 256>}, {transform_indices = @transform_1, window_bounds = array<i64: 1, 512, 1>}, {transform_indices = @transform_2, window_bounds = array<i64: 1, 512, 256>}]} {
    %c0 = arith.constant 0 : index
    %c0_0 = arith.constant 0 : index
    %c0_1 = arith.constant 0 : index
    %0 = vector.load %arg2[%c0, %c0_0, %c0_1] : memref<1x512x256xbf16, #tpu.memory_space<vmem>>, vector<1x512x256xbf16>
    %1 = vector.shape_cast %0 : vector<1x512x256xbf16> to vector<512x256xbf16>
    %2 = arith.extf %1 : vector<512x256xbf16> to vector<512x256xf32>
    %c0_2 = arith.constant 0 : index
    %c0_3 = arith.constant 0 : index
    %c0_4 = arith.constant 0 : index
    %3 = vector.load %arg3[%c0_2, %c0_3, %c0_4] : memref<1x512x1xf32, #tpu.memory_space<vmem>>, vector<1x512x1xf32>
    %4 = vector.shape_cast %3 : vector<1x512x1xf32> to vector<512x1xf32>
    %5 = vector.broadcast %4 : vector<512x1xf32> to vector<512x256xf32>
    %6 = arith.mulf %2, %5 : vector<512x256xf32>
    %c0_5 = arith.constant 0 : index
    %c0_6 = arith.constant 0 : index
    %c0_7 = arith.constant 0 : index
    %7 = vector.load %arg4[%c0_5, %c0_6, %c0_7] : memref<1x512x256xf32, #tpu.memory_space<vmem>>, vector<1x512x256xf32>
    %8 = vector.shape_cast %7 : vector<1x512x256xf32> to vector<512x256xf32>
    %9 = vector.shape_cast %6 : vector<512x256xf32> to vector<1x512x256xf32>
    tpu.vector_store %arg4[%c0_5, %c0_6, %c0_7], %9 {strides = array<i32>} : memref<1x512x256xf32, #tpu.memory_space<vmem>>, vector<1x512x256xf32>,
    return
  }
  func.func @transform_0(%arg0: i32, %arg1: i32) -> (i32, i32, i32) {
    %c0_i32 = arith.constant 0 : i32
    %c0_i32_0 = arith.constant 0 : i32
    return %arg0, %c0_i32, %arg1 : i32, i32, i32
  }
  func.func @transform_1(%arg0: i32, %arg1: i32) -> (i32, i32, i32) {
    %c0_i32 = arith.constant 0 : i32
    %c0_i32_0 = arith.constant 0 : i32
    %c0_i32_1 = arith.constant 0 : i32
    return %arg0, %c0_i32, %c0_i32_0 : i32, i32, i32
  }
  func.func @transform_2(%arg0: i32, %arg1: i32) -> (i32, i32, i32) {
    %c0_i32 = arith.constant 0 : i32
    %c0_i32_0 = arith.constant 0 : i32
    return %arg0, %c0_i32, %arg1 : i32, i32, i32
  }
}

</mosaic_0001>

<llo_original>
// kernel: spatial_block.3
$region0: #{spatial_block.3}
  #allocation0 [shape = 'u32[]', space=smem, size = 0x4, offset = 0x4, fixed_abs, tag = 'smem constant byte address 0x4 - core index']
  #allocation1 [shape = 'u32[144,128]{1,0:T(1,128)}', space=vmem, size = 0x12000, scoped, tag = 'internal scratch']
  %s0 = inlined_call_operand.vmem [shape: bf16[2,512,256], index: 0, kind: input, shape index: {}]
  %s1 = inlined_call_operand.vmem [shape: f32[2,512,1], index: 1, kind: input, shape index: {}]
  %s2 = inlined_call_operand.vmem [shape: f32[2,512,256], index: 2, kind: output, shape index: {}]
  %s3 = sld [smem:[#allocation0]]
  $region41: #{spatial_block.3} parent=0
    _
  %s5 = ssub.s32 1, %s3
  %s6 = scalar_select 0, %s5, %s3
  loop: start=0, step=1, limit=4
  $region2: #{spatial_block.3} parent=0 // loop_pre_header
    _
  $region3: #{spatial_block.3} parent=0 // loop_header
    %s8 = sphi 0, %s12
    %p9 = scmp.ge.s32.totalorder %s8, 4
    %s15 = sphi 0, %s27
    %s16 = sphi 0, %s23
    %s17 = sphi 0, %s15
    %s18 = sphi 0, %s16
    %s19 = sphi 0, %s17
    %s20 = sphi 0, %s18
    %s32 = sphi 0, %s34
    %s35 = sphi 0, %s32
    %s36 = sphi 0, %s35
    %s52 = sphi 0, %s36
    %s58 = sphi 0, %s60
    %s61 = sphi 0, %s58
    %s62 = sphi 0, %s61
    %s78 = sphi 0, %s62
    %s86 = sphi 0, %s88
    %s89 = sphi 0, %s86
    %s90 = sphi 0, %s89
    %s106 = sphi 0, %s90
  $region4: #{spatial_block.3} parent=0 // loop_header_branch
    %11 = sbr.rel (%p9) target = $region8
  $region5: #{spatial_block.3} parent=0 // loop_body
    %s13 = ssub.s32 %s8, 1
    %s14 = ssub.s32 %s8, 2
    %s21 = sadd.s32 1, %s16
    %p22 = scmp.ge.s32.totalorder %s21, 1
    %s23 = scalar_select %p22, 0, %s21
    %s24 = sadd.s32 1, %s15
    %s25 = scalar_select %p22, %s24, %s15
    %p26 = scmp.ge.s32.totalorder %s25, 2
    %s27 = scalar_select %p26, 0, %s25
    %s28 = ssub.s32 %s15, %s27
    %s29 = ssub.s32 %s16, %s23
    %s30 = sor.u32 %s28, %s29
    %p31 = scmp.eq.s32.totalorder %s30, 0
    %s33 = sadd.s32 %s32, 1
    %s34 = scalar_select %p31, %s32, %s33
    %p37 = pneg %p31
    %p38 = scmp.eq.s32.totalorder %s8, 1
    %p39 = por %p37, %p38
    %p40 = scmp.ne.s32.totalorder %s32, %s35
    %p41 = scmp.eq.s32.totalorder %s8, 0
    %p42 = por %p40, %p41
    %p43 = scmp.ne.s32.totalorder %s32, %s35
    %p44 = scmp.eq.s32.totalorder %s13, 1
    %p45 = por %p43, %p44
    %p46 = scmp.ne.s32.totalorder %s35, %s36
    %p47 = scmp.eq.s32.totalorder %s13, 0
    %p48 = por %p46, %p47
    %p49 = scmp.ne.s32.totalorder %s35, %s36
    %p50 = scmp.eq.s32.totalorder %s14, 1
    %p51 = por %p49, %p50
    %p53 = scmp.ne.s32.totalorder %s36, %s52
    %p54 = scmp.eq.s32.totalorder %s14, 0
    %p55 = por %p53, %p54
    %s56 = ssub.s32 %s15, %s27
    %p57 = scmp.eq.s32.totalorder %s56, 0
    %s59 = sadd.s32 %s58, 1
    %s60 = scalar_select %p57, %s58, %s59
    %p63 = pneg %p57
    %p64 = scmp.eq.s32.totalorder %s8, 1
    %p65 = por %p63, %p64
    %p66 = scmp.ne.s32.totalorder %s58, %s61
    %p67 = scmp.eq.s32.totalorder %s8, 0
    %p68 = por %p66, %p67
    %p69 = scmp.ne.s32.totalorder %s58, %s61
    %p70 = scmp.eq.s32.totalorder %s13, 1
    %p71 = por %p69, %p70
    %p72 = scmp.ne.s32.totalorder %s61, %s62
    %p73 = scmp.eq.s32.totalorder %s13, 0
    %p74 = por %p72, %p73
    %p75 = scmp.ne.s32.totalorder %s61, %s62
    %p76 = scmp.eq.s32.totalorder %s14, 1
    %p77 = por %p75, %p76
    %p79 = scmp.ne.s32.totalorder %s62, %s78
    %p80 = scmp.eq.s32.totalorder %s14, 0
    %p81 = por %p79, %p80
    %s82 = ssub.s32 %s15, %s27
    %s83 = ssub.s32 %s16, %s23
    %s84 = sor.u32 %s82, %s83
    %p85 = scmp.eq.s32.totalorder %s84, 0
    %s87 = sadd.s32 %s86, 1
    %s88 = scalar_select %p85, %s86, %s87
    %p91 = pneg %p85
    %p92 = scmp.eq.s32.totalorder %s8, 1
    %p93 = por %p91, %p92
    %p94 = scmp.ne.s32.totalorder %s86, %s89
    %p95 = scmp.eq.s32.totalorder %s8, 0
    %p96 = por %p94, %p95
    %p97 = scmp.ne.s32.totalorder %s86, %s89
    %p98 = scmp.eq.s32.totalorder %s13, 1
    %p99 = por %p97, %p98
    %p100 = scmp.ne.s32.totalorder %s89, %s90
    %p101 = scmp.eq.s32.totalorder %s13, 0
    %p102 = por %p100, %p101
    %p103 = scmp.ne.s32.totalorder %s89, %s90
    %p104 = scmp.eq.s32.totalorder %s14, 1
    %p105 = por %p103, %p104
    %p107 = scmp.ne.s32.totalorder %s90, %s106
    %p108 = scmp.eq.s32.totalorder %s14, 0
    %p109 = por %p107, %p108
    %p110 = scmp.le.s32.totalorder 1, %s8
    %p111 = scmp.lt.s32.totalorder %s8, 3
    %p112 = pnand %p110, %p111
    %p113 = pneg %p112
    // Predicated region
    $region9: #{spatial_block.3} parent=5 // pred_check
      _
    $region10: #{spatial_block.3} parent=5 // pred_check_branch
      %115 = sbr.rel (%p112) target = $region12
    $region11: #{spatial_block.3} parent=5 // pred_region
      %s116 = ssub.s32 %s8, 1
    $region12: #{spatial_block.3} parent=5 // pred_fallthru
      _
    %p117 = scmp.lt.s32.totalorder %s8, 2
    // Predicated region
    $region13: #{spatial_block.3} parent=5 // pred_check
      %p118 = pneg %p117
    $region14: #{spatial_block.3} parent=5 // pred_check_branch
      %120 = sbr.rel (%p118) target = $region16
    $region15: #{spatial_block.3} parent=5 // pred_region
      // Predicated region
      $region17: #{spatial_block.3} parent=15 // pred_check
        %p121 = pneg %p42
      $region18: #{spatial_block.3} parent=15 // pred_check_branch
        %123 = sbr.rel (%p121) target = $region20
      $region19: #{spatial_block.3} parent=15 // pred_region
        %s124 = smul.u32 2, %s16
        %p125 = scmp.lt.s32.totalorder %s15, 1
        %s126 = scalar_select %p125, %s15, 1
        %p127 = scmp.lt.s32.totalorder %s124, 1
        %s128 = scalar_select %p127, %s124, 1
        %s129 = smul.addr %s126, 128
        %s130 = sadd.s32 %s128, %s129
        %s131 = smul.addr %s130, 4
        %s132 = scalar_lea.vmem %s0, %s131
        %s133 = smul.u32 2, %s16
      $region20: #{spatial_block.3} parent=15 // pred_fallthru
        _
      // Predicated region
      $region21: #{spatial_block.3} parent=15 // pred_check
        %p134 = pneg %p68
      $region22: #{spatial_block.3} parent=15 // pred_check_branch
        %136 = sbr.rel (%p134) target = $region24
      $region23: #{spatial_block.3} parent=15 // pred_region
        %p137 = scmp.lt.s32.totalorder %s15, 1
        %s138 = scalar_select %p137, %s15, 1
        %s139 = smul.addr %s138, 64
        %s140 = smul.addr %s139, 8
        %s141 = scalar_lea.vmem %s1, %s140
      $region24: #{spatial_block.3} parent=15 // pred_fallthru
        _
    $region16: #{spatial_block.3} parent=5 // pred_fallthru
      _
    %p142 = scmp.le.s32.totalorder 1, %s8
    %p143 = scmp.lt.s32.totalorder %s8, 3
    %p144 = pnand %p142, %p143
    %p145 = pneg %p144
    // Predicated region
    $region25: #{spatial_block.3} parent=5 // pred_check
      _
    $region26: #{spatial_block.3} parent=5 // pred_check_branch
      %147 = sbr.rel (%p144) target = $region28
    $region27: #{spatial_block.3} parent=5 // pred_region
      %s148 = ssub.s32 %s8, 1
      %s149 = smul.u32 2, %s18
      %p150 = scmp.lt.s32.totalorder %s17, 1
      %s151 = scalar_select %p150, %s17, 1
      %p152 = scmp.lt.s32.totalorder %s149, 1
      %s153 = scalar_select %p152, %s149, 1
      %s154 = smul.addr %s151, 128
      %s155 = sadd.s32 %s153, %s154
      %s156 = smul.addr %s155, 4
      %s157 = scalar_lea.vmem %s0, %s156
      %p158 = pneg %p48
      %p159 = pneg %p45
      %p160 = scmp.lt.s32.totalorder %s17, 1
      %s161 = scalar_select %p160, %s17, 1
      %s162 = smul.addr %s161, 64
      %s163 = smul.addr %s162, 8
      %s164 = scalar_lea.vmem %s1, %s163
      %p165 = pneg %p74
      %p166 = pneg %p71
      %p167 = pneg %p102
      %p168 = pneg %p99
      %s169 = smul.u32 2, %s18
      %p170 = scmp.lt.s32.totalorder %s17, 1
      %s171 = scalar_select %p170, %s17, 1
      %p172 = scmp.lt.s32.totalorder %s169, 1
      %s173 = scalar_select %p172, %s169, 1
      %s174 = smul.addr %s171, 128
      %s175 = sadd.s32 %s173, %s174
      %s176 = smul.addr %s175, 8
      %s177 = scalar_lea.vmem %s2, %s176
      %s178 = smul.u32 2, %s18
      %p179 = scmp.lt.s32.totalorder %s17, 1
      %s180 = scalar_select %p179, %s17, 1
      %p181 = scmp.lt.s32.totalorder %s178, 1
      %s182 = scalar_select %p181, %s178, 1
      %s183 = smul.addr %s180, 128
      %s184 = sadd.s32 %s182, %s183
      %s185 = smul.addr %s184, 4
      %s186 = scalar_lea.vmem %s0, %s185
      %s187 = smul.u32 2, %s18
      %p188 = scmp.lt.s32.totalorder %s17, 1
      %s189 = scalar_select %p188, %s17, 1
      %s190 = smul.addr %s189, 64
      %s191 = smul.addr %s190, 8
      %s192 = scalar_lea.vmem %s1, %s191
      %s193 = smul.u32 2, %s18
      %p194 = scmp.lt.s32.totalorder %s17, 1
      %s195 = scalar_select %p194, %s17, 1
      %p196 = scmp.lt.s32.totalorder %s193, 1
      %s197 = scalar_select %p196, %s193, 1
      %s198 = smul.addr %s195, 128
      %s199 = sadd.s32 %s197, %s198
      %s200 = smul.addr %s199, 8
      %s201 = scalar_lea.vmem %s2, %s200
      %s202 = smul.u32 2, %s18
      %v203 = vld [vmem:[%s186] sm:$0xff]
      %v204 = vld [vmem:[%s186 + $0x8] sm:$0xff]
      %v205 = vld [vmem:[%s186 + $0x10] sm:$0xff]
      %v206 = vld [vmem:[%s186 + $0x18] sm:$0xff]
      %v207 = vld [vmem:[%s186 + $0x20] sm:$0xff]
      %v208 = vld [vmem:[%s186 + $0x28] sm:$0xff]
      %v209 = vld [vmem:[%s186 + $0x30] sm:$0xff]
      %v210 = vld [vmem:[%s186 + $0x38] sm:$0xff]
      %v211 = vld [vmem:[%s186 + $0x40] sm:$0xff]
      %v212 = vld [vmem:[%s186 + $0x48] sm:$0xff]
      %v213 = vld [vmem:[%s186 + $0x50] sm:$0xff]
      %v214 = vld [vmem:[%s186 + $0x58] sm:$0xff]
      %v215 = vld [vmem:[%s186 + $0x60] sm:$0xff]
      %v216 = vld [vmem:[%s186 + $0x68] sm:$0xff]
      %v217 = vld [vmem:[%s186 + $0x70] sm:$0xff]
      %v218 = vld [vmem:[%s186 + $0x78] sm:$0xff]
      %v219 = vld [vmem:[%s186 + $0x80] sm:$0xff]
      %v220 = vld [vmem:[%s186 + $0x88] sm:$0xff]
      %v221 = vld [vmem:[%s186 + $0x90] sm:$0xff]
      %v222 = vld [vmem:[%s186 + $0x98] sm:$0xff]
      %v223 = vld [vmem:[%s186 + $0xa0] sm:$0xff]
      %v224 = vld [vmem:[%s186 + $0xa8] sm:$0xff]
      %v225 = vld [vmem:[%s186 + $0xb0] sm:$0xff]
      %v226 = vld [vmem:[%s186 + $0xb8] sm:$0xff]
      %v227 = vld [vmem:[%s186 + $0xc0] sm:$0xff]
      %v228 = vld [vmem:[%s186 + $0xc8] sm:$0xff]
      %v229 = vld [vmem:[%s186 + $0xd0] sm:$0xff]
      %v230 = vld [vmem:[%s186 + $0xd8] sm:$0xff]
      %v231 = vld [vmem:[%s186 + $0xe0] sm:$0xff]
      %v232 = vld [vmem:[%s186 + $0xe8] sm:$0xff]
      %v233 = vld [vmem:[%s186 + $0xf0] sm:$0xff]
      %v234 = vld [vmem:[%s186 + $0xf8] sm:$0xff]
      %v235 = vld [vmem:[%s186 + $0x100] sm:$0xff]
      %v236 = vld [vmem:[%s186 + $0x108] sm:$0xff]
      %v237 = vld [vmem:[%s186 + $0x110] sm:$0xff]
      %v238 = vld [vmem:[%s186 + $0x118] sm:$0xff]
      %v239 = vld [vmem:[%s186 + $0x120] sm:$0xff]
      %v240 = vld [vmem:[%s186 + $0x128] sm:$0xff]
      %v241 = vld [vmem:[%s186 + $0x130] sm:$0xff]
      %v242 = vld [vmem:[%s186 + $0x138] sm:$0xff]
      %v243 = vld [vmem:[%s186 + $0x140] sm:$0xff]
      %v244 = vld [vmem:[%s186 + $0x148] sm:$0xff]
      %v245 = vld [vmem:[%s186 + $0x150] sm:$0xff]
      %v246 = vld [vmem:[%s186 + $0x158] sm:$0xff]
      %v247 = vld [vmem:[%s186 + $0x160] sm:$0xff]
      %v248 = vld [vmem:[%s186 + $0x168] sm:$0xff]
      %v249 = vld [vmem:[%s186 + $0x170] sm:$0xff]
      %v250 = vld [vmem:[%s186 + $0x178] sm:$0xff]
      %v251 = vld [vmem:[%s186 + $0x180] sm:$0xff]
      %v252 = vld [vmem:[%s186 + $0x188] sm:$0xff]
      %v253 = vld [vmem:[%s186 + $0x190] sm:$0xff]
      %v254 = vld [vmem:[%s186 + $0x198] sm:$0xff]
      %v255 = vld [vmem:[%s186 + $0x1a0] sm:$0xff]
      %v256 = vld [vmem:[%s186 + $0x1a8] sm:$0xff]
      %v257 = vld [vmem:[%s186 + $0x1b0] sm:$0xff]
      %v258 = vld [vmem:[%s186 + $0x1b8] sm:$0xff]
      %v259 = vld [vmem:[%s186 + $0x1c0] sm:$0xff]
      %v260 = vld [vmem:[%s186 + $0x1c8] sm:$0xff]
      %v261 = vld [vmem:[%s186 + $0x1d0] sm:$0xff]
      %v262 = vld [vmem:[%s186 + $0x1d8] sm:$0xff]
      %v263 = vld [vmem:[%s186 + $0x1e0] sm:$0xff]
      %v264 = vld [vmem:[%s186 + $0x1e8] sm:$0xff]
      %v265 = vld [vmem:[%s186 + $0x1f0] sm:$0xff]
      %v266 = vld [vmem:[%s186 + $0x1f8] sm:$0xff]
      %v267 = vunpack.c.l.bf16 %v203
      %v268 = vunpack.c.h.bf16 %v203
      %v269 = vunpack.c.l.bf16 %v204
      %v270 = vunpack.c.h.bf16 %v204
      %v271 = vunpack.c.l.bf16 %v205
      %v272 = vunpack.c.h.bf16 %v205
      %v273 = vunpack.c.l.bf16 %v206
      %v274 = vunpack.c.h.bf16 %v206
      %v275 = vunpack.c.l.bf16 %v207
      %v276 = vunpack.c.h.bf16 %v207
      %v277 = vunpack.c.l.bf16 %v208
      %v278 = vunpack.c.h.bf16 %v208
      %v279 = vunpack.c.l.bf16 %v209
      %v280 = vunpack.c.h.bf16 %v209
      %v281 = vunpack.c.l.bf16 %v210
      %v282 = vunpack.c.h.bf16 %v210
      %v283 = vunpack.c.l.bf16 %v211
      %v284 = vunpack.c.h.bf16 %v211
      %v285 = vunpack.c.l.bf16 %v212
      %v286 = vunpack.c.h.bf16 %v212
      %v287 = vunpack.c.l.bf16 %v213
      %v288 = vunpack.c.h.bf16 %v213
      %v289 = vunpack.c.l.bf16 %v214
      %v290 = vunpack.c.h.bf16 %v214
      %v291 = vunpack.c.l.bf16 %v215
      %v292 = vunpack.c.h.bf16 %v215
      %v293 = vunpack.c.l.bf16 %v216
      %v294 = vunpack.c.h.bf16 %v216
      %v295 = vunpack.c.l.bf16 %v217
      %v296 = vunpack.c.h.bf16 %v217
      %v297 = vunpack.c.l.bf16 %v218
      %v298 = vunpack.c.h.bf16 %v218
      %v299 = vunpack.c.l.bf16 %v219
      %v300 = vunpack.c.h.bf16 %v219
      %v301 = vunpack.c.l.bf16 %v220
      %v302 = vunpack.c.h.bf16 %v220
      %v303 = vunpack.c.l.bf16 %v221
      %v304 = vunpack.c.h.bf16 %v221
      %v305 = vunpack.c.l.bf16 %v222
      %v306 = vunpack.c.h.bf16 %v222
      %v307 = vunpack.c.l.bf16 %v223
      %v308 = vunpack.c.h.bf16 %v223
      %v309 = vunpack.c.l.bf16 %v224
      %v310 = vunpack.c.h.bf16 %v224
      %v311 = vunpack.c.l.bf16 %v225
      %v312 = vunpack.c.h.bf16 %v225
      %v313 = vunpack.c.l.bf16 %v226
      %v314 = vunpack.c.h.bf16 %v226
      %v315 = vunpack.c.l.bf16 %v227
      %v316 = vunpack.c.h.bf16 %v227
      %v317 = vunpack.c.l.bf16 %v228
      %v318 = vunpack.c.h.bf16 %v228
      %v319 = vunpack.c.l.bf16 %v229
      %v320 = vunpack.c.h.bf16 %v229
      %v321 = vunpack.c.l.bf16 %v230
      %v322 = vunpack.c.h.bf16 %v230
      %v323 = vunpack.c.l.bf16 %v231
      %v324 = vunpack.c.h.bf16 %v231
      %v325 = vunpack.c.l.bf16 %v232
      %v326 = vunpack.c.h.bf16 %v232
      %v327 = vunpack.c.l.bf16 %v233
      %v328 = vunpack.c.h.bf16 %v233
      %v329 = vunpack.c.l.bf16 %v234
      %v330 = vunpack.c.h.bf16 %v234
      %v331 = vunpack.c.l.bf16 %v235
      %v332 = vunpack.c.h.bf16 %v235
      %v333 = vunpack.c.l.bf16 %v236
      %v334 = vunpack.c.h.bf16 %v236
      %v335 = vunpack.c.l.bf16 %v237
      %v336 = vunpack.c.h.bf16 %v237
      %v337 = vunpack.c.l.bf16 %v238
      %v338 = vunpack.c.h.bf16 %v238
      %v339 = vunpack.c.l.bf16 %v239
      %v340 = vunpack.c.h.bf16 %v239
      %v341 = vunpack.c.l.bf16 %v240
      %v342 = vunpack.c.h.bf16 %v240
      %v343 = vunpack.c.l.bf16 %v241
      %v344 = vunpack.c.h.bf16 %v241
      %v345 = vunpack.c.l.bf16 %v242
      %v346 = vunpack.c.h.bf16 %v242
      %v347 = vunpack.c.l.bf16 %v243
      %v348 = vunpack.c.h.bf16 %v243
      %v349 = vunpack.c.l.bf16 %v244
      %v350 = vunpack.c.h.bf16 %v244
      %v351 = vunpack.c.l.bf16 %v245
      %v352 = vunpack.c.h.bf16 %v245
      %v353 = vunpack.c.l.bf16 %v246
      %v354 = vunpack.c.h.bf16 %v246
      %v355 = vunpack.c.l.bf16 %v247
      %v356 = vunpack.c.h.bf16 %v247
      %v357 = vunpack.c.l.bf16 %v248
      %v358 = vunpack.c.h.bf16 %v248
      %v359 = vunpack.c.l.bf16 %v249
      %v360 = vunpack.c.h.bf16 %v249
      %v361 = vunpack.c.l.bf16 %v250
      %v362 = vunpack.c.h.bf16 %v250
      %v363 = vunpack.c.l.bf16 %v251
      %v364 = vunpack.c.h.bf16 %v251
      %v365 = vunpack.c.l.bf16 %v252
      %v366 = vunpack.c.h.bf16 %v252
      %v367 = vunpack.c.l.bf16 %v253
      %v368 = vunpack.c.h.bf16 %v253
      %v369 = vunpack.c.l.bf16 %v254
      %v370 = vunpack.c.h.bf16 %v254
      %v371 = vunpack.c.l.bf16 %v255
      %v372 = vunpack.c.h.bf16 %v255
      %v373 = vunpack.c.l.bf16 %v256
      %v374 = vunpack.c.h.bf16 %v256
      %v375 = vunpack.c.l.bf16 %v257
      %v376 = vunpack.c.h.bf16 %v257
      %v377 = vunpack.c.l.bf16 %v258
      %v378 = vunpack.c.h.bf16 %v258
      %v379 = vunpack.c.l.bf16 %v259
      %v380 = vunpack.c.h.bf16 %v259
      %v381 = vunpack.c.l.bf16 %v260
      %v382 = vunpack.c.h.bf16 %v260
      %v383 = vunpack.c.l.bf16 %v261
      %v384 = vunpack.c.h.bf16 %v261
      %v385 = vunpack.c.l.bf16 %v262
      %v386 = vunpack.c.h.bf16 %v262
      %v387 = vunpack.c.l.bf16 %v263
      %v388 = vunpack.c.h.bf16 %v263
      %v389 = vunpack.c.l.bf16 %v264
      %v390 = vunpack.c.h.bf16 %v264
      %v391 = vunpack.c.l.bf16 %v265
      %v392 = vunpack.c.h.bf16 %v265
      %v393 = vunpack.c.l.bf16 %v266
      %v394 = vunpack.c.h.bf16 %v266
      %v395 = vld [vmem:[%s192] sm:$0xff]
      %v396 = vld [vmem:[%s192 + $0x8] sm:$0xff]
      %v397 = vld [vmem:[%s192 + $0x10] sm:$0xff]
      %v398 = vld [vmem:[%s192 + $0x18] sm:$0xff]
      %v399 = vld [vmem:[%s192 + $0x20] sm:$0xff]
      %v400 = vld [vmem:[%s192 + $0x28] sm:$0xff]
      %v401 = vld [vmem:[%s192 + $0x30] sm:$0xff]
      %v402 = vld [vmem:[%s192 + $0x38] sm:$0xff]
      %v403 = vld [vmem:[%s192 + $0x40] sm:$0xff]
      %v404 = vld [vmem:[%s192 + $0x48] sm:$0xff]
      %v405 = vld [vmem:[%s192 + $0x50] sm:$0xff]
      %v406 = vld [vmem:[%s192 + $0x58] sm:$0xff]
      %v407 = vld [vmem:[%s192 + $0x60] sm:$0xff]
      %v408 = vld [vmem:[%s192 + $0x68] sm:$0xff]
      %v409 = vld [vmem:[%s192 + $0x70] sm:$0xff]
      %v410 = vld [vmem:[%s192 + $0x78] sm:$0xff]
      %v411 = vld [vmem:[%s192 + $0x80] sm:$0xff]
      %v412 = vld [vmem:[%s192 + $0x88] sm:$0xff]
      %v413 = vld [vmem:[%s192 + $0x90] sm:$0xff]
      %v414 = vld [vmem:[%s192 + $0x98] sm:$0xff]
      %v415 = vld [vmem:[%s192 + $0xa0] sm:$0xff]
      %v416 = vld [vmem:[%s192 + $0xa8] sm:$0xff]
      %v417 = vld [vmem:[%s192 + $0xb0] sm:$0xff]
      %v418 = vld [vmem:[%s192 + $0xb8] sm:$0xff]
      %v419 = vld [vmem:[%s192 + $0xc0] sm:$0xff]
      %v420 = vld [vmem:[%s192 + $0xc8] sm:$0xff]
      %v421 = vld [vmem:[%s192 + $0xd0] sm:$0xff]
      %v422 = vld [vmem:[%s192 + $0xd8] sm:$0xff]
      %v423 = vld [vmem:[%s192 + $0xe0] sm:$0xff]
      %v424 = vld [vmem:[%s192 + $0xe8] sm:$0xff]
      %v425 = vld [vmem:[%s192 + $0xf0] sm:$0xff]
      %v426 = vld [vmem:[%s192 + $0xf8] sm:$0xff]
      %v427 = vld [vmem:[%s192 + $0x100] sm:$0xff]
      %v428 = vld [vmem:[%s192 + $0x108] sm:$0xff]
      %v429 = vld [vmem:[%s192 + $0x110] sm:$0xff]
      %v430 = vld [vmem:[%s192 + $0x118] sm:$0xff]
      %v431 = vld [vmem:[%s192 + $0x120] sm:$0xff]
      %v432 = vld [vmem:[%s192 + $0x128] sm:$0xff]
      %v433 = vld [vmem:[%s192 + $0x130] sm:$0xff]
      %v434 = vld [vmem:[%s192 + $0x138] sm:$0xff]
      %v435 = vld [vmem:[%s192 + $0x140] sm:$0xff]
      %v436 = vld [vmem:[%s192 + $0x148] sm:$0xff]
      %v437 = vld [vmem:[%s192 + $0x150] sm:$0xff]
      %v438 = vld [vmem:[%s192 + $0x158] sm:$0xff]
      %v439 = vld [vmem:[%s192 + $0x160] sm:$0xff]
      %v440 = vld [vmem:[%s192 + $0x168] sm:$0xff]
      %v441 = vld [vmem:[%s192 + $0x170] sm:$0xff]
      %v442 = vld [vmem:[%s192 + $0x178] sm:$0xff]
      %v443 = vld [vmem:[%s192 + $0x180] sm:$0xff]
      %v444 = vld [vmem:[%s192 + $0x188] sm:$0xff]
      %v445 = vld [vmem:[%s192 + $0x190] sm:$0xff]
      %v446 = vld [vmem:[%s192 + $0x198] sm:$0xff]
      %v447 = vld [vmem:[%s192 + $0x1a0] sm:$0xff]
      %v448 = vld [vmem:[%s192 + $0x1a8] sm:$0xff]
      %v449 = vld [vmem:[%s192 + $0x1b0] sm:$0xff]
      %v450 = vld [vmem:[%s192 + $0x1b8] sm:$0xff]
      %v451 = vld [vmem:[%s192 + $0x1c0] sm:$0xff]
      %v452 = vld [vmem:[%s192 + $0x1c8] sm:$0xff]
      %v453 = vld [vmem:[%s192 + $0x1d0] sm:$0xff]
      %v454 = vld [vmem:[%s192 + $0x1d8] sm:$0xff]
      %v455 = vld [vmem:[%s192 + $0x1e0] sm:$0xff]
      %v456 = vld [vmem:[%s192 + $0x1e8] sm:$0xff]
      %v457 = vld [vmem:[%s192 + $0x1f0] sm:$0xff]
      %v458 = vld [vmem:[%s192 + $0x1f8] sm:$0xff]
      %460 = vset.pattern.permute.xlu0 0
      %461 = vperm.xlu0 %460, %v395
      %v462 = vpop.permute.xlu0 %461
      %465 = vset.pattern.permute.xlu0 0
      %466 = vperm.xlu0 %465, %v396
      %v467 = vpop.permute.xlu0 %466
      %470 = vset.pattern.permute.xlu0 0
      %471 = vperm.xlu0 %470, %v397
      %v472 = vpop.permute.xlu0 %471
      %475 = vset.pattern.permute.xlu0 0
      %476 = vperm.xlu0 %475, %v398
      %v477 = vpop.permute.xlu0 %476
      %480 = vset.pattern.permute.xlu0 0
      %481 = vperm.xlu0 %480, %v399
      %v482 = vpop.permute.xlu0 %481
      %485 = vset.pattern.permute.xlu0 0
      %486 = vperm.xlu0 %485, %v400
      %v487 = vpop.permute.xlu0 %486
      %490 = vset.pattern.permute.xlu0 0
      %491 = vperm.xlu0 %490, %v401
      %v492 = vpop.permute.xlu0 %491
      %495 = vset.pattern.permute.xlu0 0
      %496 = vperm.xlu0 %495, %v402
      %v497 = vpop.permute.xlu0 %496
      %500 = vset.pattern.permute.xlu0 0
      %501 = vperm.xlu0 %500, %v403
      %v502 = vpop.permute.xlu0 %501
      %505 = vset.pattern.permute.xlu0 0
      %506 = vperm.xlu0 %505, %v404
      %v507 = vpop.permute.xlu0 %506
      %510 = vset.pattern.permute.xlu0 0
      %511 = vperm.xlu0 %510, %v405
      %v512 = vpop.permute.xlu0 %511
      %515 = vset.pattern.permute.xlu0 0
      %516 = vperm.xlu0 %515, %v406
      %v517 = vpop.permute.xlu0 %516
      %520 = vset.pattern.permute.xlu0 0
      %521 = vperm.xlu0 %520, %v407
      %v522 = vpop.permute.xlu0 %521
      %525 = vset.pattern.permute.xlu0 0
      %526 = vperm.xlu0 %525, %v408
      %v527 = vpop.permute.xlu0 %526
      %530 = vset.pattern.permute.xlu0 0
      %531 = vperm.xlu0 %530, %v409
      %v532 = vpop.permute.xlu0 %531
      %535 = vset.pattern.permute.xlu0 0
      %536 = vperm.xlu0 %535, %v410
      %v537 = vpop.permute.xlu0 %536
      %540 = vset.pattern.permute.xlu0 0
      %541 = vperm.xlu0 %540, %v411
      %v542 = vpop.permute.xlu0 %541
      %545 = vset.pattern.permute.xlu0 0
      %546 = vperm.xlu0 %545, %v412
      %v547 = vpop.permute.xlu0 %546
      %550 = vset.pattern.permute.xlu0 0
      %551 = vperm.xlu0 %550, %v413
      %v552 = vpop.permute.xlu0 %551
      %555 = vset.pattern.permute.xlu0 0
      %556 = vperm.xlu0 %555, %v414
      %v557 = vpop.permute.xlu0 %556
      %560 = vset.pattern.permute.xlu0 0
      %561 = vperm.xlu0 %560, %v415
      %v562 = vpop.permute.xlu0 %561
      %565 = vset.pattern.permute.xlu0 0
      %566 = vperm.xlu0 %565, %v416
      %v567 = vpop.permute.xlu0 %566
      %570 = vset.pattern.permute.xlu0 0
      %571 = vperm.xlu0 %570, %v417
      %v572 = vpop.permute.xlu0 %571
      %575 = vset.pattern.permute.xlu0 0
      %576 = vperm.xlu0 %575, %v418
      %v577 = vpop.permute.xlu0 %576
      %580 = vset.pattern.permute.xlu0 0
      %581 = vperm.xlu0 %580, %v419
      %v582 = vpop.permute.xlu0 %581
      %585 = vset.pattern.permute.xlu0 0
      %586 = vperm.xlu0 %585, %v420
      %v587 = vpop.permute.xlu0 %586
      %590 = vset.pattern.permute.xlu0 0
      %591 = vperm.xlu0 %590, %v421
      %v592 = vpop.permute.xlu0 %591
      %595 = vset.pattern.permute.xlu0 0
      %596 = vperm.xlu0 %595, %v422
      %v597 = vpop.permute.xlu0 %596
      %600 = vset.pattern.permute.xlu0 0
      %601 = vperm.xlu0 %600, %v423
      %v602 = vpop.permute.xlu0 %601
      %605 = vset.pattern.permute.xlu0 0
      %606 = vperm.xlu0 %605, %v424
      %v607 = vpop.permute.xlu0 %606
      %610 = vset.pattern.permute.xlu0 0
      %611 = vperm.xlu0 %610, %v425
      %v612 = vpop.permute.xlu0 %611
      %615 = vset.pattern.permute.xlu0 0
      %616 = vperm.xlu0 %615, %v426
      %v617 = vpop.permute.xlu0 %616
      %620 = vset.pattern.permute.xlu0 0
      %621 = vperm.xlu0 %620, %v427
      %v622 = vpop.permute.xlu0 %621
      %625 = vset.pattern.permute.xlu0 0
      %626 = vperm.xlu0 %625, %v428
      %v627 = vpop.permute.xlu0 %626
      %630 = vset.pattern.permute.xlu0 0
      %631 = vperm.xlu0 %630, %v429
      %v632 = vpop.permute.xlu0 %631
      %635 = vset.pattern.permute.xlu0 0
      %636 = vperm.xlu0 %635, %v430
      %v637 = vpop.permute.xlu0 %636
      %640 = vset.pattern.permute.xlu0 0
      %641 = vperm.xlu0 %640, %v431
      %v642 = vpop.permute.xlu0 %641
      %645 = vset.pattern.permute.xlu0 0
      %646 = vperm.xlu0 %645, %v432
      %v647 = vpop.permute.xlu0 %646
      %650 = vset.pattern.permute.xlu0 0
      %651 = vperm.xlu0 %650, %v433
      %v652 = vpop.permute.xlu0 %651
      %655 = vset.pattern.permute.xlu0 0
      %656 = vperm.xlu0 %655, %v434
      %v657 = vpop.permute.xlu0 %656
      %660 = vset.pattern.permute.xlu0 0
      %661 = vperm.xlu0 %660, %v435
      %v662 = vpop.permute.xlu0 %661
      %665 = vset.pattern.permute.xlu0 0
      %666 = vperm.xlu0 %665, %v436
      %v667 = vpop.permute.xlu0 %666
      %670 = vset.pattern.permute.xlu0 0
      %671 = vperm.xlu0 %670, %v437
      %v672 = vpop.permute.xlu0 %671
      %675 = vset.pattern.permute.xlu0 0
      %676 = vperm.xlu0 %675, %v438
      %v677 = vpop.permute.xlu0 %676
      %680 = vset.pattern.permute.xlu0 0
      %681 = vperm.xlu0 %680, %v439
      %v682 = vpop.permute.xlu0 %681
      %685 = vset.pattern.permute.xlu0 0
      %686 = vperm.xlu0 %685, %v440
      %v687 = vpop.permute.xlu0 %686
      %690 = vset.pattern.permute.xlu0 0
      %691 = vperm.xlu0 %690, %v441
      %v692 = vpop.permute.xlu0 %691
      %695 = vset.pattern.permute.xlu0 0
      %696 = vperm.xlu0 %695, %v442
      %v697 = vpop.permute.xlu0 %696
      %700 = vset.pattern.permute.xlu0 0
      %701 = vperm.xlu0 %700, %v443
      %v702 = vpop.permute.xlu0 %701
      %705 = vset.pattern.permute.xlu0 0
      %706 = vperm.xlu0 %705, %v444
      %v707 = vpop.permute.xlu0 %706
      %710 = vset.pattern.permute.xlu0 0
      %711 = vperm.xlu0 %710, %v445
      %v712 = vpop.permute.xlu0 %711
      %715 = vset.pattern.permute.xlu0 0
      %716 = vperm.xlu0 %715, %v446
      %v717 = vpop.permute.xlu0 %716
      %720 = vset.pattern.permute.xlu0 0
      %721 = vperm.xlu0 %720, %v447
      %v722 = vpop.permute.xlu0 %721
      %725 = vset.pattern.permute.xlu0 0
      %726 = vperm.xlu0 %725, %v448
      %v727 = vpop.permute.xlu0 %726
      %730 = vset.pattern.permute.xlu0 0
      %731 = vperm.xlu0 %730, %v449
      %v732 = vpop.permute.xlu0 %731
      %735 = vset.pattern.permute.xlu0 0
      %736 = vperm.xlu0 %735, %v450
      %v737 = vpop.permute.xlu0 %736
      %740 = vset.pattern.permute.xlu0 0
      %741 = vperm.xlu0 %740, %v451
      %v742 = vpop.permute.xlu0 %741
      %745 = vset.pattern.permute.xlu0 0
      %746 = vperm.xlu0 %745, %v452
      %v747 = vpop.permute.xlu0 %746
      %750 = vset.pattern.permute.xlu0 0
      %751 = vperm.xlu0 %750, %v453
      %v752 = vpop.permute.xlu0 %751
      %755 = vset.pattern.permute.xlu0 0
      %756 = vperm.xlu0 %755, %v454
      %v757 = vpop.permute.xlu0 %756
      %760 = vset.pattern.permute.xlu0 0
      %761 = vperm.xlu0 %760, %v455
      %v762 = vpop.permute.xlu0 %761
      %765 = vset.pattern.permute.xlu0 0
      %766 = vperm.xlu0 %765, %v456
      %v767 = vpop.permute.xlu0 %766
      %770 = vset.pattern.permute.xlu0 0
      %771 = vperm.xlu0 %770, %v457
      %v772 = vpop.permute.xlu0 %771
      %775 = vset.pattern.permute.xlu0 0
      %776 = vperm.xlu0 %775, %v458
      %v777 = vpop.permute.xlu0 %776
      %v779 = vmul.f32 %v267, %v462
      %v780 = vmul.f32 %v268, %v462
      %v781 = vmul.f32 %v269, %v467
      %v782 = vmul.f32 %v270, %v467
      %v783 = vmul.f32 %v271, %v472
      %v784 = vmul.f32 %v272, %v472
      %v785 = vmul.f32 %v273, %v477
      %v786 = vmul.f32 %v274, %v477
      %v787 = vmul.f32 %v275, %v482
      %v788 = vmul.f32 %v276, %v482
      %v789 = vmul.f32 %v277, %v487
      %v790 = vmul.f32 %v278, %v487
      %v791 = vmul.f32 %v279, %v492
      %v792 = vmul.f32 %v280, %v492
      %v793 = vmul.f32 %v281, %v497
      %v794 = vmul.f32 %v282, %v497
      %v795 = vmul.f32 %v283, %v502
      %v796 = vmul.f32 %v284, %v502
      %v797 = vmul.f32 %v285, %v507
      %v798 = vmul.f32 %v286, %v507
      %v799 = vmul.f32 %v287, %v512
      %v800 = vmul.f32 %v288, %v512
      %v801 = vmul.f32 %v289, %v517
      %v802 = vmul.f32 %v290, %v517
      %v803 = vmul.f32 %v291, %v522
      %v804 = vmul.f32 %v292, %v522
      %v805 = vmul.f32 %v293, %v527
      %v806 = vmul.f32 %v294, %v527
      %v807 = vmul.f32 %v295, %v532
      %v808 = vmul.f32 %v296, %v532
      %v809 = vmul.f32 %v297, %v537
      %v810 = vmul.f32 %v298, %v537
      %v811 = vmul.f32 %v299, %v542
      %v812 = vmul.f32 %v300, %v542
      %v813 = vmul.f32 %v301, %v547
      %v814 = vmul.f32 %v302, %v547
      %v815 = vmul.f32 %v303, %v552
      %v816 = vmul.f32 %v304, %v552
      %v817 = vmul.f32 %v305, %v557
      %v818 = vmul.f32 %v306, %v557
      %v819 = vmul.f32 %v307, %v562
      %v820 = vmul.f32 %v308, %v562
      %v821 = vmul.f32 %v309, %v567
      %v822 = vmul.f32 %v310, %v567
      %v823 = vmul.f32 %v311, %v572
      %v824 = vmul.f32 %v312, %v572
      %v825 = vmul.f32 %v313, %v577
      %v826 = vmul.f32 %v314, %v577
      %v827 = vmul.f32 %v315, %v582
      %v828 = vmul.f32 %v316, %v582
      %v829 = vmul.f32 %v317, %v587
      %v830 = vmul.f32 %v318, %v587
      %v831 = vmul.f32 %v319, %v592
      %v832 = vmul.f32 %v320, %v592
      %v833 = vmul.f32 %v321, %v597
      %v834 = vmul.f32 %v322, %v597
      %v835 = vmul.f32 %v323, %v602
      %v836 = vmul.f32 %v324, %v602
      %v837 = vmul.f32 %v325, %v607
      %v838 = vmul.f32 %v326, %v607
      %v839 = vmul.f32 %v327, %v612
      %v840 = vmul.f32 %v328, %v612
      %v841 = vmul.f32 %v329, %v617
      %v842 = vmul.f32 %v330, %v617
      %v843 = vmul.f32 %v331, %v622
      %v844 = vmul.f32 %v332, %v622
      %v845 = vmul.f32 %v333, %v627
      %v846 = vmul.f32 %v334, %v627
      %v847 = vmul.f32 %v335, %v632
      %v848 = vmul.f32 %v336, %v632
      %v849 = vmul.f32 %v337, %v637
      %v850 = vmul.f32 %v338, %v637
      %v851 = vmul.f32 %v339, %v642
      %v852 = vmul.f32 %v340, %v642
      %v853 = vmul.f32 %v341, %v647
      %v854 = vmul.f32 %v342, %v647
      %v855 = vmul.f32 %v343, %v652
      %v856 = vmul.f32 %v344, %v652
      %v857 = vmul.f32 %v345, %v657
      %v858 = vmul.f32 %v346, %v657
      %v859 = vmul.f32 %v347, %v662
      %v860 = vmul.f32 %v348, %v662
      %v861 = vmul.f32 %v349, %v667
      %v862 = vmul.f32 %v350, %v667
      %v863 = vmul.f32 %v351, %v672
      %v864 = vmul.f32 %v352, %v672
      %v865 = vmul.f32 %v353, %v677
      %v866 = vmul.f32 %v354, %v677
      %v867 = vmul.f32 %v355, %v682
      %v868 = vmul.f32 %v356, %v682
      %v869 = vmul.f32 %v357, %v687
      %v870 = vmul.f32 %v358, %v687
      %v871 = vmul.f32 %v359, %v692
      %v872 = vmul.f32 %v360, %v692
      %v873 = vmul.f32 %v361, %v697
      %v874 = vmul.f32 %v362, %v697
      %v875 = vmul.f32 %v363, %v702
      %v876 = vmul.f32 %v364, %v702
      %v877 = vmul.f32 %v365, %v707
      %v878 = vmul.f32 %v366, %v707
      %v879 = vmul.f32 %v367, %v712
      %v880 = vmul.f32 %v368, %v712
      %v881 = vmul.f32 %v369, %v717
      %v882 = vmul.f32 %v370, %v717
      %v883 = vmul.f32 %v371, %v722
      %v884 = vmul.f32 %v372, %v722
      %v885 = vmul.f32 %v373, %v727
      %v886 = vmul.f32 %v374, %v727
      %v887 = vmul.f32 %v375, %v732
      %v888 = vmul.f32 %v376, %v732
      %v889 = vmul.f32 %v377, %v737
      %v890 = vmul.f32 %v378, %v737
      %v891 = vmul.f32 %v379, %v742
      %v892 = vmul.f32 %v380, %v742
      %v893 = vmul.f32 %v381, %v747
      %v894 = vmul.f32 %v382, %v747
      %v895 = vmul.f32 %v383, %v752
      %v896 = vmul.f32 %v384, %v752
      %v897 = vmul.f32 %v385, %v757
      %v898 = vmul.f32 %v386, %v757
      %v899 = vmul.f32 %v387, %v762
      %v900 = vmul.f32 %v388, %v762
      %v901 = vmul.f32 %v389, %v767
      %v902 = vmul.f32 %v390, %v767
      %v903 = vmul.f32 %v391, %v772
      %v904 = vmul.f32 %v392, %v772
      %v905 = vmul.f32 %v393, %v777
      %v906 = vmul.f32 %v394, %v777
      %907 = vst [vmem:[%s201] sm:$0xff] %v779
      %908 = vst [vmem:[%s201 + $0x8] sm:$0xff] %v780
      %909 = vst [vmem:[%s201 + $0x10] sm:$0xff] %v781
      %910 = vst [vmem:[%s201 + $0x18] sm:$0xff] %v782
      %911 = vst [vmem:[%s201 + $0x20] sm:$0xff] %v783
      %912 = vst [vmem:[%s201 + $0x28] sm:$0xff] %v784
      %913 = vst [vmem:[%s201 + $0x30] sm:$0xff] %v785
      %914 = vst [vmem:[%s201 + $0x38] sm:$0xff] %v786
      %915 = vst [vmem:[%s201 + $0x40] sm:$0xff] %v787
      %916 = vst [vmem:[%s201 + $0x48] sm:$0xff] %v788
      %917 = vst [vmem:[%s201 + $0x50] sm:$0xff] %v789
      %918 = vst [vmem:[%s201 + $0x58] sm:$0xff] %v790
      %919 = vst [vmem:[%s201 + $0x60] sm:$0xff] %v791
      %920 = vst [vmem:[%s201 + $0x68] sm:$0xff] %v792
      %921 = vst [vmem:[%s201 + $0x70] sm:$0xff] %v793
      %922 = vst [vmem:[%s201 + $0x78] sm:$0xff] %v794
      %923 = vst [vmem:[%s201 + $0x80] sm:$0xff] %v795
      %924 = vst [vmem:[%s201 + $0x88] sm:$0xff] %v796
      %925 = vst [vmem:[%s201 + $0x90] sm:$0xff] %v797
      %926 = vst [vmem:[%s201 + $0x98] sm:$0xff] %v798
      %927 = vst [vmem:[%s201 + $0xa0] sm:$0xff] %v799
      %928 = vst [vmem:[%s201 + $0xa8] sm:$0xff] %v800
      %929 = vst [vmem:[%s201 + $0xb0] sm:$0xff] %v801
      %930 = vst [vmem:[%s201 + $0xb8] sm:$0xff] %v802
      %931 = vst [vmem:[%s201 + $0xc0] sm:$0xff] %v803
      %932 = vst [vmem:[%s201 + $0xc8] sm:$0xff] %v804
      %933 = vst [vmem:[%s201 + $0xd0] sm:$0xff] %v805
      %934 = vst [vmem:[%s201 + $0xd8] sm:$0xff] %v806
      %935 = vst [vmem:[%s201 + $0xe0] sm:$0xff] %v807
      %936 = vst [vmem:[%s201 + $0xe8] sm:$0xff] %v808
      %937 = vst [vmem:[%s201 + $0xf0] sm:$0xff] %v809
      %938 = vst [vmem:[%s201 + $0xf8] sm:$0xff] %v810
      %939 = vst [vmem:[%s201 + $0x100] sm:$0xff] %v811
      %940 = vst [vmem:[%s201 + $0x108] sm:$0xff] %v812
      %941 = vst [vmem:[%s201 + $0x110] sm:$0xff] %v813
      %942 = vst [vmem:[%s201 + $0x118] sm:$0xff] %v814
      %943 = vst [vmem:[%s201 + $0x120] sm:$0xff] %v815
      %944 = vst [vmem:[%s201 + $0x128] sm:$0xff] %v816
      %945 = vst [vmem:[%s201 + $0x130] sm:$0xff] %v817
      %946 = vst [vmem:[%s201 + $0x138] sm:$0xff] %v818
      %947 = vst [vmem:[%s201 + $0x140] sm:$0xff] %v819
      %948 = vst [vmem:[%s201 + $0x148] sm:$0xff] %v820
      %949 = vst [vmem:[%s201 + $0x150] sm:$0xff] %v821
      %950 = vst [vmem:[%s201 + $0x158] sm:$0xff] %v822
      %951 = vst [vmem:[%s201 + $0x160] sm:$0xff] %v823
      %952 = vst [vmem:[%s201 + $0x168] sm:$0xff] %v824
      %953 = vst [vmem:[%s201 + $0x170] sm:$0xff] %v825
      %954 = vst [vmem:[%s201 + $0x178] sm:$0xff] %v826
      %955 = vst [vmem:[%s201 + $0x180] sm:$0xff] %v827
      %956 = vst [vmem:[%s201 + $0x188] sm:$0xff] %v828
      %957 = vst [vmem:[%s201 + $0x190] sm:$0xff] %v829
      %958 = vst [vmem:[%s201 + $0x198] sm:$0xff] %v830
      %959 = vst [vmem:[%s201 + $0x1a0] sm:$0xff] %v831
      %960 = vst [vmem:[%s201 + $0x1a8] sm:$0xff] %v832
      %961 = vst [vmem:[%s201 + $0x1b0] sm:$0xff] %v833
      %962 = vst [vmem:[%s201 + $0x1b8] sm:$0xff] %v834
      %963 = vst [vmem:[%s201 + $0x1c0] sm:$0xff] %v835
      %964 = vst [vmem:[%s201 + $0x1c8] sm:$0xff] %v836
      %965 = vst [vmem:[%s201 + $0x1d0] sm:$0xff] %v837
      %966 = vst [vmem:[%s201 + $0x1d8] sm:$0xff] %v838
      %967 = vst [vmem:[%s201 + $0x1e0] sm:$0xff] %v839
      %968 = vst [vmem:[%s201 + $0x1e8] sm:$0xff] %v840
      %969 = vst [vmem:[%s201 + $0x1f0] sm:$0xff] %v841
      %970 = vst [vmem:[%s201 + $0x1f8] sm:$0xff] %v842
      %971 = vst [vmem:[%s201 + $0x200] sm:$0xff] %v843
      %972 = vst [vmem:[%s201 + $0x208] sm:$0xff] %v844
      %973 = vst [vmem:[%s201 + $0x210] sm:$0xff] %v845
      %974 = vst [vmem:[%s201 + $0x218] sm:$0xff] %v846
      %975 = vst [vmem:[%s201 + $0x220] sm:$0xff] %v847
      %976 = vst [vmem:[%s201 + $0x228] sm:$0xff] %v848
      %977 = vst [vmem:[%s201 + $0x230] sm:$0xff] %v849
      %978 = vst [vmem:[%s201 + $0x238] sm:$0xff] %v850
      %979 = vst [vmem:[%s201 + $0x240] sm:$0xff] %v851
      %980 = vst [vmem:[%s201 + $0x248] sm:$0xff] %v852
      %981 = vst [vmem:[%s201 + $0x250] sm:$0xff] %v853
      %982 = vst [vmem:[%s201 + $0x258] sm:$0xff] %v854
      %983 = vst [vmem:[%s201 + $0x260] sm:$0xff] %v855
      %984 = vst [vmem:[%s201 + $0x268] sm:$0xff] %v856
      %985 = vst [vmem:[%s201 + $0x270] sm:$0xff] %v857
      %986 = vst [vmem:[%s201 + $0x278] sm:$0xff] %v858
      %987 = vst [vmem:[%s201 + $0x280] sm:$0xff] %v859
      %988 = vst [vmem:[%s201 + $0x288] sm:$0xff] %v860
      %989 = vst [vmem:[%s201 + $0x290] sm:$0xff] %v861
      %990 = vst [vmem:[%s201 + $0x298] sm:$0xff] %v862
      %991 = vst [vmem:[%s201 + $0x2a0] sm:$0xff] %v863
      %992 = vst [vmem:[%s201 + $0x2a8] sm:$0xff] %v864
      %993 = vst [vmem:[%s201 + $0x2b0] sm:$0xff] %v865
      %994 = vst [vmem:[%s201 + $0x2b8] sm:$0xff] %v866
      %995 = vst [vmem:[%s201 + $0x2c0] sm:$0xff] %v867
      %996 = vst [vmem:[%s201 + $0x2c8] sm:$0xff] %v868
      %997 = vst [vmem:[%s201 + $0x2d0] sm:$0xff] %v869
      %998 = vst [vmem:[%s201 + $0x2d8] sm:$0xff] %v870
      %999 = vst [vmem:[%s201 + $0x2e0] sm:$0xff] %v871
      %1000 = vst [vmem:[%s201 + $0x2e8] sm:$0xff] %v872
      %1001 = vst [vmem:[%s201 + $0x2f0] sm:$0xff] %v873
      %1002 = vst [vmem:[%s201 + $0x2f8] sm:$0xff] %v874
      %1003 = vst [vmem:[%s201 + $0x300] sm:$0xff] %v875
      %1004 = vst [vmem:[%s201 + $0x308] sm:$0xff] %v876
      %1005 = vst [vmem:[%s201 + $0x310] sm:$0xff] %v877
      %1006 = vst [vmem:[%s201 + $0x318] sm:$0xff] %v878
      %1007 = vst [vmem:[%s201 + $0x320] sm:$0xff] %v879
      %1008 = vst [vmem:[%s201 + $0x328] sm:$0xff] %v880
      %1009 = vst [vmem:[%s201 + $0x330] sm:$0xff] %v881
      %1010 = vst [vmem:[%s201 + $0x338] sm:$0xff] %v882
      %1011 = vst [vmem:[%s201 + $0x340] sm:$0xff] %v883
      %1012 = vst [vmem:[%s201 + $0x348] sm:$0xff] %v884
      %1013 = vst [vmem:[%s201 + $0x350] sm:$0xff] %v885
      %1014 = vst [vmem:[%s201 + $0x358] sm:$0xff] %v886
      %1015 = vst [vmem:[%s201 + $0x360] sm:$0xff] %v887
      %1016 = vst [vmem:[%s201 + $0x368] sm:$0xff] %v888
      %1017 = vst [vmem:[%s201 + $0x370] sm:$0xff] %v889
      %1018 = vst [vmem:[%s201 + $0x378] sm:$0xff] %v890
      %1019 = vst [vmem:[%s201 + $0x380] sm:$0xff] %v891
      %1020 = vst [vmem:[%s201 + $0x388] sm:$0xff] %v892
      %1021 = vst [vmem:[%s201 + $0x390] sm:$0xff] %v893
      %1022 = vst [vmem:[%s201 + $0x398] sm:$0xff] %v894
      %1023 = vst [vmem:[%s201 + $0x3a0] sm:$0xff] %v895
      %1024 = vst [vmem:[%s201 + $0x3a8] sm:$0xff] %v896
      %1025 = vst [vmem:[%s201 + $0x3b0] sm:$0xff] %v897
      %1026 = vst [vmem:[%s201 + $0x3b8] sm:$0xff] %v898
      %1027 = vst [vmem:[%s201 + $0x3c0] sm:$0xff] %v899
      %1028 = vst [vmem:[%s201 + $0x3c8] sm:$0xff] %v900
      %1029 = vst [vmem:[%s201 + $0x3d0] sm:$0xff] %v901
      %1030 = vst [vmem:[%s201 + $0x3d8] sm:$0xff] %v902
      %1031 = vst [vmem:[%s201 + $0x3e0] sm:$0xff] %v903
      %1032 = vst [vmem:[%s201 + $0x3e8] sm:$0xff] %v904
      %1033 = vst [vmem:[%s201 + $0x3f0] sm:$0xff] %v905
      %1034 = vst [vmem:[%s201 + $0x3f8] sm:$0xff] %v906
      %s1035 = smul.u32 2, %s18
      %p1036 = scmp.lt.s32.totalorder %s17, 1
      %s1037 = scalar_select %p1036, %s17, 1
      %p1038 = scmp.lt.s32.totalorder %s1035, 1
      %s1039 = scalar_select %p1038, %s1035, 1
      %s1040 = smul.addr %s1037, 128
      %s1041 = sadd.s32 %s1039, %s1040
      %s1042 = smul.addr %s1041, 8
      %s1043 = scalar_lea.vmem %s2, %s1042
      // Predicated region
      $region29: #{spatial_block.3} parent=27 // pred_check
        %p1044 = pneg %p99
      $region30: #{spatial_block.3} parent=27 // pred_check_branch
        %1046 = sbr.rel (%p1044) target = $region32
      $region31: #{spatial_block.3} parent=27 // pred_region
        %s1047 = smul.u32 2, %s18
      $region32: #{spatial_block.3} parent=27 // pred_fallthru
        _
    $region28: #{spatial_block.3} parent=5 // pred_fallthru
      _
    %p1048 = scmp.le.s32.totalorder 2, %s8
    // Predicated region
    $region33: #{spatial_block.3} parent=5 // pred_check
      %p1049 = pneg %p1048
    $region34: #{spatial_block.3} parent=5 // pred_check_branch
      %1051 = sbr.rel (%p1049) target = $region36
    $region35: #{spatial_block.3} parent=5 // pred_region
      %s1052 = ssub.s32 %s8, 2
      // Predicated region
      $region37: #{spatial_block.3} parent=35 // pred_check
        %p1053 = pneg %p105
      $region38: #{spatial_block.3} parent=35 // pred_check_branch
        %1055 = sbr.rel (%p1053) target = $region40
      $region39: #{spatial_block.3} parent=35 // pred_region
        %s1056 = smul.u32 2, %s20
        %p1057 = scmp.lt.s32.totalorder %s19, 1
        %s1058 = scalar_select %p1057, %s19, 1
        %p1059 = scmp.lt.s32.totalorder %s1056, 1
        %s1060 = scalar_select %p1059, %s1056, 1
        %s1061 = smul.addr %s1058, 128
        %s1062 = sadd.s32 %s1060, %s1061
        %s1063 = smul.addr %s1062, 8
        %s1064 = scalar_lea.vmem %s2, %s1063
      $region40: #{spatial_block.3} parent=35 // pred_fallthru
        _
    $region36: #{spatial_block.3} parent=5 // pred_fallthru
      _
  $region6: #{spatial_block.3} parent=0 // loop_footer
    %s12 = sadd.s32 1, %s8
  $region7: #{spatial_block.3} parent=0 // loop_footer_branch
    %7 = sbr.rel target = $region3
  $region8: #{spatial_block.3} parent=0 // loop_exit
    _

// kernel: spatial_block.2
$region0: #{spatial_block.2}
  #allocation0 [shape = 'u32[]', space=smem, size = 0x4, offset = 0x4, fixed_abs, tag = 'smem constant byte address 0x4 - core index']
  #allocation1 [shape = 'u32[144,128]{1,0:T(1,128)}', space=vmem, size = 0x12000, scoped, tag = 'internal scratch']
  #allocation2 [shape = 'bf16[704,256]{1,0:T(8,128)(2,1)}', space=vmem, size = 0x58000, scoped, tag = 'scratch operand']
  %s0 = inlined_call_operand.vmem [shape: f32[2,512,256], index: 0, kind: input, shape index: {}]
  %s1 = inlined_call_operand.vmem [shape: bf16[256,512], index: 1, kind: input, shape index: {}]
  %s2 = inlined_call_operand.vmem [shape: f32[256,1], index: 2, kind: input, shape index: {}]
  %s3 = inlined_call_operand.vmem [shape: bf16[64,256], index: 3, kind: input, shape index: {}]
  %s4 = inlined_call_operand.vmem [shape: f32[64,1], index: 4, kind: input, shape index: {}]
  %s5 = inlined_call_operand.vmem [shape: bf16[256,576], index: 5, kind: input, shape index: {}]
  %s6 = inlined_call_operand.vmem [shape: f32[256,1], index: 6, kind: input, shape index: {}]
  %s7 = inlined_call_operand.vmem [shape: bf16[64,256], index: 7, kind: input, shape index: {}]
  %s8 = inlined_call_operand.vmem [shape: f32[64,1], index: 8, kind: input, shape index: {}]
  %s9 = inlined_call_operand.vmem [shape: bf16[256,640], index: 9, kind: input, shape index: {}]
  %s10 = inlined_call_operand.vmem [shape: f32[256,1], index: 10, kind: input, shape index: {}]
  %s11 = inlined_call_operand.vmem [shape: bf16[64,256], index: 11, kind: input, shape index: {}]
  %s12 = inlined_call_operand.vmem [shape: f32[64,1], index: 12, kind: input, shape index: {}]
  %s13 = inlined_call_operand.vmem [shape: bf16[512,704], index: 13, kind: input, shape index: {}]
  %s14 = inlined_call_operand.vmem [shape: f32[512,1], index: 14, kind: input, shape index: {}]
  %s15 = inlined_call_operand.vmem [shape: bf16[2,512,256], index: 15, kind: output, shape index: {0}]
  %s16 = inlined_call_operand.vmem [shape: f32[2,1,512,1], index: 16, kind: output, shape index: {1}]
  %17 = xla_tuple %s15, %s16
  %s18 = sld [smem:[#allocation0]]
  $region101: #{spatial_block.2} parent=0
    _
  %s20 = ssub.s32 1, %s18
  %s21 = scalar_select 0, %s20, %s18
  loop: start=0, step=1, limit=4
  $region2: #{spatial_block.2} parent=0 // loop_pre_header
    _
  $region3: #{spatial_block.2} parent=0 // loop_header
    %s23 = sphi 0, %s27
    %p24 = scmp.ge.s32.totalorder %s23, 4
    %s30 = sphi 0, %s42
    %s31 = sphi 0, %s38
    %s32 = sphi 0, %s30
    %s33 = sphi 0, %s31
    %s34 = sphi 0, %s32
    %s35 = sphi 0, %s33
    %s47 = sphi 0, %s49
    %s50 = sphi 0, %s47
    %s51 = sphi 0, %s50
    %s67 = sphi 0, %s51
    %s71 = sphi 0, %s71
    %s73 = sphi 0, %s71
    %s74 = sphi 0, %s73
    %s88 = sphi 0, %s74
    %s92 = sphi 0, %s92
    %s94 = sphi 0, %s92
    %s95 = sphi 0, %s94
    %s109 = sphi 0, %s95
    %s113 = sphi 0, %s113
    %s115 = sphi 0, %s113
    %s116 = sphi 0, %s115
    %s130 = sphi 0, %s116
    %s134 = sphi 0, %s134
    %s136 = sphi 0, %s134
    %s137 = sphi 0, %s136
    %s151 = sphi 0, %s137
    %s155 = sphi 0, %s155
    %s157 = sphi 0, %s155
    %s158 = sphi 0, %s157
    %s172 = sphi 0, %s158
    %s176 = sphi 0, %s176
    %s178 = sphi 0, %s176
    %s179 = sphi 0, %s178
    %s193 = sphi 0, %s179
    %s197 = sphi 0, %s197
    %s199 = sphi 0, %s197
    %s200 = sphi 0, %s199
    %s214 = sphi 0, %s200
    %s218 = sphi 0, %s218
    %s220 = sphi 0, %s218
    %s221 = sphi 0, %s220
    %s235 = sphi 0, %s221
    %s239 = sphi 0, %s239
    %s241 = sphi 0, %s239
    %s242 = sphi 0, %s241
    %s256 = sphi 0, %s242
    %s260 = sphi 0, %s260
    %s262 = sphi 0, %s260
    %s263 = sphi 0, %s262
    %s277 = sphi 0, %s263
    %s281 = sphi 0, %s281
    %s283 = sphi 0, %s281
    %s284 = sphi 0, %s283
    %s298 = sphi 0, %s284
    %s302 = sphi 0, %s302
    %s304 = sphi 0, %s302
    %s305 = sphi 0, %s304
    %s319 = sphi 0, %s305
    %s323 = sphi 0, %s323
    %s325 = sphi 0, %s323
    %s326 = sphi 0, %s325
    %s340 = sphi 0, %s326
    %s344 = sphi 0, %s344
    %s346 = sphi 0, %s344
    %s347 = sphi 0, %s346
    %s361 = sphi 0, %s347
    %s369 = sphi 0, %s371
    %s372 = sphi 0, %s369
    %s373 = sphi 0, %s372
    %s389 = sphi 0, %s373
    %s397 = sphi 0, %s399
    %s400 = sphi 0, %s397
    %s401 = sphi 0, %s400
    %s417 = sphi 0, %s401
  $region4: #{spatial_block.2} parent=0 // loop_header_branch
    %26 = sbr.rel (%p24) target = $region8
  $region5: #{spatial_block.2} parent=0 // loop_body
    %s28 = ssub.s32 %s23, 1
    %s29 = ssub.s32 %s23, 2
    %s36 = sadd.s32 1, %s31
    %p37 = scmp.ge.s32.totalorder %s36, 1
    %s38 = scalar_select %p37, 0, %s36
    %s39 = sadd.s32 1, %s30
    %s40 = scalar_select %p37, %s39, %s30
    %p41 = scmp.ge.s32.totalorder %s40, 2
    %s42 = scalar_select %p41, 0, %s40
    %s43 = ssub.s32 %s30, %s42
    %s44 = ssub.s32 %s31, %s38
    %s45 = sor.u32 %s43, %s44
    %p46 = scmp.eq.s32.totalorder %s45, 0
    %s48 = sadd.s32 %s47, 1
    %s49 = scalar_select %p46, %s47, %s48
    %p52 = pneg %p46
    %p53 = scmp.eq.s32.totalorder %s23, 1
    %p54 = por %p52, %p53
    %p55 = scmp.ne.s32.totalorder %s47, %s50
    %p56 = scmp.eq.s32.totalorder %s23, 0
    %p57 = por %p55, %p56
    %p58 = scmp.ne.s32.totalorder %s47, %s50
    %p59 = scmp.eq.s32.totalorder %s28, 1
    %p60 = por %p58, %p59
    %p61 = scmp.ne.s32.totalorder %s50, %s51
    %p62 = scmp.eq.s32.totalorder %s28, 0
    %p63 = por %p61, %p62
    %p64 = scmp.ne.s32.totalorder %s50, %s51
    %p65 = scmp.eq.s32.totalorder %s29, 1
    %p66 = por %p64, %p65
    %p68 = scmp.ne.s32.totalorder %s51, %s67
    %p69 = scmp.eq.s32.totalorder %s29, 0
    %p70 = por %p68, %p69
    %s72 = sadd.s32 %s71, 1
    %p75 = scmp.eq.s32.totalorder %s23, 1
    %p76 = scmp.ne.s32.totalorder %s71, %s73
    %p77 = scmp.eq.s32.totalorder %s23, 0
    %p78 = por %p76, %p77
    %p79 = scmp.ne.s32.totalorder %s71, %s73
    %p80 = scmp.eq.s32.totalorder %s28, 1
    %p81 = por %p79, %p80
    %p82 = scmp.ne.s32.totalorder %s73, %s74
    %p83 = scmp.eq.s32.totalorder %s28, 0
    %p84 = por %p82, %p83
    %p85 = scmp.ne.s32.totalorder %s73, %s74
    %p86 = scmp.eq.s32.totalorder %s29, 1
    %p87 = por %p85, %p86
    %p89 = scmp.ne.s32.totalorder %s74, %s88
    %p90 = scmp.eq.s32.totalorder %s29, 0
    %p91 = por %p89, %p90
    %s93 = sadd.s32 %s92, 1
    %p96 = scmp.eq.s32.totalorder %s23, 1
    %p97 = scmp.ne.s32.totalorder %s92, %s94
    %p98 = scmp.eq.s32.totalorder %s23, 0
    %p99 = por %p97, %p98
    %p100 = scmp.ne.s32.totalorder %s92, %s94
    %p101 = scmp.eq.s32.totalorder %s28, 1
    %p102 = por %p100, %p101
    %p103 = scmp.ne.s32.totalorder %s94, %s95
    %p104 = scmp.eq.s32.totalorder %s28, 0
    %p105 = por %p103, %p104
    %p106 = scmp.ne.s32.totalorder %s94, %s95
    %p107 = scmp.eq.s32.totalorder %s29, 1
    %p108 = por %p106, %p107
    %p110 = scmp.ne.s32.totalorder %s95, %s109
    %p111 = scmp.eq.s32.totalorder %s29, 0
    %p112 = por %p110, %p111
    %s114 = sadd.s32 %s113, 1
    %p117 = scmp.eq.s32.totalorder %s23, 1
    %p118 = scmp.ne.s32.totalorder %s113, %s115
    %p119 = scmp.eq.s32.totalorder %s23, 0
    %p120 = por %p118, %p119
    %p121 = scmp.ne.s32.totalorder %s113, %s115
    %p122 = scmp.eq.s32.totalorder %s28, 1
    %p123 = por %p121, %p122
    %p124 = scmp.ne.s32.totalorder %s115, %s116
    %p125 = scmp.eq.s32.totalorder %s28, 0
    %p126 = por %p124, %p125
    %p127 = scmp.ne.s32.totalorder %s115, %s116
    %p128 = scmp.eq.s32.totalorder %s29, 1
    %p129 = por %p127, %p128
    %p131 = scmp.ne.s32.totalorder %s116, %s130
    %p132 = scmp.eq.s32.totalorder %s29, 0
    %p133 = por %p131, %p132
    %s135 = sadd.s32 %s134, 1
    %p138 = scmp.eq.s32.totalorder %s23, 1
    %p139 = scmp.ne.s32.totalorder %s134, %s136
    %p140 = scmp.eq.s32.totalorder %s23, 0
    %p141 = por %p139, %p140
    %p142 = scmp.ne.s32.totalorder %s134, %s136
    %p143 = scmp.eq.s32.totalorder %s28, 1
    %p144 = por %p142, %p143
    %p145 = scmp.ne.s32.totalorder %s136, %s137
    %p146 = scmp.eq.s32.totalorder %s28, 0
    %p147 = por %p145, %p146
    %p148 = scmp.ne.s32.totalorder %s136, %s137
    %p149 = scmp.eq.s32.totalorder %s29, 1
    %p150 = por %p148, %p149
    %p152 = scmp.ne.s32.totalorder %s137, %s151
    %p153 = scmp.eq.s32.totalorder %s29, 0
    %p154 = por %p152, %p153
    %s156 = sadd.s32 %s155, 1
    %p159 = scmp.eq.s32.totalorder %s23, 1
    %p160 = scmp.ne.s32.totalorder %s155, %s157
    %p161 = scmp.eq.s32.totalorder %s23, 0
    %p162 = por %p160, %p161
    %p163 = scmp.ne.s32.totalorder %s155, %s157
    %p164 = scmp.eq.s32.totalorder %s28, 1
    %p165 = por %p163, %p164
    %p166 = scmp.ne.s32.totalorder %s157, %s158
    %p167 = scmp.eq.s32.totalorder %s28, 0
    %p168 = por %p166, %p167
    %p169 = scmp.ne.s32.totalorder %s157, %s158
    %p170 = scmp.eq.s32.totalorder %s29, 1
    %p171 = por %p169, %p170
    %p173 = scmp.ne.s32.totalorder %s158, %s172
    %p174 = scmp.eq.s32.totalorder %s29, 0
    %p175 = por %p173, %p174
    %s177 = sadd.s32 %s176, 1
    %p180 = scmp.eq.s32.totalorder %s23, 1
    %p181 = scmp.ne.s32.totalorder %s176, %s178
    %p182 = scmp.eq.s32.totalorder %s23, 0
    %p183 = por %p181, %p182
    %p184 = scmp.ne.s32.totalorder %s176, %s178
    %p185 = scmp.eq.s32.totalorder %s28, 1
    %p186 = por %p184, %p185
    %p187 = scmp.ne.s32.totalorder %s178, %s179
    %p188 = scmp.eq.s32.totalorder %s28, 0
    %p189 = por %p187, %p188
    %p190 = scmp.ne.s32.totalorder %s178, %s179
    %p191 = scmp.eq.s32.totalorder %s29, 1
    %p192 = por %p190, %p191
    %p194 = scmp.ne.s32.totalorder %s179, %s193
    %p195 = scmp.eq.s32.totalorder %s29, 0
    %p196 = por %p194, %p195
    %s198 = sadd.s32 %s197, 1
    %p201 = scmp.eq.s32.totalorder %s23, 1
    %p202 = scmp.ne.s32.totalorder %s197, %s199
    %p203 = scmp.eq.s32.totalorder %s23, 0
    %p204 = por %p202, %p203
    %p205 = scmp.ne.s32.totalorder %s197, %s199
    %p206 = scmp.eq.s32.totalorder %s28, 1
    %p207 = por %p205, %p206
    %p208 = scmp.ne.s32.totalorder %s199, %s200
    %p209 = scmp.eq.s32.totalorder %s28, 0
    %p210 = por %p208, %p209
    %p211 = scmp.ne.s32.totalorder %s199, %s200
    %p212 = scmp.eq.s32.totalorder %s29, 1
    %p213 = por %p211, %p212
    %p215 = scmp.ne.s32.totalorder %s200, %s214
    %p216 = scmp.eq.s32.totalorder %s29, 0
    %p217 = por %p215, %p216
    %s219 = sadd.s32 %s218, 1
    %p222 = scmp.eq.s32.totalorder %s23, 1
    %p223 = scmp.ne.s32.totalorder %s218, %s220
    %p224 = scmp.eq.s32.totalorder %s23, 0
    %p225 = por %p223, %p224
    %p226 = scmp.ne.s32.totalorder %s218, %s220
    %p227 = scmp.eq.s32.totalorder %s28, 1
    %p228 = por %p226, %p227
    %p229 = scmp.ne.s32.totalorder %s220, %s221
    %p230 = scmp.eq.s32.totalorder %s28, 0
    %p231 = por %p229, %p230
    %p232 = scmp.ne.s32.totalorder %s220, %s221
    %p233 = scmp.eq.s32.totalorder %s29, 1
    %p234 = por %p232, %p233
    %p236 = scmp.ne.s32.totalorder %s221, %s235
    %p237 = scmp.eq.s32.totalorder %s29, 0
    %p238 = por %p236, %p237
    %s240 = sadd.s32 %s239, 1
    %p243 = scmp.eq.s32.totalorder %s23, 1
    %p244 = scmp.ne.s32.totalorder %s239, %s241
    %p245 = scmp.eq.s32.totalorder %s23, 0
    %p246 = por %p244, %p245
    %p247 = scmp.ne.s32.totalorder %s239, %s241
    %p248 = scmp.eq.s32.totalorder %s28, 1
    %p249 = por %p247, %p248
    %p250 = scmp.ne.s32.totalorder %s241, %s242
    %p251 = scmp.eq.s32.totalorder %s28, 0
    %p252 = por %p250, %p251
    %p253 = scmp.ne.s32.totalorder %s241, %s242
    %p254 = scmp.eq.s32.totalorder %s29, 1
    %p255 = por %p253, %p254
    %p257 = scmp.ne.s32.totalorder %s242, %s256
    %p258 = scmp.eq.s32.totalorder %s29, 0
    %p259 = por %p257, %p258
    %s261 = sadd.s32 %s260, 1
    %p264 = scmp.eq.s32.totalorder %s23, 1
    %p265 = scmp.ne.s32.totalorder %s260, %s262
    %p266 = scmp.eq.s32.totalorder %s23, 0
    %p267 = por %p265, %p266
    %p268 = scmp.ne.s32.totalorder %s260, %s262
    %p269 = scmp.eq.s32.totalorder %s28, 1
    %p270 = por %p268, %p269
    %p271 = scmp.ne.s32.totalorder %s262, %s263
    %p272 = scmp.eq.s32.totalorder %s28, 0
    %p273 = por %p271, %p272
    %p274 = scmp.ne.s32.totalorder %s262, %s263
    %p275 = scmp.eq.s32.totalorder %s29, 1
    %p276 = por %p274, %p275
    %p278 = scmp.ne.s32.totalorder %s263, %s277
    %p279 = scmp.eq.s32.totalorder %s29, 0
    %p280 = por %p278, %p279
    %s282 = sadd.s32 %s281, 1
    %p285 = scmp.eq.s32.totalorder %s23, 1
    %p286 = scmp.ne.s32.totalorder %s281, %s283
    %p287 = scmp.eq.s32.totalorder %s23, 0
    %p288 = por %p286, %p287
    %p289 = scmp.ne.s32.totalorder %s281, %s283
    %p290 = scmp.eq.s32.totalorder %s28, 1
    %p291 = por %p289, %p290
    %p292 = scmp.ne.s32.totalorder %s283, %s284
    %p293 = scmp.eq.s32.totalorder %s28, 0
    %p294 = por %p292, %p293
    %p295 = scmp.ne.s32.totalorder %s283, %s284
    %p296 = scmp.eq.s32.totalorder %s29, 1
    %p297 = por %p295, %p296
    %p299 = scmp.ne.s32.totalorder %s284, %s298
    %p300 = scmp.eq.s32.totalorder %s29, 0
    %p301 = por %p299, %p300
    %s303 = sadd.s32 %s302, 1
    %p306 = scmp.eq.s32.totalorder %s23, 1
    %p307 = scmp.ne.s32.totalorder %s302, %s304
    %p308 = scmp.eq.s32.totalorder %s23, 0
    %p309 = por %p307, %p308
    %p310 = scmp.ne.s32.totalorder %s302, %s304
    %p311 = scmp.eq.s32.totalorder %s28, 1
    %p312 = por %p310, %p311
    %p313 = scmp.ne.s32.totalorder %s304, %s305
    %p314 = scmp.eq.s32.totalorder %s28, 0
    %p315 = por %p313, %p314
    %p316 = scmp.ne.s32.totalorder %s304, %s305
    %p317 = scmp.eq.s32.totalorder %s29, 1
    %p318 = por %p316, %p317
    %p320 = scmp.ne.s32.totalorder %s305, %s319
    %p321 = scmp.eq.s32.totalorder %s29, 0
    %p322 = por %p320, %p321
    %s324 = sadd.s32 %s323, 1
    %p327 = scmp.eq.s32.totalorder %s23, 1
    %p328 = scmp.ne.s32.totalorder %s323, %s325
    %p329 = scmp.eq.s32.totalorder %s23, 0
    %p330 = por %p328, %p329
    %p331 = scmp.ne.s32.totalorder %s323, %s325
    %p332 = scmp.eq.s32.totalorder %s28, 1
    %p333 = por %p331, %p332
    %p334 = scmp.ne.s32.totalorder %s325, %s326
    %p335 = scmp.eq.s32.totalorder %s28, 0
    %p336 = por %p334, %p335
    %p337 = scmp.ne.s32.totalorder %s325, %s326
    %p338 = scmp.eq.s32.totalorder %s29, 1
    %p339 = por %p337, %p338
    %p341 = scmp.ne.s32.totalorder %s326, %s340
    %p342 = scmp.eq.s32.totalorder %s29, 0
    %p343 = por %p341, %p342
    %s345 = sadd.s32 %s344, 1
    %p348 = scmp.eq.s32.totalorder %s23, 1
    %p349 = scmp.ne.s32.totalorder %s344, %s346
    %p350 = scmp.eq.s32.totalorder %s23, 0
    %p351 = por %p349, %p350
    %p352 = scmp.ne.s32.totalorder %s344, %s346
    %p353 = scmp.eq.s32.totalorder %s28, 1
    %p354 = por %p352, %p353
    %p355 = scmp.ne.s32.totalorder %s346, %s347
    %p356 = scmp.eq.s32.totalorder %s28, 0
    %p357 = por %p355, %p356
    %p358 = scmp.ne.s32.totalorder %s346, %s347
    %p359 = scmp.eq.s32.totalorder %s29, 1
    %p360 = por %p358, %p359
    %p362 = scmp.ne.s32.totalorder %s347, %s361
    %p363 = scmp.eq.s32.totalorder %s29, 0
    %p364 = por %p362, %p363
    %s365 = ssub.s32 %s30, %s42
    %s366 = ssub.s32 %s31, %s38
    %s367 = sor.u32 %s365, %s366
    %p368 = scmp.eq.s32.totalorder %s367, 0
    %s370 = sadd.s32 %s369, 1
    %s371 = scalar_select %p368, %s369, %s370
    %p374 = pneg %p368
    %p375 = scmp.eq.s32.totalorder %s23, 1
    %p376 = por %p374, %p375
    %p377 = scmp.ne.s32.totalorder %s369, %s372
    %p378 = scmp.eq.s32.totalorder %s23, 0
    %p379 = por %p377, %p378
    %p380 = scmp.ne.s32.totalorder %s369, %s372
    %p381 = scmp.eq.s32.totalorder %s28, 1
    %p382 = por %p380, %p381
    %p383 = scmp.ne.s32.totalorder %s372, %s373
    %p384 = scmp.eq.s32.totalorder %s28, 0
    %p385 = por %p383, %p384
    %p386 = scmp.ne.s32.totalorder %s372, %s373
    %p387 = scmp.eq.s32.totalorder %s29, 1
    %p388 = por %p386, %p387
    %p390 = scmp.ne.s32.totalorder %s373, %s389
    %p391 = scmp.eq.s32.totalorder %s29, 0
    %p392 = por %p390, %p391
    %s393 = ssub.s32 %s30, %s42
    %s394 = ssub.s32 %s31, %s38
    %s395 = sor.u32 %s393, %s394
    %p396 = scmp.eq.s32.totalorder %s395, 0
    %s398 = sadd.s32 %s397, 1
    %s399 = scalar_select %p396, %s397, %s398
    %p402 = pneg %p396
    %p403 = scmp.eq.s32.totalorder %s23, 1
    %p404 = por %p402, %p403
    %p405 = scmp.ne.s32.totalorder %s397, %s400
    %p406 = scmp.eq.s32.totalorder %s23, 0
    %p407 = por %p405, %p406
    %p408 = scmp.ne.s32.totalorder %s397, %s400
    %p409 = scmp.eq.s32.totalorder %s28, 1
    %p410 = por %p408, %p409
    %p411 = scmp.ne.s32.totalorder %s400, %s401
    %p412 = scmp.eq.s32.totalorder %s28, 0
    %p413 = por %p411, %p412
    %p414 = scmp.ne.s32.totalorder %s400, %s401
    %p415 = scmp.eq.s32.totalorder %s29, 1
    %p416 = por %p414, %p415
    %p418 = scmp.ne.s32.totalorder %s401, %s417
    %p419 = scmp.eq.s32.totalorder %s29, 0
    %p420 = por %p418, %p419
    %p421 = scmp.le.s32.totalorder 1, %s23
    %p422 = scmp.lt.s32.totalorder %s23, 3
    %p423 = pnand %p421, %p422
    %p424 = pneg %p423
    // Predicated region
    $region9: #{spatial_block.2} parent=5 // pred_check
      _
    $region10: #{spatial_block.2} parent=5 // pred_check_branch
      %426 = sbr.rel (%p423) target = $region12
    $region11: #{spatial_block.2} parent=5 // pred_region
      %s427 = ssub.s32 %s23, 1
      // Predicated region
      $region13: #{spatial_block.2} parent=11 // pred_check
        %p428 = pneg %p84
      $region14: #{spatial_block.2} parent=11 // pred_check_branch
        %430 = sbr.rel (%p428) target = $region16
      $region15: #{spatial_block.2} parent=11 // pred_region
        _
      $region16: #{spatial_block.2} parent=11 // pred_fallthru
        _
      // Predicated region
      $region17: #{spatial_block.2} parent=11 // pred_check
        %p431 = pneg %p105
      $region18: #{spatial_block.2} parent=11 // pred_check_branch
        %433 = sbr.rel (%p431) target = $region20
      $region19: #{spatial_block.2} parent=11 // pred_region
        _
      $region20: #{spatial_block.2} parent=11 // pred_fallthru
        _
      // Predicated region
      $region21: #{spatial_block.2} parent=11 // pred_check
        %p434 = pneg %p126
      $region22: #{spatial_block.2} parent=11 // pred_check_branch
        %436 = sbr.rel (%p434) target = $region24
      $region23: #{spatial_block.2} parent=11 // pred_region
        _
      $region24: #{spatial_block.2} parent=11 // pred_fallthru
        _
      // Predicated region
      $region25: #{spatial_block.2} parent=11 // pred_check
        %p437 = pneg %p147
      $region26: #{spatial_block.2} parent=11 // pred_check_branch
        %439 = sbr.rel (%p437) target = $region28
      $region27: #{spatial_block.2} parent=11 // pred_region
        _
      $region28: #{spatial_block.2} parent=11 // pred_fallthru
        _
      // Predicated region
      $region29: #{spatial_block.2} parent=11 // pred_check
        %p440 = pneg %p168
      $region30: #{spatial_block.2} parent=11 // pred_check_branch
        %442 = sbr.rel (%p440) target = $region32
      $region31: #{spatial_block.2} parent=11 // pred_region
        _
      $region32: #{spatial_block.2} parent=11 // pred_fallthru
        _
      // Predicated region
      $region33: #{spatial_block.2} parent=11 // pred_check
        %p443 = pneg %p189
      $region34: #{spatial_block.2} parent=11 // pred_check_branch
        %445 = sbr.rel (%p443) target = $region36
      $region35: #{spatial_block.2} parent=11 // pred_region
        _
      $region36: #{spatial_block.2} parent=11 // pred_fallthru
        _
      // Predicated region
      $region37: #{spatial_block.2} parent=11 // pred_check
        %p446 = pneg %p210
      $region38: #{spatial_block.2} parent=11 // pred_check_branch
        %448 = sbr.rel (%p446) target = $region40
      $region39: #{spatial_block.2} parent=11 // pred_region
        _
      $region40: #{spatial_block.2} parent=11 // pred_fallthru
        _
      // Predicated region
      $region41: #{spatial_block.2} parent=11 // pred_check
        %p449 = pneg %p231
      $region42: #{spatial_block.2} parent=11 // pred_check_branch
        %451 = sbr.rel (%p449) target = $region44
      $region43: #{spatial_block.2} parent=11 // pred_region
        _
      $region44: #{spatial_block.2} parent=11 // pred_fallthru
        _
      // Predicated region
      $region45: #{spatial_block.2} parent=11 // pred_check
        %p452 = pneg %p252
      $region46: #{spatial_block.2} parent=11 // pred_check_branch
        %454 = sbr.rel (%p452) target = $region48
      $region47: #{spatial_block.2} parent=11 // pred_region
        _
      $region48: #{spatial_block.2} parent=11 // pred_fallthru
        _
      // Predicated region
      $region49: #{spatial_block.2} parent=11 // pred_check
        %p455 = pneg %p273
      $region50: #{spatial_block.2} parent=11 // pred_check_branch
        %457 = sbr.rel (%p455) target = $region52
      $region51: #{spatial_block.2} parent=11 // pred_region
        _
      $region52: #{spatial_block.2} parent=11 // pred_fallthru
        _
      // Predicated region
      $region53: #{spatial_block.2} parent=11 // pred_check
        %p458 = pneg %p294
      $region54: #{spatial_block.2} parent=11 // pred_check_branch
        %460 = sbr.rel (%p458) target = $region56
      $region55: #{spatial_block.2} parent=11 // pred_region
        _
      $region56: #{spatial_block.2} parent=11 // pred_fallthru
        _
      // Predicated region
      $region57: #{spatial_block.2} parent=11 // pred_check
        %p461 = pneg %p315
      $region58: #{spatial_block.2} parent=11 // pred_check_branch
        %463 = sbr.rel (%p461) target = $region60
      $region59: #{spatial_block.2} parent=11 // pred_region
        _
      $region60: #{spatial_block.2} parent=11 // pred_fallthru
        _
      // Predicated region
      $region61: #{spatial_block.2} parent=11 // pred_check
        %p464 = pneg %p336
      $region62: #{spatial_block.2} parent=11 // pred_check_branch
        %466 = sbr.rel (%p464) target = $region64
      $region63: #{spatial_block.2} parent=11 // pred_region
        _
      $region64: #{spatial_block.2} parent=11 // pred_fallthru
        _
      // Predicated region
      $region65: #{spatial_block.2} parent=11 // pred_check
        %p467 = pneg %p357
      $region66: #{spatial_block.2} parent=11 // pred_check_branch
        %469 = sbr.rel (%p467) target = $region68
      $region67: #{spatial_block.2} parent=11 // pred_region
        _
      $region68: #{spatial_block.2} parent=11 // pred_fallthru
        _
    $region12: #{spatial_block.2} parent=5 // pred_fallthru
      _
    %p470 = scmp.lt.s32.totalorder %s23, 2
    // Predicated region
    $region69: #{spatial_block.2} parent=5 // pred_check
      %p471 = pneg %p470
    $region70: #{spatial_block.2} parent=5 // pred_check_branch
      %473 = sbr.rel (%p471) target = $region72
    $region71: #{spatial_block.2} parent=5 // pred_region
      // Predicated region
      $region73: #{spatial_block.2} parent=71 // pred_check
        %p474 = pneg %p57
      $region74: #{spatial_block.2} parent=71 // pred_check_branch
        %476 = sbr.rel (%p474) target = $region76
      $region75: #{spatial_block.2} parent=71 // pred_region
        %s477 = smul.u32 2, %s31
        %p478 = scmp.lt.s32.totalorder %s30, 1
        %s479 = scalar_select %p478, %s30, 1
        %p480 = scmp.lt.s32.totalorder %s477, 1
        %s481 = scalar_select %p480, %s477, 1
        %s482 = smul.addr %s479, 128
        %s483 = sadd.s32 %s481, %s482
        %s484 = smul.addr %s483, 8
        %s485 = scalar_lea.vmem %s0, %s484
        %s486 = smul.u32 2, %s31
      $region76: #{spatial_block.2} parent=71 // pred_fallthru
        _
    $region72: #{spatial_block.2} parent=5 // pred_fallthru
      _
    %p487 = scmp.le.s32.totalorder 1, %s23
    %p488 = scmp.lt.s32.totalorder %s23, 3
    %p489 = pnand %p487, %p488
    %p490 = pneg %p489
    // Predicated region
    $region77: #{spatial_block.2} parent=5 // pred_check
      _
    $region78: #{spatial_block.2} parent=5 // pred_check_branch
      %492 = sbr.rel (%p489) target = $region80
    $region79: #{spatial_block.2} parent=5 // pred_region
      %s493 = ssub.s32 %s23, 1
      %s494 = smul.u32 2, %s33
      %p495 = scmp.lt.s32.totalorder %s32, 1
      %s496 = scalar_select %p495, %s32, 1
      %p497 = scmp.lt.s32.totalorder %s494, 1
      %s498 = scalar_select %p497, %s494, 1
      %s499 = smul.addr %s496, 128
      %s500 = sadd.s32 %s498, %s499
      %s501 = smul.addr %s500, 8
      %s502 = scalar_lea.vmem %s0, %s501
      %p503 = pneg %p63
      %p504 = pneg %p60
      %p505 = pneg %p84
      %p506 = pneg %p81
      %p507 = pneg %p105
      %p508 = pneg %p102
      %p509 = pneg %p126
      %p510 = pneg %p123
      %p511 = pneg %p147
      %p512 = pneg %p144
      %p513 = pneg %p168
      %p514 = pneg %p165
      %p515 = pneg %p189
      %p516 = pneg %p186
      %p517 = pneg %p210
      %p518 = pneg %p207
      %p519 = pneg %p231
      %p520 = pneg %p228
      %p521 = pneg %p252
      %p522 = pneg %p249
      %p523 = pneg %p273
      %p524 = pneg %p270
      %p525 = pneg %p294
      %p526 = pneg %p291
      %p527 = pneg %p315
      %p528 = pneg %p312
      %p529 = pneg %p336
      %p530 = pneg %p333
      %p531 = pneg %p357
      %p532 = pneg %p354
      %p533 = pneg %p385
      %p534 = pneg %p382
      %s535 = smul.u32 2, %s33
      %p536 = scmp.lt.s32.totalorder %s32, 1
      %s537 = scalar_select %p536, %s32, 1
      %p538 = scmp.lt.s32.totalorder %s535, 1
      %s539 = scalar_select %p538, %s535, 1
      %s540 = smul.addr %s537, 128
      %s541 = sadd.s32 %s539, %s540
      %s542 = smul.addr %s541, 4
      %s543 = scalar_lea.vmem %s15, %s542
      %p544 = pneg %p413
      %p545 = pneg %p410
      %p546 = scmp.lt.s32.totalorder %s32, 1
      %s547 = scalar_select %p546, %s32, 1
      %p548 = scmp.lt.s32.totalorder %s33, 0
      %s549 = scalar_select %p548, %s33, 0
      %s550 = smul.addr %s549, 64
      %s551 = smul.addr %s547, 64
      %s552 = sadd.s32 %s550, %s551
      %s553 = smul.addr %s552, 8
      %s554 = scalar_lea.vmem %s16, %s553
      %s555 = smul.u32 2, %s33
      %p556 = scmp.lt.s32.totalorder %s32, 1
      %s557 = scalar_select %p556, %s32, 1
      %p558 = scmp.lt.s32.totalorder %s555, 1
      %s559 = scalar_select %p558, %s555, 1
      %s560 = smul.addr %s557, 128
      %s561 = sadd.s32 %s559, %s560
      %s562 = smul.addr %s561, 8
      %s563 = scalar_lea.vmem %s0, %s562
      %s564 = smul.u32 2, %s33
      %s565 = smul.u32 2, %s33
      %p566 = scmp.lt.s32.totalorder %s32, 1
      %s567 = scalar_select %p566, %s32, 1
      %p568 = scmp.lt.s32.totalorder %s565, 1
      %s569 = scalar_select %p568, %s565, 1
      %s570 = smul.addr %s567, 128
      %s571 = sadd.s32 %s569, %s570
      %s572 = smul.addr %s571, 4
      %s573 = scalar_lea.vmem %s15, %s572
      %s574 = smul.u32 2, %s33
      %p575 = scmp.lt.s32.totalorder %s32, 1
      %s576 = scalar_select %p575, %s32, 1
      %p577 = scmp.lt.s32.totalorder %s33, 0
      %s578 = scalar_select %p577, %s33, 0
      %s579 = smul.addr %s578, 64
      %s580 = smul.addr %s576, 64
      %s581 = sadd.s32 %s579, %s580
      %s582 = smul.addr %s581, 8
      %s583 = scalar_lea.vmem %s16, %s582
      %v585 = vld [vmem:[%s563] sm:$0xff]
      %v586 = vld [vmem:[%s563 + $0x8] sm:$0xff]
      %v587 = vld [vmem:[%s563 + $0x10] sm:$0xff]
      %v588 = vld [vmem:[%s563 + $0x18] sm:$0xff]
      %v589 = vld [vmem:[%s563 + $0x20] sm:$0xff]
      %v590 = vld [vmem:[%s563 + $0x28] sm:$0xff]
      %v591 = vld [vmem:[%s563 + $0x30] sm:$0xff]
      %v592 = vld [vmem:[%s563 + $0x38] sm:$0xff]
      %v593 = vld [vmem:[%s563 + $0x40] sm:$0xff]
      %v594 = vld [vmem:[%s563 + $0x48] sm:$0xff]
      %v595 = vld [vmem:[%s563 + $0x50] sm:$0xff]
      %v596 = vld [vmem:[%s563 + $0x58] sm:$0xff]
      %v597 = vld [vmem:[%s563 + $0x60] sm:$0xff]
      %v598 = vld [vmem:[%s563 + $0x68] sm:$0xff]
      %v599 = vld [vmem:[%s563 + $0x70] sm:$0xff]
      %v600 = vld [vmem:[%s563 + $0x78] sm:$0xff]
      %v601 = vld [vmem:[%s563 + $0x80] sm:$0xff]
      %v602 = vld [vmem:[%s563 + $0x88] sm:$0xff]
      %v603 = vld [vmem:[%s563 + $0x90] sm:$0xff]
      %v604 = vld [vmem:[%s563 + $0x98] sm:$0xff]
      %v605 = vld [vmem:[%s563 + $0xa0] sm:$0xff]
      %v606 = vld [vmem:[%s563 + $0xa8] sm:$0xff]
      %v607 = vld [vmem:[%s563 + $0xb0] sm:$0xff]
      %v608 = vld [vmem:[%s563 + $0xb8] sm:$0xff]
      %v609 = vld [vmem:[%s563 + $0xc0] sm:$0xff]
      %v610 = vld [vmem:[%s563 + $0xc8] sm:$0xff]
      %v611 = vld [vmem:[%s563 + $0xd0] sm:$0xff]
      %v612 = vld [vmem:[%s563 + $0xd8] sm:$0xff]
      %v613 = vld [vmem:[%s563 + $0xe0] sm:$0xff]
      %v614 = vld [vmem:[%s563 + $0xe8] sm:$0xff]
      %v615 = vld [vmem:[%s563 + $0xf0] sm:$0xff]
      %v616 = vld [vmem:[%s563 + $0xf8] sm:$0xff]
      %v617 = vld [vmem:[%s563 + $0x100] sm:$0xff]
      %v618 = vld [vmem:[%s563 + $0x108] sm:$0xff]
      %v619 = vld [vmem:[%s563 + $0x110] sm:$0xff]
      %v620 = vld [vmem:[%s563 + $0x118] sm:$0xff]
      %v621 = vld [vmem:[%s563 + $0x120] sm:$0xff]
      %v622 = vld [vmem:[%s563 + $0x128] sm:$0xff]
      %v623 = vld [vmem:[%s563 + $0x130] sm:$0xff]
      %v624 = vld [vmem:[%s563 + $0x138] sm:$0xff]
      %v625 = vld [vmem:[%s563 + $0x140] sm:$0xff]
      %v626 = vld [vmem:[%s563 + $0x148] sm:$0xff]
      %v627 = vld [vmem:[%s563 + $0x150] sm:$0xff]
      %v628 = vld [vmem:[%s563 + $0x158] sm:$0xff]
      %v629 = vld [vmem:[%s563 + $0x160] sm:$0xff]
      %v630 = vld [vmem:[%s563 + $0x168] sm:$0xff]
      %v631 = vld [vmem:[%s563 + $0x170] sm:$0xff]
      %v632 = vld [vmem:[%s563 + $0x178] sm:$0xff]
      %v633 = vld [vmem:[%s563 + $0x180] sm:$0xff]
      %v634 = vld [vmem:[%s563 + $0x188] sm:$0xff]
      %v635 = vld [vmem:[%s563 + $0x190] sm:$0xff]
      %v636 = vld [vmem:[%s563 + $0x198] sm:$0xff]
      %v637 = vld [vmem:[%s563 + $0x1a0] sm:$0xff]
      %v638 = vld [vmem:[%s563 + $0x1a8] sm:$0xff]
      %v639 = vld [vmem:[%s563 + $0x1b0] sm:$0xff]
      %v640 = vld [vmem:[%s563 + $0x1b8] sm:$0xff]
      %v641 = vld [vmem:[%s563 + $0x1c0] sm:$0xff]
      %v642 = vld [vmem:[%s563 + $0x1c8] sm:$0xff]
      %v643 = vld [vmem:[%s563 + $0x1d0] sm:$0xff]
      %v644 = vld [vmem:[%s563 + $0x1d8] sm:$0xff]
      %v645 = vld [vmem:[%s563 + $0x1e0] sm:$0xff]
      %v646 = vld [vmem:[%s563 + $0x1e8] sm:$0xff]
      %v647 = vld [vmem:[%s563 + $0x1f0] sm:$0xff]
      %v648 = vld [vmem:[%s563 + $0x1f8] sm:$0xff]
      %v649 = vld [vmem:[%s563 + $0x200] sm:$0xff]
      %v650 = vld [vmem:[%s563 + $0x208] sm:$0xff]
      %v651 = vld [vmem:[%s563 + $0x210] sm:$0xff]
      %v652 = vld [vmem:[%s563 + $0x218] sm:$0xff]
      %v653 = vld [vmem:[%s563 + $0x220] sm:$0xff]
      %v654 = vld [vmem:[%s563 + $0x228] sm:$0xff]
      %v655 = vld [vmem:[%s563 + $0x230] sm:$0xff]
      %v656 = vld [vmem:[%s563 + $0x238] sm:$0xff]
      %v657 = vld [vmem:[%s563 + $0x240] sm:$0xff]
      %v658 = vld [vmem:[%s563 + $0x248] sm:$0xff]
      %v659 = vld [vmem:[%s563 + $0x250] sm:$0xff]
      %v660 = vld [vmem:[%s563 + $0x258] sm:$0xff]
      %v661 = vld [vmem:[%s563 + $0x260] sm:$0xff]
      %v662 = vld [vmem:[%s563 + $0x268] sm:$0xff]
      %v663 = vld [vmem:[%s563 + $0x270] sm:$0xff]
      %v664 = vld [vmem:[%s563 + $0x278] sm:$0xff]
      %v665 = vld [vmem:[%s563 + $0x280] sm:$0xff]
      %v666 = vld [vmem:[%s563 + $0x288] sm:$0xff]
      %v667 = vld [vmem:[%s563 + $0x290] sm:$0xff]
      %v668 = vld [vmem:[%s563 + $0x298] sm:$0xff]
      %v669 = vld [vmem:[%s563 + $0x2a0] sm:$0xff]
      %v670 = vld [vmem:[%s563 + $0x2a8] sm:$0xff]
      %v671 = vld [vmem:[%s563 + $0x2b0] sm:$0xff]
      %v672 = vld [vmem:[%s563 + $0x2b8] sm:$0xff]
      %v673 = vld [vmem:[%s563 + $0x2c0] sm:$0xff]
      %v674 = vld [vmem:[%s563 + $0x2c8] sm:$0xff]
      %v675 = vld [vmem:[%s563 + $0x2d0] sm:$0xff]
      %v676 = vld [vmem:[%s563 + $0x2d8] sm:$0xff]
      %v677 = vld [vmem:[%s563 + $0x2e0] sm:$0xff]
      %v678 = vld [vmem:[%s563 + $0x2e8] sm:$0xff]
      %v679 = vld [vmem:[%s563 + $0x2f0] sm:$0xff]
      %v680 = vld [vmem:[%s563 + $0x2f8] sm:$0xff]
      %v681 = vld [vmem:[%s563 + $0x300] sm:$0xff]
      %v682 = vld [vmem:[%s563 + $0x308] sm:$0xff]
      %v683 = vld [vmem:[%s563 + $0x310] sm:$0xff]
      %v684 = vld [vmem:[%s563 + $0x318] sm:$0xff]
      %v685 = vld [vmem:[%s563 + $0x320] sm:$0xff]
      %v686 = vld [vmem:[%s563 + $0x328] sm:$0xff]
      %v687 = vld [vmem:[%s563 + $0x330] sm:$0xff]
      %v688 = vld [vmem:[%s563 + $0x338] sm:$0xff]
      %v689 = vld [vmem:[%s563 + $0x340] sm:$0xff]
      %v690 = vld [vmem:[%s563 + $0x348] sm:$0xff]
      %v691 = vld [vmem:[%s563 + $0x350] sm:$0xff]
      %v692 = vld [vmem:[%s563 + $0x358] sm:$0xff]
      %v693 = vld [vmem:[%s563 + $0x360] sm:$0xff]
      %v694 = vld [vmem:[%s563 + $0x368] sm:$0xff]
      %v695 = vld [vmem:[%s563 + $0x370] sm:$0xff]
      %v696 = vld [vmem:[%s563 + $0x378] sm:$0xff]
      %v697 = vld [vmem:[%s563 + $0x380] sm:$0xff]
      %v698 = vld [vmem:[%s563 + $0x388] sm:$0xff]
      %v699 = vld [vmem:[%s563 + $0x390] sm:$0xff]
      %v700 = vld [vmem:[%s563 + $0x398] sm:$0xff]
      %v701 = vld [vmem:[%s563 + $0x3a0] sm:$0xff]
      %v702 = vld [vmem:[%s563 + $0x3a8] sm:$0xff]
      %v703 = vld [vmem:[%s563 + $0x3b0] sm:$0xff]
      %v704 = vld [vmem:[%s563 + $0x3b8] sm:$0xff]
      %v705 = vld [vmem:[%s563 + $0x3c0] sm:$0xff]
      %v706 = vld [vmem:[%s563 + $0x3c8] sm:$0xff]
      %v707 = vld [vmem:[%s563 + $0x3d0] sm:$0xff]
      %v708 = vld [vmem:[%s563 + $0x3d8] sm:$0xff]
      %v709 = vld [vmem:[%s563 + $0x3e0] sm:$0xff]
      %v710 = vld [vmem:[%s563 + $0x3e8] sm:$0xff]
      %v711 = vld [vmem:[%s563 + $0x3f0] sm:$0xff]
      %v712 = vld [vmem:[%s563 + $0x3f8] sm:$0xff]
      %v713 = vpack.c.bf16 %v587, %v585
      %v714 = vpack.c.bf16 %v588, %v586
      %v715 = vpack.c.bf16 %v591, %v589
      %v716 = vpack.c.bf16 %v592, %v590
      %v717 = vpack.c.bf16 %v595, %v593
      %v718 = vpack.c.bf16 %v596, %v594
      %v719 = vpack.c.bf16 %v599, %v597
      %v720 = vpack.c.bf16 %v600, %v598
      %v721 = vpack.c.bf16 %v603, %v601
      %v722 = vpack.c.bf16 %v604, %v602
      %v723 = vpack.c.bf16 %v607, %v605
      %v724 = vpack.c.bf16 %v608, %v606
      %v725 = vpack.c.bf16 %v611, %v609
      %v726 = vpack.c.bf16 %v612, %v610
      %v727 = vpack.c.bf16 %v615, %v613
      %v728 = vpack.c.bf16 %v616, %v614
      %v729 = vpack.c.bf16 %v619, %v617
      %v730 = vpack.c.bf16 %v620, %v618
      %v731 = vpack.c.bf16 %v623, %v621
      %v732 = vpack.c.bf16 %v624, %v622
      %v733 = vpack.c.bf16 %v627, %v625
      %v734 = vpack.c.bf16 %v628, %v626
      %v735 = vpack.c.bf16 %v631, %v629
      %v736 = vpack.c.bf16 %v632, %v630
      %v737 = vpack.c.bf16 %v635, %v633
      %v738 = vpack.c.bf16 %v636, %v634
      %v739 = vpack.c.bf16 %v639, %v637
      %v740 = vpack.c.bf16 %v640, %v638
      %v741 = vpack.c.bf16 %v643, %v641
      %v742 = vpack.c.bf16 %v644, %v642
      %v743 = vpack.c.bf16 %v647, %v645
      %v744 = vpack.c.bf16 %v648, %v646
      %v745 = vpack.c.bf16 %v651, %v649
      %v746 = vpack.c.bf16 %v652, %v650
      %v747 = vpack.c.bf16 %v655, %v653
      %v748 = vpack.c.bf16 %v656, %v654
      %v749 = vpack.c.bf16 %v659, %v657
      %v750 = vpack.c.bf16 %v660, %v658
      %v751 = vpack.c.bf16 %v663, %v661
      %v752 = vpack.c.bf16 %v664, %v662
      %v753 = vpack.c.bf16 %v667, %v665
      %v754 = vpack.c.bf16 %v668, %v666
      %v755 = vpack.c.bf16 %v671, %v669
      %v756 = vpack.c.bf16 %v672, %v670
      %v757 = vpack.c.bf16 %v675, %v673
      %v758 = vpack.c.bf16 %v676, %v674
      %v759 = vpack.c.bf16 %v679, %v677
      %v760 = vpack.c.bf16 %v680, %v678
      %v761 = vpack.c.bf16 %v683, %v681
      %v762 = vpack.c.bf16 %v684, %v682
      %v763 = vpack.c.bf16 %v687, %v685
      %v764 = vpack.c.bf16 %v688, %v686
      %v765 = vpack.c.bf16 %v691, %v689
      %v766 = vpack.c.bf16 %v692, %v690
      %v767 = vpack.c.bf16 %v695, %v693
      %v768 = vpack.c.bf16 %v696, %v694
      %v769 = vpack.c.bf16 %v699, %v697
      %v770 = vpack.c.bf16 %v700, %v698
      %v771 = vpack.c.bf16 %v703, %v701
      %v772 = vpack.c.bf16 %v704, %v702
      %v773 = vpack.c.bf16 %v707, %v705
      %v774 = vpack.c.bf16 %v708, %v706
      %v775 = vpack.c.bf16 %v711, %v709
      %v776 = vpack.c.bf16 %v712, %v710
      %v841 = vunpack.c.l.b16 %v713
      %v842 = vunpack.c.l.b16 %v714
      %v843 = vunpack.c.h.b16 %v713
      %v844 = vunpack.c.h.b16 %v714
      %v845 = vunpack.c.l.b16 %v715
      %v846 = vunpack.c.l.b16 %v716
      %v847 = vunpack.c.h.b16 %v715
      %v848 = vunpack.c.h.b16 %v716
      %v849 = vunpack.c.l.b16 %v717
      %v850 = vunpack.c.l.b16 %v718
      %v851 = vunpack.c.h.b16 %v717
      %v852 = vunpack.c.h.b16 %v718
      %v853 = vunpack.c.l.b16 %v719
      %v854 = vunpack.c.l.b16 %v720
      %v855 = vunpack.c.h.b16 %v719
      %v856 = vunpack.c.h.b16 %v720
      %v857 = vunpack.c.l.b16 %v721
      %v858 = vunpack.c.l.b16 %v722
      %v859 = vunpack.c.h.b16 %v721
      %v860 = vunpack.c.h.b16 %v722
      %v861 = vunpack.c.l.b16 %v723
      %v862 = vunpack.c.l.b16 %v724
      %v863 = vunpack.c.h.b16 %v723
      %v864 = vunpack.c.h.b16 %v724
      %v865 = vunpack.c.l.b16 %v725
      %v866 = vunpack.c.l.b16 %v726
      %v867 = vunpack.c.h.b16 %v725
      %v868 = vunpack.c.h.b16 %v726
      %v869 = vunpack.c.l.b16 %v727
      %v870 = vunpack.c.l.b16 %v728
      %v871 = vunpack.c.h.b16 %v727
      %v872 = vunpack.c.h.b16 %v728
      %v873 = vunpack.c.l.b16 %v729
      %v874 = vunpack.c.l.b16 %v730
      %v875 = vunpack.c.h.b16 %v729
      %v876 = vunpack.c.h.b16 %v730
      %v877 = vunpack.c.l.b16 %v731
      %v878 = vunpack.c.l.b16 %v732
      %v879 = vunpack.c.h.b16 %v731
      %v880 = vunpack.c.h.b16 %v732
      %v881 = vunpack.c.l.b16 %v733
      %v882 = vunpack.c.l.b16 %v734
      %v883 = vunpack.c.h.b16 %v733
      %v884 = vunpack.c.h.b16 %v734
      %v885 = vunpack.c.l.b16 %v735
      %v886 = vunpack.c.l.b16 %v736
      %v887 = vunpack.c.h.b16 %v735
      %v888 = vunpack.c.h.b16 %v736
      %v889 = vunpack.c.l.b16 %v737
      %v890 = vunpack.c.l.b16 %v738
      %v891 = vunpack.c.h.b16 %v737
      %v892 = vunpack.c.h.b16 %v738
      %v893 = vunpack.c.l.b16 %v739
      %v894 = vunpack.c.l.b16 %v740
      %v895 = vunpack.c.h.b16 %v739
      %v896 = vunpack.c.h.b16 %v740
      %v897 = vunpack.c.l.b16 %v741
      %v898 = vunpack.c.l.b16 %v742
      %v899 = vunpack.c.h.b16 %v741
      %v900 = vunpack.c.h.b16 %v742
      %v901 = vunpack.c.l.b16 %v743
      %v902 = vunpack.c.l.b16 %v744
      %v903 = vunpack.c.h.b16 %v743
      %v904 = vunpack.c.h.b16 %v744
      %v905 = vunpack.c.l.b16 %v745
      %v906 = vunpack.c.l.b16 %v746
      %v907 = vunpack.c.h.b16 %v745
      %v908 = vunpack.c.h.b16 %v746
      %v909 = vunpack.c.l.b16 %v747
      %v910 = vunpack.c.l.b16 %v748
      %v911 = vunpack.c.h.b16 %v747
      %v912 = vunpack.c.h.b16 %v748
      %v913 = vunpack.c.l.b16 %v749
      %v914 = vunpack.c.l.b16 %v750
      %v915 = vunpack.c.h.b16 %v749
      %v916 = vunpack.c.h.b16 %v750
      %v917 = vunpack.c.l.b16 %v751
      %v918 = vunpack.c.l.b16 %v752
      %v919 = vunpack.c.h.b16 %v751
      %v920 = vunpack.c.h.b16 %v752
      %v921 = vunpack.c.l.b16 %v753
      %v922 = vunpack.c.l.b16 %v754
      %v923 = vunpack.c.h.b16 %v753
      %v924 = vunpack.c.h.b16 %v754
      %v925 = vunpack.c.l.b16 %v755
      %v926 = vunpack.c.l.b16 %v756
      %v927 = vunpack.c.h.b16 %v755
      %v928 = vunpack.c.h.b16 %v756
      %v929 = vunpack.c.l.b16 %v757
      %v930 = vunpack.c.l.b16 %v758
      %v931 = vunpack.c.h.b16 %v757
      %v932 = vunpack.c.h.b16 %v758
      %v933 = vunpack.c.l.b16 %v759
      %v934 = vunpack.c.l.b16 %v760
      %v935 = vunpack.c.h.b16 %v759
      %v936 = vunpack.c.h.b16 %v760
      %v937 = vunpack.c.l.b16 %v761
      %v938 = vunpack.c.l.b16 %v762
      %v939 = vunpack.c.h.b16 %v761
      %v940 = vunpack.c.h.b16 %v762
      %v941 = vunpack.c.l.b16 %v763
      %v942 = vunpack.c.l.b16 %v764
      %v943 = vunpack.c.h.b16 %v763
      %v944 = vunpack.c.h.b16 %v764
      %v945 = vunpack.c.l.b16 %v765
      %v946 = vunpack.c.l.b16 %v766
      %v947 = vunpack.c.h.b16 %v765
      %v948 = vunpack.c.h.b16 %v766
      %v949 = vunpack.c.l.b16 %v767
      %v950 = vunpack.c.l.b16 %v768
      %v951 = vunpack.c.h.b16 %v767
      %v952 = vunpack.c.h.b16 %v768
      %v953 = vunpack.c.l.b16 %v769
      %v954 = vunpack.c.l.b16 %v770
      %v955 = vunpack.c.h.b16 %v769
      %v956 = vunpack.c.h.b16 %v770
      %v957 = vunpack.c.l.b16 %v771
      %v958 = vunpack.c.l.b16 %v772
      %v959 = vunpack.c.h.b16 %v771
      %v960 = vunpack.c.h.b16 %v772
      %v961 = vunpack.c.l.b16 %v773
      %v962 = vunpack.c.l.b16 %v774
      %v963 = vunpack.c.h.b16 %v773
      %v964 = vunpack.c.h.b16 %v774
      %v965 = vunpack.c.l.b16 %v775
      %v966 = vunpack.c.l.b16 %v776
      %v967 = vunpack.c.h.b16 %v775
      %v968 = vunpack.c.h.b16 %v776
      %v969 = vpack.c.b16 %v842, %v841
      %v970 = vpack.c.b16 %v844, %v843
      %v971 = vpack.c.b16 %v846, %v845
      %v972 = vpack.c.b16 %v848, %v847
      %v973 = vpack.c.b16 %v850, %v849
      %v974 = vpack.c.b16 %v852, %v851
      %v975 = vpack.c.b16 %v854, %v853
      %v976 = vpack.c.b16 %v856, %v855
      %v977 = vpack.c.b16 %v858, %v857
      %v978 = vpack.c.b16 %v860, %v859
      %v979 = vpack.c.b16 %v862, %v861
      %v980 = vpack.c.b16 %v864, %v863
      %v981 = vpack.c.b16 %v866, %v865
      %v982 = vpack.c.b16 %v868, %v867
      %v983 = vpack.c.b16 %v870, %v869
      %v984 = vpack.c.b16 %v872, %v871
      %v985 = vpack.c.b16 %v874, %v873
      %v986 = vpack.c.b16 %v876, %v875
      %v987 = vpack.c.b16 %v878, %v877
      %v988 = vpack.c.b16 %v880, %v879
      %v989 = vpack.c.b16 %v882, %v881
      %v990 = vpack.c.b16 %v884, %v883
      %v991 = vpack.c.b16 %v886, %v885
      %v992 = vpack.c.b16 %v888, %v887
      %v993 = vpack.c.b16 %v890, %v889
      %v994 = vpack.c.b16 %v892, %v891
      %v995 = vpack.c.b16 %v894, %v893
      %v996 = vpack.c.b16 %v896, %v895
      %v997 = vpack.c.b16 %v898, %v897
      %v998 = vpack.c.b16 %v900, %v899
      %v999 = vpack.c.b16 %v902, %v901
      %v1000 = vpack.c.b16 %v904, %v903
      %v1001 = vpack.c.b16 %v906, %v905
      %v1002 = vpack.c.b16 %v908, %v907
      %v1003 = vpack.c.b16 %v910, %v909
      %v1004 = vpack.c.b16 %v912, %v911
      %v1005 = vpack.c.b16 %v914, %v913
      %v1006 = vpack.c.b16 %v916, %v915
      %v1007 = vpack.c.b16 %v918, %v917
      %v1008 = vpack.c.b16 %v920, %v919
      %v1009 = vpack.c.b16 %v922, %v921
      %v1010 = vpack.c.b16 %v924, %v923
      %v1011 = vpack.c.b16 %v926, %v925
      %v1012 = vpack.c.b16 %v928, %v927
      %v1013 = vpack.c.b16 %v930, %v929
      %v1014 = vpack.c.b16 %v932, %v931
      %v1015 = vpack.c.b16 %v934, %v933
      %v1016 = vpack.c.b16 %v936, %v935
      %v1017 = vpack.c.b16 %v938, %v937
      %v1018 = vpack.c.b16 %v940, %v939
      %v1019 = vpack.c.b16 %v942, %v941
      %v1020 = vpack.c.b16 %v944, %v943
      %v1021 = vpack.c.b16 %v946, %v945
      %v1022 = vpack.c.b16 %v948, %v947
      %v1023 = vpack.c.b16 %v950, %v949
      %v1024 = vpack.c.b16 %v952, %v951
      %v1025 = vpack.c.b16 %v954, %v953
      %v1026 = vpack.c.b16 %v956, %v955
      %v1027 = vpack.c.b16 %v958, %v957
      %v1028 = vpack.c.b16 %v960, %v959
      %v1029 = vpack.c.b16 %v962, %v961
      %v1030 = vpack.c.b16 %v964, %v963
      %v1031 = vpack.c.b16 %v966, %v965
      %v1032 = vpack.c.b16 %v968, %v967
      %1097 = vst [vmem:[#allocation2] sm:$0xff] %v969
      %1098 = vst [vmem:[#allocation2 + $0x8] sm:$0xff] %v970
      %1099 = vst [vmem:[#allocation2 + $0x10] sm:$0xff] %v971
      %1100 = vst [vmem:[#allocation2 + $0x18] sm:$0xff] %v972
      %1101 = vst [vmem:[#allocation2 + $0x20] sm:$0xff] %v973
      %1102 = vst [vmem:[#allocation2 + $0x28] sm:$0xff] %v974
      %1103 = vst [vmem:[#allocation2 + $0x30] sm:$0xff] %v975
      %1104 = vst [vmem:[#allocation2 + $0x38] sm:$0xff] %v976
      %1105 = vst [vmem:[#allocation2 + $0x40] sm:$0xff] %v977
      %1106 = vst [vmem:[#allocation2 + $0x48] sm:$0xff] %v978
      %1107 = vst [vmem:[#allocation2 + $0x50] sm:$0xff] %v979
      %1108 = vst [vmem:[#allocation2 + $0x58] sm:$0xff] %v980
      %1109 = vst [vmem:[#allocation2 + $0x60] sm:$0xff] %v981
      %1110 = vst [vmem:[#allocation2 + $0x68] sm:$0xff] %v982
      %1111 = vst [vmem:[#allocation2 + $0x70] sm:$0xff] %v983
      %1112 = vst [vmem:[#allocation2 + $0x78] sm:$0xff] %v984
      %1113 = vst [vmem:[#allocation2 + $0x80] sm:$0xff] %v985
      %1114 = vst [vmem:[#allocation2 + $0x88] sm:$0xff] %v986
      %1115 = vst [vmem:[#allocation2 + $0x90] sm:$0xff] %v987
      %1116 = vst [vmem:[#allocation2 + $0x98] sm:$0xff] %v988
      %1117 = vst [vmem:[#allocation2 + $0xa0] sm:$0xff] %v989
      %1118 = vst [vmem:[#allocation2 + $0xa8] sm:$0xff] %v990
      %1119 = vst [vmem:[#allocation2 + $0xb0] sm:$0xff] %v991
      %1120 = vst [vmem:[#allocation2 + $0xb8] sm:$0xff] %v992
      %1121 = vst [vmem:[#allocation2 + $0xc0] sm:$0xff] %v993
      %1122 = vst [vmem:[#allocation2 + $0xc8] sm:$0xff] %v994
      %1123 = vst [vmem:[#allocation2 + $0xd0] sm:$0xff] %v995
      %1124 = vst [vmem:[#allocation2 + $0xd8] sm:$0xff] %v996
      %1125 = vst [vmem:[#allocation2 + $0xe0] sm:$0xff] %v997
      %1126 = vst [vmem:[#allocation2 + $0xe8] sm:$0xff] %v998
      %1127 = vst [vmem:[#allocation2 + $0xf0] sm:$0xff] %v999
      %1128 = vst [vmem:[#allocation2 + $0xf8] sm:$0xff] %v1000
      %1129 = vst [vmem:[#allocation2 + $0x100] sm:$0xff] %v1001
      %1130 = vst [vmem:[#allocation2 + $0x108] sm:$0xff] %v1002
      %1131 = vst [vmem:[#allocation2 + $0x110] sm:$0xff] %v1003
      %1132 = vst [vmem:[#allocation2 + $0x118] sm:$0xff] %v1004
      %1133 = vst [vmem:[#allocation2 + $0x120] sm:$0xff] %v1005
      %1134 = vst [vmem:[#allocation2 + $0x128] sm:$0xff] %v1006
      %1135 = vst [vmem:[#allocation2 + $0x130] sm:$0xff] %v1007
      %1136 = vst [vmem:[#allocation2 + $0x138] sm:$0xff] %v1008
      %1137 = vst [vmem:[#allocation2 + $0x140] sm:$0xff] %v1009
      %1138 = vst [vmem:[#allocation2 + $0x148] sm:$0xff] %v1010
      %1139 = vst [vmem:[#allocation2 + $0x150] sm:$0xff] %v1011
      %1140 = vst [vmem:[#allocation2 + $0x158] sm:$0xff] %v1012
      %1141 = vst [vmem:[#allocation2 + $0x160] sm:$0xff] %v1013
      %1142 = vst [vmem:[#allocation2 + $0x168] sm:$0xff] %v1014
      %1143 = vst [vmem:[#allocation2 + $0x170] sm:$0xff] %v1015
      %1144 = vst [vmem:[#allocation2 + $0x178] sm:$0xff] %v1016
      %1145 = vst [vmem:[#allocation2 + $0x180] sm:$0xff] %v1017
      %1146 = vst [vmem:[#allocation2 + $0x188] sm:$0xff] %v1018
      %1147 = vst [vmem:[#allocation2 + $0x190] sm:$0xff] %v1019
      %1148 = vst [vmem:[#allocation2 + $0x198] sm:$0xff] %v1020
      %1149 = vst [vmem:[#allocation2 + $0x1a0] sm:$0xff] %v1021
      %1150 = vst [vmem:[#allocation2 + $0x1a8] sm:$0xff] %v1022
      %1151 = vst [vmem:[#allocation2 + $0x1b0] sm:$0xff] %v1023
      %1152 = vst [vmem:[#allocation2 + $0x1b8] sm:$0xff] %v1024
      %1153 = vst [vmem:[#allocation2 + $0x1c0] sm:$0xff] %v1025
      %1154 = vst [vmem:[#allocation2 + $0x1c8] sm:$0xff] %v1026
      %1155 = vst [vmem:[#allocation2 + $0x1d0] sm:$0xff] %v1027
      %1156 = vst [vmem:[#allocation2 + $0x1d8] sm:$0xff] %v1028
      %1157 = vst [vmem:[#allocation2 + $0x1e0] sm:$0xff] %v1029
      %1158 = vst [vmem:[#allocation2 + $0x1e8] sm:$0xff] %v1030
      %1159 = vst [vmem:[#allocation2 + $0x1f0] sm:$0xff] %v1031
      %1160 = vst [vmem:[#allocation2 + $0x1f8] sm:$0xff] %v1032
      %v1161 = vld [vmem:[#allocation2] sm:$0xff]
      %v1162 = vld [vmem:[#allocation2 + $0x8] sm:$0xff]
      %v1163 = vld [vmem:[#allocation2 + $0x10] sm:$0xff]
      %v1164 = vld [vmem:[#allocation2 + $0x18] sm:$0xff]
      %v1165 = vld [vmem:[#allocation2 + $0x20] sm:$0xff]
      %v1166 = vld [vmem:[#allocation2 + $0x28] sm:$0xff]
      %v1167 = vld [vmem:[#allocation2 + $0x30] sm:$0xff]
      %v1168 = vld [vmem:[#allocation2 + $0x38] sm:$0xff]
      %v1169 = vld [vmem:[#allocation2 + $0x40] sm:$0xff]
      %v1170 = vld [vmem:[#allocation2 + $0x48] sm:$0xff]
      %v1171 = vld [vmem:[#allocation2 + $0x50] sm:$0xff]
      %v1172 = vld [vmem:[#allocation2 + $0x58] sm:$0xff]
      %v1173 = vld [vmem:[#allocation2 + $0x60] sm:$0xff]
      %v1174 = vld [vmem:[#allocation2 + $0x68] sm:$0xff]
      %v1175 = vld [vmem:[#allocation2 + $0x70] sm:$0xff]
      %v1176 = vld [vmem:[#allocation2 + $0x78] sm:$0xff]
      %v1177 = vld [vmem:[#allocation2 + $0x80] sm:$0xff]
      %v1178 = vld [vmem:[#allocation2 + $0x88] sm:$0xff]
      %v1179 = vld [vmem:[#allocation2 + $0x90] sm:$0xff]
      %v1180 = vld [vmem:[#allocation2 + $0x98] sm:$0xff]
      %v1181 = vld [vmem:[#allocation2 + $0xa0] sm:$0xff]
      %v1182 = vld [vmem:[#allocation2 + $0xa8] sm:$0xff]
      %v1183 = vld [vmem:[#allocation2 + $0xb0] sm:$0xff]
      %v1184 = vld [vmem:[#allocation2 + $0xb8] sm:$0xff]
      %v1185 = vld [vmem:[#allocation2 + $0xc0] sm:$0xff]
      %v1186 = vld [vmem:[#allocation2 + $0xc8] sm:$0xff]
      %v1187 = vld [vmem:[#allocation2 + $0xd0] sm:$0xff]
      %v1188 = vld [vmem:[#allocation2 + $0xd8] sm:$0xff]
      %v1189 = vld [vmem:[#allocation2 + $0xe0] sm:$0xff]
      %v1190 = vld [vmem:[#allocation2 + $0xe8] sm:$0xff]
      %v1191 = vld [vmem:[#allocation2 + $0xf0] sm:$0xff]
      %v1192 = vld [vmem:[#allocation2 + $0xf8] sm:$0xff]
      %v1193 = vld [vmem:[#allocation2 + $0x100] sm:$0xff]
      %v1194 = vld [vmem:[#allocation2 + $0x108] sm:$0xff]
      %v1195 = vld [vmem:[#allocation2 + $0x110] sm:$0xff]
      %v1196 = vld [vmem:[#allocation2 + $0x118] sm:$0xff]
      %v1197 = vld [vmem:[#allocation2 + $0x120] sm:$0xff]
      %v1198 = vld [vmem:[#allocation2 + $0x128] sm:$0xff]
      %v1199 = vld [vmem:[#allocation2 + $0x130] sm:$0xff]
      %v1200 = vld [vmem:[#allocation2 + $0x138] sm:$0xff]
      %v1201 = vld [vmem:[#allocation2 + $0x140] sm:$0xff]
      %v1202 = vld [vmem:[#allocation2 + $0x148] sm:$0xff]
      %v1203 = vld [vmem:[#allocation2 + $0x150] sm:$0xff]
      %v1204 = vld [vmem:[#allocation2 + $0x158] sm:$0xff]
      %v1205 = vld [vmem:[#allocation2 + $0x160] sm:$0xff]
      %v1206 = vld [vmem:[#allocation2 + $0x168] sm:$0xff]
      %v1207 = vld [vmem:[#allocation2 + $0x170] sm:$0xff]
      %v1208 = vld [vmem:[#allocation2 + $0x178] sm:$0xff]
      %v1209 = vld [vmem:[#allocation2 + $0x180] sm:$0xff]
      %v1210 = vld [vmem:[#allocation2 + $0x188] sm:$0xff]
      %v1211 = vld [vmem:[#allocation2 + $0x190] sm:$0xff]
      %v1212 = vld [vmem:[#allocation2 + $0x198] sm:$0xff]
      %v1213 = vld [vmem:[#allocation2 + $0x1a0] sm:$0xff]
      %v1214 = vld [vmem:[#allocation2 + $0x1a8] sm:$0xff]
      %v1215 = vld [vmem:[#allocation2 + $0x1b0] sm:$0xff]
      %v1216 = vld [vmem:[#allocation2 + $0x1b8] sm:$0xff]
      %v1217 = vld [vmem:[#allocation2 + $0x1c0] sm:$0xff]
      %v1218 = vld [vmem:[#allocation2 + $0x1c8] sm:$0xff]
      %v1219 = vld [vmem:[#allocation2 + $0x1d0] sm:$0xff]
      %v1220 = vld [vmem:[#allocation2 + $0x1d8] sm:$0xff]
      %v1221 = vld [vmem:[#allocation2 + $0x1e0] sm:$0xff]
      %v1222 = vld [vmem:[#allocation2 + $0x1e8] sm:$0xff]
      %v1223 = vld [vmem:[#allocation2 + $0x1f0] sm:$0xff]
      %v1224 = vld [vmem:[#allocation2 + $0x1f8] sm:$0xff]
      %v1225 = vld [vmem:[%s1] sm:$0xff]
      %v1226 = vld [vmem:[%s1 + $0x8] sm:$0xff]
      %v1227 = vld [vmem:[%s1 + $0x10] sm:$0xff]
      %v1228 = vld [vmem:[%s1 + $0x18] sm:$0xff]
      %v1229 = vld [vmem:[%s1 + $0x20] sm:$0xff]
      %v1230 = vld [vmem:[%s1 + $0x28] sm:$0xff]
      %v1231 = vld [vmem:[%s1 + $0x30] sm:$0xff]
      %v1232 = vld [vmem:[%s1 + $0x38] sm:$0xff]
      %v1233 = vld [vmem:[%s1 + $0x40] sm:$0xff]
      %v1234 = vld [vmem:[%s1 + $0x48] sm:$0xff]
      %v1235 = vld [vmem:[%s1 + $0x50] sm:$0xff]
      %v1236 = vld [vmem:[%s1 + $0x58] sm:$0xff]
      %v1237 = vld [vmem:[%s1 + $0x60] sm:$0xff]
      %v1238 = vld [vmem:[%s1 + $0x68] sm:$0xff]
      %v1239 = vld [vmem:[%s1 + $0x70] sm:$0xff]
      %v1240 = vld [vmem:[%s1 + $0x78] sm:$0xff]
      %v1241 = vld [vmem:[%s1 + $0x80] sm:$0xff]
      %v1242 = vld [vmem:[%s1 + $0x88] sm:$0xff]
      %v1243 = vld [vmem:[%s1 + $0x90] sm:$0xff]
      %v1244 = vld [vmem:[%s1 + $0x98] sm:$0xff]
      %v1245 = vld [vmem:[%s1 + $0xa0] sm:$0xff]
      %v1246 = vld [vmem:[%s1 + $0xa8] sm:$0xff]
      %v1247 = vld [vmem:[%s1 + $0xb0] sm:$0xff]
      %v1248 = vld [vmem:[%s1 + $0xb8] sm:$0xff]
      %v1249 = vld [vmem:[%s1 + $0xc0] sm:$0xff]
      %v1250 = vld [vmem:[%s1 + $0xc8] sm:$0xff]
      %v1251 = vld [vmem:[%s1 + $0xd0] sm:$0xff]
      %v1252 = vld [vmem:[%s1 + $0xd8] sm:$0xff]
      %v1253 = vld [vmem:[%s1 + $0xe0] sm:$0xff]
      %v1254 = vld [vmem:[%s1 + $0xe8] sm:$0xff]
      %v1255 = vld [vmem:[%s1 + $0xf0] sm:$0xff]
      %v1256 = vld [vmem:[%s1 + $0xf8] sm:$0xff]
      %v1257 = vld [vmem:[%s1 + $0x100] sm:$0xff]
      %v1258 = vld [vmem:[%s1 + $0x108] sm:$0xff]
      %v1259 = vld [vmem:[%s1 + $0x110] sm:$0xff]
      %v1260 = vld [vmem:[%s1 + $0x118] sm:$0xff]
      %v1261 = vld [vmem:[%s1 + $0x120] sm:$0xff]
      %v1262 = vld [vmem:[%s1 + $0x128] sm:$0xff]
      %v1263 = vld [vmem:[%s1 + $0x130] sm:$0xff]
      %v1264 = vld [vmem:[%s1 + $0x138] sm:$0xff]
      %v1265 = vld [vmem:[%s1 + $0x140] sm:$0xff]
      %v1266 = vld [vmem:[%s1 + $0x148] sm:$0xff]
      %v1267 = vld [vmem:[%s1 + $0x150] sm:$0xff]
      %v1268 = vld [vmem:[%s1 + $0x158] sm:$0xff]
      %v1269 = vld [vmem:[%s1 + $0x160] sm:$0xff]
      %v1270 = vld [vmem:[%s1 + $0x168] sm:$0xff]
      %v1271 = vld [vmem:[%s1 + $0x170] sm:$0xff]
      %v1272 = vld [vmem:[%s1 + $0x178] sm:$0xff]
      %v1273 = vld [vmem:[%s1 + $0x180] sm:$0xff]
      %v1274 = vld [vmem:[%s1 + $0x188] sm:$0xff]
      %v1275 = vld [vmem:[%s1 + $0x190] sm:$0xff]
      %v1276 = vld [vmem:[%s1 + $0x198] sm:$0xff]
      %v1277 = vld [vmem:[%s1 + $0x1a0] sm:$0xff]
      %v1278 = vld [vmem:[%s1 + $0x1a8] sm:$0xff]
      %v1279 = vld [vmem:[%s1 + $0x1b0] sm:$0xff]
      %v1280 = vld [vmem:[%s1 + $0x1b8] sm:$0xff]
      %v1281 = vld [vmem:[%s1 + $0x1c0] sm:$0xff]
      %v1282 = vld [vmem:[%s1 + $0x1c8] sm:$0xff]
      %v1283 = vld [vmem:[%s1 + $0x1d0] sm:$0xff]
      %v1284 = vld [vmem:[%s1 + $0x1d8] sm:$0xff]
      %v1285 = vld [vmem:[%s1 + $0x1e0] sm:$0xff]
      %v1286 = vld [vmem:[%s1 + $0x1e8] sm:$0xff]
      %v1287 = vld [vmem:[%s1 + $0x1f0] sm:$0xff]
      %v1288 = vld [vmem:[%s1 + $0x1f8] sm:$0xff]
      %v1289 = vld [vmem:[%s2] sm:$0xff]
      %v1290 = vld [vmem:[%s2 + $0x8] sm:$0xff]
      %v1291 = vld [vmem:[%s2 + $0x10] sm:$0xff]
      %v1292 = vld [vmem:[%s2 + $0x18] sm:$0xff]
      %v1293 = vld [vmem:[%s2 + $0x20] sm:$0xff]
      %v1294 = vld [vmem:[%s2 + $0x28] sm:$0xff]
      %v1295 = vld [vmem:[%s2 + $0x30] sm:$0xff]
      %v1296 = vld [vmem:[%s2 + $0x38] sm:$0xff]
      %v1297 = vld [vmem:[%s2 + $0x40] sm:$0xff]
      %v1298 = vld [vmem:[%s2 + $0x48] sm:$0xff]
      %v1299 = vld [vmem:[%s2 + $0x50] sm:$0xff]
      %v1300 = vld [vmem:[%s2 + $0x58] sm:$0xff]
      %v1301 = vld [vmem:[%s2 + $0x60] sm:$0xff]
      %v1302 = vld [vmem:[%s2 + $0x68] sm:$0xff]
      %v1303 = vld [vmem:[%s2 + $0x70] sm:$0xff]
      %v1304 = vld [vmem:[%s2 + $0x78] sm:$0xff]
      %v1305 = vld [vmem:[%s2 + $0x80] sm:$0xff]
      %v1306 = vld [vmem:[%s2 + $0x88] sm:$0xff]
      %v1307 = vld [vmem:[%s2 + $0x90] sm:$0xff]
      %v1308 = vld [vmem:[%s2 + $0x98] sm:$0xff]
      %v1309 = vld [vmem:[%s2 + $0xa0] sm:$0xff]
      %v1310 = vld [vmem:[%s2 + $0xa8] sm:$0xff]
      %v1311 = vld [vmem:[%s2 + $0xb0] sm:$0xff]
      %v1312 = vld [vmem:[%s2 + $0xb8] sm:$0xff]
      %v1313 = vld [vmem:[%s2 + $0xc0] sm:$0xff]
      %v1314 = vld [vmem:[%s2 + $0xc8] sm:$0xff]
      %v1315 = vld [vmem:[%s2 + $0xd0] sm:$0xff]
      %v1316 = vld [vmem:[%s2 + $0xd8] sm:$0xff]
      %v1317 = vld [vmem:[%s2 + $0xe0] sm:$0xff]
      %v1318 = vld [vmem:[%s2 + $0xe8] sm:$0xff]
      %v1319 = vld [vmem:[%s2 + $0xf0] sm:$0xff]
      %v1320 = vld [vmem:[%s2 + $0xf8] sm:$0xff]
      %1322 = vset.pattern.permute.xlu0 0
      %1323 = vperm.xlu0 %1322, %v1289
      %v1324 = vpop.permute.xlu0 %1323
      %1327 = vset.pattern.permute.xlu0 0
      %1328 = vperm.xlu0 %1327, %v1290
      %v1329 = vpop.permute.xlu0 %1328
      %1332 = vset.pattern.permute.xlu0 0
      %1333 = vperm.xlu0 %1332, %v1291
      %v1334 = vpop.permute.xlu0 %1333
      %1337 = vset.pattern.permute.xlu0 0
      %1338 = vperm.xlu0 %1337, %v1292
      %v1339 = vpop.permute.xlu0 %1338
      %1342 = vset.pattern.permute.xlu0 0
      %1343 = vperm.xlu0 %1342, %v1293
      %v1344 = vpop.permute.xlu0 %1343
      %1347 = vset.pattern.permute.xlu0 0
      %1348 = vperm.xlu0 %1347, %v1294
      %v1349 = vpop.permute.xlu0 %1348
      %1352 = vset.pattern.permute.xlu0 0
      %1353 = vperm.xlu0 %1352, %v1295
      %v1354 = vpop.permute.xlu0 %1353
      %1357 = vset.pattern.permute.xlu0 0
      %1358 = vperm.xlu0 %1357, %v1296
      %v1359 = vpop.permute.xlu0 %1358
      %1362 = vset.pattern.permute.xlu0 0
      %1363 = vperm.xlu0 %1362, %v1297
      %v1364 = vpop.permute.xlu0 %1363
      %1367 = vset.pattern.permute.xlu0 0
      %1368 = vperm.xlu0 %1367, %v1298
      %v1369 = vpop.permute.xlu0 %1368
      %1372 = vset.pattern.permute.xlu0 0
      %1373 = vperm.xlu0 %1372, %v1299
      %v1374 = vpop.permute.xlu0 %1373
      %1377 = vset.pattern.permute.xlu0 0
      %1378 = vperm.xlu0 %1377, %v1300
      %v1379 = vpop.permute.xlu0 %1378
      %1382 = vset.pattern.permute.xlu0 0
      %1383 = vperm.xlu0 %1382, %v1301
      %v1384 = vpop.permute.xlu0 %1383
      %1387 = vset.pattern.permute.xlu0 0
      %1388 = vperm.xlu0 %1387, %v1302
      %v1389 = vpop.permute.xlu0 %1388
      %1392 = vset.pattern.permute.xlu0 0
      %1393 = vperm.xlu0 %1392, %v1303
      %v1394 = vpop.permute.xlu0 %1393
      %1397 = vset.pattern.permute.xlu0 0
      %1398 = vperm.xlu0 %1397, %v1304
      %v1399 = vpop.permute.xlu0 %1398
      %1402 = vset.pattern.permute.xlu0 0
      %1403 = vperm.xlu0 %1402, %v1305
      %v1404 = vpop.permute.xlu0 %1403
      %1407 = vset.pattern.permute.xlu0 0
      %1408 = vperm.xlu0 %1407, %v1306
      %v1409 = vpop.permute.xlu0 %1408
      %1412 = vset.pattern.permute.xlu0 0
      %1413 = vperm.xlu0 %1412, %v1307
      %v1414 = vpop.permute.xlu0 %1413
      %1417 = vset.pattern.permute.xlu0 0
      %1418 = vperm.xlu0 %1417, %v1308
      %v1419 = vpop.permute.xlu0 %1418
      %1422 = vset.pattern.permute.xlu0 0
      %1423 = vperm.xlu0 %1422, %v1309
      %v1424 = vpop.permute.xlu0 %1423
      %1427 = vset.pattern.permute.xlu0 0
      %1428 = vperm.xlu0 %1427, %v1310
      %v1429 = vpop.permute.xlu0 %1428
      %1432 = vset.pattern.permute.xlu0 0
      %1433 = vperm.xlu0 %1432, %v1311
      %v1434 = vpop.permute.xlu0 %1433
      %1437 = vset.pattern.permute.xlu0 0
      %1438 = vperm.xlu0 %1437, %v1312
      %v1439 = vpop.permute.xlu0 %1438
      %1442 = vset.pattern.permute.xlu0 0
      %1443 = vperm.xlu0 %1442, %v1313
      %v1444 = vpop.permute.xlu0 %1443
      %1447 = vset.pattern.permute.xlu0 0
      %1448 = vperm.xlu0 %1447, %v1314
      %v1449 = vpop.permute.xlu0 %1448
      %1452 = vset.pattern.permute.xlu0 0
      %1453 = vperm.xlu0 %1452, %v1315
      %v1454 = vpop.permute.xlu0 %1453
      %1457 = vset.pattern.permute.xlu0 0
      %1458 = vperm.xlu0 %1457, %v1316
      %v1459 = vpop.permute.xlu0 %1458
      %1462 = vset.pattern.permute.xlu0 0
      %1463 = vperm.xlu0 %1462, %v1317
      %v1464 = vpop.permute.xlu0 %1463
      %1467 = vset.pattern.permute.xlu0 0
      %1468 = vperm.xlu0 %1467, %v1318
      %v1469 = vpop.permute.xlu0 %1468
      %1472 = vset.pattern.permute.xlu0 0
      %1473 = vperm.xlu0 %1472, %v1319
      %v1474 = vpop.permute.xlu0 %1473
      %1477 = vset.pattern.permute.xlu0 0
      %1478 = vperm.xlu0 %1477, %v1320
      %v1479 = vpop.permute.xlu0 %1478
      %v1545 = vunpack.c.l.b16 %v1225
      %v1546 = vunpack.c.h.b16 %v1225
      %v1547 = vunpack.c.l.b16 %v1226
      %v1548 = vunpack.c.h.b16 %v1226
      %v1549 = vunpack.c.l.b16 %v1227
      %v1550 = vunpack.c.h.b16 %v1227
      %v1551 = vunpack.c.l.b16 %v1228
      %v1552 = vunpack.c.h.b16 %v1228
      %v1553 = vunpack.c.l.b16 %v1229
      %v1554 = vunpack.c.h.b16 %v1229
      %v1555 = vunpack.c.l.b16 %v1230
      %v1556 = vunpack.c.h.b16 %v1230
      %v1557 = vunpack.c.l.b16 %v1231
      %v1558 = vunpack.c.h.b16 %v1231
      %v1559 = vunpack.c.l.b16 %v1232
      %v1560 = vunpack.c.h.b16 %v1232
      %v1561 = vunpack.c.l.b16 %v1233
      %v1562 = vunpack.c.h.b16 %v1233
      %v1563 = vunpack.c.l.b16 %v1234
      %v1564 = vunpack.c.h.b16 %v1234
      %v1565 = vunpack.c.l.b16 %v1235
      %v1566 = vunpack.c.h.b16 %v1235
      %v1567 = vunpack.c.l.b16 %v1236
      %v1568 = vunpack.c.h.b16 %v1236
      %v1569 = vunpack.c.l.b16 %v1237
      %v1570 = vunpack.c.h.b16 %v1237
      %v1571 = vunpack.c.l.b16 %v1238
      %v1572 = vunpack.c.h.b16 %v1238
      %v1573 = vunpack.c.l.b16 %v1239
      %v1574 = vunpack.c.h.b16 %v1239
      %v1575 = vunpack.c.l.b16 %v1240
      %v1576 = vunpack.c.h.b16 %v1240
      %v1577 = vunpack.c.l.b16 %v1241
      %v1578 = vunpack.c.h.b16 %v1241
      %v1579 = vunpack.c.l.b16 %v1242
      %v1580 = vunpack.c.h.b16 %v1242
      %v1581 = vunpack.c.l.b16 %v1243
      %v1582 = vunpack.c.h.b16 %v1243
      %v1583 = vunpack.c.l.b16 %v1244
      %v1584 = vunpack.c.h.b16 %v1244
      %v1585 = vunpack.c.l.b16 %v1245
      %v1586 = vunpack.c.h.b16 %v1245
      %v1587 = vunpack.c.l.b16 %v1246
      %v1588 = vunpack.c.h.b16 %v1246
      %v1589 = vunpack.c.l.b16 %v1247
      %v1590 = vunpack.c.h.b16 %v1247
      %v1591 = vunpack.c.l.b16 %v1248
      %v1592 = vunpack.c.h.b16 %v1248
      %v1593 = vunpack.c.l.b16 %v1249
      %v1594 = vunpack.c.h.b16 %v1249
      %v1595 = vunpack.c.l.b16 %v1250
      %v1596 = vunpack.c.h.b16 %v1250
      %v1597 = vunpack.c.l.b16 %v1251
      %v1598 = vunpack.c.h.b16 %v1251
      %v1599 = vunpack.c.l.b16 %v1252
      %v1600 = vunpack.c.h.b16 %v1252
      %v1601 = vunpack.c.l.b16 %v1253
      %v1602 = vunpack.c.h.b16 %v1253
      %v1603 = vunpack.c.l.b16 %v1254
      %v1604 = vunpack.c.h.b16 %v1254
      %v1605 = vunpack.c.l.b16 %v1255
      %v1606 = vunpack.c.h.b16 %v1255
      %v1607 = vunpack.c.l.b16 %v1256
      %v1608 = vunpack.c.h.b16 %v1256
      %v1609 = vunpack.c.l.b16 %v1257
      %v1610 = vunpack.c.h.b16 %v1257
      %v1611 = vunpack.c.l.b16 %v1258
      %v1612 = vunpack.c.h.b16 %v1258
      %v1613 = vunpack.c.l.b16 %v1259
      %v1614 = vunpack.c.h.b16 %v1259
      %v1615 = vunpack.c.l.b16 %v1260
      %v1616 = vunpack.c.h.b16 %v1260
      %v1617 = vunpack.c.l.b16 %v1261
      %v1618 = vunpack.c.h.b16 %v1261
      %v1619 = vunpack.c.l.b16 %v1262
      %v1620 = vunpack.c.h.b16 %v1262
      %v1621 = vunpack.c.l.b16 %v1263
      %v1622 = vunpack.c.h.b16 %v1263
      %v1623 = vunpack.c.l.b16 %v1264
      %v1624 = vunpack.c.h.b16 %v1264
      %v1625 = vunpack.c.l.b16 %v1265
      %v1626 = vunpack.c.h.b16 %v1265
      %v1627 = vunpack.c.l.b16 %v1266
      %v1628 = vunpack.c.h.b16 %v1266
      %v1629 = vunpack.c.l.b16 %v1267
      %v1630 = vunpack.c.h.b16 %v1267
      %v1631 = vunpack.c.l.b16 %v1268
      %v1632 = vunpack.c.h.b16 %v1268
      %v1633 = vunpack.c.l.b16 %v1269
      %v1634 = vunpack.c.h.b16 %v1269
      %v1635 = vunpack.c.l.b16 %v1270
      %v1636 = vunpack.c.h.b16 %v1270
      %v1637 = vunpack.c.l.b16 %v1271
      %v1638 = vunpack.c.h.b16 %v1271
      %v1639 = vunpack.c.l.b16 %v1272
      %v1640 = vunpack.c.h.b16 %v1272
      %v1641 = vunpack.c.l.b16 %v1273
      %v1642 = vunpack.c.h.b16 %v1273
      %v1643 = vunpack.c.l.b16 %v1274
      %v1644 = vunpack.c.h.b16 %v1274
      %v1645 = vunpack.c.l.b16 %v1275
      %v1646 = vunpack.c.h.b16 %v1275
      %v1647 = vunpack.c.l.b16 %v1276
      %v1648 = vunpack.c.h.b16 %v1276
      %v1649 = vunpack.c.l.b16 %v1277
      %v1650 = vunpack.c.h.b16 %v1277
      %v1651 = vunpack.c.l.b16 %v1278
      %v1652 = vunpack.c.h.b16 %v1278
      %v1653 = vunpack.c.l.b16 %v1279
      %v1654 = vunpack.c.h.b16 %v1279
      %v1655 = vunpack.c.l.b16 %v1280
      %v1656 = vunpack.c.h.b16 %v1280
      %v1657 = vunpack.c.l.b16 %v1281
      %v1658 = vunpack.c.h.b16 %v1281
      %v1659 = vunpack.c.l.b16 %v1282
      %v1660 = vunpack.c.h.b16 %v1282
      %v1661 = vunpack.c.l.b16 %v1283
      %v1662 = vunpack.c.h.b16 %v1283
      %v1663 = vunpack.c.l.b16 %v1284
      %v1664 = vunpack.c.h.b16 %v1284
      %v1665 = vunpack.c.l.b16 %v1285
      %v1666 = vunpack.c.h.b16 %v1285
      %v1667 = vunpack.c.l.b16 %v1286
      %v1668 = vunpack.c.h.b16 %v1286
      %v1669 = vunpack.c.l.b16 %v1287
      %v1670 = vunpack.c.h.b16 %v1287
      %v1671 = vunpack.c.l.b16 %v1288
      %v1672 = vunpack.c.h.b16 %v1288
      %v1673 = vpack.c.b16 %v1549, %v1545
      %v1674 = vpack.c.b16 %v1550, %v1546
      %v1675 = vpack.c.b16 %v1551, %v1547
      %v1676 = vpack.c.b16 %v1552, %v1548
      %v1677 = vpack.c.b16 %v1557, %v1553
      %v1678 = vpack.c.b16 %v1558, %v1554
      %v1679 = vpack.c.b16 %v1559, %v1555
      %v1680 = vpack.c.b16 %v1560, %v1556
      %v1681 = vpack.c.b16 %v1565, %v1561
      %v1682 = vpack.c.b16 %v1566, %v1562
      %v1683 = vpack.c.b16 %v1567, %v1563
      %v1684 = vpack.c.b16 %v1568, %v1564
      %v1685 = vpack.c.b16 %v1573, %v1569
      %v1686 = vpack.c.b16 %v1574, %v1570
      %v1687 = vpack.c.b16 %v1575, %v1571
      %v1688 = vpack.c.b16 %v1576, %v1572
      %v1689 = vpack.c.b16 %v1581, %v1577
      %v1690 = vpack.c.b16 %v1582, %v1578
      %v1691 = vpack.c.b16 %v1583, %v1579
      %v1692 = vpack.c.b16 %v1584, %v1580
      %v1693 = vpack.c.b16 %v1589, %v1585
      %v1694 = vpack.c.b16 %v1590, %v1586
      %v1695 = vpack.c.b16 %v1591, %v1587
      %v1696 = vpack.c.b16 %v1592, %v1588
      %v1697 = vpack.c.b16 %v1597, %v1593
      %v1698 = vpack.c.b16 %v1598, %v1594
      %v1699 = vpack.c.b16 %v1599, %v1595
      %v1700 = vpack.c.b16 %v1600, %v1596
      %v1701 = vpack.c.b16 %v1605, %v1601
      %v1702 = vpack.c.b16 %v1606, %v1602
      %v1703 = vpack.c.b16 %v1607, %v1603
      %v1704 = vpack.c.b16 %v1608, %v1604
      %v1705 = vpack.c.b16 %v1613, %v1609
      %v1706 = vpack.c.b16 %v1614, %v1610
      %v1707 = vpack.c.b16 %v1615, %v1611
      %v1708 = vpack.c.b16 %v1616, %v1612
      %v1709 = vpack.c.b16 %v1621, %v1617
      %v1710 = vpack.c.b16 %v1622, %v1618
      %v1711 = vpack.c.b16 %v1623, %v1619
      %v1712 = vpack.c.b16 %v1624, %v1620
      %v1713 = vpack.c.b16 %v1629, %v1625
      %v1714 = vpack.c.b16 %v1630, %v1626
      %v1715 = vpack.c.b16 %v1631, %v1627
      %v1716 = vpack.c.b16 %v1632, %v1628
      %v1717 = vpack.c.b16 %v1637, %v1633
      %v1718 = vpack.c.b16 %v1638, %v1634
      %v1719 = vpack.c.b16 %v1639, %v1635
      %v1720 = vpack.c.b16 %v1640, %v1636
      %v1721 = vpack.c.b16 %v1645, %v1641
      %v1722 = vpack.c.b16 %v1646, %v1642
      %v1723 = vpack.c.b16 %v1647, %v1643
      %v1724 = vpack.c.b16 %v1648, %v1644
      %v1725 = vpack.c.b16 %v1653, %v1649
      %v1726 = vpack.c.b16 %v1654, %v1650
      %v1727 = vpack.c.b16 %v1655, %v1651
      %v1728 = vpack.c.b16 %v1656, %v1652
      %v1729 = vpack.c.b16 %v1661, %v1657
      %v1730 = vpack.c.b16 %v1662, %v1658
      %v1731 = vpack.c.b16 %v1663, %v1659
      %v1732 = vpack.c.b16 %v1664, %v1660
      %v1733 = vpack.c.b16 %v1669, %v1665
      %v1734 = vpack.c.b16 %v1670, %v1666
      %v1735 = vpack.c.b16 %v1671, %v1667
      %v1736 = vpack.c.b16 %v1672, %v1668
      %v1865 = vunpack.c.l.b16 %v1161
      %v1866 = vunpack.c.h.b16 %v1161
      %v1867 = vunpack.c.l.b16 %v1162
      %v1868 = vunpack.c.h.b16 %v1162
      %v1869 = vunpack.c.l.b16 %v1163
      %v1870 = vunpack.c.h.b16 %v1163
      %v1871 = vunpack.c.l.b16 %v1164
      %v1872 = vunpack.c.h.b16 %v1164
      %v1873 = vunpack.c.l.b16 %v1165
      %v1874 = vunpack.c.h.b16 %v1165
      %v1875 = vunpack.c.l.b16 %v1166
      %v1876 = vunpack.c.h.b16 %v1166
      %v1877 = vunpack.c.l.b16 %v1167
      %v1878 = vunpack.c.h.b16 %v1167
      %v1879 = vunpack.c.l.b16 %v1168
      %v1880 = vunpack.c.h.b16 %v1168
      %v1881 = vunpack.c.l.b16 %v1169
      %v1882 = vunpack.c.h.b16 %v1169
      %v1883 = vunpack.c.l.b16 %v1170
      %v1884 = vunpack.c.h.b16 %v1170
      %v1885 = vunpack.c.l.b16 %v1171
      %v1886 = vunpack.c.h.b16 %v1171
      %v1887 = vunpack.c.l.b16 %v1172
      %v1888 = vunpack.c.h.b16 %v1172
      %v1889 = vunpack.c.l.b16 %v1173
      %v1890 = vunpack.c.h.b16 %v1173
      %v1891 = vunpack.c.l.b16 %v1174
      %v1892 = vunpack.c.h.b16 %v1174
      %v1893 = vunpack.c.l.b16 %v1175
      %v1894 = vunpack.c.h.b16 %v1175
      %v1895 = vunpack.c.l.b16 %v1176
      %v1896 = vunpack.c.h.b16 %v1176
      %v1897 = vunpack.c.l.b16 %v1177
      %v1898 = vunpack.c.h.b16 %v1177
      %v1899 = vunpack.c.l.b16 %v1178
      %v1900 = vunpack.c.h.b16 %v1178
      %v1901 = vunpack.c.l.b16 %v1179
      %v1902 = vunpack.c.h.b16 %v1179
      %v1903 = vunpack.c.l.b16 %v1180
      %v1904 = vunpack.c.h.b16 %v1180
      %v1905 = vunpack.c.l.b16 %v1181
      %v1906 = vunpack.c.h.b16 %v1181
      %v1907 = vunpack.c.l.b16 %v1182
      %v1908 = vunpack.c.h.b16 %v1182
      %v1909 = vunpack.c.l.b16 %v1183
      %v1910 = vunpack.c.h.b16 %v1183
      %v1911 = vunpack.c.l.b16 %v1184
      %v1912 = vunpack.c.h.b16 %v1184
      %v1913 = vunpack.c.l.b16 %v1185
      %v1914 = vunpack.c.h.b16 %v1185
      %v1915 = vunpack.c.l.b16 %v1186
      %v1916 = vunpack.c.h.b16 %v1186
      %v1917 = vunpack.c.l.b16 %v1187
      %v1918 = vunpack.c.h.b16 %v1187
      %v1919 = vunpack.c.l.b16 %v1188
      %v1920 = vunpack.c.h.b16 %v1188
      %v1921 = vunpack.c.l.b16 %v1189
      %v1922 = vunpack.c.h.b16 %v1189
      %v1923 = vunpack.c.l.b16 %v1190
      %v1924 = vunpack.c.h.b16 %v1190
      %v1925 = vunpack.c.l.b16 %v1191
      %v1926 = vunpack.c.h.b16 %v1191
      %v1927 = vunpack.c.l.b16 %v1192
      %v1928 = vunpack.c.h.b16 %v1192
      %v1929 = vunpack.c.l.b16 %v1193
      %v1930 = vunpack.c.h.b16 %v1193
      %v1931 = vunpack.c.l.b16 %v1194
      %v1932 = vunpack.c.h.b16 %v1194
      %v1933 = vunpack.c.l.b16 %v1195
      %v1934 = vunpack.c.h.b16 %v1195
      %v1935 = vunpack.c.l.b16 %v1196
      %v1936 = vunpack.c.h.b16 %v1196
      %v1937 = vunpack.c.l.b16 %v1197
      %v1938 = vunpack.c.h.b16 %v1197
      %v1939 = vunpack.c.l.b16 %v1198
      %v1940 = vunpack.c.h.b16 %v1198
      %v1941 = vunpack.c.l.b16 %v1199
      %v1942 = vunpack.c.h.b16 %v1199
      %v1943 = vunpack.c.l.b16 %v1200
      %v1944 = vunpack.c.h.b16 %v1200
      %v1945 = vunpack.c.l.b16 %v1201
      %v1946 = vunpack.c.h.b16 %v1201
      %v1947 = vunpack.c.l.b16 %v1202
      %v1948 = vunpack.c.h.b16 %v1202
      %v1949 = vunpack.c.l.b16 %v1203
      %v1950 = vunpack.c.h.b16 %v1203
      %v1951 = vunpack.c.l.b16 %v1204
      %v1952 = vunpack.c.h.b16 %v1204
      %v1953 = vunpack.c.l.b16 %v1205
      %v1954 = vunpack.c.h.b16 %v1205
      %v1955 = vunpack.c.l.b16 %v1206
      %v1956 = vunpack.c.h.b16 %v1206
      %v1957 = vunpack.c.l.b16 %v1207
      %v1958 = vunpack.c.h.b16 %v1207
      %v1959 = vunpack.c.l.b16 %v1208
      %v1960 = vunpack.c.h.b16 %v1208
      %v1961 = vunpack.c.l.b16 %v1209
      %v1962 = vunpack.c.h.b16 %v1209
      %v1963 = vunpack.c.l.b16 %v1210
      %v1964 = vunpack.c.h.b16 %v1210
      %v1965 = vunpack.c.l.b16 %v1211
      %v1966 = vunpack.c.h.b16 %v1211
      %v1967 = vunpack.c.l.b16 %v1212
      %v1968 = vunpack.c.h.b16 %v1212
      %v1969 = vunpack.c.l.b16 %v1213
      %v1970 = vunpack.c.h.b16 %v1213
      %v1971 = vunpack.c.l.b16 %v1214
      %v1972 = vunpack.c.h.b16 %v1214
      %v1973 = vunpack.c.l.b16 %v1215
      %v1974 = vunpack.c.h.b16 %v1215
      %v1975 = vunpack.c.l.b16 %v1216
      %v1976 = vunpack.c.h.b16 %v1216
      %v1977 = vunpack.c.l.b16 %v1217
      %v1978 = vunpack.c.h.b16 %v1217
      %v1979 = vunpack.c.l.b16 %v1218
      %v1980 = vunpack.c.h.b16 %v1218
      %v1981 = vunpack.c.l.b16 %v1219
      %v1982 = vunpack.c.h.b16 %v1219
      %v1983 = vunpack.c.l.b16 %v1220
      %v1984 = vunpack.c.h.b16 %v1220
      %v1985 = vunpack.c.l.b16 %v1221
      %v1986 = vunpack.c.h.b16 %v1221
      %v1987 = vunpack.c.l.b16 %v1222
      %v1988 = vunpack.c.h.b16 %v1222
      %v1989 = vunpack.c.l.b16 %v1223
      %v1990 = vunpack.c.h.b16 %v1223
      %v1991 = vunpack.c.l.b16 %v1224
      %v1992 = vunpack.c.h.b16 %v1224
      %v1993 = vpack.c.b16 %v1867, %v1865
      %v1994 = vpack.c.b16 %v1868, %v1866
      %v1995 = vpack.c.b16 %v1871, %v1869
      %v1996 = vpack.c.b16 %v1872, %v1870
      %v1997 = vpack.c.b16 %v1875, %v1873
      %v1998 = vpack.c.b16 %v1876, %v1874
      %v1999 = vpack.c.b16 %v1879, %v1877
      %v2000 = vpack.c.b16 %v1880, %v1878
      %v2001 = vpack.c.b16 %v1883, %v1881
      %v2002 = vpack.c.b16 %v1884, %v1882
      %v2003 = vpack.c.b16 %v1887, %v1885
      %v2004 = vpack.c.b16 %v1888, %v1886
      %v2005 = vpack.c.b16 %v1891, %v1889
      %v2006 = vpack.c.b16 %v1892, %v1890
      %v2007 = vpack.c.b16 %v1895, %v1893
      %v2008 = vpack.c.b16 %v1896, %v1894
      %v2009 = vpack.c.b16 %v1899, %v1897
      %v2010 = vpack.c.b16 %v1900, %v1898
      %v2011 = vpack.c.b16 %v1903, %v1901
      %v2012 = vpack.c.b16 %v1904, %v1902
      %v2013 = vpack.c.b16 %v1907, %v1905
      %v2014 = vpack.c.b16 %v1908, %v1906
      %v2015 = vpack.c.b16 %v1911, %v1909
      %v2016 = vpack.c.b16 %v1912, %v1910
      %v2017 = vpack.c.b16 %v1915, %v1913
      %v2018 = vpack.c.b16 %v1916, %v1914
      %v2019 = vpack.c.b16 %v1919, %v1917
      %v2020 = vpack.c.b16 %v1920, %v1918
      %v2021 = vpack.c.b16 %v1923, %v1921
      %v2022 = vpack.c.b16 %v1924, %v1922
      %v2023 = vpack.c.b16 %v1927, %v1925
      %v2024 = vpack.c.b16 %v1928, %v1926
      %v2025 = vpack.c.b16 %v1931, %v1929
      %v2026 = vpack.c.b16 %v1932, %v1930
      %v2027 = vpack.c.b16 %v1935, %v1933
      %v2028 = vpack.c.b16 %v1936, %v1934
      %v2029 = vpack.c.b16 %v1939, %v1937
      %v2030 = vpack.c.b16 %v1940, %v1938
      %v2031 = vpack.c.b16 %v1943, %v1941
      %v2032 = vpack.c.b16 %v1944, %v1942
      %v2033 = vpack.c.b16 %v1947, %v1945
      %v2034 = vpack.c.b16 %v1948, %v1946
      %v2035 = vpack.c.b16 %v1951, %v1949
      %v2036 = vpack.c.b16 %v1952, %v1950
      %v2037 = vpack.c.b16 %v1955, %v1953
      %v2038 = vpack.c.b16 %v1956, %v1954
      %v2039 = vpack.c.b16 %v1959, %v1957
      %v2040 = vpack.c.b16 %v1960, %v1958
      %v2041 = vpack.c.b16 %v1963, %v1961
      %v2042 = vpack.c.b16 %v1964, %v1962
      %v2043 = vpack.c.b16 %v1967, %v1965
      %v2044 = vpack.c.b16 %v1968, %v1966
      %v2045 = vpack.c.b16 %v1971, %v1969
      %v2046 = vpack.c.b16 %v1972, %v1970
      %v2047 = vpack.c.b16 %v1975, %v1973
      %v2048 = vpack.c.b16 %v1976, %v1974
      %v2049 = vpack.c.b16 %v1979, %v1977
      %v2050 = vpack.c.b16 %v1980, %v1978
      %v2051 = vpack.c.b16 %v1983, %v1981
      %v2052 = vpack.c.b16 %v1984, %v1982
      %v2053 = vpack.c.b16 %v1987, %v1985
      %v2054 = vpack.c.b16 %v1988, %v1986
      %v2055 = vpack.c.b16 %v1991, %v1989
      %v2056 = vpack.c.b16 %v1992, %v1990
      %2121 = vmatprep.subr.bf16.mxu0 %v2008
      %2122 = vmatpush1.bf16.msra.mxu0 %v2007
      %2123 = vmatprep.subr.bf16.mxu0 %v2006
      %2124 = vmatpush1.bf16.msra.mxu0 %v2005
      %2125 = vmatprep.subr.bf16.mxu0 %v2004
      %2126 = vmatpush1.bf16.msra.mxu0 %v2003
      %2127 = vmatprep.subr.bf16.mxu0 %v2002
      %2128 = vmatpush1.bf16.msra.mxu0 %v2001
      %2129 = vmatprep.subr.bf16.mxu0 %v2000
      %2130 = vmatpush1.bf16.msra.mxu0 %v1999
      %2131 = vmatprep.subr.bf16.mxu0 %v1998
      %2132 = vmatpush1.bf16.msra.mxu0 %v1997
      %2133 = vmatprep.subr.bf16.mxu0 %v1996
      %2134 = vmatpush1.bf16.msra.mxu0 %v1995
      %2135 = vmatprep.subr.bf16.mxu0 %v1994
      %2136 = vmatpush1.bf16.msra.mxu0 %v1993
      %2137 = vmatprep.subr.bf16.mxu0 %v2024
      %2138 = vmatpush2.bf16.msra.mxu0 %v2023
      %2139 = vmatprep.subr.bf16.mxu0 %v2022
      %2140 = vmatpush2.bf16.msra.mxu0 %v2021
      %2141 = vmatprep.subr.bf16.mxu0 %v2020
      %2142 = vmatpush2.bf16.msra.mxu0 %v2019
      %2143 = vmatprep.subr.bf16.mxu0 %v2018
      %2144 = vmatpush2.bf16.msra.mxu0 %v2017
      %2145 = vmatprep.subr.bf16.mxu0 %v2016
      %2146 = vmatpush2.bf16.msra.mxu0 %v2015
      %2147 = vmatprep.subr.bf16.mxu0 %v2014
      %2148 = vmatpush2.bf16.msra.mxu0 %v2013
      %2149 = vmatprep.subr.bf16.mxu0 %v2012
      %2150 = vmatpush2.bf16.msra.mxu0 %v2011
      %2151 = vmatprep.subr.bf16.mxu0 %v2010
      %2152 = vmatpush2.bf16.msra.mxu0 %v2009
      %2153 = vmatprep.mubr.bf16.mxu0 %v1674
      %2154 = vmatmul.mubr.bf16.gmra.mxu0 %v1673
      %v2155 = vpop.f32.mrf.mxu0
      %v2156 = vadd.f32 %v1324, %v2155
      %v2157 = vpop.f32.mrf.mxu0
      %v2158 = vadd.f32 %v1324, %v2157
      %v2159 = vpop.f32.mrf.mxu0
      %v2160 = vadd.f32 %v1329, %v2159
      %v2161 = vpop.f32.mrf.mxu0
      %v2162 = vadd.f32 %v1329, %v2161
      %2163 = vmatprep.mubr.bf16.mxu0 %v1678
      %2164 = vmatmul.mubr.bf16.gmra.mxu0 %v1677
      %v2165 = vpop.f32.mrf.mxu0
      %v2166 = vadd.f32 %v1334, %v2165
      %v2167 = vpop.f32.mrf.mxu0
      %v2168 = vadd.f32 %v1334, %v2167
      %v2169 = vpop.f32.mrf.mxu0
      %v2170 = vadd.f32 %v1339, %v2169
      %v2171 = vpop.f32.mrf.mxu0
      %v2172 = vadd.f32 %v1339, %v2171
      %2173 = vmatprep.mubr.bf16.mxu0 %v1682
      %2174 = vmatmul.mubr.bf16.gmra.mxu0 %v1681
      %v2175 = vpop.f32.mrf.mxu0
      %v2176 = vadd.f32 %v1344, %v2175
      %v2177 = vpop.f32.mrf.mxu0
      %v2178 = vadd.f32 %v1344, %v2177
      %v2179 = vpop.f32.mrf.mxu0
      %v2180 = vadd.f32 %v1349, %v2179
      %v2181 = vpop.f32.mrf.mxu0
      %v2182 = vadd.f32 %v1349, %v2181
      %2183 = vmatprep.mubr.bf16.mxu0 %v1686
      %2184 = vmatmul.mubr.bf16.gmra.mxu0 %v1685
      %v2185 = vpop.f32.mrf.mxu0
      %v2186 = vadd.f32 %v1354, %v2185
      %v2187 = vpop.f32.mrf.mxu0
      %v2188 = vadd.f32 %v1354, %v2187
      %v2189 = vpop.f32.mrf.mxu0
      %v2190 = vadd.f32 %v1359, %v2189
      %v2191 = vpop.f32.mrf.mxu0
      %v2192 = vadd.f32 %v1359, %v2191
      %2193 = vmatprep.mubr.bf16.mxu0 %v1690
      %2194 = vmatmul.mubr.bf16.gmra.mxu0 %v1689
      %v2195 = vpop.f32.mrf.mxu0
      %v2196 = vadd.f32 %v1364, %v2195
      %v2197 = vpop.f32.mrf.mxu0
      %v2198 = vadd.f32 %v1364, %v2197
      %v2199 = vpop.f32.mrf.mxu0
      %v2200 = vadd.f32 %v1369, %v2199
      %v2201 = vpop.f32.mrf.mxu0
      %v2202 = vadd.f32 %v1369, %v2201
      %2203 = vmatprep.mubr.bf16.mxu0 %v1694
      %2204 = vmatmul.mubr.bf16.gmra.mxu0 %v1693
      %v2205 = vpop.f32.mrf.mxu0
      %v2206 = vadd.f32 %v1374, %v2205
      %v2207 = vpop.f32.mrf.mxu0
      %v2208 = vadd.f32 %v1374, %v2207
      %v2209 = vpop.f32.mrf.mxu0
      %v2210 = vadd.f32 %v1379, %v2209
      %v2211 = vpop.f32.mrf.mxu0
      %v2212 = vadd.f32 %v1379, %v2211
      %2213 = vmatprep.mubr.bf16.mxu0 %v1698
      %2214 = vmatmul.mubr.bf16.gmra.mxu0 %v1697
      %v2215 = vpop.f32.mrf.mxu0
      %v2216 = vadd.f32 %v1384, %v2215
      %v2217 = vpop.f32.mrf.mxu0
      %v2218 = vadd.f32 %v1384, %v2217
      %v2219 = vpop.f32.mrf.mxu0
      %v2220 = vadd.f32 %v1389, %v2219
      %v2221 = vpop.f32.mrf.mxu0
      %v2222 = vadd.f32 %v1389, %v2221
      %2223 = vmatprep.mubr.bf16.mxu0 %v1702
      %2224 = vmatmul.mubr.bf16.gmra.mxu0 %v1701
      %v2225 = vpop.f32.mrf.mxu0
      %v2226 = vadd.f32 %v1394, %v2225
      %v2227 = vpop.f32.mrf.mxu0
      %v2228 = vadd.f32 %v1394, %v2227
      %v2229 = vpop.f32.mrf.mxu0
      %v2230 = vadd.f32 %v1399, %v2229
      %v2231 = vpop.f32.mrf.mxu0
      %v2232 = vadd.f32 %v1399, %v2231
      %2233 = vmatprep.mubr.bf16.mxu0 %v1706
      %2234 = vmatmul.mubr.bf16.gmra.mxu0 %v1705
      %v2235 = vpop.f32.mrf.mxu0
      %v2236 = vadd.f32 %v1404, %v2235
      %v2237 = vpop.f32.mrf.mxu0
      %v2238 = vadd.f32 %v1404, %v2237
      %v2239 = vpop.f32.mrf.mxu0
      %v2240 = vadd.f32 %v1409, %v2239
      %v2241 = vpop.f32.mrf.mxu0
      %v2242 = vadd.f32 %v1409, %v2241
      %2243 = vmatprep.mubr.bf16.mxu0 %v1710
      %2244 = vmatmul.mubr.bf16.gmra.mxu0 %v1709
      %v2245 = vpop.f32.mrf.mxu0
      %v2246 = vadd.f32 %v1414, %v2245
      %v2247 = vpop.f32.mrf.mxu0
      %v2248 = vadd.f32 %v1414, %v2247
      %v2249 = vpop.f32.mrf.mxu0
      %v2250 = vadd.f32 %v1419, %v2249
      %v2251 = vpop.f32.mrf.mxu0
      %v2252 = vadd.f32 %v1419, %v2251
      %2253 = vmatprep.mubr.bf16.mxu0 %v1714
      %2254 = vmatmul.mubr.bf16.gmra.mxu0 %v1713
      %v2255 = vpop.f32.mrf.mxu0
      %v2256 = vadd.f32 %v1424, %v2255
      %v2257 = vpop.f32.mrf.mxu0
      %v2258 = vadd.f32 %v1424, %v2257
      %v2259 = vpop.f32.mrf.mxu0
      %v2260 = vadd.f32 %v1429, %v2259
      %v2261 = vpop.f32.mrf.mxu0
      %v2262 = vadd.f32 %v1429, %v2261
      %2263 = vmatprep.mubr.bf16.mxu0 %v1718
      %2264 = vmatmul.mubr.bf16.gmra.mxu0 %v1717
      %v2265 = vpop.f32.mrf.mxu0
      %v2266 = vadd.f32 %v1434, %v2265
      %v2267 = vpop.f32.mrf.mxu0
      %v2268 = vadd.f32 %v1434, %v2267
      %v2269 = vpop.f32.mrf.mxu0
      %v2270 = vadd.f32 %v1439, %v2269
      %v2271 = vpop.f32.mrf.mxu0
      %v2272 = vadd.f32 %v1439, %v2271
      %2273 = vmatprep.mubr.bf16.mxu0 %v1722
      %2274 = vmatmul.mubr.bf16.gmra.mxu0 %v1721
      %v2275 = vpop.f32.mrf.mxu0
      %v2276 = vadd.f32 %v1444, %v2275
      %v2277 = vpop.f32.mrf.mxu0
      %v2278 = vadd.f32 %v1444, %v2277
      %v2279 = vpop.f32.mrf.mxu0
      %v2280 = vadd.f32 %v1449, %v2279
      %v2281 = vpop.f32.mrf.mxu0
      %v2282 = vadd.f32 %v1449, %v2281
      %2283 = vmatprep.mubr.bf16.mxu0 %v1726
      %2284 = vmatmul.mubr.bf16.gmra.mxu0 %v1725
      %v2285 = vpop.f32.mrf.mxu0
      %v2286 = vadd.f32 %v1454, %v2285
      %v2287 = vpop.f32.mrf.mxu0
      %v2288 = vadd.f32 %v1454, %v2287
      %v2289 = vpop.f32.mrf.mxu0
      %v2290 = vadd.f32 %v1459, %v2289
      %v2291 = vpop.f32.mrf.mxu0
      %v2292 = vadd.f32 %v1459, %v2291
      %2293 = vmatprep.mubr.bf16.mxu0 %v1730
      %2294 = vmatmul.mubr.bf16.gmra.mxu0 %v1729
      %v2295 = vpop.f32.mrf.mxu0
      %v2296 = vadd.f32 %v1464, %v2295
      %v2297 = vpop.f32.mrf.mxu0
      %v2298 = vadd.f32 %v1464, %v2297
      %v2299 = vpop.f32.mrf.mxu0
      %v2300 = vadd.f32 %v1469, %v2299
      %v2301 = vpop.f32.mrf.mxu0
      %v2302 = vadd.f32 %v1469, %v2301
      %2303 = vmatprep.mubr.bf16.mxu0 %v1734
      %2304 = vmatmul.mubr.bf16.gmra.mxu0 %v1733
      %v2305 = vpop.f32.mrf.mxu0
      %v2306 = vadd.f32 %v1474, %v2305
      %v2307 = vpop.f32.mrf.mxu0
      %v2308 = vadd.f32 %v1474, %v2307
      %v2309 = vpop.f32.mrf.mxu0
      %v2310 = vadd.f32 %v1479, %v2309
      %v2311 = vpop.f32.mrf.mxu0
      %v2312 = vadd.f32 %v1479, %v2311
      %2313 = vdwg.mxu0
      %2314 = vmatprep.subr.bf16.mxu0 %v2040
      %2315 = vmatpush1.bf16.msra.mxu0 %v2039
      %2316 = vmatprep.subr.bf16.mxu0 %v2038
      %2317 = vmatpush1.bf16.msra.mxu0 %v2037
      %2318 = vmatprep.subr.bf16.mxu0 %v2036
      %2319 = vmatpush1.bf16.msra.mxu0 %v2035
      %2320 = vmatprep.subr.bf16.mxu0 %v2034
      %2321 = vmatpush1.bf16.msra.mxu0 %v2033
      %2322 = vmatprep.subr.bf16.mxu0 %v2032
      %2323 = vmatpush1.bf16.msra.mxu0 %v2031
      %2324 = vmatprep.subr.bf16.mxu0 %v2030
      %2325 = vmatpush1.bf16.msra.mxu0 %v2029
      %2326 = vmatprep.subr.bf16.mxu0 %v2028
      %2327 = vmatpush1.bf16.msra.mxu0 %v2027
      %2328 = vmatprep.subr.bf16.mxu0 %v2026
      %2329 = vmatpush1.bf16.msra.mxu0 %v2025
      %2330 = vmatprep.subr.bf16.mxu0 %v2056
      %2331 = vmatpush2.bf16.msra.mxu0 %v2055
      %2332 = vmatprep.subr.bf16.mxu0 %v2054
      %2333 = vmatpush2.bf16.msra.mxu0 %v2053
      %2334 = vmatprep.subr.bf16.mxu0 %v2052
      %2335 = vmatpush2.bf16.msra.mxu0 %v2051
      %2336 = vmatprep.subr.bf16.mxu0 %v2050
      %2337 = vmatpush2.bf16.msra.mxu0 %v2049
      %2338 = vmatprep.subr.bf16.mxu0 %v2048
      %2339 = vmatpush2.bf16.msra.mxu0 %v2047
      %2340 = vmatprep.subr.bf16.mxu0 %v2046
      %2341 = vmatpush2.bf16.msra.mxu0 %v2045
      %2342 = vmatprep.subr.bf16.mxu0 %v2044
      %2343 = vmatpush2.bf16.msra.mxu0 %v2043
      %2344 = vmatprep.subr.bf16.mxu0 %v2042
      %2345 = vmatpush2.bf16.msra.mxu0 %v2041
      %2346 = vmatprep.mubr.bf16.mxu0 %v1676
      %2347 = vmatmul.mubr.bf16.gmra.mxu0 %v1675
      %v2348 = vpop.f32.mrf.mxu0
      %v2349 = vadd.f32 %v2156, %v2348
      %v2350 = vpop.f32.mrf.mxu0
      %v2351 = vadd.f32 %v2158, %v2350
      %v2352 = vpop.f32.mrf.mxu0
      %v2353 = vadd.f32 %v2160, %v2352
      %v2354 = vpop.f32.mrf.mxu0
      %v2355 = vadd.f32 %v2162, %v2354
      %2356 = vmatprep.mubr.bf16.mxu0 %v1680
      %2357 = vmatmul.mubr.bf16.gmra.mxu0 %v1679
      %v2358 = vpop.f32.mrf.mxu0
      %v2359 = vadd.f32 %v2166, %v2358
      %v2360 = vpop.f32.mrf.mxu0
      %v2361 = vadd.f32 %v2168, %v2360
      %v2362 = vpop.f32.mrf.mxu0
      %v2363 = vadd.f32 %v2170, %v2362
      %v2364 = vpop.f32.mrf.mxu0
      %v2365 = vadd.f32 %v2172, %v2364
      %2366 = vmatprep.mubr.bf16.mxu0 %v1684
      %2367 = vmatmul.mubr.bf16.gmra.mxu0 %v1683
      %v2368 = vpop.f32.mrf.mxu0
      %v2369 = vadd.f32 %v2176, %v2368
      %v2370 = vpop.f32.mrf.mxu0
      %v2371 = vadd.f32 %v2178, %v2370
      %v2372 = vpop.f32.mrf.mxu0
      %v2373 = vadd.f32 %v2180, %v2372
      %v2374 = vpop.f32.mrf.mxu0
      %v2375 = vadd.f32 %v2182, %v2374
      %2376 = vmatprep.mubr.bf16.mxu0 %v1688
      %2377 = vmatmul.mubr.bf16.gmra.mxu0 %v1687
      %v2378 = vpop.f32.mrf.mxu0
      %v2379 = vadd.f32 %v2186, %v2378
      %v2380 = vpop.f32.mrf.mxu0
      %v2381 = vadd.f32 %v2188, %v2380
      %v2382 = vpop.f32.mrf.mxu0
      %v2383 = vadd.f32 %v2190, %v2382
      %v2384 = vpop.f32.mrf.mxu0
      %v2385 = vadd.f32 %v2192, %v2384
      %2386 = vmatprep.mubr.bf16.mxu0 %v1692
      %2387 = vmatmul.mubr.bf16.gmra.mxu0 %v1691
      %v2388 = vpop.f32.mrf.mxu0
      %v2389 = vadd.f32 %v2196, %v2388
      %v2390 = vpop.f32.mrf.mxu0
      %v2391 = vadd.f32 %v2198, %v2390
      %v2392 = vpop.f32.mrf.mxu0
      %v2393 = vadd.f32 %v2200, %v2392
      %v2394 = vpop.f32.mrf.mxu0
      %v2395 = vadd.f32 %v2202, %v2394
      %2396 = vmatprep.mubr.bf16.mxu0 %v1696
      %2397 = vmatmul.mubr.bf16.gmra.mxu0 %v1695
      %v2398 = vpop.f32.mrf.mxu0
      %v2399 = vadd.f32 %v2206, %v2398
      %v2400 = vpop.f32.mrf.mxu0
      %v2401 = vadd.f32 %v2208, %v2400
      %v2402 = vpop.f32.mrf.mxu0
      %v2403 = vadd.f32 %v2210, %v2402
      %v2404 = vpop.f32.mrf.mxu0
      %v2405 = vadd.f32 %v2212, %v2404
      %2406 = vmatprep.mubr.bf16.mxu0 %v1700
      %2407 = vmatmul.mubr.bf16.gmra.mxu0 %v1699
      %v2408 = vpop.f32.mrf.mxu0
      %v2409 = vadd.f32 %v2216, %v2408
      %v2410 = vpop.f32.mrf.mxu0
      %v2411 = vadd.f32 %v2218, %v2410
      %v2412 = vpop.f32.mrf.mxu0
      %v2413 = vadd.f32 %v2220, %v2412
      %v2414 = vpop.f32.mrf.mxu0
      %v2415 = vadd.f32 %v2222, %v2414
      %2416 = vmatprep.mubr.bf16.mxu0 %v1704
      %2417 = vmatmul.mubr.bf16.gmra.mxu0 %v1703
      %v2418 = vpop.f32.mrf.mxu0
      %v2419 = vadd.f32 %v2226, %v2418
      %v2420 = vpop.f32.mrf.mxu0
      %v2421 = vadd.f32 %v2228, %v2420
      %v2422 = vpop.f32.mrf.mxu0
      %v2423 = vadd.f32 %v2230, %v2422
      %v2424 = vpop.f32.mrf.mxu0
      %v2425 = vadd.f32 %v2232, %v2424
      %2426 = vmatprep.mubr.bf16.mxu0 %v1708
      %2427 = vmatmul.mubr.bf16.gmra.mxu0 %v1707
      %v2428 = vpop.f32.mrf.mxu0
      %v2429 = vadd.f32 %v2236, %v2428
      %v2430 = vpop.f32.mrf.mxu0
      %v2431 = vadd.f32 %v2238, %v2430
      %v2432 = vpop.f32.mrf.mxu0
      %v2433 = vadd.f32 %v2240, %v2432
      %v2434 = vpop.f32.mrf.mxu0
      %v2435 = vadd.f32 %v2242, %v2434
      %2436 = vmatprep.mubr.bf16.mxu0 %v1712
      %2437 = vmatmul.mubr.bf16.gmra.mxu0 %v1711
      %v2438 = vpop.f32.mrf.mxu0
      %v2439 = vadd.f32 %v2246, %v2438
      %v2440 = vpop.f32.mrf.mxu0
      %v2441 = vadd.f32 %v2248, %v2440
      %v2442 = vpop.f32.mrf.mxu0
      %v2443 = vadd.f32 %v2250, %v2442
      %v2444 = vpop.f32.mrf.mxu0
      %v2445 = vadd.f32 %v2252, %v2444
      %2446 = vmatprep.mubr.bf16.mxu0 %v1716
      %2447 = vmatmul.mubr.bf16.gmra.mxu0 %v1715
      %v2448 = vpop.f32.mrf.mxu0
      %v2449 = vadd.f32 %v2256, %v2448
      %v2450 = vpop.f32.mrf.mxu0
      %v2451 = vadd.f32 %v2258, %v2450
      %v2452 = vpop.f32.mrf.mxu0
      %v2453 = vadd.f32 %v2260, %v2452
      %v2454 = vpop.f32.mrf.mxu0
      %v2455 = vadd.f32 %v2262, %v2454
      %2456 = vmatprep.mubr.bf16.mxu0 %v1720
      %2457 = vmatmul.mubr.bf16.gmra.mxu0 %v1719
      %v2458 = vpop.f32.mrf.mxu0
      %v2459 = vadd.f32 %v2266, %v2458
      %v2460 = vpop.f32.mrf.mxu0
      %v2461 = vadd.f32 %v2268, %v2460
      %v2462 = vpop.f32.mrf.mxu0
      %v2463 = vadd.f32 %v2270, %v2462
      %v2464 = vpop.f32.mrf.mxu0
      %v2465 = vadd.f32 %v2272, %v2464
      %2466 = vmatprep.mubr.bf16.mxu0 %v1724
      %2467 = vmatmul.mubr.bf16.gmra.mxu0 %v1723
      %v2468 = vpop.f32.mrf.mxu0
      %v2469 = vadd.f32 %v2276, %v2468
      %v2470 = vpop.f32.mrf.mxu0
      %v2471 = vadd.f32 %v2278, %v2470
      %v2472 = vpop.f32.mrf.mxu0
      %v2473 = vadd.f32 %v2280, %v2472
      %v2474 = vpop.f32.mrf.mxu0
      %v2475 = vadd.f32 %v2282, %v2474
      %2476 = vmatprep.mubr.bf16.mxu0 %v1728
      %2477 = vmatmul.mubr.bf16.gmra.mxu0 %v1727
      %v2478 = vpop.f32.mrf.mxu0
      %v2479 = vadd.f32 %v2286, %v2478
      %v2480 = vpop.f32.mrf.mxu0
      %v2481 = vadd.f32 %v2288, %v2480
      %v2482 = vpop.f32.mrf.mxu0
      %v2483 = vadd.f32 %v2290, %v2482
      %v2484 = vpop.f32.mrf.mxu0
      %v2485 = vadd.f32 %v2292, %v2484
      %2486 = vmatprep.mubr.bf16.mxu0 %v1732
      %2487 = vmatmul.mubr.bf16.gmra.mxu0 %v1731
      %v2488 = vpop.f32.mrf.mxu0
      %v2489 = vadd.f32 %v2296, %v2488
      %v2490 = vpop.f32.mrf.mxu0
      %v2491 = vadd.f32 %v2298, %v2490
      %v2492 = vpop.f32.mrf.mxu0
      %v2493 = vadd.f32 %v2300, %v2492
      %v2494 = vpop.f32.mrf.mxu0
      %v2495 = vadd.f32 %v2302, %v2494
      %2496 = vmatprep.mubr.bf16.mxu0 %v1736
      %2497 = vmatmul.mubr.bf16.gmra.mxu0 %v1735
      %v2498 = vpop.f32.mrf.mxu0
      %v2499 = vadd.f32 %v2306, %v2498
      %v2500 = vpop.f32.mrf.mxu0
      %v2501 = vadd.f32 %v2308, %v2500
      %v2502 = vpop.f32.mrf.mxu0
      %v2503 = vadd.f32 %v2310, %v2502
      %v2504 = vpop.f32.mrf.mxu0
      %v2505 = vadd.f32 %v2312, %v2504
      %2506 = vdwg.mxu0
      %v2507 = vmax.f32 %v2349, 0.0
      %v2508 = vmax.f32 %v2351, 0.0
      %v2509 = vmax.f32 %v2353, 0.0
      %v2510 = vmax.f32 %v2355, 0.0
      %v2511 = vmax.f32 %v2359, 0.0
      %v2512 = vmax.f32 %v2361, 0.0
      %v2513 = vmax.f32 %v2363, 0.0
      %v2514 = vmax.f32 %v2365, 0.0
      %v2515 = vmax.f32 %v2369, 0.0
      %v2516 = vmax.f32 %v2371, 0.0
      %v2517 = vmax.f32 %v2373, 0.0
      %v2518 = vmax.f32 %v2375, 0.0
      %v2519 = vmax.f32 %v2379, 0.0
      %v2520 = vmax.f32 %v2381, 0.0
      %v2521 = vmax.f32 %v2383, 0.0
      %v2522 = vmax.f32 %v2385, 0.0
      %v2523 = vmax.f32 %v2389, 0.0
      %v2524 = vmax.f32 %v2391, 0.0
      %v2525 = vmax.f32 %v2393, 0.0
      %v2526 = vmax.f32 %v2395, 0.0
      %v2527 = vmax.f32 %v2399, 0.0
      %v2528 = vmax.f32 %v2401, 0.0
      %v2529 = vmax.f32 %v2403, 0.0
      %v2530 = vmax.f32 %v2405, 0.0
      %v2531 = vmax.f32 %v2409, 0.0
      %v2532 = vmax.f32 %v2411, 0.0
      %v2533 = vmax.f32 %v2413, 0.0
      %v2534 = vmax.f32 %v2415, 0.0
      %v2535 = vmax.f32 %v2419, 0.0
      %v2536 = vmax.f32 %v2421, 0.0
      %v2537 = vmax.f32 %v2423, 0.0
      %v2538 = vmax.f32 %v2425, 0.0
      %v2539 = vmax.f32 %v2429, 0.0
      %v2540 = vmax.f32 %v2431, 0.0
      %v2541 = vmax.f32 %v2433, 0.0
      %v2542 = vmax.f32 %v2435, 0.0
      %v2543 = vmax.f32 %v2439, 0.0
      %v2544 = vmax.f32 %v2441, 0.0
      %v2545 = vmax.f32 %v2443, 0.0
      %v2546 = vmax.f32 %v2445, 0.0
      %v2547 = vmax.f32 %v2449, 0.0
      %v2548 = vmax.f32 %v2451, 0.0
      %v2549 = vmax.f32 %v2453, 0.0
      %v2550 = vmax.f32 %v2455, 0.0
      %v2551 = vmax.f32 %v2459, 0.0
      %v2552 = vmax.f32 %v2461, 0.0
      %v2553 = vmax.f32 %v2463, 0.0
      %v2554 = vmax.f32 %v2465, 0.0
      %v2555 = vmax.f32 %v2469, 0.0
      %v2556 = vmax.f32 %v2471, 0.0
      %v2557 = vmax.f32 %v2473, 0.0
      %v2558 = vmax.f32 %v2475, 0.0
      %v2559 = vmax.f32 %v2479, 0.0
      %v2560 = vmax.f32 %v2481, 0.0
      %v2561 = vmax.f32 %v2483, 0.0
      %v2562 = vmax.f32 %v2485, 0.0
      %v2563 = vmax.f32 %v2489, 0.0
      %v2564 = vmax.f32 %v2491, 0.0
      %v2565 = vmax.f32 %v2493, 0.0
      %v2566 = vmax.f32 %v2495, 0.0
      %v2567 = vmax.f32 %v2499, 0.0
      %v2568 = vmax.f32 %v2501, 0.0
      %v2569 = vmax.f32 %v2503, 0.0
      %v2570 = vmax.f32 %v2505, 0.0
      %v2571 = vpack.c.bf16 %v2509, %v2507
      %v2572 = vpack.c.bf16 %v2510, %v2508
      %v2573 = vpack.c.bf16 %v2513, %v2511
      %v2574 = vpack.c.bf16 %v2514, %v2512
      %v2575 = vpack.c.bf16 %v2517, %v2515
      %v2576 = vpack.c.bf16 %v2518, %v2516
      %v2577 = vpack.c.bf16 %v2521, %v2519
      %v2578 = vpack.c.bf16 %v2522, %v2520
      %v2579 = vpack.c.bf16 %v2525, %v2523
      %v2580 = vpack.c.bf16 %v2526, %v2524
      %v2581 = vpack.c.bf16 %v2529, %v2527
      %v2582 = vpack.c.bf16 %v2530, %v2528
      %v2583 = vpack.c.bf16 %v2533, %v2531
      %v2584 = vpack.c.bf16 %v2534, %v2532
      %v2585 = vpack.c.bf16 %v2537, %v2535
      %v2586 = vpack.c.bf16 %v2538, %v2536
      %v2587 = vpack.c.bf16 %v2541, %v2539
      %v2588 = vpack.c.bf16 %v2542, %v2540
      %v2589 = vpack.c.bf16 %v2545, %v2543
      %v2590 = vpack.c.bf16 %v2546, %v2544
      %v2591 = vpack.c.bf16 %v2549, %v2547
      %v2592 = vpack.c.bf16 %v2550, %v2548
      %v2593 = vpack.c.bf16 %v2553, %v2551
      %v2594 = vpack.c.bf16 %v2554, %v2552
      %v2595 = vpack.c.bf16 %v2557, %v2555
      %v2596 = vpack.c.bf16 %v2558, %v2556
      %v2597 = vpack.c.bf16 %v2561, %v2559
      %v2598 = vpack.c.bf16 %v2562, %v2560
      %v2599 = vpack.c.bf16 %v2565, %v2563
      %v2600 = vpack.c.bf16 %v2566, %v2564
      %v2601 = vpack.c.bf16 %v2569, %v2567
      %v2602 = vpack.c.bf16 %v2570, %v2568
      %v2603 = vld [vmem:[%s3] sm:$0xff]
      %v2604 = vld [vmem:[%s3 + $0x8] sm:$0xff]
      %v2605 = vld [vmem:[%s3 + $0x10] sm:$0xff]
      %v2606 = vld [vmem:[%s3 + $0x18] sm:$0xff]
      %v2607 = vld [vmem:[%s3 + $0x20] sm:$0xff]
      %v2608 = vld [vmem:[%s3 + $0x28] sm:$0xff]
      %v2609 = vld [vmem:[%s3 + $0x30] sm:$0xff]
      %v2610 = vld [vmem:[%s3 + $0x38] sm:$0xff]
      %v2611 = vld [vmem:[%s4] sm:$0xff]
      %v2612 = vld [vmem:[%s4 + $0x8] sm:$0xff]
      %v2613 = vld [vmem:[%s4 + $0x10] sm:$0xff]
      %v2614 = vld [vmem:[%s4 + $0x18] sm:$0xff]
      %v2615 = vld [vmem:[%s4 + $0x20] sm:$0xff]
      %v2616 = vld [vmem:[%s4 + $0x28] sm:$0xff]
      %v2617 = vld [vmem:[%s4 + $0x30] sm:$0xff]
      %v2618 = vld [vmem:[%s4 + $0x38] sm:$0xff]
      %2620 = vset.pattern.permute.xlu0 0
      %2621 = vperm.xlu0 %2620, %v2611
      %v2622 = vpop.permute.xlu0 %2621
      %2625 = vset.pattern.permute.xlu0 0
      %2626 = vperm.xlu0 %2625, %v2612
      %v2627 = vpop.permute.xlu0 %2626
      %2630 = vset.pattern.permute.xlu0 0
      %2631 = vperm.xlu0 %2630, %v2613
      %v2632 = vpop.permute.xlu0 %2631
      %2635 = vset.pattern.permute.xlu0 0
      %2636 = vperm.xlu0 %2635, %v2614
      %v2637 = vpop.permute.xlu0 %2636
      %2640 = vset.pattern.permute.xlu0 0
      %2641 = vperm.xlu0 %2640, %v2615
      %v2642 = vpop.permute.xlu0 %2641
      %2645 = vset.pattern.permute.xlu0 0
      %2646 = vperm.xlu0 %2645, %v2616
      %v2647 = vpop.permute.xlu0 %2646
      %2650 = vset.pattern.permute.xlu0 0
      %2651 = vperm.xlu0 %2650, %v2617
      %v2652 = vpop.permute.xlu0 %2651
      %2655 = vset.pattern.permute.xlu0 0
      %2656 = vperm.xlu0 %2655, %v2618
      %v2657 = vpop.permute.xlu0 %2656
      %v2667 = vunpack.c.l.b16 %v2603
      %v2668 = vunpack.c.h.b16 %v2603
      %v2669 = vunpack.c.l.b16 %v2604
      %v2670 = vunpack.c.h.b16 %v2604
      %v2671 = vunpack.c.l.b16 %v2605
      %v2672 = vunpack.c.h.b16 %v2605
      %v2673 = vunpack.c.l.b16 %v2606
      %v2674 = vunpack.c.h.b16 %v2606
      %v2675 = vunpack.c.l.b16 %v2607
      %v2676 = vunpack.c.h.b16 %v2607
      %v2677 = vunpack.c.l.b16 %v2608
      %v2678 = vunpack.c.h.b16 %v2608
      %v2679 = vunpack.c.l.b16 %v2609
      %v2680 = vunpack.c.h.b16 %v2609
      %v2681 = vunpack.c.l.b16 %v2610
      %v2682 = vunpack.c.h.b16 %v2610
      %v2683 = vpack.c.b16 %v2669, %v2667
      %v2684 = vpack.c.b16 %v2670, %v2668
      %v2685 = vpack.c.b16 %v2673, %v2671
      %v2686 = vpack.c.b16 %v2674, %v2672
      %v2687 = vpack.c.b16 %v2677, %v2675
      %v2688 = vpack.c.b16 %v2678, %v2676
      %v2689 = vpack.c.b16 %v2681, %v2679
      %v2690 = vpack.c.b16 %v2682, %v2680
      %2699 = vmatprep.subr.bf16.mxu0 %v2586
      %2700 = vmatpush1.bf16.msra.mxu0 %v2585
      %2701 = vmatprep.subr.bf16.mxu0 %v2584
      %2702 = vmatpush1.bf16.msra.mxu0 %v2583
      %2703 = vmatprep.subr.bf16.mxu0 %v2582
      %2704 = vmatpush1.bf16.msra.mxu0 %v2581
      %2705 = vmatprep.subr.bf16.mxu0 %v2580
      %2706 = vmatpush1.bf16.msra.mxu0 %v2579
      %2707 = vmatprep.subr.bf16.mxu0 %v2578
      %2708 = vmatpush1.bf16.msra.mxu0 %v2577
      %2709 = vmatprep.subr.bf16.mxu0 %v2576
      %2710 = vmatpush1.bf16.msra.mxu0 %v2575
      %2711 = vmatprep.subr.bf16.mxu0 %v2574
      %2712 = vmatpush1.bf16.msra.mxu0 %v2573
      %2713 = vmatprep.subr.bf16.mxu0 %v2572
      %2714 = vmatpush1.bf16.msra.mxu0 %v2571
      %2715 = vmatprep.subr.bf16.mxu0 %v2602
      %2716 = vmatpush2.bf16.msra.mxu0 %v2601
      %2717 = vmatprep.subr.bf16.mxu0 %v2600
      %2718 = vmatpush2.bf16.msra.mxu0 %v2599
      %2719 = vmatprep.subr.bf16.mxu0 %v2598
      %2720 = vmatpush2.bf16.msra.mxu0 %v2597
      %2721 = vmatprep.subr.bf16.mxu0 %v2596
      %2722 = vmatpush2.bf16.msra.mxu0 %v2595
      %2723 = vmatprep.subr.bf16.mxu0 %v2594
      %2724 = vmatpush2.bf16.msra.mxu0 %v2593
      %2725 = vmatprep.subr.bf16.mxu0 %v2592
      %2726 = vmatpush2.bf16.msra.mxu0 %v2591
      %2727 = vmatprep.subr.bf16.mxu0 %v2590
      %2728 = vmatpush2.bf16.msra.mxu0 %v2589
      %2729 = vmatprep.subr.bf16.mxu0 %v2588
      %2730 = vmatpush2.bf16.msra.mxu0 %v2587
      %2731 = vmatprep.mubr.bf16.mxu0 %v2684
      %2732 = vmatmul.mubr.bf16.gmra.mxu0 %v2683
      %v2733 = vpop.f32.mrf.mxu0
      %v2734 = vadd.f32 %v2622, %v2733
      %v2735 = vpop.f32.mrf.mxu0
      %v2736 = vadd.f32 %v2622, %v2735
      %v2737 = vpop.f32.mrf.mxu0
      %v2738 = vadd.f32 %v2627, %v2737
      %v2739 = vpop.f32.mrf.mxu0
      %v2740 = vadd.f32 %v2627, %v2739
      %2741 = vmatprep.mubr.bf16.mxu0 %v2686
      %2742 = vmatmul.mubr.bf16.gmra.mxu0 %v2685
      %v2743 = vpop.f32.mrf.mxu0
      %v2744 = vadd.f32 %v2632, %v2743
      %v2745 = vpop.f32.mrf.mxu0
      %v2746 = vadd.f32 %v2632, %v2745
      %v2747 = vpop.f32.mrf.mxu0
      %v2748 = vadd.f32 %v2637, %v2747
      %v2749 = vpop.f32.mrf.mxu0
      %v2750 = vadd.f32 %v2637, %v2749
      %2751 = vmatprep.mubr.bf16.mxu0 %v2688
      %2752 = vmatmul.mubr.bf16.gmra.mxu0 %v2687
      %v2753 = vpop.f32.mrf.mxu0
      %v2754 = vadd.f32 %v2642, %v2753
      %v2755 = vpop.f32.mrf.mxu0
      %v2756 = vadd.f32 %v2642, %v2755
      %v2757 = vpop.f32.mrf.mxu0
      %v2758 = vadd.f32 %v2647, %v2757
      %v2759 = vpop.f32.mrf.mxu0
      %v2760 = vadd.f32 %v2647, %v2759
      %2761 = vmatprep.mubr.bf16.mxu0 %v2690
      %2762 = vmatmul.mubr.bf16.gmra.mxu0 %v2689
      %v2763 = vpop.f32.mrf.mxu0
      %v2764 = vadd.f32 %v2652, %v2763
      %v2765 = vpop.f32.mrf.mxu0
      %v2766 = vadd.f32 %v2652, %v2765
      %v2767 = vpop.f32.mrf.mxu0
      %v2768 = vadd.f32 %v2657, %v2767
      %v2769 = vpop.f32.mrf.mxu0
      %v2770 = vadd.f32 %v2657, %v2769
      %2771 = vdwg.mxu0
      %v2772 = vmax.f32 %v2734, 0.0
      %v2773 = vmax.f32 %v2736, 0.0
      %v2774 = vmax.f32 %v2738, 0.0
      %v2775 = vmax.f32 %v2740, 0.0
      %v2776 = vmax.f32 %v2744, 0.0
      %v2777 = vmax.f32 %v2746, 0.0
      %v2778 = vmax.f32 %v2748, 0.0
      %v2779 = vmax.f32 %v2750, 0.0
      %v2780 = vmax.f32 %v2754, 0.0
      %v2781 = vmax.f32 %v2756, 0.0
      %v2782 = vmax.f32 %v2758, 0.0
      %v2783 = vmax.f32 %v2760, 0.0
      %v2784 = vmax.f32 %v2764, 0.0
      %v2785 = vmax.f32 %v2766, 0.0
      %v2786 = vmax.f32 %v2768, 0.0
      %v2787 = vmax.f32 %v2770, 0.0
      %v2788 = vpack.c.bf16 %v2774, %v2772
      %v2789 = vpack.c.bf16 %v2775, %v2773
      %v2790 = vpack.c.bf16 %v2778, %v2776
      %v2791 = vpack.c.bf16 %v2779, %v2777
      %v2792 = vpack.c.bf16 %v2782, %v2780
      %v2793 = vpack.c.bf16 %v2783, %v2781
      %v2794 = vpack.c.bf16 %v2786, %v2784
      %v2795 = vpack.c.bf16 %v2787, %v2785
      %v2804 = vunpack.c.l.b16 %v2788
      %v2805 = vunpack.c.l.b16 %v2789
      %v2806 = vunpack.c.h.b16 %v2788
      %v2807 = vunpack.c.h.b16 %v2789
      %v2808 = vunpack.c.l.b16 %v2790
      %v2809 = vunpack.c.l.b16 %v2791
      %v2810 = vunpack.c.h.b16 %v2790
      %v2811 = vunpack.c.h.b16 %v2791
      %v2812 = vunpack.c.l.b16 %v2792
      %v2813 = vunpack.c.l.b16 %v2793
      %v2814 = vunpack.c.h.b16 %v2792
      %v2815 = vunpack.c.h.b16 %v2793
      %v2816 = vunpack.c.l.b16 %v2794
      %v2817 = vunpack.c.l.b16 %v2795
      %v2818 = vunpack.c.h.b16 %v2794
      %v2819 = vunpack.c.h.b16 %v2795
      %v2820 = vpack.c.b16 %v2805, %v2804
      %v2821 = vpack.c.b16 %v2807, %v2806
      %v2822 = vpack.c.b16 %v2809, %v2808
      %v2823 = vpack.c.b16 %v2811, %v2810
      %v2824 = vpack.c.b16 %v2813, %v2812
      %v2825 = vpack.c.b16 %v2815, %v2814
      %v2826 = vpack.c.b16 %v2817, %v2816
      %v2827 = vpack.c.b16 %v2819, %v2818
      %2836 = vst [vmem:[#allocation2 + $0x200] sm:$0xff] %v2820
      %2837 = vst [vmem:[#allocation2 + $0x208] sm:$0xff] %v2821
      %2838 = vst [vmem:[#allocation2 + $0x210] sm:$0xff] %v2822
      %2839 = vst [vmem:[#allocation2 + $0x218] sm:$0xff] %v2823
      %2840 = vst [vmem:[#allocation2 + $0x220] sm:$0xff] %v2824
      %2841 = vst [vmem:[#allocation2 + $0x228] sm:$0xff] %v2825
      %2842 = vst [vmem:[#allocation2 + $0x230] sm:$0xff] %v2826
      %2843 = vst [vmem:[#allocation2 + $0x238] sm:$0xff] %v2827
      %v2844 = vld [vmem:[#allocation2] sm:$0xff]
      %v2845 = vld [vmem:[#allocation2 + $0x8] sm:$0xff]
      %v2846 = vld [vmem:[#allocation2 + $0x10] sm:$0xff]
      %v2847 = vld [vmem:[#allocation2 + $0x18] sm:$0xff]
      %v2848 = vld [vmem:[#allocation2 + $0x20] sm:$0xff]
      %v2849 = vld [vmem:[#allocation2 + $0x28] sm:$0xff]
      %v2850 = vld [vmem:[#allocation2 + $0x30] sm:$0xff]
      %v2851 = vld [vmem:[#allocation2 + $0x38] sm:$0xff]
      %v2852 = vld [vmem:[#allocation2 + $0x40] sm:$0xff]
      %v2853 = vld [vmem:[#allocation2 + $0x48] sm:$0xff]
      %v2854 = vld [vmem:[#allocation2 + $0x50] sm:$0xff]
      %v2855 = vld [vmem:[#allocation2 + $0x58] sm:$0xff]
      %v2856 = vld [vmem:[#allocation2 + $0x60] sm:$0xff]
      %v2857 = vld [vmem:[#allocation2 + $0x68] sm:$0xff]
      %v2858 = vld [vmem:[#allocation2 + $0x70] sm:$0xff]
      %v2859 = vld [vmem:[#allocation2 + $0x78] sm:$0xff]
      %v2860 = vld [vmem:[#allocation2 + $0x80] sm:$0xff]
      %v2861 = vld [vmem:[#allocation2 + $0x88] sm:$0xff]
      %v2862 = vld [vmem:[#allocation2 + $0x90] sm:$0xff]
      %v2863 = vld [vmem:[#allocation2 + $0x98] sm:$0xff]
      %v2864 = vld [vmem:[#allocation2 + $0xa0] sm:$0xff]
      %v2865 = vld [vmem:[#allocation2 + $0xa8] sm:$0xff]
      %v2866 = vld [vmem:[#allocation2 + $0xb0] sm:$0xff]
      %v2867 = vld [vmem:[#allocation2 + $0xb8] sm:$0xff]
      %v2868 = vld [vmem:[#allocation2 + $0xc0] sm:$0xff]
      %v2869 = vld [vmem:[#allocation2 + $0xc8] sm:$0xff]
      %v2870 = vld [vmem:[#allocation2 + $0xd0] sm:$0xff]
      %v2871 = vld [vmem:[#allocation2 + $0xd8] sm:$0xff]
      %v2872 = vld [vmem:[#allocation2 + $0xe0] sm:$0xff]
      %v2873 = vld [vmem:[#allocation2 + $0xe8] sm:$0xff]
      %v2874 = vld [vmem:[#allocation2 + $0xf0] sm:$0xff]
      %v2875 = vld [vmem:[#allocation2 + $0xf8] sm:$0xff]
      %v2876 = vld [vmem:[#allocation2 + $0x100] sm:$0xff]
      %v2877 = vld [vmem:[#allocation2 + $0x108] sm:$0xff]
      %v2878 = vld [vmem:[#allocation2 + $0x110] sm:$0xff]
      %v2879 = vld [vmem:[#allocation2 + $0x118] sm:$0xff]
      %v2880 = vld [vmem:[#allocation2 + $0x120] sm:$0xff]
      %v2881 = vld [vmem:[#allocation2 + $0x128] sm:$0xff]
      %v2882 = vld [vmem:[#allocation2 + $0x130] sm:$0xff]
      %v2883 = vld [vmem:[#allocation2 + $0x138] sm:$0xff]
      %v2884 = vld [vmem:[#allocation2 + $0x140] sm:$0xff]
      %v2885 = vld [vmem:[#allocation2 + $0x148] sm:$0xff]
      %v2886 = vld [vmem:[#allocation2 + $0x150] sm:$0xff]
      %v2887 = vld [vmem:[#allocation2 + $0x158] sm:$0xff]
      %v2888 = vld [vmem:[#allocation2 + $0x160] sm:$0xff]
      %v2889 = vld [vmem:[#allocation2 + $0x168] sm:$0xff]
      %v2890 = vld [vmem:[#allocation2 + $0x170] sm:$0xff]
      %v2891 = vld [vmem:[#allocation2 + $0x178] sm:$0xff]
      %v2892 = vld [vmem:[#allocation2 + $0x180] sm:$0xff]
      %v2893 = vld [vmem:[#allocation2 + $0x188] sm:$0xff]
      %v2894 = vld [vmem:[#allocation2 + $0x190] sm:$0xff]
      %v2895 = vld [vmem:[#allocation2 + $0x198] sm:$0xff]
      %v2896 = vld [vmem:[#allocation2 + $0x1a0] sm:$0xff]
      %v2897 = vld [vmem:[#allocation2 + $0x1a8] sm:$0xff]
      %v2898 = vld [vmem:[#allocation2 + $0x1b0] sm:$0xff]
      %v2899 = vld [vmem:[#allocation2 + $0x1b8] sm:$0xff]
      %v2900 = vld [vmem:[#allocation2 + $0x1c0] sm:$0xff]
      %v2901 = vld [vmem:[#allocation2 + $0x1c8] sm:$0xff]
      %v2902 = vld [vmem:[#allocation2 + $0x1d0] sm:$0xff]
      %v2903 = vld [vmem:[#allocation2 + $0x1d8] sm:$0xff]
      %v2904 = vld [vmem:[#allocation2 + $0x1e0] sm:$0xff]
      %v2905 = vld [vmem:[#allocation2 + $0x1e8] sm:$0xff]
      %v2906 = vld [vmem:[#allocation2 + $0x1f0] sm:$0xff]
      %v2907 = vld [vmem:[#allocation2 + $0x1f8] sm:$0xff]
      %v2908 = vld [vmem:[#allocation2 + $0x200] sm:$0xff]
      %v2909 = vld [vmem:[#allocation2 + $0x208] sm:$0xff]
      %v2910 = vld [vmem:[#allocation2 + $0x210] sm:$0xff]
      %v2911 = vld [vmem:[#allocation2 + $0x218] sm:$0xff]
      %v2912 = vld [vmem:[#allocation2 + $0x220] sm:$0xff]
      %v2913 = vld [vmem:[#allocation2 + $0x228] sm:$0xff]
      %v2914 = vld [vmem:[#allocation2 + $0x230] sm:$0xff]
      %v2915 = vld [vmem:[#allocation2 + $0x238] sm:$0xff]
      %v2916 = vld [vmem:[%s5] sm:$0xff]
      %v2917 = vld [vmem:[%s5 + $0x8] sm:$0xff]
      %v2918 = vld [vmem:[%s5 + $0x10] sm:$0xf]
      %v2919 = vld [vmem:[%s5 + $0x14] sm:$0xff]
      %v2920 = vld [vmem:[%s5 + $0x1c] sm:$0xff]
      %v2921 = vld [vmem:[%s5 + $0x24] sm:$0xf]
      %v2922 = vld [vmem:[%s5 + $0x28] sm:$0xff]
      %v2923 = vld [vmem:[%s5 + $0x30] sm:$0xff]
      %v2924 = vld [vmem:[%s5 + $0x38] sm:$0xf]
      %v2925 = vld [vmem:[%s5 + $0x3c] sm:$0xff]
      %v2926 = vld [vmem:[%s5 + $0x44] sm:$0xff]
      %v2927 = vld [vmem:[%s5 + $0x4c] sm:$0xf]
      %v2928 = vld [vmem:[%s5 + $0x50] sm:$0xff]
      %v2929 = vld [vmem:[%s5 + $0x58] sm:$0xff]
      %v2930 = vld [vmem:[%s5 + $0x60] sm:$0xf]
      %v2931 = vld [vmem:[%s5 + $0x64] sm:$0xff]
      %v2932 = vld [vmem:[%s5 + $0x6c] sm:$0xff]
      %v2933 = vld [vmem:[%s5 + $0x74] sm:$0xf]
      %v2934 = vld [vmem:[%s5 + $0x78] sm:$0xff]
      %v2935 = vld [vmem:[%s5 + $0x80] sm:$0xff]
      %v2936 = vld [vmem:[%s5 + $0x88] sm:$0xf]
      %v2937 = vld [vmem:[%s5 + $0x8c] sm:$0xff]
      %v2938 = vld [vmem:[%s5 + $0x94] sm:$0xff]
      %v2939 = vld [vmem:[%s5 + $0x9c] sm:$0xf]
      %v2940 = vld [vmem:[%s5 + $0xa0] sm:$0xff]
      %v2941 = vld [vmem:[%s5 + $0xa8] sm:$0xff]
      %v2942 = vld [vmem:[%s5 + $0xb0] sm:$0xf]
      %v2943 = vld [vmem:[%s5 + $0xb4] sm:$0xff]
      %v2944 = vld [vmem:[%s5 + $0xbc] sm:$0xff]
      %v2945 = vld [vmem:[%s5 + $0xc4] sm:$0xf]
      %v2946 = vld [vmem:[%s5 + $0xc8] sm:$0xff]
      %v2947 = vld [vmem:[%s5 + $0xd0] sm:$0xff]
      %v2948 = vld [vmem:[%s5 + $0xd8] sm:$0xf]
      %v2949 = vld [vmem:[%s5 + $0xdc] sm:$0xff]
      %v2950 = vld [vmem:[%s5 + $0xe4] sm:$0xff]
      %v2951 = vld [vmem:[%s5 + $0xec] sm:$0xf]
      %v2952 = vld [vmem:[%s5 + $0xf0] sm:$0xff]
      %v2953 = vld [vmem:[%s5 + $0xf8] sm:$0xff]
      %v2954 = vld [vmem:[%s5 + $0x100] sm:$0xf]
      %v2955 = vld [vmem:[%s5 + $0x104] sm:$0xff]
      %v2956 = vld [vmem:[%s5 + $0x10c] sm:$0xff]
      %v2957 = vld [vmem:[%s5 + $0x114] sm:$0xf]
      %v2958 = vld [vmem:[%s5 + $0x118] sm:$0xff]
      %v2959 = vld [vmem:[%s5 + $0x120] sm:$0xff]
      %v2960 = vld [vmem:[%s5 + $0x128] sm:$0xf]
      %v2961 = vld [vmem:[%s5 + $0x12c] sm:$0xff]
      %v2962 = vld [vmem:[%s5 + $0x134] sm:$0xff]
      %v2963 = vld [vmem:[%s5 + $0x13c] sm:$0xf]
      %v2964 = vld [vmem:[%s5 + $0x140] sm:$0xff]
      %v2965 = vld [vmem:[%s5 + $0x148] sm:$0xff]
      %v2966 = vld [vmem:[%s5 + $0x150] sm:$0xf]
      %v2967 = vld [vmem:[%s5 + $0x154] sm:$0xff]
      %v2968 = vld [vmem:[%s5 + $0x15c] sm:$0xff]
      %v2969 = vld [vmem:[%s5 + $0x164] sm:$0xf]
      %v2970 = vld [vmem:[%s5 + $0x168] sm:$0xff]
      %v2971 = vld [vmem:[%s5 + $0x170] sm:$0xff]
      %v2972 = vld [vmem:[%s5 + $0x178] sm:$0xf]
      %v2973 = vld [vmem:[%s5 + $0x17c] sm:$0xff]
      %v2974 = vld [vmem:[%s5 + $0x184] sm:$0xff]
      %v2975 = vld [vmem:[%s5 + $0x18c] sm:$0xf]
      %v2976 = vld [vmem:[%s5 + $0x190] sm:$0xff]
      %v2977 = vld [vmem:[%s5 + $0x198] sm:$0xff]
      %v2978 = vld [vmem:[%s5 + $0x1a0] sm:$0xf]
      %v2979 = vld [vmem:[%s5 + $0x1a4] sm:$0xff]
      %v2980 = vld [vmem:[%s5 + $0x1ac] sm:$0xff]
      %v2981 = vld [vmem:[%s5 + $0x1b4] sm:$0xf]
      %v2982 = vld [vmem:[%s5 + $0x1b8] sm:$0xff]
      %v2983 = vld [vmem:[%s5 + $0x1c0] sm:$0xff]
      %v2984 = vld [vmem:[%s5 + $0x1c8] sm:$0xf]
      %v2985 = vld [vmem:[%s5 + $0x1cc] sm:$0xff]
      %v2986 = vld [vmem:[%s5 + $0x1d4] sm:$0xff]
      %v2987 = vld [vmem:[%s5 + $0x1dc] sm:$0xf]
      %v2988 = vld [vmem:[%s5 + $0x1e0] sm:$0xff]
      %v2989 = vld [vmem:[%s5 + $0x1e8] sm:$0xff]
      %v2990 = vld [vmem:[%s5 + $0x1f0] sm:$0xf]
      %v2991 = vld [vmem:[%s5 + $0x1f4] sm:$0xff]
      %v2992 = vld [vmem:[%s5 + $0x1fc] sm:$0xff]
      %v2993 = vld [vmem:[%s5 + $0x204] sm:$0xf]
      %v2994 = vld [vmem:[%s5 + $0x208] sm:$0xff]
      %v2995 = vld [vmem:[%s5 + $0x210] sm:$0xff]
      %v2996 = vld [vmem:[%s5 + $0x218] sm:$0xf]
      %v2997 = vld [vmem:[%s5 + $0x21c] sm:$0xff]
      %v2998 = vld [vmem:[%s5 + $0x224] sm:$0xff]
      %v2999 = vld [vmem:[%s5 + $0x22c] sm:$0xf]
      %v3000 = vld [vmem:[%s5 + $0x230] sm:$0xff]
      %v3001 = vld [vmem:[%s5 + $0x238] sm:$0xff]
      %v3002 = vld [vmem:[%s5 + $0x240] sm:$0xf]
      %v3003 = vld [vmem:[%s5 + $0x244] sm:$0xff]
      %v3004 = vld [vmem:[%s5 + $0x24c] sm:$0xff]
      %v3005 = vld [vmem:[%s5 + $0x254] sm:$0xf]
      %v3006 = vld [vmem:[%s5 + $0x258] sm:$0xff]
      %v3007 = vld [vmem:[%s5 + $0x260] sm:$0xff]
      %v3008 = vld [vmem:[%s5 + $0x268] sm:$0xf]
      %v3009 = vld [vmem:[%s5 + $0x26c] sm:$0xff]
      %v3010 = vld [vmem:[%s5 + $0x274] sm:$0xff]
      %v3011 = vld [vmem:[%s5 + $0x27c] sm:$0xf]
      %v3012 = vld [vmem:[%s6] sm:$0xff]
      %v3013 = vld [vmem:[%s6 + $0x8] sm:$0xff]
      %v3014 = vld [vmem:[%s6 + $0x10] sm:$0xff]
      %v3015 = vld [vmem:[%s6 + $0x18] sm:$0xff]
      %v3016 = vld [vmem:[%s6 + $0x20] sm:$0xff]
      %v3017 = vld [vmem:[%s6 + $0x28] sm:$0xff]
      %v3018 = vld [vmem:[%s6 + $0x30] sm:$0xff]
      %v3019 = vld [vmem:[%s6 + $0x38] sm:$0xff]
      %v3020 = vld [vmem:[%s6 + $0x40] sm:$0xff]
      %v3021 = vld [vmem:[%s6 + $0x48] sm:$0xff]
      %v3022 = vld [vmem:[%s6 + $0x50] sm:$0xff]
      %v3023 = vld [vmem:[%s6 + $0x58] sm:$0xff]
      %v3024 = vld [vmem:[%s6 + $0x60] sm:$0xff]
      %v3025 = vld [vmem:[%s6 + $0x68] sm:$0xff]
      %v3026 = vld [vmem:[%s6 + $0x70] sm:$0xff]
      %v3027 = vld [vmem:[%s6 + $0x78] sm:$0xff]
      %v3028 = vld [vmem:[%s6 + $0x80] sm:$0xff]
      %v3029 = vld [vmem:[%s6 + $0x88] sm:$0xff]
      %v3030 = vld [vmem:[%s6 + $0x90] sm:$0xff]
      %v3031 = vld [vmem:[%s6 + $0x98] sm:$0xff]
      %v3032 = vld [vmem:[%s6 + $0xa0] sm:$0xff]
      %v3033 = vld [vmem:[%s6 + $0xa8] sm:$0xff]
      %v3034 = vld [vmem:[%s6 + $0xb0] sm:$0xff]
      %v3035 = vld [vmem:[%s6 + $0xb8] sm:$0xff]
      %v3036 = vld [vmem:[%s6 + $0xc0] sm:$0xff]
      %v3037 = vld [vmem:[%s6 + $0xc8] sm:$0xff]
      %v3038 = vld [vmem:[%s6 + $0xd0] sm:$0xff]
      %v3039 = vld [vmem:[%s6 + $0xd8] sm:$0xff]
      %v3040 = vld [vmem:[%s6 + $0xe0] sm:$0xff]
      %v3041 = vld [vmem:[%s6 + $0xe8] sm:$0xff]
      %v3042 = vld [vmem:[%s6 + $0xf0] sm:$0xff]
      %v3043 = vld [vmem:[%s6 + $0xf8] sm:$0xff]
      %3045 = vset.pattern.permute.xlu0 0
      %3046 = vperm.xlu0 %3045, %v3012
      %v3047 = vpop.permute.xlu0 %3046
      %3050 = vset.pattern.permute.xlu0 0
      %3051 = vperm.xlu0 %3050, %v3013
      %v3052 = vpop.permute.xlu0 %3051
      %3055 = vset.pattern.permute.xlu0 0
      %3056 = vperm.xlu0 %3055, %v3014
      %v3057 = vpop.permute.xlu0 %3056
      %3060 = vset.pattern.permute.xlu0 0
      %3061 = vperm.xlu0 %3060, %v3015
      %v3062 = vpop.permute.xlu0 %3061
      %3065 = vset.pattern.permute.xlu0 0
      %3066 = vperm.xlu0 %3065, %v3016
      %v3067 = vpop.permute.xlu0 %3066
      %3070 = vset.pattern.permute.xlu0 0
      %3071 = vperm.xlu0 %3070, %v3017
      %v3072 = vpop.permute.xlu0 %3071
      %3075 = vset.pattern.permute.xlu0 0
      %3076 = vperm.xlu0 %3075, %v3018
      %v3077 = vpop.permute.xlu0 %3076
      %3080 = vset.pattern.permute.xlu0 0
      %3081 = vperm.xlu0 %3080, %v3019
      %v3082 = vpop.permute.xlu0 %3081
      %3085 = vset.pattern.permute.xlu0 0
      %3086 = vperm.xlu0 %3085, %v3020
      %v3087 = vpop.permute.xlu0 %3086
      %3090 = vset.pattern.permute.xlu0 0
      %3091 = vperm.xlu0 %3090, %v3021
      %v3092 = vpop.permute.xlu0 %3091
      %3095 = vset.pattern.permute.xlu0 0
      %3096 = vperm.xlu0 %3095, %v3022
      %v3097 = vpop.permute.xlu0 %3096
      %3100 = vset.pattern.permute.xlu0 0
      %3101 = vperm.xlu0 %3100, %v3023
      %v3102 = vpop.permute.xlu0 %3101
      %3105 = vset.pattern.permute.xlu0 0
      %3106 = vperm.xlu0 %3105, %v3024
      %v3107 = vpop.permute.xlu0 %3106
      %3110 = vset.pattern.permute.xlu0 0
      %3111 = vperm.xlu0 %3110, %v3025
      %v3112 = vpop.permute.xlu0 %3111
      %3115 = vset.pattern.permute.xlu0 0
      %3116 = vperm.xlu0 %3115, %v3026
      %v3117 = vpop.permute.xlu0 %3116
      %3120 = vset.pattern.permute.xlu0 0
      %3121 = vperm.xlu0 %3120, %v3027
      %v3122 = vpop.permute.xlu0 %3121
      %3125 = vset.pattern.permute.xlu0 0
      %3126 = vperm.xlu0 %3125, %v3028
      %v3127 = vpop.permute.xlu0 %3126
      %3130 = vset.pattern.permute.xlu0 0
      %3131 = vperm.xlu0 %3130, %v3029
      %v3132 = vpop.permute.xlu0 %3131
      %3135 = vset.pattern.permute.xlu0 0
      %3136 = vperm.xlu0 %3135, %v3030
      %v3137 = vpop.permute.xlu0 %3136
      %3140 = vset.pattern.permute.xlu0 0
      %3141 = vperm.xlu0 %3140, %v3031
      %v3142 = vpop.permute.xlu0 %3141
      %3145 = vset.pattern.permute.xlu0 0
      %3146 = vperm.xlu0 %3145, %v3032
      %v3147 = vpop.permute.xlu0 %3146
      %3150 = vset.pattern.permute.xlu0 0
      %3151 = vperm.xlu0 %3150, %v3033
      %v3152 = vpop.permute.xlu0 %3151
      %3155 = vset.pattern.permute.xlu0 0
      %3156 = vperm.xlu0 %3155, %v3034
      %v3157 = vpop.permute.xlu0 %3156
      %3160 = vset.pattern.permute.xlu0 0
      %3161 = vperm.xlu0 %3160, %v3035
      %v3162 = vpop.permute.xlu0 %3161
      %3165 = vset.pattern.permute.xlu0 0
      %3166 = vperm.xlu0 %3165, %v3036
      %v3167 = vpop.permute.xlu0 %3166
      %3170 = vset.pattern.permute.xlu0 0
      %3171 = vperm.xlu0 %3170, %v3037
      %v3172 = vpop.permute.xlu0 %3171
      %3175 = vset.pattern.permute.xlu0 0
      %3176 = vperm.xlu0 %3175, %v3038
      %v3177 = vpop.permute.xlu0 %3176
      %3180 = vset.pattern.permute.xlu0 0
      %3181 = vperm.xlu0 %3180, %v3039
      %v3182 = vpop.permute.xlu0 %3181
      %3185 = vset.pattern.permute.xlu0 0
      %3186 = vperm.xlu0 %3185, %v3040
      %v3187 = vpop.permute.xlu0 %3186
      %3190 = vset.pattern.permute.xlu0 0
      %3191 = vperm.xlu0 %3190, %v3041
      %v3192 = vpop.permute.xlu0 %3191
      %3195 = vset.pattern.permute.xlu0 0
      %3196 = vperm.xlu0 %3195, %v3042
      %v3197 = vpop.permute.xlu0 %3196
      %3200 = vset.pattern.permute.xlu0 0
      %3201 = vperm.xlu0 %3200, %v3043
      %v3202 = vpop.permute.xlu0 %3201
      %v3300 = vunpack.c.l.b16 %v2916
      %v3301 = vunpack.c.h.b16 %v2916
      %v3302 = vunpack.c.l.b16 %v2917
      %v3303 = vunpack.c.h.b16 %v2917
      %v3304 = vunpack.c.l.b16 %v2918
      %v3305 = vunpack.c.l.b16 %v2919
      %v3306 = vunpack.c.h.b16 %v2919
      %v3307 = vunpack.c.l.b16 %v2920
      %v3308 = vunpack.c.h.b16 %v2920
      %v3309 = vunpack.c.l.b16 %v2921
      %v3310 = vunpack.c.l.b16 %v2922
      %v3311 = vunpack.c.h.b16 %v2922
      %v3312 = vunpack.c.l.b16 %v2923
      %v3313 = vunpack.c.h.b16 %v2923
      %v3314 = vunpack.c.l.b16 %v2924
      %v3315 = vunpack.c.l.b16 %v2925
      %v3316 = vunpack.c.h.b16 %v2925
      %v3317 = vunpack.c.l.b16 %v2926
      %v3318 = vunpack.c.h.b16 %v2926
      %v3319 = vunpack.c.l.b16 %v2927
      %v3320 = vunpack.c.l.b16 %v2928
      %v3321 = vunpack.c.h.b16 %v2928
      %v3322 = vunpack.c.l.b16 %v2929
      %v3323 = vunpack.c.h.b16 %v2929
      %v3324 = vunpack.c.l.b16 %v2930
      %v3325 = vunpack.c.l.b16 %v2931
      %v3326 = vunpack.c.h.b16 %v2931
      %v3327 = vunpack.c.l.b16 %v2932
      %v3328 = vunpack.c.h.b16 %v2932
      %v3329 = vunpack.c.l.b16 %v2933
      %v3330 = vunpack.c.l.b16 %v2934
      %v3331 = vunpack.c.h.b16 %v2934
      %v3332 = vunpack.c.l.b16 %v2935
      %v3333 = vunpack.c.h.b16 %v2935
      %v3334 = vunpack.c.l.b16 %v2936
      %v3335 = vunpack.c.l.b16 %v2937
      %v3336 = vunpack.c.h.b16 %v2937
      %v3337 = vunpack.c.l.b16 %v2938
      %v3338 = vunpack.c.h.b16 %v2938
      %v3339 = vunpack.c.l.b16 %v2939
      %v3340 = vunpack.c.l.b16 %v2940
      %v3341 = vunpack.c.h.b16 %v2940
      %v3342 = vunpack.c.l.b16 %v2941
      %v3343 = vunpack.c.h.b16 %v2941
      %v3344 = vunpack.c.l.b16 %v2942
      %v3345 = vunpack.c.l.b16 %v2943
      %v3346 = vunpack.c.h.b16 %v2943
      %v3347 = vunpack.c.l.b16 %v2944
      %v3348 = vunpack.c.h.b16 %v2944
      %v3349 = vunpack.c.l.b16 %v2945
      %v3350 = vunpack.c.l.b16 %v2946
      %v3351 = vunpack.c.h.b16 %v2946
      %v3352 = vunpack.c.l.b16 %v2947
      %v3353 = vunpack.c.h.b16 %v2947
      %v3354 = vunpack.c.l.b16 %v2948
      %v3355 = vunpack.c.l.b16 %v2949
      %v3356 = vunpack.c.h.b16 %v2949
      %v3357 = vunpack.c.l.b16 %v2950
      %v3358 = vunpack.c.h.b16 %v2950
      %v3359 = vunpack.c.l.b16 %v2951
      %v3360 = vunpack.c.l.b16 %v2952
      %v3361 = vunpack.c.h.b16 %v2952
      %v3362 = vunpack.c.l.b16 %v2953
      %v3363 = vunpack.c.h.b16 %v2953
      %v3364 = vunpack.c.l.b16 %v2954
      %v3365 = vunpack.c.l.b16 %v2955
      %v3366 = vunpack.c.h.b16 %v2955
      %v3367 = vunpack.c.l.b16 %v2956
      %v3368 = vunpack.c.h.b16 %v2956
      %v3369 = vunpack.c.l.b16 %v2957
      %v3370 = vunpack.c.l.b16 %v2958
      %v3371 = vunpack.c.h.b16 %v2958
      %v3372 = vunpack.c.l.b16 %v2959
      %v3373 = vunpack.c.h.b16 %v2959
      %v3374 = vunpack.c.l.b16 %v2960
      %v3375 = vunpack.c.l.b16 %v2961
      %v3376 = vunpack.c.h.b16 %v2961
      %v3377 = vunpack.c.l.b16 %v2962
      %v3378 = vunpack.c.h.b16 %v2962
      %v3379 = vunpack.c.l.b16 %v2963
      %v3380 = vunpack.c.l.b16 %v2964
      %v3381 = vunpack.c.h.b16 %v2964
      %v3382 = vunpack.c.l.b16 %v2965
      %v3383 = vunpack.c.h.b16 %v2965
      %v3384 = vunpack.c.l.b16 %v2966
      %v3385 = vunpack.c.l.b16 %v2967
      %v3386 = vunpack.c.h.b16 %v2967
      %v3387 = vunpack.c.l.b16 %v2968
      %v3388 = vunpack.c.h.b16 %v2968
      %v3389 = vunpack.c.l.b16 %v2969
      %v3390 = vunpack.c.l.b16 %v2970
      %v3391 = vunpack.c.h.b16 %v2970
      %v3392 = vunpack.c.l.b16 %v2971
      %v3393 = vunpack.c.h.b16 %v2971
      %v3394 = vunpack.c.l.b16 %v2972
      %v3395 = vunpack.c.l.b16 %v2973
      %v3396 = vunpack.c.h.b16 %v2973
      %v3397 = vunpack.c.l.b16 %v2974
      %v3398 = vunpack.c.h.b16 %v2974
      %v3399 = vunpack.c.l.b16 %v2975
      %v3400 = vunpack.c.l.b16 %v2976
      %v3401 = vunpack.c.h.b16 %v2976
      %v3402 = vunpack.c.l.b16 %v2977
      %v3403 = vunpack.c.h.b16 %v2977
      %v3404 = vunpack.c.l.b16 %v2978
      %v3405 = vunpack.c.l.b16 %v2979
      %v3406 = vunpack.c.h.b16 %v2979
      %v3407 = vunpack.c.l.b16 %v2980
      %v3408 = vunpack.c.h.b16 %v2980
      %v3409 = vunpack.c.l.b16 %v2981
      %v3410 = vunpack.c.l.b16 %v2982
      %v3411 = vunpack.c.h.b16 %v2982
      %v3412 = vunpack.c.l.b16 %v2983
      %v3413 = vunpack.c.h.b16 %v2983
      %v3414 = vunpack.c.l.b16 %v2984
      %v3415 = vunpack.c.l.b16 %v2985
      %v3416 = vunpack.c.h.b16 %v2985
      %v3417 = vunpack.c.l.b16 %v2986
      %v3418 = vunpack.c.h.b16 %v2986
      %v3419 = vunpack.c.l.b16 %v2987
      %v3420 = vunpack.c.l.b16 %v2988
      %v3421 = vunpack.c.h.b16 %v2988
      %v3422 = vunpack.c.l.b16 %v2989
      %v3423 = vunpack.c.h.b16 %v2989
      %v3424 = vunpack.c.l.b16 %v2990
      %v3425 = vunpack.c.l.b16 %v2991
      %v3426 = vunpack.c.h.b16 %v2991
      %v3427 = vunpack.c.l.b16 %v2992
      %v3428 = vunpack.c.h.b16 %v2992
      %v3429 = vunpack.c.l.b16 %v2993
      %v3430 = vunpack.c.l.b16 %v2994
      %v3431 = vunpack.c.h.b16 %v2994
      %v3432 = vunpack.c.l.b16 %v2995
      %v3433 = vunpack.c.h.b16 %v2995
      %v3434 = vunpack.c.l.b16 %v2996
      %v3435 = vunpack.c.l.b16 %v2997
      %v3436 = vunpack.c.h.b16 %v2997
      %v3437 = vunpack.c.l.b16 %v2998
      %v3438 = vunpack.c.h.b16 %v2998
      %v3439 = vunpack.c.l.b16 %v2999
      %v3440 = vunpack.c.l.b16 %v3000
      %v3441 = vunpack.c.h.b16 %v3000
      %v3442 = vunpack.c.l.b16 %v3001
      %v3443 = vunpack.c.h.b16 %v3001
      %v3444 = vunpack.c.l.b16 %v3002
      %v3445 = vunpack.c.l.b16 %v3003
      %v3446 = vunpack.c.h.b16 %v3003
      %v3447 = vunpack.c.l.b16 %v3004
      %v3448 = vunpack.c.h.b16 %v3004
      %v3449 = vunpack.c.l.b16 %v3005
      %v3450 = vunpack.c.l.b16 %v3006
      %v3451 = vunpack.c.h.b16 %v3006
      %v3452 = vunpack.c.l.b16 %v3007
      %v3453 = vunpack.c.h.b16 %v3007
      %v3454 = vunpack.c.l.b16 %v3008
      %v3455 = vunpack.c.l.b16 %v3009
      %v3456 = vunpack.c.h.b16 %v3009
      %v3457 = vunpack.c.l.b16 %v3010
      %v3458 = vunpack.c.h.b16 %v3010
      %v3459 = vunpack.c.l.b16 %v3011
      %v3460 = vpack.c.b16 %v3305, %v3300
      %v3461 = vpack.c.b16 %v3306, %v3301
      %v3462 = vpack.c.b16 %v3307, %v3302
      %v3463 = vpack.c.b16 %v3308, %v3303
      %v3464 = vpack.c.b16 %v3309, %v3304
      %v3465 = vpack.c.b16 %v3315, %v3310
      %v3466 = vpack.c.b16 %v3316, %v3311
      %v3467 = vpack.c.b16 %v3317, %v3312
      %v3468 = vpack.c.b16 %v3318, %v3313
      %v3469 = vpack.c.b16 %v3319, %v3314
      %v3470 = vpack.c.b16 %v3325, %v3320
      %v3471 = vpack.c.b16 %v3326, %v3321
      %v3472 = vpack.c.b16 %v3327, %v3322
      %v3473 = vpack.c.b16 %v3328, %v3323
      %v3474 = vpack.c.b16 %v3329, %v3324
      %v3475 = vpack.c.b16 %v3335, %v3330
      %v3476 = vpack.c.b16 %v3336, %v3331
      %v3477 = vpack.c.b16 %v3337, %v3332
      %v3478 = vpack.c.b16 %v3338, %v3333
      %v3479 = vpack.c.b16 %v3339, %v3334
      %v3480 = vpack.c.b16 %v3345, %v3340
      %v3481 = vpack.c.b16 %v3346, %v3341
      %v3482 = vpack.c.b16 %v3347, %v3342
      %v3483 = vpack.c.b16 %v3348, %v3343
      %v3484 = vpack.c.b16 %v3349, %v3344
      %v3485 = vpack.c.b16 %v3355, %v3350
      %v3486 = vpack.c.b16 %v3356, %v3351
      %v3487 = vpack.c.b16 %v3357, %v3352
      %v3488 = vpack.c.b16 %v3358, %v3353
      %v3489 = vpack.c.b16 %v3359, %v3354
      %v3490 = vpack.c.b16 %v3365, %v3360
      %v3491 = vpack.c.b16 %v3366, %v3361
      %v3492 = vpack.c.b16 %v3367, %v3362
      %v3493 = vpack.c.b16 %v3368, %v3363
      %v3494 = vpack.c.b16 %v3369, %v3364
      %v3495 = vpack.c.b16 %v3375, %v3370
      %v3496 = vpack.c.b16 %v3376, %v3371
      %v3497 = vpack.c.b16 %v3377, %v3372
      %v3498 = vpack.c.b16 %v3378, %v3373
      %v3499 = vpack.c.b16 %v3379, %v3374
      %v3500 = vpack.c.b16 %v3385, %v3380
      %v3501 = vpack.c.b16 %v3386, %v3381
      %v3502 = vpack.c.b16 %v3387, %v3382
      %v3503 = vpack.c.b16 %v3388, %v3383
      %v3504 = vpack.c.b16 %v3389, %v3384
      %v3505 = vpack.c.b16 %v3395, %v3390
      %v3506 = vpack.c.b16 %v3396, %v3391
      %v3507 = vpack.c.b16 %v3397, %v3392
      %v3508 = vpack.c.b16 %v3398, %v3393
      %v3509 = vpack.c.b16 %v3399, %v3394
      %v3510 = vpack.c.b16 %v3405, %v3400
      %v3511 = vpack.c.b16 %v3406, %v3401
      %v3512 = vpack.c.b16 %v3407, %v3402
      %v3513 = vpack.c.b16 %v3408, %v3403
      %v3514 = vpack.c.b16 %v3409, %v3404
      %v3515 = vpack.c.b16 %v3415, %v3410
      %v3516 = vpack.c.b16 %v3416, %v3411
      %v3517 = vpack.c.b16 %v3417, %v3412
      %v3518 = vpack.c.b16 %v3418, %v3413
      %v3519 = vpack.c.b16 %v3419, %v3414
      %v3520 = vpack.c.b16 %v3425, %v3420
      %v3521 = vpack.c.b16 %v3426, %v3421
      %v3522 = vpack.c.b16 %v3427, %v3422
      %v3523 = vpack.c.b16 %v3428, %v3423
      %v3524 = vpack.c.b16 %v3429, %v3424
      %v3525 = vpack.c.b16 %v3435, %v3430
      %v3526 = vpack.c.b16 %v3436, %v3431
      %v3527 = vpack.c.b16 %v3437, %v3432
      %v3528 = vpack.c.b16 %v3438, %v3433
      %v3529 = vpack.c.b16 %v3439, %v3434
      %v3530 = vpack.c.b16 %v3445, %v3440
      %v3531 = vpack.c.b16 %v3446, %v3441
      %v3532 = vpack.c.b16 %v3447, %v3442
      %v3533 = vpack.c.b16 %v3448, %v3443
      %v3534 = vpack.c.b16 %v3449, %v3444
      %v3535 = vpack.c.b16 %v3455, %v3450
      %v3536 = vpack.c.b16 %v3456, %v3451
      %v3537 = vpack.c.b16 %v3457, %v3452
      %v3538 = vpack.c.b16 %v3458, %v3453
      %v3539 = vpack.c.b16 %v3459, %v3454
      %v3676 = vunpack.c.l.b16 %v2844
      %v3677 = vunpack.c.h.b16 %v2844
      %v3678 = vunpack.c.l.b16 %v2845
      %v3679 = vunpack.c.h.b16 %v2845
      %v3680 = vunpack.c.l.b16 %v2846
      %v3681 = vunpack.c.h.b16 %v2846
      %v3682 = vunpack.c.l.b16 %v2847
      %v3683 = vunpack.c.h.b16 %v2847
      %v3684 = vunpack.c.l.b16 %v2848
      %v3685 = vunpack.c.h.b16 %v2848
      %v3686 = vunpack.c.l.b16 %v2849
      %v3687 = vunpack.c.h.b16 %v2849
      %v3688 = vunpack.c.l.b16 %v2850
      %v3689 = vunpack.c.h.b16 %v2850
      %v3690 = vunpack.c.l.b16 %v2851
      %v3691 = vunpack.c.h.b16 %v2851
      %v3692 = vunpack.c.l.b16 %v2852
      %v3693 = vunpack.c.h.b16 %v2852
      %v3694 = vunpack.c.l.b16 %v2853
      %v3695 = vunpack.c.h.b16 %v2853
      %v3696 = vunpack.c.l.b16 %v2854
      %v3697 = vunpack.c.h.b16 %v2854
      %v3698 = vunpack.c.l.b16 %v2855
      %v3699 = vunpack.c.h.b16 %v2855
      %v3700 = vunpack.c.l.b16 %v2856
      %v3701 = vunpack.c.h.b16 %v2856
      %v3702 = vunpack.c.l.b16 %v2857
      %v3703 = vunpack.c.h.b16 %v2857
      %v3704 = vunpack.c.l.b16 %v2858
      %v3705 = vunpack.c.h.b16 %v2858
      %v3706 = vunpack.c.l.b16 %v2859
      %v3707 = vunpack.c.h.b16 %v2859
      %v3708 = vunpack.c.l.b16 %v2860
      %v3709 = vunpack.c.h.b16 %v2860
      %v3710 = vunpack.c.l.b16 %v2861
      %v3711 = vunpack.c.h.b16 %v2861
      %v3712 = vunpack.c.l.b16 %v2862
      %v3713 = vunpack.c.h.b16 %v2862
      %v3714 = vunpack.c.l.b16 %v2863
      %v3715 = vunpack.c.h.b16 %v2863
      %v3716 = vunpack.c.l.b16 %v2864
      %v3717 = vunpack.c.h.b16 %v2864
      %v3718 = vunpack.c.l.b16 %v2865
      %v3719 = vunpack.c.h.b16 %v2865
      %v3720 = vunpack.c.l.b16 %v2866
      %v3721 = vunpack.c.h.b16 %v2866
      %v3722 = vunpack.c.l.b16 %v2867
      %v3723 = vunpack.c.h.b16 %v2867
      %v3724 = vunpack.c.l.b16 %v2868
      %v3725 = vunpack.c.h.b16 %v2868
      %v3726 = vunpack.c.l.b16 %v2869
      %v3727 = vunpack.c.h.b16 %v2869
      %v3728 = vunpack.c.l.b16 %v2870
      %v3729 = vunpack.c.h.b16 %v2870
      %v3730 = vunpack.c.l.b16 %v2871
      %v3731 = vunpack.c.h.b16 %v2871
      %v3732 = vunpack.c.l.b16 %v2872
      %v3733 = vunpack.c.h.b16 %v2872
      %v3734 = vunpack.c.l.b16 %v2873
      %v3735 = vunpack.c.h.b16 %v2873
      %v3736 = vunpack.c.l.b16 %v2874
      %v3737 = vunpack.c.h.b16 %v2874
      %v3738 = vunpack.c.l.b16 %v2875
      %v3739 = vunpack.c.h.b16 %v2875
      %v3740 = vunpack.c.l.b16 %v2876
      %v3741 = vunpack.c.h.b16 %v2876
      %v3742 = vunpack.c.l.b16 %v2877
      %v3743 = vunpack.c.h.b16 %v2877
      %v3744 = vunpack.c.l.b16 %v2878
      %v3745 = vunpack.c.h.b16 %v2878
      %v3746 = vunpack.c.l.b16 %v2879
      %v3747 = vunpack.c.h.b16 %v2879
      %v3748 = vunpack.c.l.b16 %v2880
      %v3749 = vunpack.c.h.b16 %v2880
      %v3750 = vunpack.c.l.b16 %v2881
      %v3751 = vunpack.c.h.b16 %v2881
      %v3752 = vunpack.c.l.b16 %v2882
      %v3753 = vunpack.c.h.b16 %v2882
      %v3754 = vunpack.c.l.b16 %v2883
      %v3755 = vunpack.c.h.b16 %v2883
      %v3756 = vunpack.c.l.b16 %v2884
      %v3757 = vunpack.c.h.b16 %v2884
      %v3758 = vunpack.c.l.b16 %v2885
      %v3759 = vunpack.c.h.b16 %v2885
      %v3760 = vunpack.c.l.b16 %v2886
      %v3761 = vunpack.c.h.b16 %v2886
      %v3762 = vunpack.c.l.b16 %v2887
      %v3763 = vunpack.c.h.b16 %v2887
      %v3764 = vunpack.c.l.b16 %v2888
      %v3765 = vunpack.c.h.b16 %v2888
      %v3766 = vunpack.c.l.b16 %v2889
      %v3767 = vunpack.c.h.b16 %v2889
      %v3768 = vunpack.c.l.b16 %v2890
      %v3769 = vunpack.c.h.b16 %v2890
      %v3770 = vunpack.c.l.b16 %v2891
      %v3771 = vunpack.c.h.b16 %v2891
      %v3772 = vunpack.c.l.b16 %v2892
      %v3773 = vunpack.c.h.b16 %v2892
      %v3774 = vunpack.c.l.b16 %v2893
      %v3775 = vunpack.c.h.b16 %v2893
      %v3776 = vunpack.c.l.b16 %v2894
      %v3777 = vunpack.c.h.b16 %v2894
      %v3778 = vunpack.c.l.b16 %v2895
      %v3779 = vunpack.c.h.b16 %v2895
      %v3780 = vunpack.c.l.b16 %v2896
      %v3781 = vunpack.c.h.b16 %v2896
      %v3782 = vunpack.c.l.b16 %v2897
      %v3783 = vunpack.c.h.b16 %v2897
      %v3784 = vunpack.c.l.b16 %v2898
      %v3785 = vunpack.c.h.b16 %v2898
      %v3786 = vunpack.c.l.b16 %v2899
      %v3787 = vunpack.c.h.b16 %v2899
      %v3788 = vunpack.c.l.b16 %v2900
      %v3789 = vunpack.c.h.b16 %v2900
      %v3790 = vunpack.c.l.b16 %v2901
      %v3791 = vunpack.c.h.b16 %v2901
      %v3792 = vunpack.c.l.b16 %v2902
      %v3793 = vunpack.c.h.b16 %v2902
      %v3794 = vunpack.c.l.b16 %v2903
      %v3795 = vunpack.c.h.b16 %v2903
      %v3796 = vunpack.c.l.b16 %v2904
      %v3797 = vunpack.c.h.b16 %v2904
      %v3798 = vunpack.c.l.b16 %v2905
      %v3799 = vunpack.c.h.b16 %v2905
      %v3800 = vunpack.c.l.b16 %v2906
      %v3801 = vunpack.c.h.b16 %v2906
      %v3802 = vunpack.c.l.b16 %v2907
      %v3803 = vunpack.c.h.b16 %v2907
      %v3804 = vunpack.c.l.b16 %v2908
      %v3805 = vunpack.c.h.b16 %v2908
      %v3806 = vunpack.c.l.b16 %v2909
      %v3807 = vunpack.c.h.b16 %v2909
      %v3808 = vunpack.c.l.b16 %v2910
      %v3809 = vunpack.c.h.b16 %v2910
      %v3810 = vunpack.c.l.b16 %v2911
      %v3811 = vunpack.c.h.b16 %v2911
      %v3812 = vunpack.c.l.b16 %v2912
      %v3813 = vunpack.c.h.b16 %v2912
      %v3814 = vunpack.c.l.b16 %v2913
      %v3815 = vunpack.c.h.b16 %v2913
      %v3816 = vunpack.c.l.b16 %v2914
      %v3817 = vunpack.c.h.b16 %v2914
      %v3818 = vunpack.c.l.b16 %v2915
      %v3819 = vunpack.c.h.b16 %v2915
      %v3820 = vpack.c.b16 %v3678, %v3676
      %v3821 = vpack.c.b16 %v3679, %v3677
      %v3822 = vpack.c.b16 %v3682, %v3680
      %v3823 = vpack.c.b16 %v3683, %v3681
      %v3824 = vpack.c.b16 %v3686, %v3684
      %v3825 = vpack.c.b16 %v3687, %v3685
      %v3826 = vpack.c.b16 %v3690, %v3688
      %v3827 = vpack.c.b16 %v3691, %v3689
      %v3828 = vpack.c.b16 %v3694, %v3692
      %v3829 = vpack.c.b16 %v3695, %v3693
      %v3830 = vpack.c.b16 %v3698, %v3696
      %v3831 = vpack.c.b16 %v3699, %v3697
      %v3832 = vpack.c.b16 %v3702, %v3700
      %v3833 = vpack.c.b16 %v3703, %v3701
      %v3834 = vpack.c.b16 %v3706, %v3704
      %v3835 = vpack.c.b16 %v3707, %v3705
      %v3836 = vpack.c.b16 %v3710, %v3708
      %v3837 = vpack.c.b16 %v3711, %v3709
      %v3838 = vpack.c.b16 %v3714, %v3712
      %v3839 = vpack.c.b16 %v3715, %v3713
      %v3840 = vpack.c.b16 %v3718, %v3716
      %v3841 = vpack.c.b16 %v3719, %v3717
      %v3842 = vpack.c.b16 %v3722, %v3720
      %v3843 = vpack.c.b16 %v3723, %v3721
      %v3844 = vpack.c.b16 %v3726, %v3724
      %v3845 = vpack.c.b16 %v3727, %v3725
      %v3846 = vpack.c.b16 %v3730, %v3728
      %v3847 = vpack.c.b16 %v3731, %v3729
      %v3848 = vpack.c.b16 %v3734, %v3732
      %v3849 = vpack.c.b16 %v3735, %v3733
      %v3850 = vpack.c.b16 %v3738, %v3736
      %v3851 = vpack.c.b16 %v3739, %v3737
      %v3852 = vpack.c.b16 %v3742, %v3740
      %v3853 = vpack.c.b16 %v3743, %v3741
      %v3854 = vpack.c.b16 %v3746, %v3744
      %v3855 = vpack.c.b16 %v3747, %v3745
      %v3856 = vpack.c.b16 %v3750, %v3748
      %v3857 = vpack.c.b16 %v3751, %v3749
      %v3858 = vpack.c.b16 %v3754, %v3752
      %v3859 = vpack.c.b16 %v3755, %v3753
      %v3860 = vpack.c.b16 %v3758, %v3756
      %v3861 = vpack.c.b16 %v3759, %v3757
      %v3862 = vpack.c.b16 %v3762, %v3760
      %v3863 = vpack.c.b16 %v3763, %v3761
      %v3864 = vpack.c.b16 %v3766, %v3764
      %v3865 = vpack.c.b16 %v3767, %v3765
      %v3866 = vpack.c.b16 %v3770, %v3768
      %v3867 = vpack.c.b16 %v3771, %v3769
      %v3868 = vpack.c.b16 %v3774, %v3772
      %v3869 = vpack.c.b16 %v3775, %v3773
      %v3870 = vpack.c.b16 %v3778, %v3776
      %v3871 = vpack.c.b16 %v3779, %v3777
      %v3872 = vpack.c.b16 %v3782, %v3780
      %v3873 = vpack.c.b16 %v3783, %v3781
      %v3874 = vpack.c.b16 %v3786, %v3784
      %v3875 = vpack.c.b16 %v3787, %v3785
      %v3876 = vpack.c.b16 %v3790, %v3788
      %v3877 = vpack.c.b16 %v3791, %v3789
      %v3878 = vpack.c.b16 %v3794, %v3792
      %v3879 = vpack.c.b16 %v3795, %v3793
      %v3880 = vpack.c.b16 %v3798, %v3796
      %v3881 = vpack.c.b16 %v3799, %v3797
      %v3882 = vpack.c.b16 %v3802, %v3800
      %v3883 = vpack.c.b16 %v3803, %v3801
      %v3884 = vpack.c.b16 %v3806, %v3804
      %v3885 = vpack.c.b16 %v3807, %v3805
      %v3886 = vpack.c.b16 %v3810, %v3808
      %v3887 = vpack.c.b16 %v3811, %v3809
      %v3888 = vpack.c.b16 %v3814, %v3812
      %v3889 = vpack.c.b16 %v3815, %v3813
      %v3890 = vpack.c.b16 %v3818, %v3816
      %v3891 = vpack.c.b16 %v3819, %v3817
      %vm3964 = vcmask 523264
      %v3966 = vsel %vm3964, %v3464, 0
      %v3969 = vsel %vm3964, %v3469, 0
      %v3972 = vsel %vm3964, %v3474, 0
      %v3975 = vsel %vm3964, %v3479, 0
      %v3978 = vsel %vm3964, %v3484, 0
      %v3981 = vsel %vm3964, %v3489, 0
      %v3984 = vsel %vm3964, %v3494, 0
      %v3987 = vsel %vm3964, %v3499, 0
      %v3990 = vsel %vm3964, %v3504, 0
      %v3993 = vsel %vm3964, %v3509, 0
      %v3996 = vsel %vm3964, %v3514, 0
      %v3999 = vsel %vm3964, %v3519, 0
      %v4002 = vsel %vm3964, %v3524, 0
      %v4005 = vsel %vm3964, %v3529, 0
      %v4008 = vsel %vm3964, %v3534, 0
      %v4011 = vsel %vm3964, %v3539, 0
      %4013 = vmatprep.subr.bf16.mxu0 %v3835
      %4014 = vmatpush1.bf16.msra.mxu0 %v3834
      %4015 = vmatprep.subr.bf16.mxu0 %v3833
      %4016 = vmatpush1.bf16.msra.mxu0 %v3832
      %4017 = vmatprep.subr.bf16.mxu0 %v3831
      %4018 = vmatpush1.bf16.msra.mxu0 %v3830
      %4019 = vmatprep.subr.bf16.mxu0 %v3829
      %4020 = vmatpush1.bf16.msra.mxu0 %v3828
      %4021 = vmatprep.subr.bf16.mxu0 %v3827
      %4022 = vmatpush1.bf16.msra.mxu0 %v3826
      %4023 = vmatprep.subr.bf16.mxu0 %v3825
      %4024 = vmatpush1.bf16.msra.mxu0 %v3824
      %4025 = vmatprep.subr.bf16.mxu0 %v3823
      %4026 = vmatpush1.bf16.msra.mxu0 %v3822
      %4027 = vmatprep.subr.bf16.mxu0 %v3821
      %4028 = vmatpush1.bf16.msra.mxu0 %v3820
      %4029 = vmatprep.subr.bf16.mxu0 %v3851
      %4030 = vmatpush2.bf16.msra.mxu0 %v3850
      %4031 = vmatprep.subr.bf16.mxu0 %v3849
      %4032 = vmatpush2.bf16.msra.mxu0 %v3848
      %4033 = vmatprep.subr.bf16.mxu0 %v3847
      %4034 = vmatpush2.bf16.msra.mxu0 %v3846
      %4035 = vmatprep.subr.bf16.mxu0 %v3845
      %4036 = vmatpush2.bf16.msra.mxu0 %v3844
      %4037 = vmatprep.subr.bf16.mxu0 %v3843
      %4038 = vmatpush2.bf16.msra.mxu0 %v3842
      %4039 = vmatprep.subr.bf16.mxu0 %v3841
      %4040 = vmatpush2.bf16.msra.mxu0 %v3840
      %4041 = vmatprep.subr.bf16.mxu0 %v3839
      %4042 = vmatpush2.bf16.msra.mxu0 %v3838
      %4043 = vmatprep.subr.bf16.mxu0 %v3837
      %4044 = vmatpush2.bf16.msra.mxu0 %v3836
      %4045 = vmatprep.mubr.bf16.mxu0 %v3461
      %4046 = vmatmul.mubr.bf16.gmra.mxu0 %v3460
      %v4047 = vpop.f32.mrf.mxu0
      %v4048 = vadd.f32 %v3047, %v4047
      %v4049 = vpop.f32.mrf.mxu0
      %v4050 = vadd.f32 %v3047, %v4049
      %v4051 = vpop.f32.mrf.mxu0
      %v4052 = vadd.f32 %v3052, %v4051
      %v4053 = vpop.f32.mrf.mxu0
      %v4054 = vadd.f32 %v3052, %v4053
      %4055 = vmatprep.mubr.bf16.mxu0 %v3466
      %4056 = vmatmul.mubr.bf16.gmra.mxu0 %v3465
      %v4057 = vpop.f32.mrf.mxu0
      %v4058 = vadd.f32 %v3057, %v4057
      %v4059 = vpop.f32.mrf.mxu0
      %v4060 = vadd.f32 %v3057, %v4059
      %v4061 = vpop.f32.mrf.mxu0
      %v4062 = vadd.f32 %v3062, %v4061
      %v4063 = vpop.f32.mrf.mxu0
      %v4064 = vadd.f32 %v3062, %v4063
      %4065 = vmatprep.mubr.bf16.mxu0 %v3471
      %4066 = vmatmul.mubr.bf16.gmra.mxu0 %v3470
      %v4067 = vpop.f32.mrf.mxu0
      %v4068 = vadd.f32 %v3067, %v4067
      %v4069 = vpop.f32.mrf.mxu0
      %v4070 = vadd.f32 %v3067, %v4069
      %v4071 = vpop.f32.mrf.mxu0
      %v4072 = vadd.f32 %v3072, %v4071
      %v4073 = vpop.f32.mrf.mxu0
      %v4074 = vadd.f32 %v3072, %v4073
      %4075 = vmatprep.mubr.bf16.mxu0 %v3476
      %4076 = vmatmul.mubr.bf16.gmra.mxu0 %v3475
      %v4077 = vpop.f32.mrf.mxu0
      %v4078 = vadd.f32 %v3077, %v4077
      %v4079 = vpop.f32.mrf.mxu0
      %v4080 = vadd.f32 %v3077, %v4079
      %v4081 = vpop.f32.mrf.mxu0
      %v4082 = vadd.f32 %v3082, %v4081
      %v4083 = vpop.f32.mrf.mxu0
      %v4084 = vadd.f32 %v3082, %v4083
      %4085 = vmatprep.mubr.bf16.mxu0 %v3481
      %4086 = vmatmul.mubr.bf16.gmra.mxu0 %v3480
      %v4087 = vpop.f32.mrf.mxu0
      %v4088 = vadd.f32 %v3087, %v4087
      %v4089 = vpop.f32.mrf.mxu0
      %v4090 = vadd.f32 %v3087, %v4089
      %v4091 = vpop.f32.mrf.mxu0
      %v4092 = vadd.f32 %v3092, %v4091
      %v4093 = vpop.f32.mrf.mxu0
      %v4094 = vadd.f32 %v3092, %v4093
      %4095 = vmatprep.mubr.bf16.mxu0 %v3486
      %4096 = vmatmul.mubr.bf16.gmra.mxu0 %v3485
      %v4097 = vpop.f32.mrf.mxu0
      %v4098 = vadd.f32 %v3097, %v4097
      %v4099 = vpop.f32.mrf.mxu0
      %v4100 = vadd.f32 %v3097, %v4099
      %v4101 = vpop.f32.mrf.mxu0
      %v4102 = vadd.f32 %v3102, %v4101
      %v4103 = vpop.f32.mrf.mxu0
      %v4104 = vadd.f32 %v3102, %v4103
      %4105 = vmatprep.mubr.bf16.mxu0 %v3491
      %4106 = vmatmul.mubr.bf16.gmra.mxu0 %v3490
      %v4107 = vpop.f32.mrf.mxu0
      %v4108 = vadd.f32 %v3107, %v4107
      %v4109 = vpop.f32.mrf.mxu0
      %v4110 = vadd.f32 %v3107, %v4109
      %v4111 = vpop.f32.mrf.mxu0
      %v4112 = vadd.f32 %v3112, %v4111
      %v4113 = vpop.f32.mrf.mxu0
      %v4114 = vadd.f32 %v3112, %v4113
      %4115 = vmatprep.mubr.bf16.mxu0 %v3496
      %4116 = vmatmul.mubr.bf16.gmra.mxu0 %v3495
      %v4117 = vpop.f32.mrf.mxu0
      %v4118 = vadd.f32 %v3117, %v4117
      %v4119 = vpop.f32.mrf.mxu0
      %v4120 = vadd.f32 %v3117, %v4119
      %v4121 = vpop.f32.mrf.mxu0
      %v4122 = vadd.f32 %v3122, %v4121
      %v4123 = vpop.f32.mrf.mxu0
      %v4124 = vadd.f32 %v3122, %v4123
      %4125 = vmatprep.mubr.bf16.mxu0 %v3501
      %4126 = vmatmul.mubr.bf16.gmra.mxu0 %v3500
      %v4127 = vpop.f32.mrf.mxu0
      %v4128 = vadd.f32 %v3127, %v4127
      %v4129 = vpop.f32.mrf.mxu0
      %v4130 = vadd.f32 %v3127, %v4129
      %v4131 = vpop.f32.mrf.mxu0
      %v4132 = vadd.f32 %v3132, %v4131
      %v4133 = vpop.f32.mrf.mxu0
      %v4134 = vadd.f32 %v3132, %v4133
      %4135 = vmatprep.mubr.bf16.mxu0 %v3506
      %4136 = vmatmul.mubr.bf16.gmra.mxu0 %v3505
      %v4137 = vpop.f32.mrf.mxu0
      %v4138 = vadd.f32 %v3137, %v4137
      %v4139 = vpop.f32.mrf.mxu0
      %v4140 = vadd.f32 %v3137, %v4139
      %v4141 = vpop.f32.mrf.mxu0
      %v4142 = vadd.f32 %v3142, %v4141
      %v4143 = vpop.f32.mrf.mxu0
      %v4144 = vadd.f32 %v3142, %v4143
      %4145 = vmatprep.mubr.bf16.mxu0 %v3511
      %4146 = vmatmul.mubr.bf16.gmra.mxu0 %v3510
      %v4147 = vpop.f32.mrf.mxu0
      %v4148 = vadd.f32 %v3147, %v4147
      %v4149 = vpop.f32.mrf.mxu0
      %v4150 = vadd.f32 %v3147, %v4149
      %v4151 = vpop.f32.mrf.mxu0
      %v4152 = vadd.f32 %v3152, %v4151
      %v4153 = vpop.f32.mrf.mxu0
      %v4154 = vadd.f32 %v3152, %v4153
      %4155 = vmatprep.mubr.bf16.mxu0 %v3516
      %4156 = vmatmul.mubr.bf16.gmra.mxu0 %v3515
      %v4157 = vpop.f32.mrf.mxu0
      %v4158 = vadd.f32 %v3157, %v4157
      %v4159 = vpop.f32.mrf.mxu0
      %v4160 = vadd.f32 %v3157, %v4159
      %v4161 = vpop.f32.mrf.mxu0
      %v4162 = vadd.f32 %v3162, %v4161
      %v4163 = vpop.f32.mrf.mxu0
      %v4164 = vadd.f32 %v3162, %v4163
      %4165 = vmatprep.mubr.bf16.mxu0 %v3521
      %4166 = vmatmul.mubr.bf16.gmra.mxu0 %v3520
      %v4167 = vpop.f32.mrf.mxu0
      %v4168 = vadd.f32 %v3167, %v4167
      %v4169 = vpop.f32.mrf.mxu0
      %v4170 = vadd.f32 %v3167, %v4169
      %v4171 = vpop.f32.mrf.mxu0
      %v4172 = vadd.f32 %v3172, %v4171
      %v4173 = vpop.f32.mrf.mxu0
      %v4174 = vadd.f32 %v3172, %v4173
      %4175 = vmatprep.mubr.bf16.mxu0 %v3526
      %4176 = vmatmul.mubr.bf16.gmra.mxu0 %v3525
      %v4177 = vpop.f32.mrf.mxu0
      %v4178 = vadd.f32 %v3177, %v4177
      %v4179 = vpop.f32.mrf.mxu0
      %v4180 = vadd.f32 %v3177, %v4179
      %v4181 = vpop.f32.mrf.mxu0
      %v4182 = vadd.f32 %v3182, %v4181
      %v4183 = vpop.f32.mrf.mxu0
      %v4184 = vadd.f32 %v3182, %v4183
      %4185 = vmatprep.mubr.bf16.mxu0 %v3531
      %4186 = vmatmul.mubr.bf16.gmra.mxu0 %v3530
      %v4187 = vpop.f32.mrf.mxu0
      %v4188 = vadd.f32 %v3187, %v4187
      %v4189 = vpop.f32.mrf.mxu0
      %v4190 = vadd.f32 %v3187, %v4189
      %v4191 = vpop.f32.mrf.mxu0
      %v4192 = vadd.f32 %v3192, %v4191
      %v4193 = vpop.f32.mrf.mxu0
      %v4194 = vadd.f32 %v3192, %v4193
      %4195 = vmatprep.mubr.bf16.mxu0 %v3536
      %4196 = vmatmul.mubr.bf16.gmra.mxu0 %v3535
      %v4197 = vpop.f32.mrf.mxu0
      %v4198 = vadd.f32 %v3197, %v4197
      %v4199 = vpop.f32.mrf.mxu0
      %v4200 = vadd.f32 %v3197, %v4199
      %v4201 = vpop.f32.mrf.mxu0
      %v4202 = vadd.f32 %v3202, %v4201
      %v4203 = vpop.f32.mrf.mxu0
      %v4204 = vadd.f32 %v3202, %v4203
      %4205 = vdwg.mxu0
      %4206 = vmatprep.subr.bf16.mxu0 %v3867
      %4207 = vmatpush1.bf16.msra.mxu0 %v3866
      %4208 = vmatprep.subr.bf16.mxu0 %v3865
      %4209 = vmatpush1.bf16.msra.mxu0 %v3864
      %4210 = vmatprep.subr.bf16.mxu0 %v3863
      %4211 = vmatpush1.bf16.msra.mxu0 %v3862
      %4212 = vmatprep.subr.bf16.mxu0 %v3861
      %4213 = vmatpush1.bf16.msra.mxu0 %v3860
      %4214 = vmatprep.subr.bf16.mxu0 %v3859
      %4215 = vmatpush1.bf16.msra.mxu0 %v3858
      %4216 = vmatprep.subr.bf16.mxu0 %v3857
      %4217 = vmatpush1.bf16.msra.mxu0 %v3856
      %4218 = vmatprep.subr.bf16.mxu0 %v3855
      %4219 = vmatpush1.bf16.msra.mxu0 %v3854
      %4220 = vmatprep.subr.bf16.mxu0 %v3853
      %4221 = vmatpush1.bf16.msra.mxu0 %v3852
      %4222 = vmatprep.subr.bf16.mxu0 %v3883
      %4223 = vmatpush2.bf16.msra.mxu0 %v3882
      %4224 = vmatprep.subr.bf16.mxu0 %v3881
      %4225 = vmatpush2.bf16.msra.mxu0 %v3880
      %4226 = vmatprep.subr.bf16.mxu0 %v3879
      %4227 = vmatpush2.bf16.msra.mxu0 %v3878
      %4228 = vmatprep.subr.bf16.mxu0 %v3877
      %4229 = vmatpush2.bf16.msra.mxu0 %v3876
      %4230 = vmatprep.subr.bf16.mxu0 %v3875
      %4231 = vmatpush2.bf16.msra.mxu0 %v3874
      %4232 = vmatprep.subr.bf16.mxu0 %v3873
      %4233 = vmatpush2.bf16.msra.mxu0 %v3872
      %4234 = vmatprep.subr.bf16.mxu0 %v3871
      %4235 = vmatpush2.bf16.msra.mxu0 %v3870
      %4236 = vmatprep.subr.bf16.mxu0 %v3869
      %4237 = vmatpush2.bf16.msra.mxu0 %v3868
      %4238 = vmatprep.mubr.bf16.mxu0 %v3463
      %4239 = vmatmul.mubr.bf16.gmra.mxu0 %v3462
      %v4240 = vpop.f32.mrf.mxu0
      %v4241 = vadd.f32 %v4048, %v4240
      %v4242 = vpop.f32.mrf.mxu0
      %v4243 = vadd.f32 %v4050, %v4242
      %v4244 = vpop.f32.mrf.mxu0
      %v4245 = vadd.f32 %v4052, %v4244
      %v4246 = vpop.f32.mrf.mxu0
      %v4247 = vadd.f32 %v4054, %v4246
      %4248 = vmatprep.mubr.bf16.mxu0 %v3468
      %4249 = vmatmul.mubr.bf16.gmra.mxu0 %v3467
      %v4250 = vpop.f32.mrf.mxu0
      %v4251 = vadd.f32 %v4058, %v4250
      %v4252 = vpop.f32.mrf.mxu0
      %v4253 = vadd.f32 %v4060, %v4252
      %v4254 = vpop.f32.mrf.mxu0
      %v4255 = vadd.f32 %v4062, %v4254
      %v4256 = vpop.f32.mrf.mxu0
      %v4257 = vadd.f32 %v4064, %v4256
      %4258 = vmatprep.mubr.bf16.mxu0 %v3473
      %4259 = vmatmul.mubr.bf16.gmra.mxu0 %v3472
      %v4260 = vpop.f32.mrf.mxu0
      %v4261 = vadd.f32 %v4068, %v4260
      %v4262 = vpop.f32.mrf.mxu0
      %v4263 = vadd.f32 %v4070, %v4262
      %v4264 = vpop.f32.mrf.mxu0
      %v4265 = vadd.f32 %v4072, %v4264
      %v4266 = vpop.f32.mrf.mxu0
      %v4267 = vadd.f32 %v4074, %v4266
      %4268 = vmatprep.mubr.bf16.mxu0 %v3478
      %4269 = vmatmul.mubr.bf16.gmra.mxu0 %v3477
      %v4270 = vpop.f32.mrf.mxu0
      %v4271 = vadd.f32 %v4078, %v4270
      %v4272 = vpop.f32.mrf.mxu0
      %v4273 = vadd.f32 %v4080, %v4272
      %v4274 = vpop.f32.mrf.mxu0
      %v4275 = vadd.f32 %v4082, %v4274
      %v4276 = vpop.f32.mrf.mxu0
      %v4277 = vadd.f32 %v4084, %v4276
      %4278 = vmatprep.mubr.bf16.mxu0 %v3483
      %4279 = vmatmul.mubr.bf16.gmra.mxu0 %v3482
      %v4280 = vpop.f32.mrf.mxu0
      %v4281 = vadd.f32 %v4088, %v4280
      %v4282 = vpop.f32.mrf.mxu0
      %v4283 = vadd.f32 %v4090, %v4282
      %v4284 = vpop.f32.mrf.mxu0
      %v4285 = vadd.f32 %v4092, %v4284
      %v4286 = vpop.f32.mrf.mxu0
      %v4287 = vadd.f32 %v4094, %v4286
      %4288 = vmatprep.mubr.bf16.mxu0 %v3488
      %4289 = vmatmul.mubr.bf16.gmra.mxu0 %v3487
      %v4290 = vpop.f32.mrf.mxu0
      %v4291 = vadd.f32 %v4098, %v4290
      %v4292 = vpop.f32.mrf.mxu0
      %v4293 = vadd.f32 %v4100, %v4292
      %v4294 = vpop.f32.mrf.mxu0
      %v4295 = vadd.f32 %v4102, %v4294
      %v4296 = vpop.f32.mrf.mxu0
      %v4297 = vadd.f32 %v4104, %v4296
      %4298 = vmatprep.mubr.bf16.mxu0 %v3493
      %4299 = vmatmul.mubr.bf16.gmra.mxu0 %v3492
      %v4300 = vpop.f32.mrf.mxu0
      %v4301 = vadd.f32 %v4108, %v4300
      %v4302 = vpop.f32.mrf.mxu0
      %v4303 = vadd.f32 %v4110, %v4302
      %v4304 = vpop.f32.mrf.mxu0
      %v4305 = vadd.f32 %v4112, %v4304
      %v4306 = vpop.f32.mrf.mxu0
      %v4307 = vadd.f32 %v4114, %v4306
      %4308 = vmatprep.mubr.bf16.mxu0 %v3498
      %4309 = vmatmul.mubr.bf16.gmra.mxu0 %v3497
      %v4310 = vpop.f32.mrf.mxu0
      %v4311 = vadd.f32 %v4118, %v4310
      %v4312 = vpop.f32.mrf.mxu0
      %v4313 = vadd.f32 %v4120, %v4312
      %v4314 = vpop.f32.mrf.mxu0
      %v4315 = vadd.f32 %v4122, %v4314
      %v4316 = vpop.f32.mrf.mxu0
      %v4317 = vadd.f32 %v4124, %v4316
      %4318 = vmatprep.mubr.bf16.mxu0 %v3503
      %4319 = vmatmul.mubr.bf16.gmra.mxu0 %v3502
      %v4320 = vpop.f32.mrf.mxu0
      %v4321 = vadd.f32 %v4128, %v4320
      %v4322 = vpop.f32.mrf.mxu0
      %v4323 = vadd.f32 %v4130, %v4322
      %v4324 = vpop.f32.mrf.mxu0
      %v4325 = vadd.f32 %v4132, %v4324
      %v4326 = vpop.f32.mrf.mxu0
      %v4327 = vadd.f32 %v4134, %v4326
      %4328 = vmatprep.mubr.bf16.mxu0 %v3508
      %4329 = vmatmul.mubr.bf16.gmra.mxu0 %v3507
      %v4330 = vpop.f32.mrf.mxu0
      %v4331 = vadd.f32 %v4138, %v4330
      %v4332 = vpop.f32.mrf.mxu0
      %v4333 = vadd.f32 %v4140, %v4332
      %v4334 = vpop.f32.mrf.mxu0
      %v4335 = vadd.f32 %v4142, %v4334
      %v4336 = vpop.f32.mrf.mxu0
      %v4337 = vadd.f32 %v4144, %v4336
      %4338 = vmatprep.mubr.bf16.mxu0 %v3513
      %4339 = vmatmul.mubr.bf16.gmra.mxu0 %v3512
      %v4340 = vpop.f32.mrf.mxu0
      %v4341 = vadd.f32 %v4148, %v4340
      %v4342 = vpop.f32.mrf.mxu0
      %v4343 = vadd.f32 %v4150, %v4342
      %v4344 = vpop.f32.mrf.mxu0
      %v4345 = vadd.f32 %v4152, %v4344
      %v4346 = vpop.f32.mrf.mxu0
      %v4347 = vadd.f32 %v4154, %v4346
      %4348 = vmatprep.mubr.bf16.mxu0 %v3518
      %4349 = vmatmul.mubr.bf16.gmra.mxu0 %v3517
      %v4350 = vpop.f32.mrf.mxu0
      %v4351 = vadd.f32 %v4158, %v4350
      %v4352 = vpop.f32.mrf.mxu0
      %v4353 = vadd.f32 %v4160, %v4352
      %v4354 = vpop.f32.mrf.mxu0
      %v4355 = vadd.f32 %v4162, %v4354
      %v4356 = vpop.f32.mrf.mxu0
      %v4357 = vadd.f32 %v4164, %v4356
      %4358 = vmatprep.mubr.bf16.mxu0 %v3523
      %4359 = vmatmul.mubr.bf16.gmra.mxu0 %v3522
      %v4360 = vpop.f32.mrf.mxu0
      %v4361 = vadd.f32 %v4168, %v4360
      %v4362 = vpop.f32.mrf.mxu0
      %v4363 = vadd.f32 %v4170, %v4362
      %v4364 = vpop.f32.mrf.mxu0
      %v4365 = vadd.f32 %v4172, %v4364
      %v4366 = vpop.f32.mrf.mxu0
      %v4367 = vadd.f32 %v4174, %v4366
      %4368 = vmatprep.mubr.bf16.mxu0 %v3528
      %4369 = vmatmul.mubr.bf16.gmra.mxu0 %v3527
      %v4370 = vpop.f32.mrf.mxu0
      %v4371 = vadd.f32 %v4178, %v4370
      %v4372 = vpop.f32.mrf.mxu0
      %v4373 = vadd.f32 %v4180, %v4372
      %v4374 = vpop.f32.mrf.mxu0
      %v4375 = vadd.f32 %v4182, %v4374
      %v4376 = vpop.f32.mrf.mxu0
      %v4377 = vadd.f32 %v4184, %v4376
      %4378 = vmatprep.mubr.bf16.mxu0 %v3533
      %4379 = vmatmul.mubr.bf16.gmra.mxu0 %v3532
      %v4380 = vpop.f32.mrf.mxu0
      %v4381 = vadd.f32 %v4188, %v4380
      %v4382 = vpop.f32.mrf.mxu0
      %v4383 = vadd.f32 %v4190, %v4382
      %v4384 = vpop.f32.mrf.mxu0
      %v4385 = vadd.f32 %v4192, %v4384
      %v4386 = vpop.f32.mrf.mxu0
      %v4387 = vadd.f32 %v4194, %v4386
      %4388 = vmatprep.mubr.bf16.mxu0 %v3538
      %4389 = vmatmul.mubr.bf16.gmra.mxu0 %v3537
      %v4390 = vpop.f32.mrf.mxu0
      %v4391 = vadd.f32 %v4198, %v4390
      %v4392 = vpop.f32.mrf.mxu0
      %v4393 = vadd.f32 %v4200, %v4392
      %v4394 = vpop.f32.mrf.mxu0
      %v4395 = vadd.f32 %v4202, %v4394
      %v4396 = vpop.f32.mrf.mxu0
      %v4397 = vadd.f32 %v4204, %v4396
      %4398 = vdwg.mxu0
      %4399 = vmatprep.subr.bf16.mxu0 0
      %4400 = vmatpush1.bf16.msra.mxu0 0
      %4401 = vmatprep.subr.bf16.mxu0 0
      %4402 = vmatpush1.bf16.msra.mxu0 0
      %4403 = vmatprep.subr.bf16.mxu0 0
      %4404 = vmatpush1.bf16.msra.mxu0 0
      %4405 = vmatprep.subr.bf16.mxu0 0
      %4406 = vmatpush1.bf16.msra.mxu0 0
      %4407 = vmatprep.subr.bf16.mxu0 %v3891
      %4408 = vmatpush1.bf16.msra.mxu0 %v3890
      %4409 = vmatprep.subr.bf16.mxu0 %v3889
      %4410 = vmatpush1.bf16.msra.mxu0 %v3888
      %4411 = vmatprep.subr.bf16.mxu0 %v3887
      %4412 = vmatpush1.bf16.msra.mxu0 %v3886
      %4413 = vmatprep.subr.bf16.mxu0 %v3885
      %4414 = vmatpush1.bf16.msra.mxu0 %v3884
      %4415 = vmatprep.subr.bf16.mxu0 0
      %4416 = vmatpush2.bf16.msra.mxu0 0
      %4417 = vmatprep.subr.bf16.mxu0 0
      %4418 = vmatpush2.bf16.msra.mxu0 0
      %4419 = vmatprep.subr.bf16.mxu0 0
      %4420 = vmatpush2.bf16.msra.mxu0 0
      %4421 = vmatprep.subr.bf16.mxu0 0
      %4422 = vmatpush2.bf16.msra.mxu0 0
      %4423 = vmatprep.subr.bf16.mxu0 0
      %4424 = vmatpush2.bf16.msra.mxu0 0
      %4425 = vmatprep.subr.bf16.mxu0 0
      %4426 = vmatpush2.bf16.msra.mxu0 0
      %4427 = vmatprep.subr.bf16.mxu0 0
      %4428 = vmatpush2.bf16.msra.mxu0 0
      %4429 = vmatprep.subr.bf16.mxu0 0
      %4430 = vmatpush2.bf16.msra.mxu0 0
      %4431 = vmatprep.mubr.bf16.mxu0 0
      %4432 = vmatmul.mubr.bf16.gmra.mxu0 %v3966
      %v4433 = vpop.f32.mrf.mxu0
      %v4434 = vadd.f32 %v4241, %v4433
      %v4435 = vpop.f32.mrf.mxu0
      %v4436 = vadd.f32 %v4243, %v4435
      %v4437 = vpop.f32.mrf.mxu0
      %v4438 = vadd.f32 %v4245, %v4437
      %v4439 = vpop.f32.mrf.mxu0
      %v4440 = vadd.f32 %v4247, %v4439
      %4441 = vmatprep.mubr.bf16.mxu0 0
      %4442 = vmatmul.mubr.bf16.gmra.mxu0 %v3969
      %v4443 = vpop.f32.mrf.mxu0
      %v4444 = vadd.f32 %v4251, %v4443
      %v4445 = vpop.f32.mrf.mxu0
      %v4446 = vadd.f32 %v4253, %v4445
      %v4447 = vpop.f32.mrf.mxu0
      %v4448 = vadd.f32 %v4255, %v4447
      %v4449 = vpop.f32.mrf.mxu0
      %v4450 = vadd.f32 %v4257, %v4449
      %4451 = vmatprep.mubr.bf16.mxu0 0
      %4452 = vmatmul.mubr.bf16.gmra.mxu0 %v3972
      %v4453 = vpop.f32.mrf.mxu0
      %v4454 = vadd.f32 %v4261, %v4453
      %v4455 = vpop.f32.mrf.mxu0
      %v4456 = vadd.f32 %v4263, %v4455
      %v4457 = vpop.f32.mrf.mxu0
      %v4458 = vadd.f32 %v4265, %v4457
      %v4459 = vpop.f32.mrf.mxu0
      %v4460 = vadd.f32 %v4267, %v4459
      %4461 = vmatprep.mubr.bf16.mxu0 0
      %4462 = vmatmul.mubr.bf16.gmra.mxu0 %v3975
      %v4463 = vpop.f32.mrf.mxu0
      %v4464 = vadd.f32 %v4271, %v4463
      %v4465 = vpop.f32.mrf.mxu0
      %v4466 = vadd.f32 %v4273, %v4465
      %v4467 = vpop.f32.mrf.mxu0
      %v4468 = vadd.f32 %v4275, %v4467
      %v4469 = vpop.f32.mrf.mxu0
      %v4470 = vadd.f32 %v4277, %v4469
      %4471 = vmatprep.mubr.bf16.mxu0 0
      %4472 = vmatmul.mubr.bf16.gmra.mxu0 %v3978
      %v4473 = vpop.f32.mrf.mxu0
      %v4474 = vadd.f32 %v4281, %v4473
      %v4475 = vpop.f32.mrf.mxu0
      %v4476 = vadd.f32 %v4283, %v4475
      %v4477 = vpop.f32.mrf.mxu0
      %v4478 = vadd.f32 %v4285, %v4477
      %v4479 = vpop.f32.mrf.mxu0
      %v4480 = vadd.f32 %v4287, %v4479
      %4481 = vmatprep.mubr.bf16.mxu0 0
      %4482 = vmatmul.mubr.bf16.gmra.mxu0 %v3981
      %v4483 = vpop.f32.mrf.mxu0
      %v4484 = vadd.f32 %v4291, %v4483
      %v4485 = vpop.f32.mrf.mxu0
      %v4486 = vadd.f32 %v4293, %v4485
      %v4487 = vpop.f32.mrf.mxu0
      %v4488 = vadd.f32 %v4295, %v4487
      %v4489 = vpop.f32.mrf.mxu0
      %v4490 = vadd.f32 %v4297, %v4489
      %4491 = vmatprep.mubr.bf16.mxu0 0
      %4492 = vmatmul.mubr.bf16.gmra.mxu0 %v3984
      %v4493 = vpop.f32.mrf.mxu0
      %v4494 = vadd.f32 %v4301, %v4493
      %v4495 = vpop.f32.mrf.mxu0
      %v4496 = vadd.f32 %v4303, %v4495
      %v4497 = vpop.f32.mrf.mxu0
      %v4498 = vadd.f32 %v4305, %v4497
      %v4499 = vpop.f32.mrf.mxu0
      %v4500 = vadd.f32 %v4307, %v4499
      %4501 = vmatprep.mubr.bf16.mxu0 0
      %4502 = vmatmul.mubr.bf16.gmra.mxu0 %v3987
      %v4503 = vpop.f32.mrf.mxu0
      %v4504 = vadd.f32 %v4311, %v4503
      %v4505 = vpop.f32.mrf.mxu0
      %v4506 = vadd.f32 %v4313, %v4505
      %v4507 = vpop.f32.mrf.mxu0
      %v4508 = vadd.f32 %v4315, %v4507
      %v4509 = vpop.f32.mrf.mxu0
      %v4510 = vadd.f32 %v4317, %v4509
      %4511 = vmatprep.mubr.bf16.mxu0 0
      %4512 = vmatmul.mubr.bf16.gmra.mxu0 %v3990
      %v4513 = vpop.f32.mrf.mxu0
      %v4514 = vadd.f32 %v4321, %v4513
      %v4515 = vpop.f32.mrf.mxu0
      %v4516 = vadd.f32 %v4323, %v4515
      %v4517 = vpop.f32.mrf.mxu0
      %v4518 = vadd.f32 %v4325, %v4517
      %v4519 = vpop.f32.mrf.mxu0
      %v4520 = vadd.f32 %v4327, %v4519
      %4521 = vmatprep.mubr.bf16.mxu0 0
      %4522 = vmatmul.mubr.bf16.gmra.mxu0 %v3993
      %v4523 = vpop.f32.mrf.mxu0
      %v4524 = vadd.f32 %v4331, %v4523
      %v4525 = vpop.f32.mrf.mxu0
      %v4526 = vadd.f32 %v4333, %v4525
      %v4527 = vpop.f32.mrf.mxu0
      %v4528 = vadd.f32 %v4335, %v4527
      %v4529 = vpop.f32.mrf.mxu0
      %v4530 = vadd.f32 %v4337, %v4529
      %4531 = vmatprep.mubr.bf16.mxu0 0
      %4532 = vmatmul.mubr.bf16.gmra.mxu0 %v3996
      %v4533 = vpop.f32.mrf.mxu0
      %v4534 = vadd.f32 %v4341, %v4533
      %v4535 = vpop.f32.mrf.mxu0
      %v4536 = vadd.f32 %v4343, %v4535
      %v4537 = vpop.f32.mrf.mxu0
      %v4538 = vadd.f32 %v4345, %v4537
      %v4539 = vpop.f32.mrf.mxu0
      %v4540 = vadd.f32 %v4347, %v4539
      %4541 = vmatprep.mubr.bf16.mxu0 0
      %4542 = vmatmul.mubr.bf16.gmra.mxu0 %v3999
      %v4543 = vpop.f32.mrf.mxu0
      %v4544 = vadd.f32 %v4351, %v4543
      %v4545 = vpop.f32.mrf.mxu0
      %v4546 = vadd.f32 %v4353, %v4545
      %v4547 = vpop.f32.mrf.mxu0
      %v4548 = vadd.f32 %v4355, %v4547
      %v4549 = vpop.f32.mrf.mxu0
      %v4550 = vadd.f32 %v4357, %v4549
      %4551 = vmatprep.mubr.bf16.mxu0 0
      %4552 = vmatmul.mubr.bf16.gmra.mxu0 %v4002
      %v4553 = vpop.f32.mrf.mxu0
      %v4554 = vadd.f32 %v4361, %v4553
      %v4555 = vpop.f32.mrf.mxu0
      %v4556 = vadd.f32 %v4363, %v4555
      %v4557 = vpop.f32.mrf.mxu0
      %v4558 = vadd.f32 %v4365, %v4557
      %v4559 = vpop.f32.mrf.mxu0
      %v4560 = vadd.f32 %v4367, %v4559
      %4561 = vmatprep.mubr.bf16.mxu0 0
      %4562 = vmatmul.mubr.bf16.gmra.mxu0 %v4005
      %v4563 = vpop.f32.mrf.mxu0
      %v4564 = vadd.f32 %v4371, %v4563
      %v4565 = vpop.f32.mrf.mxu0
      %v4566 = vadd.f32 %v4373, %v4565
      %v4567 = vpop.f32.mrf.mxu0
      %v4568 = vadd.f32 %v4375, %v4567
      %v4569 = vpop.f32.mrf.mxu0
      %v4570 = vadd.f32 %v4377, %v4569
      %4571 = vmatprep.mubr.bf16.mxu0 0
      %4572 = vmatmul.mubr.bf16.gmra.mxu0 %v4008
      %v4573 = vpop.f32.mrf.mxu0
      %v4574 = vadd.f32 %v4381, %v4573
      %v4575 = vpop.f32.mrf.mxu0
      %v4576 = vadd.f32 %v4383, %v4575
      %v4577 = vpop.f32.mrf.mxu0
      %v4578 = vadd.f32 %v4385, %v4577
      %v4579 = vpop.f32.mrf.mxu0
      %v4580 = vadd.f32 %v4387, %v4579
      %4581 = vmatprep.mubr.bf16.mxu0 0
      %4582 = vmatmul.mubr.bf16.gmra.mxu0 %v4011
      %v4583 = vpop.f32.mrf.mxu0
      %v4584 = vadd.f32 %v4391, %v4583
      %v4585 = vpop.f32.mrf.mxu0
      %v4586 = vadd.f32 %v4393, %v4585
      %v4587 = vpop.f32.mrf.mxu0
      %v4588 = vadd.f32 %v4395, %v4587
      %v4589 = vpop.f32.mrf.mxu0
      %v4590 = vadd.f32 %v4397, %v4589
      %4591 = vdwg.mxu0
      %v4592 = vmax.f32 %v4434, 0.0
      %v4593 = vmax.f32 %v4436, 0.0
      %v4594 = vmax.f32 %v4438, 0.0
      %v4595 = vmax.f32 %v4440, 0.0
      %v4596 = vmax.f32 %v4444, 0.0
      %v4597 = vmax.f32 %v4446, 0.0
      %v4598 = vmax.f32 %v4448, 0.0
      %v4599 = vmax.f32 %v4450, 0.0
      %v4600 = vmax.f32 %v4454, 0.0
      %v4601 = vmax.f32 %v4456, 0.0
      %v4602 = vmax.f32 %v4458, 0.0
      %v4603 = vmax.f32 %v4460, 0.0
      %v4604 = vmax.f32 %v4464, 0.0
      %v4605 = vmax.f32 %v4466, 0.0
      %v4606 = vmax.f32 %v4468, 0.0
      %v4607 = vmax.f32 %v4470, 0.0
      %v4608 = vmax.f32 %v4474, 0.0
      %v4609 = vmax.f32 %v4476, 0.0
      %v4610 = vmax.f32 %v4478, 0.0
      %v4611 = vmax.f32 %v4480, 0.0
      %v4612 = vmax.f32 %v4484, 0.0
      %v4613 = vmax.f32 %v4486, 0.0
      %v4614 = vmax.f32 %v4488, 0.0
      %v4615 = vmax.f32 %v4490, 0.0
      %v4616 = vmax.f32 %v4494, 0.0
      %v4617 = vmax.f32 %v4496, 0.0
      %v4618 = vmax.f32 %v4498, 0.0
      %v4619 = vmax.f32 %v4500, 0.0
      %v4620 = vmax.f32 %v4504, 0.0
      %v4621 = vmax.f32 %v4506, 0.0
      %v4622 = vmax.f32 %v4508, 0.0
      %v4623 = vmax.f32 %v4510, 0.0
      %v4624 = vmax.f32 %v4514, 0.0
      %v4625 = vmax.f32 %v4516, 0.0
      %v4626 = vmax.f32 %v4518, 0.0
      %v4627 = vmax.f32 %v4520, 0.0
      %v4628 = vmax.f32 %v4524, 0.0
      %v4629 = vmax.f32 %v4526, 0.0
      %v4630 = vmax.f32 %v4528, 0.0
      %v4631 = vmax.f32 %v4530, 0.0
      %v4632 = vmax.f32 %v4534, 0.0
      %v4633 = vmax.f32 %v4536, 0.0
      %v4634 = vmax.f32 %v4538, 0.0
      %v4635 = vmax.f32 %v4540, 0.0
      %v4636 = vmax.f32 %v4544, 0.0
      %v4637 = vmax.f32 %v4546, 0.0
      %v4638 = vmax.f32 %v4548, 0.0
      %v4639 = vmax.f32 %v4550, 0.0
      %v4640 = vmax.f32 %v4554, 0.0
      %v4641 = vmax.f32 %v4556, 0.0
      %v4642 = vmax.f32 %v4558, 0.0
      %v4643 = vmax.f32 %v4560, 0.0
      %v4644 = vmax.f32 %v4564, 0.0
      %v4645 = vmax.f32 %v4566, 0.0
      %v4646 = vmax.f32 %v4568, 0.0
      %v4647 = vmax.f32 %v4570, 0.0
      %v4648 = vmax.f32 %v4574, 0.0
      %v4649 = vmax.f32 %v4576, 0.0
      %v4650 = vmax.f32 %v4578, 0.0
      %v4651 = vmax.f32 %v4580, 0.0
      %v4652 = vmax.f32 %v4584, 0.0
      %v4653 = vmax.f32 %v4586, 0.0
      %v4654 = vmax.f32 %v4588, 0.0
      %v4655 = vmax.f32 %v4590, 0.0
      %v4656 = vpack.c.bf16 %v4594, %v4592
      %v4657 = vpack.c.bf16 %v4595, %v4593
      %v4658 = vpack.c.bf16 %v4598, %v4596
      %v4659 = vpack.c.bf16 %v4599, %v4597
      %v4660 = vpack.c.bf16 %v4602, %v4600
      %v4661 = vpack.c.bf16 %v4603, %v4601
      %v4662 = vpack.c.bf16 %v4606, %v4604
      %v4663 = vpack.c.bf16 %v4607, %v4605
      %v4664 = vpack.c.bf16 %v4610, %v4608
      %v4665 = vpack.c.bf16 %v4611, %v4609
      %v4666 = vpack.c.bf16 %v4614, %v4612
      %v4667 = vpack.c.bf16 %v4615, %v4613
      %v4668 = vpack.c.bf16 %v4618, %v4616
      %v4669 = vpack.c.bf16 %v4619, %v4617
      %v4670 = vpack.c.bf16 %v4622, %v4620
      %v4671 = vpack.c.bf16 %v4623, %v4621
      %v4672 = vpack.c.bf16 %v4626, %v4624
      %v4673 = vpack.c.bf16 %v4627, %v4625
      %v4674 = vpack.c.bf16 %v4630, %v4628
      %v4675 = vpack.c.bf16 %v4631, %v4629
      %v4676 = vpack.c.bf16 %v4634, %v4632
      %v4677 = vpack.c.bf16 %v4635, %v4633
      %v4678 = vpack.c.bf16 %v4638, %v4636
      %v4679 = vpack.c.bf16 %v4639, %v4637
      %v4680 = vpack.c.bf16 %v4642, %v4640
      %v4681 = vpack.c.bf16 %v4643, %v4641
      %v4682 = vpack.c.bf16 %v4646, %v4644
      %v4683 = vpack.c.bf16 %v4647, %v4645
      %v4684 = vpack.c.bf16 %v4650, %v4648
      %v4685 = vpack.c.bf16 %v4651, %v4649
      %v4686 = vpack.c.bf16 %v4654, %v4652
      %v4687 = vpack.c.bf16 %v4655, %v4653
      %v4688 = vld [vmem:[%s7] sm:$0xff]
      %v4689 = vld [vmem:[%s7 + $0x8] sm:$0xff]
      %v4690 = vld [vmem:[%s7 + $0x10] sm:$0xff]
      %v4691 = vld [vmem:[%s7 + $0x18] sm:$0xff]
      %v4692 = vld [vmem:[%s7 + $0x20] sm:$0xff]
      %v4693 = vld [vmem:[%s7 + $0x28] sm:$0xff]
      %v4694 = vld [vmem:[%s7 + $0x30] sm:$0xff]
      %v4695 = vld [vmem:[%s7 + $0x38] sm:$0xff]
      %v4696 = vld [vmem:[%s8] sm:$0xff]
      %v4697 = vld [vmem:[%s8 + $0x8] sm:$0xff]
      %v4698 = vld [vmem:[%s8 + $0x10] sm:$0xff]
      %v4699 = vld [vmem:[%s8 + $0x18] sm:$0xff]
      %v4700 = vld [vmem:[%s8 + $0x20] sm:$0xff]
      %v4701 = vld [vmem:[%s8 + $0x28] sm:$0xff]
      %v4702 = vld [vmem:[%s8 + $0x30] sm:$0xff]
      %v4703 = vld [vmem:[%s8 + $0x38] sm:$0xff]
      %4705 = vset.pattern.permute.xlu0 0
      %4706 = vperm.xlu0 %4705, %v4696
      %v4707 = vpop.permute.xlu0 %4706
      %4710 = vset.pattern.permute.xlu0 0
      %4711 = vperm.xlu0 %4710, %v4697
      %v4712 = vpop.permute.xlu0 %4711
      %4715 = vset.pattern.permute.xlu0 0
      %4716 = vperm.xlu0 %4715, %v4698
      %v4717 = vpop.permute.xlu0 %4716
      %4720 = vset.pattern.permute.xlu0 0
      %4721 = vperm.xlu0 %4720, %v4699
      %v4722 = vpop.permute.xlu0 %4721
      %4725 = vset.pattern.permute.xlu0 0
      %4726 = vperm.xlu0 %4725, %v4700
      %v4727 = vpop.permute.xlu0 %4726
      %4730 = vset.pattern.permute.xlu0 0
      %4731 = vperm.xlu0 %4730, %v4701
      %v4732 = vpop.permute.xlu0 %4731
      %4735 = vset.pattern.permute.xlu0 0
      %4736 = vperm.xlu0 %4735, %v4702
      %v4737 = vpop.permute.xlu0 %4736
      %4740 = vset.pattern.permute.xlu0 0
      %4741 = vperm.xlu0 %4740, %v4703
      %v4742 = vpop.permute.xlu0 %4741
      %v4752 = vunpack.c.l.b16 %v4688
      %v4753 = vunpack.c.h.b16 %v4688
      %v4754 = vunpack.c.l.b16 %v4689
      %v4755 = vunpack.c.h.b16 %v4689
      %v4756 = vunpack.c.l.b16 %v4690
      %v4757 = vunpack.c.h.b16 %v4690
      %v4758 = vunpack.c.l.b16 %v4691
      %v4759 = vunpack.c.h.b16 %v4691
      %v4760 = vunpack.c.l.b16 %v4692
      %v4761 = vunpack.c.h.b16 %v4692
      %v4762 = vunpack.c.l.b16 %v4693
      %v4763 = vunpack.c.h.b16 %v4693
      %v4764 = vunpack.c.l.b16 %v4694
      %v4765 = vunpack.c.h.b16 %v4694
      %v4766 = vunpack.c.l.b16 %v4695
      %v4767 = vunpack.c.h.b16 %v4695
      %v4768 = vpack.c.b16 %v4754, %v4752
      %v4769 = vpack.c.b16 %v4755, %v4753
      %v4770 = vpack.c.b16 %v4758, %v4756
      %v4771 = vpack.c.b16 %v4759, %v4757
      %v4772 = vpack.c.b16 %v4762, %v4760
      %v4773 = vpack.c.b16 %v4763, %v4761
      %v4774 = vpack.c.b16 %v4766, %v4764
      %v4775 = vpack.c.b16 %v4767, %v4765
      %4784 = vmatprep.subr.bf16.mxu0 %v4671
      %4785 = vmatpush1.bf16.msra.mxu0 %v4670
      %4786 = vmatprep.subr.bf16.mxu0 %v4669
      %4787 = vmatpush1.bf16.msra.mxu0 %v4668
      %4788 = vmatprep.subr.bf16.mxu0 %v4667
      %4789 = vmatpush1.bf16.msra.mxu0 %v4666
      %4790 = vmatprep.subr.bf16.mxu0 %v4665
      %4791 = vmatpush1.bf16.msra.mxu0 %v4664
      %4792 = vmatprep.subr.bf16.mxu0 %v4663
      %4793 = vmatpush1.bf16.msra.mxu0 %v4662
      %4794 = vmatprep.subr.bf16.mxu0 %v4661
      %4795 = vmatpush1.bf16.msra.mxu0 %v4660
      %4796 = vmatprep.subr.bf16.mxu0 %v4659
      %4797 = vmatpush1.bf16.msra.mxu0 %v4658
      %4798 = vmatprep.subr.bf16.mxu0 %v4657
      %4799 = vmatpush1.bf16.msra.mxu0 %v4656
      %4800 = vmatprep.subr.bf16.mxu0 %v4687
      %4801 = vmatpush2.bf16.msra.mxu0 %v4686
      %4802 = vmatprep.subr.bf16.mxu0 %v4685
      %4803 = vmatpush2.bf16.msra.mxu0 %v4684
      %4804 = vmatprep.subr.bf16.mxu0 %v4683
      %4805 = vmatpush2.bf16.msra.mxu0 %v4682
      %4806 = vmatprep.subr.bf16.mxu0 %v4681
      %4807 = vmatpush2.bf16.msra.mxu0 %v4680
      %4808 = vmatprep.subr.bf16.mxu0 %v4679
      %4809 = vmatpush2.bf16.msra.mxu0 %v4678
      %4810 = vmatprep.subr.bf16.mxu0 %v4677
      %4811 = vmatpush2.bf16.msra.mxu0 %v4676
      %4812 = vmatprep.subr.bf16.mxu0 %v4675
      %4813 = vmatpush2.bf16.msra.mxu0 %v4674
      %4814 = vmatprep.subr.bf16.mxu0 %v4673
      %4815 = vmatpush2.bf16.msra.mxu0 %v4672
      %4816 = vmatprep.mubr.bf16.mxu0 %v4769
      %4817 = vmatmul.mubr.bf16.gmra.mxu0 %v4768
      %v4818 = vpop.f32.mrf.mxu0
      %v4819 = vadd.f32 %v4707, %v4818
      %v4820 = vpop.f32.mrf.mxu0
      %v4821 = vadd.f32 %v4707, %v4820
      %v4822 = vpop.f32.mrf.mxu0
      %v4823 = vadd.f32 %v4712, %v4822
      %v4824 = vpop.f32.mrf.mxu0
      %v4825 = vadd.f32 %v4712, %v4824
      %4826 = vmatprep.mubr.bf16.mxu0 %v4771
      %4827 = vmatmul.mubr.bf16.gmra.mxu0 %v4770
      %v4828 = vpop.f32.mrf.mxu0
      %v4829 = vadd.f32 %v4717, %v4828
      %v4830 = vpop.f32.mrf.mxu0
      %v4831 = vadd.f32 %v4717, %v4830
      %v4832 = vpop.f32.mrf.mxu0
      %v4833 = vadd.f32 %v4722, %v4832
      %v4834 = vpop.f32.mrf.mxu0
      %v4835 = vadd.f32 %v4722, %v4834
      %4836 = vmatprep.mubr.bf16.mxu0 %v4773
      %4837 = vmatmul.mubr.bf16.gmra.mxu0 %v4772
      %v4838 = vpop.f32.mrf.mxu0
      %v4839 = vadd.f32 %v4727, %v4838
      %v4840 = vpop.f32.mrf.mxu0
      %v4841 = vadd.f32 %v4727, %v4840
      %v4842 = vpop.f32.mrf.mxu0
      %v4843 = vadd.f32 %v4732, %v4842
      %v4844 = vpop.f32.mrf.mxu0
      %v4845 = vadd.f32 %v4732, %v4844
      %4846 = vmatprep.mubr.bf16.mxu0 %v4775
      %4847 = vmatmul.mubr.bf16.gmra.mxu0 %v4774
      %v4848 = vpop.f32.mrf.mxu0
      %v4849 = vadd.f32 %v4737, %v4848
      %v4850 = vpop.f32.mrf.mxu0
      %v4851 = vadd.f32 %v4737, %v4850
      %v4852 = vpop.f32.mrf.mxu0
      %v4853 = vadd.f32 %v4742, %v4852
      %v4854 = vpop.f32.mrf.mxu0
      %v4855 = vadd.f32 %v4742, %v4854
      %4856 = vdwg.mxu0
      %v4857 = vmax.f32 %v4819, 0.0
      %v4858 = vmax.f32 %v4821, 0.0
      %v4859 = vmax.f32 %v4823, 0.0
      %v4860 = vmax.f32 %v4825, 0.0
      %v4861 = vmax.f32 %v4829, 0.0
      %v4862 = vmax.f32 %v4831, 0.0
      %v4863 = vmax.f32 %v4833, 0.0
      %v4864 = vmax.f32 %v4835, 0.0
      %v4865 = vmax.f32 %v4839, 0.0
      %v4866 = vmax.f32 %v4841, 0.0
      %v4867 = vmax.f32 %v4843, 0.0
      %v4868 = vmax.f32 %v4845, 0.0
      %v4869 = vmax.f32 %v4849, 0.0
      %v4870 = vmax.f32 %v4851, 0.0
      %v4871 = vmax.f32 %v4853, 0.0
      %v4872 = vmax.f32 %v4855, 0.0
      %v4873 = vpack.c.bf16 %v4859, %v4857
      %v4874 = vpack.c.bf16 %v4860, %v4858
      %v4875 = vpack.c.bf16 %v4863, %v4861
      %v4876 = vpack.c.bf16 %v4864, %v4862
      %v4877 = vpack.c.bf16 %v4867, %v4865
      %v4878 = vpack.c.bf16 %v4868, %v4866
      %v4879 = vpack.c.bf16 %v4871, %v4869
      %v4880 = vpack.c.bf16 %v4872, %v4870
      %v4889 = vunpack.c.l.b16 %v4873
      %v4890 = vunpack.c.l.b16 %v4874
      %v4891 = vunpack.c.h.b16 %v4873
      %v4892 = vunpack.c.h.b16 %v4874
      %v4893 = vunpack.c.l.b16 %v4875
      %v4894 = vunpack.c.l.b16 %v4876
      %v4895 = vunpack.c.h.b16 %v4875
      %v4896 = vunpack.c.h.b16 %v4876
      %v4897 = vunpack.c.l.b16 %v4877
      %v4898 = vunpack.c.l.b16 %v4878
      %v4899 = vunpack.c.h.b16 %v4877
      %v4900 = vunpack.c.h.b16 %v4878
      %v4901 = vunpack.c.l.b16 %v4879
      %v4902 = vunpack.c.l.b16 %v4880
      %v4903 = vunpack.c.h.b16 %v4879
      %v4904 = vunpack.c.h.b16 %v4880
      %v4905 = vpack.c.b16 %v4890, %v4889
      %v4906 = vpack.c.b16 %v4892, %v4891
      %v4907 = vpack.c.b16 %v4894, %v4893
      %v4908 = vpack.c.b16 %v4896, %v4895
      %v4909 = vpack.c.b16 %v4898, %v4897
      %v4910 = vpack.c.b16 %v4900, %v4899
      %v4911 = vpack.c.b16 %v4902, %v4901
      %v4912 = vpack.c.b16 %v4904, %v4903
      %4921 = vst [vmem:[#allocation2 + $0x240] sm:$0xff] %v4905
      %4922 = vst [vmem:[#allocation2 + $0x248] sm:$0xff] %v4906
      %4923 = vst [vmem:[#allocation2 + $0x250] sm:$0xff] %v4907
      %4924 = vst [vmem:[#allocation2 + $0x258] sm:$0xff] %v4908
      %4925 = vst [vmem:[#allocation2 + $0x260] sm:$0xff] %v4909
      %4926 = vst [vmem:[#allocation2 + $0x268] sm:$0xff] %v4910
      %4927 = vst [vmem:[#allocation2 + $0x270] sm:$0xff] %v4911
      %4928 = vst [vmem:[#allocation2 + $0x278] sm:$0xff] %v4912
      %v4929 = vld [vmem:[#allocation2] sm:$0xff]
      %v4930 = vld [vmem:[#allocation2 + $0x8] sm:$0xff]
      %v4931 = vld [vmem:[#allocation2 + $0x10] sm:$0xff]
      %v4932 = vld [vmem:[#allocation2 + $0x18] sm:$0xff]
      %v4933 = vld [vmem:[#allocation2 + $0x20] sm:$0xff]
      %v4934 = vld [vmem:[#allocation2 + $0x28] sm:$0xff]
      %v4935 = vld [vmem:[#allocation2 + $0x30] sm:$0xff]
      %v4936 = vld [vmem:[#allocation2 + $0x38] sm:$0xff]
      %v4937 = vld [vmem:[#allocation2 + $0x40] sm:$0xff]
      %v4938 = vld [vmem:[#allocation2 + $0x48] sm:$0xff]
      %v4939 = vld [vmem:[#allocation2 + $0x50] sm:$0xff]
      %v4940 = vld [vmem:[#allocation2 + $0x58] sm:$0xff]
      %v4941 = vld [vmem:[#allocation2 + $0x60] sm:$0xff]
      %v4942 = vld [vmem:[#allocation2 + $0x68] sm:$0xff]
      %v4943 = vld [vmem:[#allocation2 + $0x70] sm:$0xff]
      %v4944 = vld [vmem:[#allocation2 + $0x78] sm:$0xff]
      %v4945 = vld [vmem:[#allocation2 + $0x80] sm:$0xff]
      %v4946 = vld [vmem:[#allocation2 + $0x88] sm:$0xff]
      %v4947 = vld [vmem:[#allocation2 + $0x90] sm:$0xff]
      %v4948 = vld [vmem:[#allocation2 + $0x98] sm:$0xff]
      %v4949 = vld [vmem:[#allocation2 + $0xa0] sm:$0xff]
      %v4950 = vld [vmem:[#allocation2 + $0xa8] sm:$0xff]
      %v4951 = vld [vmem:[#allocation2 + $0xb0] sm:$0xff]
      %v4952 = vld [vmem:[#allocation2 + $0xb8] sm:$0xff]
      %v4953 = vld [vmem:[#allocation2 + $0xc0] sm:$0xff]
      %v4954 = vld [vmem:[#allocation2 + $0xc8] sm:$0xff]
      %v4955 = vld [vmem:[#allocation2 + $0xd0] sm:$0xff]
      %v4956 = vld [vmem:[#allocation2 + $0xd8] sm:$0xff]
      %v4957 = vld [vmem:[#allocation2 + $0xe0] sm:$0xff]
      %v4958 = vld [vmem:[#allocation2 + $0xe8] sm:$0xff]
      %v4959 = vld [vmem:[#allocation2 + $0xf0] sm:$0xff]
      %v4960 = vld [vmem:[#allocation2 + $0xf8] sm:$0xff]
      %v4961 = vld [vmem:[#allocation2 + $0x100] sm:$0xff]
      %v4962 = vld [vmem:[#allocation2 + $0x108] sm:$0xff]
      %v4963 = vld [vmem:[#allocation2 + $0x110] sm:$0xff]
      %v4964 = vld [vmem:[#allocation2 + $0x118] sm:$0xff]
      %v4965 = vld [vmem:[#allocation2 + $0x120] sm:$0xff]
      %v4966 = vld [vmem:[#allocation2 + $0x128] sm:$0xff]
      %v4967 = vld [vmem:[#allocation2 + $0x130] sm:$0xff]
      %v4968 = vld [vmem:[#allocation2 + $0x138] sm:$0xff]
      %v4969 = vld [vmem:[#allocation2 + $0x140] sm:$0xff]
      %v4970 = vld [vmem:[#allocation2 + $0x148] sm:$0xff]
      %v4971 = vld [vmem:[#allocation2 + $0x150] sm:$0xff]
      %v4972 = vld [vmem:[#allocation2 + $0x158] sm:$0xff]
      %v4973 = vld [vmem:[#allocation2 + $0x160] sm:$0xff]
      %v4974 = vld [vmem:[#allocation2 + $0x168] sm:$0xff]
      %v4975 = vld [vmem:[#allocation2 + $0x170] sm:$0xff]
      %v4976 = vld [vmem:[#allocation2 + $0x178] sm:$0xff]
      %v4977 = vld [vmem:[#allocation2 + $0x180] sm:$0xff]
      %v4978 = vld [vmem:[#allocation2 + $0x188] sm:$0xff]
      %v4979 = vld [vmem:[#allocation2 + $0x190] sm:$0xff]
      %v4980 = vld [vmem:[#allocation2 + $0x198] sm:$0xff]
      %v4981 = vld [vmem:[#allocation2 + $0x1a0] sm:$0xff]
      %v4982 = vld [vmem:[#allocation2 + $0x1a8] sm:$0xff]
      %v4983 = vld [vmem:[#allocation2 + $0x1b0] sm:$0xff]
      %v4984 = vld [vmem:[#allocation2 + $0x1b8] sm:$0xff]
      %v4985 = vld [vmem:[#allocation2 + $0x1c0] sm:$0xff]
      %v4986 = vld [vmem:[#allocation2 + $0x1c8] sm:$0xff]
      %v4987 = vld [vmem:[#allocation2 + $0x1d0] sm:$0xff]
      %v4988 = vld [vmem:[#allocation2 + $0x1d8] sm:$0xff]
      %v4989 = vld [vmem:[#allocation2 + $0x1e0] sm:$0xff]
      %v4990 = vld [vmem:[#allocation2 + $0x1e8] sm:$0xff]
      %v4991 = vld [vmem:[#allocation2 + $0x1f0] sm:$0xff]
      %v4992 = vld [vmem:[#allocation2 + $0x1f8] sm:$0xff]
      %v4993 = vld [vmem:[#allocation2 + $0x200] sm:$0xff]
      %v4994 = vld [vmem:[#allocation2 + $0x208] sm:$0xff]
      %v4995 = vld [vmem:[#allocation2 + $0x210] sm:$0xff]
      %v4996 = vld [vmem:[#allocation2 + $0x218] sm:$0xff]
      %v4997 = vld [vmem:[#allocation2 + $0x220] sm:$0xff]
      %v4998 = vld [vmem:[#allocation2 + $0x228] sm:$0xff]
      %v4999 = vld [vmem:[#allocation2 + $0x230] sm:$0xff]
      %v5000 = vld [vmem:[#allocation2 + $0x238] sm:$0xff]
      %v5001 = vld [vmem:[#allocation2 + $0x240] sm:$0xff]
      %v5002 = vld [vmem:[#allocation2 + $0x248] sm:$0xff]
      %v5003 = vld [vmem:[#allocation2 + $0x250] sm:$0xff]
      %v5004 = vld [vmem:[#allocation2 + $0x258] sm:$0xff]
      %v5005 = vld [vmem:[#allocation2 + $0x260] sm:$0xff]
      %v5006 = vld [vmem:[#allocation2 + $0x268] sm:$0xff]
      %v5007 = vld [vmem:[#allocation2 + $0x270] sm:$0xff]
      %v5008 = vld [vmem:[#allocation2 + $0x278] sm:$0xff]
      %v5009 = vld [vmem:[%s9] sm:$0xff]
      %v5010 = vld [vmem:[%s9 + $0x8] sm:$0xff]
      %v5011 = vld [vmem:[%s9 + $0x10] sm:$0xf]
      %v5012 = vld [vmem:[%s9 + $0x14] sm:$0xff]
      %v5013 = vld [vmem:[%s9 + $0x1c] sm:$0xff]
      %v5014 = vld [vmem:[%s9 + $0x24] sm:$0xf]
      %v5015 = vld [vmem:[%s9 + $0x28] sm:$0xff]
      %v5016 = vld [vmem:[%s9 + $0x30] sm:$0xff]
      %v5017 = vld [vmem:[%s9 + $0x38] sm:$0xf]
      %v5018 = vld [vmem:[%s9 + $0x3c] sm:$0xff]
      %v5019 = vld [vmem:[%s9 + $0x44] sm:$0xff]
      %v5020 = vld [vmem:[%s9 + $0x4c] sm:$0xf]
      %v5021 = vld [vmem:[%s9 + $0x50] sm:$0xff]
      %v5022 = vld [vmem:[%s9 + $0x58] sm:$0xff]
      %v5023 = vld [vmem:[%s9 + $0x60] sm:$0xf]
      %v5024 = vld [vmem:[%s9 + $0x64] sm:$0xff]
      %v5025 = vld [vmem:[%s9 + $0x6c] sm:$0xff]
      %v5026 = vld [vmem:[%s9 + $0x74] sm:$0xf]
      %v5027 = vld [vmem:[%s9 + $0x78] sm:$0xff]
      %v5028 = vld [vmem:[%s9 + $0x80] sm:$0xff]
      %v5029 = vld [vmem:[%s9 + $0x88] sm:$0xf]
      %v5030 = vld [vmem:[%s9 + $0x8c] sm:$0xff]
      %v5031 = vld [vmem:[%s9 + $0x94] sm:$0xff]
      %v5032 = vld [vmem:[%s9 + $0x9c] sm:$0xf]
      %v5033 = vld [vmem:[%s9 + $0xa0] sm:$0xff]
      %v5034 = vld [vmem:[%s9 + $0xa8] sm:$0xff]
      %v5035 = vld [vmem:[%s9 + $0xb0] sm:$0xf]
      %v5036 = vld [vmem:[%s9 + $0xb4] sm:$0xff]
      %v5037 = vld [vmem:[%s9 + $0xbc] sm:$0xff]
      %v5038 = vld [vmem:[%s9 + $0xc4] sm:$0xf]
      %v5039 = vld [vmem:[%s9 + $0xc8] sm:$0xff]
      %v5040 = vld [vmem:[%s9 + $0xd0] sm:$0xff]
      %v5041 = vld [vmem:[%s9 + $0xd8] sm:$0xf]
      %v5042 = vld [vmem:[%s9 + $0xdc] sm:$0xff]
      %v5043 = vld [vmem:[%s9 + $0xe4] sm:$0xff]
      %v5044 = vld [vmem:[%s9 + $0xec] sm:$0xf]
      %v5045 = vld [vmem:[%s9 + $0xf0] sm:$0xff]
      %v5046 = vld [vmem:[%s9 + $0xf8] sm:$0xff]
      %v5047 = vld [vmem:[%s9 + $0x100] sm:$0xf]
      %v5048 = vld [vmem:[%s9 + $0x104] sm:$0xff]
      %v5049 = vld [vmem:[%s9 + $0x10c] sm:$0xff]
      %v5050 = vld [vmem:[%s9 + $0x114] sm:$0xf]
      %v5051 = vld [vmem:[%s9 + $0x118] sm:$0xff]
      %v5052 = vld [vmem:[%s9 + $0x120] sm:$0xff]
      %v5053 = vld [vmem:[%s9 + $0x128] sm:$0xf]
      %v5054 = vld [vmem:[%s9 + $0x12c] sm:$0xff]
      %v5055 = vld [vmem:[%s9 + $0x134] sm:$0xff]
      %v5056 = vld [vmem:[%s9 + $0x13c] sm:$0xf]
      %v5057 = vld [vmem:[%s9 + $0x140] sm:$0xff]
      %v5058 = vld [vmem:[%s9 + $0x148] sm:$0xff]
      %v5059 = vld [vmem:[%s9 + $0x150] sm:$0xf]
      %v5060 = vld [vmem:[%s9 + $0x154] sm:$0xff]
      %v5061 = vld [vmem:[%s9 + $0x15c] sm:$0xff]
      %v5062 = vld [vmem:[%s9 + $0x164] sm:$0xf]
      %v5063 = vld [vmem:[%s9 + $0x168] sm:$0xff]
      %v5064 = vld [vmem:[%s9 + $0x170] sm:$0xff]
      %v5065 = vld [vmem:[%s9 + $0x178] sm:$0xf]
      %v5066 = vld [vmem:[%s9 + $0x17c] sm:$0xff]
      %v5067 = vld [vmem:[%s9 + $0x184] sm:$0xff]
      %v5068 = vld [vmem:[%s9 + $0x18c] sm:$0xf]
      %v5069 = vld [vmem:[%s9 + $0x190] sm:$0xff]
      %v5070 = vld [vmem:[%s9 + $0x198] sm:$0xff]
      %v5071 = vld [vmem:[%s9 + $0x1a0] sm:$0xf]
      %v5072 = vld [vmem:[%s9 + $0x1a4] sm:$0xff]
      %v5073 = vld [vmem:[%s9 + $0x1ac] sm:$0xff]
      %v5074 = vld [vmem:[%s9 + $0x1b4] sm:$0xf]
      %v5075 = vld [vmem:[%s9 + $0x1b8] sm:$0xff]
      %v5076 = vld [vmem:[%s9 + $0x1c0] sm:$0xff]
      %v5077 = vld [vmem:[%s9 + $0x1c8] sm:$0xf]
      %v5078 = vld [vmem:[%s9 + $0x1cc] sm:$0xff]
      %v5079 = vld [vmem:[%s9 + $0x1d4] sm:$0xff]
      %v5080 = vld [vmem:[%s9 + $0x1dc] sm:$0xf]
      %v5081 = vld [vmem:[%s9 + $0x1e0] sm:$0xff]
      %v5082 = vld [vmem:[%s9 + $0x1e8] sm:$0xff]
      %v5083 = vld [vmem:[%s9 + $0x1f0] sm:$0xf]
      %v5084 = vld [vmem:[%s9 + $0x1f4] sm:$0xff]
      %v5085 = vld [vmem:[%s9 + $0x1fc] sm:$0xff]
      %v5086 = vld [vmem:[%s9 + $0x204] sm:$0xf]
      %v5087 = vld [vmem:[%s9 + $0x208] sm:$0xff]
      %v5088 = vld [vmem:[%s9 + $0x210] sm:$0xff]
      %v5089 = vld [vmem:[%s9 + $0x218] sm:$0xf]
      %v5090 = vld [vmem:[%s9 + $0x21c] sm:$0xff]
      %v5091 = vld [vmem:[%s9 + $0x224] sm:$0xff]
      %v5092 = vld [vmem:[%s9 + $0x22c] sm:$0xf]
      %v5093 = vld [vmem:[%s9 + $0x230] sm:$0xff]
      %v5094 = vld [vmem:[%s9 + $0x238] sm:$0xff]
      %v5095 = vld [vmem:[%s9 + $0x240] sm:$0xf]
      %v5096 = vld [vmem:[%s9 + $0x244] sm:$0xff]
      %v5097 = vld [vmem:[%s9 + $0x24c] sm:$0xff]
      %v5098 = vld [vmem:[%s9 + $0x254] sm:$0xf]
      %v5099 = vld [vmem:[%s9 + $0x258] sm:$0xff]
      %v5100 = vld [vmem:[%s9 + $0x260] sm:$0xff]
      %v5101 = vld [vmem:[%s9 + $0x268] sm:$0xf]
      %v5102 = vld [vmem:[%s9 + $0x26c] sm:$0xff]
      %v5103 = vld [vmem:[%s9 + $0x274] sm:$0xff]
      %v5104 = vld [vmem:[%s9 + $0x27c] sm:$0xf]
      %v5105 = vld [vmem:[%s10] sm:$0xff]
      %v5106 = vld [vmem:[%s10 + $0x8] sm:$0xff]
      %v5107 = vld [vmem:[%s10 + $0x10] sm:$0xff]
      %v5108 = vld [vmem:[%s10 + $0x18] sm:$0xff]
      %v5109 = vld [vmem:[%s10 + $0x20] sm:$0xff]
      %v5110 = vld [vmem:[%s10 + $0x28] sm:$0xff]
      %v5111 = vld [vmem:[%s10 + $0x30] sm:$0xff]
      %v5112 = vld [vmem:[%s10 + $0x38] sm:$0xff]
      %v5113 = vld [vmem:[%s10 + $0x40] sm:$0xff]
      %v5114 = vld [vmem:[%s10 + $0x48] sm:$0xff]
      %v5115 = vld [vmem:[%s10 + $0x50] sm:$0xff]
      %v5116 = vld [vmem:[%s10 + $0x58] sm:$0xff]
      %v5117 = vld [vmem:[%s10 + $0x60] sm:$0xff]
      %v5118 = vld [vmem:[%s10 + $0x68] sm:$0xff]
      %v5119 = vld [vmem:[%s10 + $0x70] sm:$0xff]
      %v5120 = vld [vmem:[%s10 + $0x78] sm:$0xff]
      %v5121 = vld [vmem:[%s10 + $0x80] sm:$0xff]
      %v5122 = vld [vmem:[%s10 + $0x88] sm:$0xff]
      %v5123 = vld [vmem:[%s10 + $0x90] sm:$0xff]
      %v5124 = vld [vmem:[%s10 + $0x98] sm:$0xff]
      %v5125 = vld [vmem:[%s10 + $0xa0] sm:$0xff]
      %v5126 = vld [vmem:[%s10 + $0xa8] sm:$0xff]
      %v5127 = vld [vmem:[%s10 + $0xb0] sm:$0xff]
      %v5128 = vld [vmem:[%s10 + $0xb8] sm:$0xff]
      %v5129 = vld [vmem:[%s10 + $0xc0] sm:$0xff]
      %v5130 = vld [vmem:[%s10 + $0xc8] sm:$0xff]
      %v5131 = vld [vmem:[%s10 + $0xd0] sm:$0xff]
      %v5132 = vld [vmem:[%s10 + $0xd8] sm:$0xff]
      %v5133 = vld [vmem:[%s10 + $0xe0] sm:$0xff]
      %v5134 = vld [vmem:[%s10 + $0xe8] sm:$0xff]
      %v5135 = vld [vmem:[%s10 + $0xf0] sm:$0xff]
      %v5136 = vld [vmem:[%s10 + $0xf8] sm:$0xff]
      %5138 = vset.pattern.permute.xlu0 0
      %5139 = vperm.xlu0 %5138, %v5105
      %v5140 = vpop.permute.xlu0 %5139
      %5143 = vset.pattern.permute.xlu0 0
      %5144 = vperm.xlu0 %5143, %v5106
      %v5145 = vpop.permute.xlu0 %5144
      %5148 = vset.pattern.permute.xlu0 0
      %5149 = vperm.xlu0 %5148, %v5107
      %v5150 = vpop.permute.xlu0 %5149
      %5153 = vset.pattern.permute.xlu0 0
      %5154 = vperm.xlu0 %5153, %v5108
      %v5155 = vpop.permute.xlu0 %5154
      %5158 = vset.pattern.permute.xlu0 0
      %5159 = vperm.xlu0 %5158, %v5109
      %v5160 = vpop.permute.xlu0 %5159
      %5163 = vset.pattern.permute.xlu0 0
      %5164 = vperm.xlu0 %5163, %v5110
      %v5165 = vpop.permute.xlu0 %5164
      %5168 = vset.pattern.permute.xlu0 0
      %5169 = vperm.xlu0 %5168, %v5111
      %v5170 = vpop.permute.xlu0 %5169
      %5173 = vset.pattern.permute.xlu0 0
      %5174 = vperm.xlu0 %5173, %v5112
      %v5175 = vpop.permute.xlu0 %5174
      %5178 = vset.pattern.permute.xlu0 0
      %5179 = vperm.xlu0 %5178, %v5113
      %v5180 = vpop.permute.xlu0 %5179
      %5183 = vset.pattern.permute.xlu0 0
      %5184 = vperm.xlu0 %5183, %v5114
      %v5185 = vpop.permute.xlu0 %5184
      %5188 = vset.pattern.permute.xlu0 0
      %5189 = vperm.xlu0 %5188, %v5115
      %v5190 = vpop.permute.xlu0 %5189
      %5193 = vset.pattern.permute.xlu0 0
      %5194 = vperm.xlu0 %5193, %v5116
      %v5195 = vpop.permute.xlu0 %5194
      %5198 = vset.pattern.permute.xlu0 0
      %5199 = vperm.xlu0 %5198, %v5117
      %v5200 = vpop.permute.xlu0 %5199
      %5203 = vset.pattern.permute.xlu0 0
      %5204 = vperm.xlu0 %5203, %v5118
      %v5205 = vpop.permute.xlu0 %5204
      %5208 = vset.pattern.permute.xlu0 0
      %5209 = vperm.xlu0 %5208, %v5119
      %v5210 = vpop.permute.xlu0 %5209
      %5213 = vset.pattern.permute.xlu0 0
      %5214 = vperm.xlu0 %5213, %v5120
      %v5215 = vpop.permute.xlu0 %5214
      %5218 = vset.pattern.permute.xlu0 0
      %5219 = vperm.xlu0 %5218, %v5121
      %v5220 = vpop.permute.xlu0 %5219
      %5223 = vset.pattern.permute.xlu0 0
      %5224 = vperm.xlu0 %5223, %v5122
      %v5225 = vpop.permute.xlu0 %5224
      %5228 = vset.pattern.permute.xlu0 0
      %5229 = vperm.xlu0 %5228, %v5123
      %v5230 = vpop.permute.xlu0 %5229
      %5233 = vset.pattern.permute.xlu0 0
      %5234 = vperm.xlu0 %5233, %v5124
      %v5235 = vpop.permute.xlu0 %5234
      %5238 = vset.pattern.permute.xlu0 0
      %5239 = vperm.xlu0 %5238, %v5125
      %v5240 = vpop.permute.xlu0 %5239
      %5243 = vset.pattern.permute.xlu0 0
      %5244 = vperm.xlu0 %5243, %v5126
      %v5245 = vpop.permute.xlu0 %5244
      %5248 = vset.pattern.permute.xlu0 0
      %5249 = vperm.xlu0 %5248, %v5127
      %v5250 = vpop.permute.xlu0 %5249
      %5253 = vset.pattern.permute.xlu0 0
      %5254 = vperm.xlu0 %5253, %v5128
      %v5255 = vpop.permute.xlu0 %5254
      %5258 = vset.pattern.permute.xlu0 0
      %5259 = vperm.xlu0 %5258, %v5129
      %v5260 = vpop.permute.xlu0 %5259
      %5263 = vset.pattern.permute.xlu0 0
      %5264 = vperm.xlu0 %5263, %v5130
      %v5265 = vpop.permute.xlu0 %5264
      %5268 = vset.pattern.permute.xlu0 0
      %5269 = vperm.xlu0 %5268, %v5131
      %v5270 = vpop.permute.xlu0 %5269
      %5273 = vset.pattern.permute.xlu0 0
      %5274 = vperm.xlu0 %5273, %v5132
      %v5275 = vpop.permute.xlu0 %5274
      %5278 = vset.pattern.permute.xlu0 0
      %5279 = vperm.xlu0 %5278, %v5133
      %v5280 = vpop.permute.xlu0 %5279
      %5283 = vset.pattern.permute.xlu0 0
      %5284 = vperm.xlu0 %5283, %v5134
      %v5285 = vpop.permute.xlu0 %5284
      %5288 = vset.pattern.permute.xlu0 0
      %5289 = vperm.xlu0 %5288, %v5135
      %v5290 = vpop.permute.xlu0 %5289
      %5293 = vset.pattern.permute.xlu0 0
      %5294 = vperm.xlu0 %5293, %v5136
      %v5295 = vpop.permute.xlu0 %5294
      %v5393 = vunpack.c.l.b16 %v5009
      %v5394 = vunpack.c.h.b16 %v5009
      %v5395 = vunpack.c.l.b16 %v5010
      %v5396 = vunpack.c.h.b16 %v5010
      %v5397 = vunpack.c.l.b16 %v5011
      %v5398 = vunpack.c.l.b16 %v5012
      %v5399 = vunpack.c.h.b16 %v5012
      %v5400 = vunpack.c.l.b16 %v5013
      %v5401 = vunpack.c.h.b16 %v5013
      %v5402 = vunpack.c.l.b16 %v5014
      %v5403 = vunpack.c.l.b16 %v5015
      %v5404 = vunpack.c.h.b16 %v5015
      %v5405 = vunpack.c.l.b16 %v5016
      %v5406 = vunpack.c.h.b16 %v5016
      %v5407 = vunpack.c.l.b16 %v5017
      %v5408 = vunpack.c.l.b16 %v5018
      %v5409 = vunpack.c.h.b16 %v5018
      %v5410 = vunpack.c.l.b16 %v5019
      %v5411 = vunpack.c.h.b16 %v5019
      %v5412 = vunpack.c.l.b16 %v5020
      %v5413 = vunpack.c.l.b16 %v5021
      %v5414 = vunpack.c.h.b16 %v5021
      %v5415 = vunpack.c.l.b16 %v5022
      %v5416 = vunpack.c.h.b16 %v5022
      %v5417 = vunpack.c.l.b16 %v5023
      %v5418 = vunpack.c.l.b16 %v5024
      %v5419 = vunpack.c.h.b16 %v5024
      %v5420 = vunpack.c.l.b16 %v5025
      %v5421 = vunpack.c.h.b16 %v5025
      %v5422 = vunpack.c.l.b16 %v5026
      %v5423 = vunpack.c.l.b16 %v5027
      %v5424 = vunpack.c.h.b16 %v5027
      %v5425 = vunpack.c.l.b16 %v5028
      %v5426 = vunpack.c.h.b16 %v5028
      %v5427 = vunpack.c.l.b16 %v5029
      %v5428 = vunpack.c.l.b16 %v5030
      %v5429 = vunpack.c.h.b16 %v5030
      %v5430 = vunpack.c.l.b16 %v5031
      %v5431 = vunpack.c.h.b16 %v5031
      %v5432 = vunpack.c.l.b16 %v5032
      %v5433 = vunpack.c.l.b16 %v5033
      %v5434 = vunpack.c.h.b16 %v5033
      %v5435 = vunpack.c.l.b16 %v5034
      %v5436 = vunpack.c.h.b16 %v5034
      %v5437 = vunpack.c.l.b16 %v5035
      %v5438 = vunpack.c.l.b16 %v5036
      %v5439 = vunpack.c.h.b16 %v5036
      %v5440 = vunpack.c.l.b16 %v5037
      %v5441 = vunpack.c.h.b16 %v5037
      %v5442 = vunpack.c.l.b16 %v5038
      %v5443 = vunpack.c.l.b16 %v5039
      %v5444 = vunpack.c.h.b16 %v5039
      %v5445 = vunpack.c.l.b16 %v5040
      %v5446 = vunpack.c.h.b16 %v5040
      %v5447 = vunpack.c.l.b16 %v5041
      %v5448 = vunpack.c.l.b16 %v5042
      %v5449 = vunpack.c.h.b16 %v5042
      %v5450 = vunpack.c.l.b16 %v5043
      %v5451 = vunpack.c.h.b16 %v5043
      %v5452 = vunpack.c.l.b16 %v5044
      %v5453 = vunpack.c.l.b16 %v5045
      %v5454 = vunpack.c.h.b16 %v5045
      %v5455 = vunpack.c.l.b16 %v5046
      %v5456 = vunpack.c.h.b16 %v5046
      %v5457 = vunpack.c.l.b16 %v5047
      %v5458 = vunpack.c.l.b16 %v5048
      %v5459 = vunpack.c.h.b16 %v5048
      %v5460 = vunpack.c.l.b16 %v5049
      %v5461 = vunpack.c.h.b16 %v5049
      %v5462 = vunpack.c.l.b16 %v5050
      %v5463 = vunpack.c.l.b16 %v5051
      %v5464 = vunpack.c.h.b16 %v5051
      %v5465 = vunpack.c.l.b16 %v5052
      %v5466 = vunpack.c.h.b16 %v5052
      %v5467 = vunpack.c.l.b16 %v5053
      %v5468 = vunpack.c.l.b16 %v5054
      %v5469 = vunpack.c.h.b16 %v5054
      %v5470 = vunpack.c.l.b16 %v5055
      %v5471 = vunpack.c.h.b16 %v5055
      %v5472 = vunpack.c.l.b16 %v5056
      %v5473 = vunpack.c.l.b16 %v5057
      %v5474 = vunpack.c.h.b16 %v5057
      %v5475 = vunpack.c.l.b16 %v5058
      %v5476 = vunpack.c.h.b16 %v5058
      %v5477 = vunpack.c.l.b16 %v5059
      %v5478 = vunpack.c.l.b16 %v5060
      %v5479 = vunpack.c.h.b16 %v5060
      %v5480 = vunpack.c.l.b16 %v5061
      %v5481 = vunpack.c.h.b16 %v5061
      %v5482 = vunpack.c.l.b16 %v5062
      %v5483 = vunpack.c.l.b16 %v5063
      %v5484 = vunpack.c.h.b16 %v5063
      %v5485 = vunpack.c.l.b16 %v5064
      %v5486 = vunpack.c.h.b16 %v5064
      %v5487 = vunpack.c.l.b16 %v5065
      %v5488 = vunpack.c.l.b16 %v5066
      %v5489 = vunpack.c.h.b16 %v5066
      %v5490 = vunpack.c.l.b16 %v5067
      %v5491 = vunpack.c.h.b16 %v5067
      %v5492 = vunpack.c.l.b16 %v5068
      %v5493 = vunpack.c.l.b16 %v5069
      %v5494 = vunpack.c.h.b16 %v5069
      %v5495 = vunpack.c.l.b16 %v5070
      %v5496 = vunpack.c.h.b16 %v5070
      %v5497 = vunpack.c.l.b16 %v5071
      %v5498 = vunpack.c.l.b16 %v5072
      %v5499 = vunpack.c.h.b16 %v5072
      %v5500 = vunpack.c.l.b16 %v5073
      %v5501 = vunpack.c.h.b16 %v5073
      %v5502 = vunpack.c.l.b16 %v5074
      %v5503 = vunpack.c.l.b16 %v5075
      %v5504 = vunpack.c.h.b16 %v5075
      %v5505 = vunpack.c.l.b16 %v5076
      %v5506 = vunpack.c.h.b16 %v5076
      %v5507 = vunpack.c.l.b16 %v5077
      %v5508 = vunpack.c.l.b16 %v5078
      %v5509 = vunpack.c.h.b16 %v5078
      %v5510 = vunpack.c.l.b16 %v5079
      %v5511 = vunpack.c.h.b16 %v5079
      %v5512 = vunpack.c.l.b16 %v5080
      %v5513 = vunpack.c.l.b16 %v5081
      %v5514 = vunpack.c.h.b16 %v5081
      %v5515 = vunpack.c.l.b16 %v5082
      %v5516 = vunpack.c.h.b16 %v5082
      %v5517 = vunpack.c.l.b16 %v5083
      %v5518 = vunpack.c.l.b16 %v5084
      %v5519 = vunpack.c.h.b16 %v5084
      %v5520 = vunpack.c.l.b16 %v5085
      %v5521 = vunpack.c.h.b16 %v5085
      %v5522 = vunpack.c.l.b16 %v5086
      %v5523 = vunpack.c.l.b16 %v5087
      %v5524 = vunpack.c.h.b16 %v5087
      %v5525 = vunpack.c.l.b16 %v5088
      %v5526 = vunpack.c.h.b16 %v5088
      %v5527 = vunpack.c.l.b16 %v5089
      %v5528 = vunpack.c.l.b16 %v5090
      %v5529 = vunpack.c.h.b16 %v5090
      %v5530 = vunpack.c.l.b16 %v5091
      %v5531 = vunpack.c.h.b16 %v5091
      %v5532 = vunpack.c.l.b16 %v5092
      %v5533 = vunpack.c.l.b16 %v5093
      %v5534 = vunpack.c.h.b16 %v5093
      %v5535 = vunpack.c.l.b16 %v5094
      %v5536 = vunpack.c.h.b16 %v5094
      %v5537 = vunpack.c.l.b16 %v5095
      %v5538 = vunpack.c.l.b16 %v5096
      %v5539 = vunpack.c.h.b16 %v5096
      %v5540 = vunpack.c.l.b16 %v5097
      %v5541 = vunpack.c.h.b16 %v5097
      %v5542 = vunpack.c.l.b16 %v5098
      %v5543 = vunpack.c.l.b16 %v5099
      %v5544 = vunpack.c.h.b16 %v5099
      %v5545 = vunpack.c.l.b16 %v5100
      %v5546 = vunpack.c.h.b16 %v5100
      %v5547 = vunpack.c.l.b16 %v5101
      %v5548 = vunpack.c.l.b16 %v5102
      %v5549 = vunpack.c.h.b16 %v5102
      %v5550 = vunpack.c.l.b16 %v5103
      %v5551 = vunpack.c.h.b16 %v5103
      %v5552 = vunpack.c.l.b16 %v5104
      %v5553 = vpack.c.b16 %v5398, %v5393
      %v5554 = vpack.c.b16 %v5399, %v5394
      %v5555 = vpack.c.b16 %v5400, %v5395
      %v5556 = vpack.c.b16 %v5401, %v5396
      %v5557 = vpack.c.b16 %v5402, %v5397
      %v5558 = vpack.c.b16 %v5408, %v5403
      %v5559 = vpack.c.b16 %v5409, %v5404
      %v5560 = vpack.c.b16 %v5410, %v5405
      %v5561 = vpack.c.b16 %v5411, %v5406
      %v5562 = vpack.c.b16 %v5412, %v5407
      %v5563 = vpack.c.b16 %v5418, %v5413
      %v5564 = vpack.c.b16 %v5419, %v5414
      %v5565 = vpack.c.b16 %v5420, %v5415
      %v5566 = vpack.c.b16 %v5421, %v5416
      %v5567 = vpack.c.b16 %v5422, %v5417
      %v5568 = vpack.c.b16 %v5428, %v5423
      %v5569 = vpack.c.b16 %v5429, %v5424
      %v5570 = vpack.c.b16 %v5430, %v5425
      %v5571 = vpack.c.b16 %v5431, %v5426
      %v5572 = vpack.c.b16 %v5432, %v5427
      %v5573 = vpack.c.b16 %v5438, %v5433
      %v5574 = vpack.c.b16 %v5439, %v5434
      %v5575 = vpack.c.b16 %v5440, %v5435
      %v5576 = vpack.c.b16 %v5441, %v5436
      %v5577 = vpack.c.b16 %v5442, %v5437
      %v5578 = vpack.c.b16 %v5448, %v5443
      %v5579 = vpack.c.b16 %v5449, %v5444
      %v5580 = vpack.c.b16 %v5450, %v5445
      %v5581 = vpack.c.b16 %v5451, %v5446
      %v5582 = vpack.c.b16 %v5452, %v5447
      %v5583 = vpack.c.b16 %v5458, %v5453
      %v5584 = vpack.c.b16 %v5459, %v5454
      %v5585 = vpack.c.b16 %v5460, %v5455
      %v5586 = vpack.c.b16 %v5461, %v5456
      %v5587 = vpack.c.b16 %v5462, %v5457
      %v5588 = vpack.c.b16 %v5468, %v5463
      %v5589 = vpack.c.b16 %v5469, %v5464
      %v5590 = vpack.c.b16 %v5470, %v5465
      %v5591 = vpack.c.b16 %v5471, %v5466
      %v5592 = vpack.c.b16 %v5472, %v5467
      %v5593 = vpack.c.b16 %v5478, %v5473
      %v5594 = vpack.c.b16 %v5479, %v5474
      %v5595 = vpack.c.b16 %v5480, %v5475
      %v5596 = vpack.c.b16 %v5481, %v5476
      %v5597 = vpack.c.b16 %v5482, %v5477
      %v5598 = vpack.c.b16 %v5488, %v5483
      %v5599 = vpack.c.b16 %v5489, %v5484
      %v5600 = vpack.c.b16 %v5490, %v5485
      %v5601 = vpack.c.b16 %v5491, %v5486
      %v5602 = vpack.c.b16 %v5492, %v5487
      %v5603 = vpack.c.b16 %v5498, %v5493
      %v5604 = vpack.c.b16 %v5499, %v5494
      %v5605 = vpack.c.b16 %v5500, %v5495
      %v5606 = vpack.c.b16 %v5501, %v5496
      %v5607 = vpack.c.b16 %v5502, %v5497
      %v5608 = vpack.c.b16 %v5508, %v5503
      %v5609 = vpack.c.b16 %v5509, %v5504
      %v5610 = vpack.c.b16 %v5510, %v5505
      %v5611 = vpack.c.b16 %v5511, %v5506
      %v5612 = vpack.c.b16 %v5512, %v5507
      %v5613 = vpack.c.b16 %v5518, %v5513
      %v5614 = vpack.c.b16 %v5519, %v5514
      %v5615 = vpack.c.b16 %v5520, %v5515
      %v5616 = vpack.c.b16 %v5521, %v5516
      %v5617 = vpack.c.b16 %v5522, %v5517
      %v5618 = vpack.c.b16 %v5528, %v5523
      %v5619 = vpack.c.b16 %v5529, %v5524
      %v5620 = vpack.c.b16 %v5530, %v5525
      %v5621 = vpack.c.b16 %v5531, %v5526
      %v5622 = vpack.c.b16 %v5532, %v5527
      %v5623 = vpack.c.b16 %v5538, %v5533
      %v5624 = vpack.c.b16 %v5539, %v5534
      %v5625 = vpack.c.b16 %v5540, %v5535
      %v5626 = vpack.c.b16 %v5541, %v5536
      %v5627 = vpack.c.b16 %v5542, %v5537
      %v5628 = vpack.c.b16 %v5548, %v5543
      %v5629 = vpack.c.b16 %v5549, %v5544
      %v5630 = vpack.c.b16 %v5550, %v5545
      %v5631 = vpack.c.b16 %v5551, %v5546
      %v5632 = vpack.c.b16 %v5552, %v5547
      %v5793 = vunpack.c.l.b16 %v4929
      %v5794 = vunpack.c.h.b16 %v4929
      %v5795 = vunpack.c.l.b16 %v4930
      %v5796 = vunpack.c.h.b16 %v4930
      %v5797 = vunpack.c.l.b16 %v4931
      %v5798 = vunpack.c.h.b16 %v4931
      %v5799 = vunpack.c.l.b16 %v4932
      %v5800 = vunpack.c.h.b16 %v4932
      %v5801 = vunpack.c.l.b16 %v4933
      %v5802 = vunpack.c.h.b16 %v4933
      %v5803 = vunpack.c.l.b16 %v4934
      %v5804 = vunpack.c.h.b16 %v4934
      %v5805 = vunpack.c.l.b16 %v4935
      %v5806 = vunpack.c.h.b16 %v4935
      %v5807 = vunpack.c.l.b16 %v4936
      %v5808 = vunpack.c.h.b16 %v4936
      %v5809 = vunpack.c.l.b16 %v4937
      %v5810 = vunpack.c.h.b16 %v4937
      %v5811 = vunpack.c.l.b16 %v4938
      %v5812 = vunpack.c.h.b16 %v4938
      %v5813 = vunpack.c.l.b16 %v4939
      %v5814 = vunpack.c.h.b16 %v4939
      %v5815 = vunpack.c.l.b16 %v4940
      %v5816 = vunpack.c.h.b16 %v4940
      %v5817 = vunpack.c.l.b16 %v4941
      %v5818 = vunpack.c.h.b16 %v4941
      %v5819 = vunpack.c.l.b16 %v4942
      %v5820 = vunpack.c.h.b16 %v4942
      %v5821 = vunpack.c.l.b16 %v4943
      %v5822 = vunpack.c.h.b16 %v4943
      %v5823 = vunpack.c.l.b16 %v4944
      %v5824 = vunpack.c.h.b16 %v4944
      %v5825 = vunpack.c.l.b16 %v4945
      %v5826 = vunpack.c.h.b16 %v4945
      %v5827 = vunpack.c.l.b16 %v4946
      %v5828 = vunpack.c.h.b16 %v4946
      %v5829 = vunpack.c.l.b16 %v4947
      %v5830 = vunpack.c.h.b16 %v4947
      %v5831 = vunpack.c.l.b16 %v4948
      %v5832 = vunpack.c.h.b16 %v4948
      %v5833 = vunpack.c.l.b16 %v4949
      %v5834 = vunpack.c.h.b16 %v4949
      %v5835 = vunpack.c.l.b16 %v4950
      %v5836 = vunpack.c.h.b16 %v4950
      %v5837 = vunpack.c.l.b16 %v4951
      %v5838 = vunpack.c.h.b16 %v4951
      %v5839 = vunpack.c.l.b16 %v4952
      %v5840 = vunpack.c.h.b16 %v4952
      %v5841 = vunpack.c.l.b16 %v4953
      %v5842 = vunpack.c.h.b16 %v4953
      %v5843 = vunpack.c.l.b16 %v4954
      %v5844 = vunpack.c.h.b16 %v4954
      %v5845 = vunpack.c.l.b16 %v4955
      %v5846 = vunpack.c.h.b16 %v4955
      %v5847 = vunpack.c.l.b16 %v4956
      %v5848 = vunpack.c.h.b16 %v4956
      %v5849 = vunpack.c.l.b16 %v4957
      %v5850 = vunpack.c.h.b16 %v4957
      %v5851 = vunpack.c.l.b16 %v4958
      %v5852 = vunpack.c.h.b16 %v4958
      %v5853 = vunpack.c.l.b16 %v4959
      %v5854 = vunpack.c.h.b16 %v4959
      %v5855 = vunpack.c.l.b16 %v4960
      %v5856 = vunpack.c.h.b16 %v4960
      %v5857 = vunpack.c.l.b16 %v4961
      %v5858 = vunpack.c.h.b16 %v4961
      %v5859 = vunpack.c.l.b16 %v4962
      %v5860 = vunpack.c.h.b16 %v4962
      %v5861 = vunpack.c.l.b16 %v4963
      %v5862 = vunpack.c.h.b16 %v4963
      %v5863 = vunpack.c.l.b16 %v4964
      %v5864 = vunpack.c.h.b16 %v4964
      %v5865 = vunpack.c.l.b16 %v4965
      %v5866 = vunpack.c.h.b16 %v4965
      %v5867 = vunpack.c.l.b16 %v4966
      %v5868 = vunpack.c.h.b16 %v4966
      %v5869 = vunpack.c.l.b16 %v4967
      %v5870 = vunpack.c.h.b16 %v4967
      %v5871 = vunpack.c.l.b16 %v4968
      %v5872 = vunpack.c.h.b16 %v4968
      %v5873 = vunpack.c.l.b16 %v4969
      %v5874 = vunpack.c.h.b16 %v4969
      %v5875 = vunpack.c.l.b16 %v4970
      %v5876 = vunpack.c.h.b16 %v4970
      %v5877 = vunpack.c.l.b16 %v4971
      %v5878 = vunpack.c.h.b16 %v4971
      %v5879 = vunpack.c.l.b16 %v4972
      %v5880 = vunpack.c.h.b16 %v4972
      %v5881 = vunpack.c.l.b16 %v4973
      %v5882 = vunpack.c.h.b16 %v4973
      %v5883 = vunpack.c.l.b16 %v4974
      %v5884 = vunpack.c.h.b16 %v4974
      %v5885 = vunpack.c.l.b16 %v4975
      %v5886 = vunpack.c.h.b16 %v4975
      %v5887 = vunpack.c.l.b16 %v4976
      %v5888 = vunpack.c.h.b16 %v4976
      %v5889 = vunpack.c.l.b16 %v4977
      %v5890 = vunpack.c.h.b16 %v4977
      %v5891 = vunpack.c.l.b16 %v4978
      %v5892 = vunpack.c.h.b16 %v4978
      %v5893 = vunpack.c.l.b16 %v4979
      %v5894 = vunpack.c.h.b16 %v4979
      %v5895 = vunpack.c.l.b16 %v4980
      %v5896 = vunpack.c.h.b16 %v4980
      %v5897 = vunpack.c.l.b16 %v4981
      %v5898 = vunpack.c.h.b16 %v4981
      %v5899 = vunpack.c.l.b16 %v4982
      %v5900 = vunpack.c.h.b16 %v4982
      %v5901 = vunpack.c.l.b16 %v4983
      %v5902 = vunpack.c.h.b16 %v4983
      %v5903 = vunpack.c.l.b16 %v4984
      %v5904 = vunpack.c.h.b16 %v4984
      %v5905 = vunpack.c.l.b16 %v4985
      %v5906 = vunpack.c.h.b16 %v4985
      %v5907 = vunpack.c.l.b16 %v4986
      %v5908 = vunpack.c.h.b16 %v4986
      %v5909 = vunpack.c.l.b16 %v4987
      %v5910 = vunpack.c.h.b16 %v4987
      %v5911 = vunpack.c.l.b16 %v4988
      %v5912 = vunpack.c.h.b16 %v4988
      %v5913 = vunpack.c.l.b16 %v4989
      %v5914 = vunpack.c.h.b16 %v4989
      %v5915 = vunpack.c.l.b16 %v4990
      %v5916 = vunpack.c.h.b16 %v4990
      %v5917 = vunpack.c.l.b16 %v4991
      %v5918 = vunpack.c.h.b16 %v4991
      %v5919 = vunpack.c.l.b16 %v4992
      %v5920 = vunpack.c.h.b16 %v4992
      %v5921 = vunpack.c.l.b16 %v4993
      %v5922 = vunpack.c.h.b16 %v4993
      %v5923 = vunpack.c.l.b16 %v4994
      %v5924 = vunpack.c.h.b16 %v4994
      %v5925 = vunpack.c.l.b16 %v4995
      %v5926 = vunpack.c.h.b16 %v4995
      %v5927 = vunpack.c.l.b16 %v4996
      %v5928 = vunpack.c.h.b16 %v4996
      %v5929 = vunpack.c.l.b16 %v4997
      %v5930 = vunpack.c.h.b16 %v4997
      %v5931 = vunpack.c.l.b16 %v4998
      %v5932 = vunpack.c.h.b16 %v4998
      %v5933 = vunpack.c.l.b16 %v4999
      %v5934 = vunpack.c.h.b16 %v4999
      %v5935 = vunpack.c.l.b16 %v5000
      %v5936 = vunpack.c.h.b16 %v5000
      %v5937 = vunpack.c.l.b16 %v5001
      %v5938 = vunpack.c.h.b16 %v5001
      %v5939 = vunpack.c.l.b16 %v5002
      %v5940 = vunpack.c.h.b16 %v5002
      %v5941 = vunpack.c.l.b16 %v5003
      %v5942 = vunpack.c.h.b16 %v5003
      %v5943 = vunpack.c.l.b16 %v5004
      %v5944 = vunpack.c.h.b16 %v5004
      %v5945 = vunpack.c.l.b16 %v5005
      %v5946 = vunpack.c.h.b16 %v5005
      %v5947 = vunpack.c.l.b16 %v5006
      %v5948 = vunpack.c.h.b16 %v5006
      %v5949 = vunpack.c.l.b16 %v5007
      %v5950 = vunpack.c.h.b16 %v5007
      %v5951 = vunpack.c.l.b16 %v5008
      %v5952 = vunpack.c.h.b16 %v5008
      %v5953 = vpack.c.b16 %v5795, %v5793
      %v5954 = vpack.c.b16 %v5796, %v5794
      %v5955 = vpack.c.b16 %v5799, %v5797
      %v5956 = vpack.c.b16 %v5800, %v5798
      %v5957 = vpack.c.b16 %v5803, %v5801
      %v5958 = vpack.c.b16 %v5804, %v5802
      %v5959 = vpack.c.b16 %v5807, %v5805
      %v5960 = vpack.c.b16 %v5808, %v5806
      %v5961 = vpack.c.b16 %v5811, %v5809
      %v5962 = vpack.c.b16 %v5812, %v5810
      %v5963 = vpack.c.b16 %v5815, %v5813
      %v5964 = vpack.c.b16 %v5816, %v5814
      %v5965 = vpack.c.b16 %v5819, %v5817
      %v5966 = vpack.c.b16 %v5820, %v5818
      %v5967 = vpack.c.b16 %v5823, %v5821
      %v5968 = vpack.c.b16 %v5824, %v5822
      %v5969 = vpack.c.b16 %v5827, %v5825
      %v5970 = vpack.c.b16 %v5828, %v5826
      %v5971 = vpack.c.b16 %v5831, %v5829
      %v5972 = vpack.c.b16 %v5832, %v5830
      %v5973 = vpack.c.b16 %v5835, %v5833
      %v5974 = vpack.c.b16 %v5836, %v5834
      %v5975 = vpack.c.b16 %v5839, %v5837
      %v5976 = vpack.c.b16 %v5840, %v5838
      %v5977 = vpack.c.b16 %v5843, %v5841
      %v5978 = vpack.c.b16 %v5844, %v5842
      %v5979 = vpack.c.b16 %v5847, %v5845
      %v5980 = vpack.c.b16 %v5848, %v5846
      %v5981 = vpack.c.b16 %v5851, %v5849
      %v5982 = vpack.c.b16 %v5852, %v5850
      %v5983 = vpack.c.b16 %v5855, %v5853
      %v5984 = vpack.c.b16 %v5856, %v5854
      %v5985 = vpack.c.b16 %v5859, %v5857
      %v5986 = vpack.c.b16 %v5860, %v5858
      %v5987 = vpack.c.b16 %v5863, %v5861
      %v5988 = vpack.c.b16 %v5864, %v5862
      %v5989 = vpack.c.b16 %v5867, %v5865
      %v5990 = vpack.c.b16 %v5868, %v5866
      %v5991 = vpack.c.b16 %v5871, %v5869
      %v5992 = vpack.c.b16 %v5872, %v5870
      %v5993 = vpack.c.b16 %v5875, %v5873
      %v5994 = vpack.c.b16 %v5876, %v5874
      %v5995 = vpack.c.b16 %v5879, %v5877
      %v5996 = vpack.c.b16 %v5880, %v5878
      %v5997 = vpack.c.b16 %v5883, %v5881
      %v5998 = vpack.c.b16 %v5884, %v5882
      %v5999 = vpack.c.b16 %v5887, %v5885
      %v6000 = vpack.c.b16 %v5888, %v5886
      %v6001 = vpack.c.b16 %v5891, %v5889
      %v6002 = vpack.c.b16 %v5892, %v5890
      %v6003 = vpack.c.b16 %v5895, %v5893
      %v6004 = vpack.c.b16 %v5896, %v5894
      %v6005 = vpack.c.b16 %v5899, %v5897
      %v6006 = vpack.c.b16 %v5900, %v5898
      %v6007 = vpack.c.b16 %v5903, %v5901
      %v6008 = vpack.c.b16 %v5904, %v5902
      %v6009 = vpack.c.b16 %v5907, %v5905
      %v6010 = vpack.c.b16 %v5908, %v5906
      %v6011 = vpack.c.b16 %v5911, %v5909
      %v6012 = vpack.c.b16 %v5912, %v5910
      %v6013 = vpack.c.b16 %v5915, %v5913
      %v6014 = vpack.c.b16 %v5916, %v5914
      %v6015 = vpack.c.b16 %v5919, %v5917
      %v6016 = vpack.c.b16 %v5920, %v5918
      %v6017 = vpack.c.b16 %v5923, %v5921
      %v6018 = vpack.c.b16 %v5924, %v5922
      %v6019 = vpack.c.b16 %v5927, %v5925
      %v6020 = vpack.c.b16 %v5928, %v5926
      %v6021 = vpack.c.b16 %v5931, %v5929
      %v6022 = vpack.c.b16 %v5932, %v5930
      %v6023 = vpack.c.b16 %v5935, %v5933
      %v6024 = vpack.c.b16 %v5936, %v5934
      %v6025 = vpack.c.b16 %v5939, %v5937
      %v6026 = vpack.c.b16 %v5940, %v5938
      %v6027 = vpack.c.b16 %v5943, %v5941
      %v6028 = vpack.c.b16 %v5944, %v5942
      %v6029 = vpack.c.b16 %v5947, %v5945
      %v6030 = vpack.c.b16 %v5948, %v5946
      %v6031 = vpack.c.b16 %v5951, %v5949
      %v6032 = vpack.c.b16 %v5952, %v5950
      %6113 = vmatprep.subr.bf16.mxu0 %v5968
      %6114 = vmatpush1.bf16.msra.mxu0 %v5967
      %6115 = vmatprep.subr.bf16.mxu0 %v5966
      %6116 = vmatpush1.bf16.msra.mxu0 %v5965
      %6117 = vmatprep.subr.bf16.mxu0 %v5964
      %6118 = vmatpush1.bf16.msra.mxu0 %v5963
      %6119 = vmatprep.subr.bf16.mxu0 %v5962
      %6120 = vmatpush1.bf16.msra.mxu0 %v5961
      %6121 = vmatprep.subr.bf16.mxu0 %v5960
      %6122 = vmatpush1.bf16.msra.mxu0 %v5959
      %6123 = vmatprep.subr.bf16.mxu0 %v5958
      %6124 = vmatpush1.bf16.msra.mxu0 %v5957
      %6125 = vmatprep.subr.bf16.mxu0 %v5956
      %6126 = vmatpush1.bf16.msra.mxu0 %v5955
      %6127 = vmatprep.subr.bf16.mxu0 %v5954
      %6128 = vmatpush1.bf16.msra.mxu0 %v5953
      %6129 = vmatprep.subr.bf16.mxu0 %v5984
      %6130 = vmatpush2.bf16.msra.mxu0 %v5983
      %6131 = vmatprep.subr.bf16.mxu0 %v5982
      %6132 = vmatpush2.bf16.msra.mxu0 %v5981
      %6133 = vmatprep.subr.bf16.mxu0 %v5980
      %6134 = vmatpush2.bf16.msra.mxu0 %v5979
      %6135 = vmatprep.subr.bf16.mxu0 %v5978
      %6136 = vmatpush2.bf16.msra.mxu0 %v5977
      %6137 = vmatprep.subr.bf16.mxu0 %v5976
      %6138 = vmatpush2.bf16.msra.mxu0 %v5975
      %6139 = vmatprep.subr.bf16.mxu0 %v5974
      %6140 = vmatpush2.bf16.msra.mxu0 %v5973
      %6141 = vmatprep.subr.bf16.mxu0 %v5972
      %6142 = vmatpush2.bf16.msra.mxu0 %v5971
      %6143 = vmatprep.subr.bf16.mxu0 %v5970
      %6144 = vmatpush2.bf16.msra.mxu0 %v5969
      %6145 = vmatprep.mubr.bf16.mxu0 %v5554
      %6146 = vmatmul.mubr.bf16.gmra.mxu0 %v5553
      %v6147 = vpop.f32.mrf.mxu0
      %v6148 = vadd.f32 %v5140, %v6147
      %v6149 = vpop.f32.mrf.mxu0
      %v6150 = vadd.f32 %v5140, %v6149
      %v6151 = vpop.f32.mrf.mxu0
      %v6152 = vadd.f32 %v5145, %v6151
      %v6153 = vpop.f32.mrf.mxu0
      %v6154 = vadd.f32 %v5145, %v6153
      %6155 = vmatprep.mubr.bf16.mxu0 %v5559
      %6156 = vmatmul.mubr.bf16.gmra.mxu0 %v5558
      %v6157 = vpop.f32.mrf.mxu0
      %v6158 = vadd.f32 %v5150, %v6157
      %v6159 = vpop.f32.mrf.mxu0
      %v6160 = vadd.f32 %v5150, %v6159
      %v6161 = vpop.f32.mrf.mxu0
      %v6162 = vadd.f32 %v5155, %v6161
      %v6163 = vpop.f32.mrf.mxu0
      %v6164 = vadd.f32 %v5155, %v6163
      %6165 = vmatprep.mubr.bf16.mxu0 %v5564
      %6166 = vmatmul.mubr.bf16.gmra.mxu0 %v5563
      %v6167 = vpop.f32.mrf.mxu0
      %v6168 = vadd.f32 %v5160, %v6167
      %v6169 = vpop.f32.mrf.mxu0
      %v6170 = vadd.f32 %v5160, %v6169
      %v6171 = vpop.f32.mrf.mxu0
      %v6172 = vadd.f32 %v5165, %v6171
      %v6173 = vpop.f32.mrf.mxu0
      %v6174 = vadd.f32 %v5165, %v6173
      %6175 = vmatprep.mubr.bf16.mxu0 %v5569
      %6176 = vmatmul.mubr.bf16.gmra.mxu0 %v5568
      %v6177 = vpop.f32.mrf.mxu0
      %v6178 = vadd.f32 %v5170, %v6177
      %v6179 = vpop.f32.mrf.mxu0
      %v6180 = vadd.f32 %v5170, %v6179
      %v6181 = vpop.f32.mrf.mxu0
      %v6182 = vadd.f32 %v5175, %v6181
      %v6183 = vpop.f32.mrf.mxu0
      %v6184 = vadd.f32 %v5175, %v6183
      %6185 = vmatprep.mubr.bf16.mxu0 %v5574
      %6186 = vmatmul.mubr.bf16.gmra.mxu0 %v5573
      %v6187 = vpop.f32.mrf.mxu0
      %v6188 = vadd.f32 %v5180, %v6187
      %v6189 = vpop.f32.mrf.mxu0
      %v6190 = vadd.f32 %v5180, %v6189
      %v6191 = vpop.f32.mrf.mxu0
      %v6192 = vadd.f32 %v5185, %v6191
      %v6193 = vpop.f32.mrf.mxu0
      %v6194 = vadd.f32 %v5185, %v6193
      %6195 = vmatprep.mubr.bf16.mxu0 %v5579
      %6196 = vmatmul.mubr.bf16.gmra.mxu0 %v5578
      %v6197 = vpop.f32.mrf.mxu0
      %v6198 = vadd.f32 %v5190, %v6197
      %v6199 = vpop.f32.mrf.mxu0
      %v6200 = vadd.f32 %v5190, %v6199
      %v6201 = vpop.f32.mrf.mxu0
      %v6202 = vadd.f32 %v5195, %v6201
      %v6203 = vpop.f32.mrf.mxu0
      %v6204 = vadd.f32 %v5195, %v6203
      %6205 = vmatprep.mubr.bf16.mxu0 %v5584
      %6206 = vmatmul.mubr.bf16.gmra.mxu0 %v5583
      %v6207 = vpop.f32.mrf.mxu0
      %v6208 = vadd.f32 %v5200, %v6207
      %v6209 = vpop.f32.mrf.mxu0
      %v6210 = vadd.f32 %v5200, %v6209
      %v6211 = vpop.f32.mrf.mxu0
      %v6212 = vadd.f32 %v5205, %v6211
      %v6213 = vpop.f32.mrf.mxu0
      %v6214 = vadd.f32 %v5205, %v6213
      %6215 = vmatprep.mubr.bf16.mxu0 %v5589
      %6216 = vmatmul.mubr.bf16.gmra.mxu0 %v5588
      %v6217 = vpop.f32.mrf.mxu0
      %v6218 = vadd.f32 %v5210, %v6217
      %v6219 = vpop.f32.mrf.mxu0
      %v6220 = vadd.f32 %v5210, %v6219
      %v6221 = vpop.f32.mrf.mxu0
      %v6222 = vadd.f32 %v5215, %v6221
      %v6223 = vpop.f32.mrf.mxu0
      %v6224 = vadd.f32 %v5215, %v6223
      %6225 = vmatprep.mubr.bf16.mxu0 %v5594
      %6226 = vmatmul.mubr.bf16.gmra.mxu0 %v5593
      %v6227 = vpop.f32.mrf.mxu0
      %v6228 = vadd.f32 %v5220, %v6227
      %v6229 = vpop.f32.mrf.mxu0
      %v6230 = vadd.f32 %v5220, %v6229
      %v6231 = vpop.f32.mrf.mxu0
      %v6232 = vadd.f32 %v5225, %v6231
      %v6233 = vpop.f32.mrf.mxu0
      %v6234 = vadd.f32 %v5225, %v6233
      %6235 = vmatprep.mubr.bf16.mxu0 %v5599
      %6236 = vmatmul.mubr.bf16.gmra.mxu0 %v5598
      %v6237 = vpop.f32.mrf.mxu0
      %v6238 = vadd.f32 %v5230, %v6237
      %v6239 = vpop.f32.mrf.mxu0
      %v6240 = vadd.f32 %v5230, %v6239
      %v6241 = vpop.f32.mrf.mxu0
      %v6242 = vadd.f32 %v5235, %v6241
      %v6243 = vpop.f32.mrf.mxu0
      %v6244 = vadd.f32 %v5235, %v6243
      %6245 = vmatprep.mubr.bf16.mxu0 %v5604
      %6246 = vmatmul.mubr.bf16.gmra.mxu0 %v5603
      %v6247 = vpop.f32.mrf.mxu0
      %v6248 = vadd.f32 %v5240, %v6247
      %v6249 = vpop.f32.mrf.mxu0
      %v6250 = vadd.f32 %v5240, %v6249
      %v6251 = vpop.f32.mrf.mxu0
      %v6252 = vadd.f32 %v5245, %v6251
      %v6253 = vpop.f32.mrf.mxu0
      %v6254 = vadd.f32 %v5245, %v6253
      %6255 = vmatprep.mubr.bf16.mxu0 %v5609
      %6256 = vmatmul.mubr.bf16.gmra.mxu0 %v5608
      %v6257 = vpop.f32.mrf.mxu0
      %v6258 = vadd.f32 %v5250, %v6257
      %v6259 = vpop.f32.mrf.mxu0
      %v6260 = vadd.f32 %v5250, %v6259
      %v6261 = vpop.f32.mrf.mxu0
      %v6262 = vadd.f32 %v5255, %v6261
      %v6263 = vpop.f32.mrf.mxu0
      %v6264 = vadd.f32 %v5255, %v6263
      %6265 = vmatprep.mubr.bf16.mxu0 %v5614
      %6266 = vmatmul.mubr.bf16.gmra.mxu0 %v5613
      %v6267 = vpop.f32.mrf.mxu0
      %v6268 = vadd.f32 %v5260, %v6267
      %v6269 = vpop.f32.mrf.mxu0
      %v6270 = vadd.f32 %v5260, %v6269
      %v6271 = vpop.f32.mrf.mxu0
      %v6272 = vadd.f32 %v5265, %v6271
      %v6273 = vpop.f32.mrf.mxu0
      %v6274 = vadd.f32 %v5265, %v6273
      %6275 = vmatprep.mubr.bf16.mxu0 %v5619
      %6276 = vmatmul.mubr.bf16.gmra.mxu0 %v5618
      %v6277 = vpop.f32.mrf.mxu0
      %v6278 = vadd.f32 %v5270, %v6277
      %v6279 = vpop.f32.mrf.mxu0
      %v6280 = vadd.f32 %v5270, %v6279
      %v6281 = vpop.f32.mrf.mxu0
      %v6282 = vadd.f32 %v5275, %v6281
      %v6283 = vpop.f32.mrf.mxu0
      %v6284 = vadd.f32 %v5275, %v6283
      %6285 = vmatprep.mubr.bf16.mxu0 %v5624
      %6286 = vmatmul.mubr.bf16.gmra.mxu0 %v5623
      %v6287 = vpop.f32.mrf.mxu0
      %v6288 = vadd.f32 %v5280, %v6287
      %v6289 = vpop.f32.mrf.mxu0
      %v6290 = vadd.f32 %v5280, %v6289
      %v6291 = vpop.f32.mrf.mxu0
      %v6292 = vadd.f32 %v5285, %v6291
      %v6293 = vpop.f32.mrf.mxu0
      %v6294 = vadd.f32 %v5285, %v6293
      %6295 = vmatprep.mubr.bf16.mxu0 %v5629
      %6296 = vmatmul.mubr.bf16.gmra.mxu0 %v5628
      %v6297 = vpop.f32.mrf.mxu0
      %v6298 = vadd.f32 %v5290, %v6297
      %v6299 = vpop.f32.mrf.mxu0
      %v6300 = vadd.f32 %v5290, %v6299
      %v6301 = vpop.f32.mrf.mxu0
      %v6302 = vadd.f32 %v5295, %v6301
      %v6303 = vpop.f32.mrf.mxu0
      %v6304 = vadd.f32 %v5295, %v6303
      %6305 = vdwg.mxu0
      %6306 = vmatprep.subr.bf16.mxu0 %v6000
      %6307 = vmatpush1.bf16.msra.mxu0 %v5999
      %6308 = vmatprep.subr.bf16.mxu0 %v5998
      %6309 = vmatpush1.bf16.msra.mxu0 %v5997
      %6310 = vmatprep.subr.bf16.mxu0 %v5996
      %6311 = vmatpush1.bf16.msra.mxu0 %v5995
      %6312 = vmatprep.subr.bf16.mxu0 %v5994
      %6313 = vmatpush1.bf16.msra.mxu0 %v5993
      %6314 = vmatprep.subr.bf16.mxu0 %v5992
      %6315 = vmatpush1.bf16.msra.mxu0 %v5991
      %6316 = vmatprep.subr.bf16.mxu0 %v5990
      %6317 = vmatpush1.bf16.msra.mxu0 %v5989
      %6318 = vmatprep.subr.bf16.mxu0 %v5988
      %6319 = vmatpush1.bf16.msra.mxu0 %v5987
      %6320 = vmatprep.subr.bf16.mxu0 %v5986
      %6321 = vmatpush1.bf16.msra.mxu0 %v5985
      %6322 = vmatprep.subr.bf16.mxu0 %v6016
      %6323 = vmatpush2.bf16.msra.mxu0 %v6015
      %6324 = vmatprep.subr.bf16.mxu0 %v6014
      %6325 = vmatpush2.bf16.msra.mxu0 %v6013
      %6326 = vmatprep.subr.bf16.mxu0 %v6012
      %6327 = vmatpush2.bf16.msra.mxu0 %v6011
      %6328 = vmatprep.subr.bf16.mxu0 %v6010
      %6329 = vmatpush2.bf16.msra.mxu0 %v6009
      %6330 = vmatprep.subr.bf16.mxu0 %v6008
      %6331 = vmatpush2.bf16.msra.mxu0 %v6007
      %6332 = vmatprep.subr.bf16.mxu0 %v6006
      %6333 = vmatpush2.bf16.msra.mxu0 %v6005
      %6334 = vmatprep.subr.bf16.mxu0 %v6004
      %6335 = vmatpush2.bf16.msra.mxu0 %v6003
      %6336 = vmatprep.subr.bf16.mxu0 %v6002
      %6337 = vmatpush2.bf16.msra.mxu0 %v6001
      %6338 = vmatprep.mubr.bf16.mxu0 %v5556
      %6339 = vmatmul.mubr.bf16.gmra.mxu0 %v5555
      %v6340 = vpop.f32.mrf.mxu0
      %v6341 = vadd.f32 %v6148, %v6340
      %v6342 = vpop.f32.mrf.mxu0
      %v6343 = vadd.f32 %v6150, %v6342
      %v6344 = vpop.f32.mrf.mxu0
      %v6345 = vadd.f32 %v6152, %v6344
      %v6346 = vpop.f32.mrf.mxu0
      %v6347 = vadd.f32 %v6154, %v6346
      %6348 = vmatprep.mubr.bf16.mxu0 %v5561
      %6349 = vmatmul.mubr.bf16.gmra.mxu0 %v5560
      %v6350 = vpop.f32.mrf.mxu0
      %v6351 = vadd.f32 %v6158, %v6350
      %v6352 = vpop.f32.mrf.mxu0
      %v6353 = vadd.f32 %v6160, %v6352
      %v6354 = vpop.f32.mrf.mxu0
      %v6355 = vadd.f32 %v6162, %v6354
      %v6356 = vpop.f32.mrf.mxu0
      %v6357 = vadd.f32 %v6164, %v6356
      %6358 = vmatprep.mubr.bf16.mxu0 %v5566
      %6359 = vmatmul.mubr.bf16.gmra.mxu0 %v5565
      %v6360 = vpop.f32.mrf.mxu0
      %v6361 = vadd.f32 %v6168, %v6360
      %v6362 = vpop.f32.mrf.mxu0
      %v6363 = vadd.f32 %v6170, %v6362
      %v6364 = vpop.f32.mrf.mxu0
      %v6365 = vadd.f32 %v6172, %v6364
      %v6366 = vpop.f32.mrf.mxu0
      %v6367 = vadd.f32 %v6174, %v6366
      %6368 = vmatprep.mubr.bf16.mxu0 %v5571
      %6369 = vmatmul.mubr.bf16.gmra.mxu0 %v5570
      %v6370 = vpop.f32.mrf.mxu0
      %v6371 = vadd.f32 %v6178, %v6370
      %v6372 = vpop.f32.mrf.mxu0
      %v6373 = vadd.f32 %v6180, %v6372
      %v6374 = vpop.f32.mrf.mxu0
      %v6375 = vadd.f32 %v6182, %v6374
      %v6376 = vpop.f32.mrf.mxu0
      %v6377 = vadd.f32 %v6184, %v6376
      %6378 = vmatprep.mubr.bf16.mxu0 %v5576
      %6379 = vmatmul.mubr.bf16.gmra.mxu0 %v5575
      %v6380 = vpop.f32.mrf.mxu0
      %v6381 = vadd.f32 %v6188, %v6380
      %v6382 = vpop.f32.mrf.mxu0
      %v6383 = vadd.f32 %v6190, %v6382
      %v6384 = vpop.f32.mrf.mxu0
      %v6385 = vadd.f32 %v6192, %v6384
      %v6386 = vpop.f32.mrf.mxu0
      %v6387 = vadd.f32 %v6194, %v6386
      %6388 = vmatprep.mubr.bf16.mxu0 %v5581
      %6389 = vmatmul.mubr.bf16.gmra.mxu0 %v5580
      %v6390 = vpop.f32.mrf.mxu0
      %v6391 = vadd.f32 %v6198, %v6390
      %v6392 = vpop.f32.mrf.mxu0
      %v6393 = vadd.f32 %v6200, %v6392
      %v6394 = vpop.f32.mrf.mxu0
      %v6395 = vadd.f32 %v6202, %v6394
      %v6396 = vpop.f32.mrf.mxu0
      %v6397 = vadd.f32 %v6204, %v6396
      %6398 = vmatprep.mubr.bf16.mxu0 %v5586
      %6399 = vmatmul.mubr.bf16.gmra.mxu0 %v5585
      %v6400 = vpop.f32.mrf.mxu0
      %v6401 = vadd.f32 %v6208, %v6400
      %v6402 = vpop.f32.mrf.mxu0
      %v6403 = vadd.f32 %v6210, %v6402
      %v6404 = vpop.f32.mrf.mxu0
      %v6405 = vadd.f32 %v6212, %v6404
      %v6406 = vpop.f32.mrf.mxu0
      %v6407 = vadd.f32 %v6214, %v6406
      %6408 = vmatprep.mubr.bf16.mxu0 %v5591
      %6409 = vmatmul.mubr.bf16.gmra.mxu0 %v5590
      %v6410 = vpop.f32.mrf.mxu0
      %v6411 = vadd.f32 %v6218, %v6410
      %v6412 = vpop.f32.mrf.mxu0
      %v6413 = vadd.f32 %v6220, %v6412
      %v6414 = vpop.f32.mrf.mxu0
      %v6415 = vadd.f32 %v6222, %v6414
      %v6416 = vpop.f32.mrf.mxu0
      %v6417 = vadd.f32 %v6224, %v6416
      %6418 = vmatprep.mubr.bf16.mxu0 %v5596
      %6419 = vmatmul.mubr.bf16.gmra.mxu0 %v5595
      %v6420 = vpop.f32.mrf.mxu0
      %v6421 = vadd.f32 %v6228, %v6420
      %v6422 = vpop.f32.mrf.mxu0
      %v6423 = vadd.f32 %v6230, %v6422
      %v6424 = vpop.f32.mrf.mxu0
      %v6425 = vadd.f32 %v6232, %v6424
      %v6426 = vpop.f32.mrf.mxu0
      %v6427 = vadd.f32 %v6234, %v6426
      %6428 = vmatprep.mubr.bf16.mxu0 %v5601
      %6429 = vmatmul.mubr.bf16.gmra.mxu0 %v5600
      %v6430 = vpop.f32.mrf.mxu0
      %v6431 = vadd.f32 %v6238, %v6430
      %v6432 = vpop.f32.mrf.mxu0
      %v6433 = vadd.f32 %v6240, %v6432
      %v6434 = vpop.f32.mrf.mxu0
      %v6435 = vadd.f32 %v6242, %v6434
      %v6436 = vpop.f32.mrf.mxu0
      %v6437 = vadd.f32 %v6244, %v6436
      %6438 = vmatprep.mubr.bf16.mxu0 %v5606
      %6439 = vmatmul.mubr.bf16.gmra.mxu0 %v5605
      %v6440 = vpop.f32.mrf.mxu0
      %v6441 = vadd.f32 %v6248, %v6440
      %v6442 = vpop.f32.mrf.mxu0
      %v6443 = vadd.f32 %v6250, %v6442
      %v6444 = vpop.f32.mrf.mxu0
      %v6445 = vadd.f32 %v6252, %v6444
      %v6446 = vpop.f32.mrf.mxu0
      %v6447 = vadd.f32 %v6254, %v6446
      %6448 = vmatprep.mubr.bf16.mxu0 %v5611
      %6449 = vmatmul.mubr.bf16.gmra.mxu0 %v5610
      %v6450 = vpop.f32.mrf.mxu0
      %v6451 = vadd.f32 %v6258, %v6450
      %v6452 = vpop.f32.mrf.mxu0
      %v6453 = vadd.f32 %v6260, %v6452
      %v6454 = vpop.f32.mrf.mxu0
      %v6455 = vadd.f32 %v6262, %v6454
      %v6456 = vpop.f32.mrf.mxu0
      %v6457 = vadd.f32 %v6264, %v6456
      %6458 = vmatprep.mubr.bf16.mxu0 %v5616
      %6459 = vmatmul.mubr.bf16.gmra.mxu0 %v5615
      %v6460 = vpop.f32.mrf.mxu0
      %v6461 = vadd.f32 %v6268, %v6460
      %v6462 = vpop.f32.mrf.mxu0
      %v6463 = vadd.f32 %v6270, %v6462
      %v6464 = vpop.f32.mrf.mxu0
      %v6465 = vadd.f32 %v6272, %v6464
      %v6466 = vpop.f32.mrf.mxu0
      %v6467 = vadd.f32 %v6274, %v6466
      %6468 = vmatprep.mubr.bf16.mxu0 %v5621
      %6469 = vmatmul.mubr.bf16.gmra.mxu0 %v5620
      %v6470 = vpop.f32.mrf.mxu0
      %v6471 = vadd.f32 %v6278, %v6470
      %v6472 = vpop.f32.mrf.mxu0
      %v6473 = vadd.f32 %v6280, %v6472
      %v6474 = vpop.f32.mrf.mxu0
      %v6475 = vadd.f32 %v6282, %v6474
      %v6476 = vpop.f32.mrf.mxu0
      %v6477 = vadd.f32 %v6284, %v6476
      %6478 = vmatprep.mubr.bf16.mxu0 %v5626
      %6479 = vmatmul.mubr.bf16.gmra.mxu0 %v5625
      %v6480 = vpop.f32.mrf.mxu0
      %v6481 = vadd.f32 %v6288, %v6480
      %v6482 = vpop.f32.mrf.mxu0
      %v6483 = vadd.f32 %v6290, %v6482
      %v6484 = vpop.f32.mrf.mxu0
      %v6485 = vadd.f32 %v6292, %v6484
      %v6486 = vpop.f32.mrf.mxu0
      %v6487 = vadd.f32 %v6294, %v6486
      %6488 = vmatprep.mubr.bf16.mxu0 %v5631
      %6489 = vmatmul.mubr.bf16.gmra.mxu0 %v5630
      %v6490 = vpop.f32.mrf.mxu0
      %v6491 = vadd.f32 %v6298, %v6490
      %v6492 = vpop.f32.mrf.mxu0
      %v6493 = vadd.f32 %v6300, %v6492
      %v6494 = vpop.f32.mrf.mxu0
      %v6495 = vadd.f32 %v6302, %v6494
      %v6496 = vpop.f32.mrf.mxu0
      %v6497 = vadd.f32 %v6304, %v6496
      %6498 = vdwg.mxu0
      %6499 = vmatprep.subr.bf16.mxu0 %v6032
      %6500 = vmatpush1.bf16.msra.mxu0 %v6031
      %6501 = vmatprep.subr.bf16.mxu0 %v6030
      %6502 = vmatpush1.bf16.msra.mxu0 %v6029
      %6503 = vmatprep.subr.bf16.mxu0 %v6028
      %6504 = vmatpush1.bf16.msra.mxu0 %v6027
      %6505 = vmatprep.subr.bf16.mxu0 %v6026
      %6506 = vmatpush1.bf16.msra.mxu0 %v6025
      %6507 = vmatprep.subr.bf16.mxu0 %v6024
      %6508 = vmatpush1.bf16.msra.mxu0 %v6023
      %6509 = vmatprep.subr.bf16.mxu0 %v6022
      %6510 = vmatpush1.bf16.msra.mxu0 %v6021
      %6511 = vmatprep.subr.bf16.mxu0 %v6020
      %6512 = vmatpush1.bf16.msra.mxu0 %v6019
      %6513 = vmatprep.subr.bf16.mxu0 %v6018
      %6514 = vmatpush1.bf16.msra.mxu0 %v6017
      %6515 = vmatprep.subr.bf16.mxu0 0
      %6516 = vmatpush2.bf16.msra.mxu0 0
      %6517 = vmatprep.subr.bf16.mxu0 0
      %6518 = vmatpush2.bf16.msra.mxu0 0
      %6519 = vmatprep.subr.bf16.mxu0 0
      %6520 = vmatpush2.bf16.msra.mxu0 0
      %6521 = vmatprep.subr.bf16.mxu0 0
      %6522 = vmatpush2.bf16.msra.mxu0 0
      %6523 = vmatprep.subr.bf16.mxu0 0
      %6524 = vmatpush2.bf16.msra.mxu0 0
      %6525 = vmatprep.subr.bf16.mxu0 0
      %6526 = vmatpush2.bf16.msra.mxu0 0
      %6527 = vmatprep.subr.bf16.mxu0 0
      %6528 = vmatpush2.bf16.msra.mxu0 0
      %6529 = vmatprep.subr.bf16.mxu0 0
      %6530 = vmatpush2.bf16.msra.mxu0 0
      %6531 = vmatprep.mubr.bf16.mxu0 0
      %6532 = vmatmul.mubr.bf16.gmra.mxu0 %v5557
      %v6533 = vpop.f32.mrf.mxu0
      %v6534 = vadd.f32 %v6341, %v6533
      %v6535 = vpop.f32.mrf.mxu0
      %v6536 = vadd.f32 %v6343, %v6535
      %v6537 = vpop.f32.mrf.mxu0
      %v6538 = vadd.f32 %v6345, %v6537
      %v6539 = vpop.f32.mrf.mxu0
      %v6540 = vadd.f32 %v6347, %v6539
      %6541 = vmatprep.mubr.bf16.mxu0 0
      %6542 = vmatmul.mubr.bf16.gmra.mxu0 %v5562
      %v6543 = vpop.f32.mrf.mxu0
      %v6544 = vadd.f32 %v6351, %v6543
      %v6545 = vpop.f32.mrf.mxu0
      %v6546 = vadd.f32 %v6353, %v6545
      %v6547 = vpop.f32.mrf.mxu0
      %v6548 = vadd.f32 %v6355, %v6547
      %v6549 = vpop.f32.mrf.mxu0
      %v6550 = vadd.f32 %v6357, %v6549
      %6551 = vmatprep.mubr.bf16.mxu0 0
      %6552 = vmatmul.mubr.bf16.gmra.mxu0 %v5567
      %v6553 = vpop.f32.mrf.mxu0
      %v6554 = vadd.f32 %v6361, %v6553
      %v6555 = vpop.f32.mrf.mxu0
      %v6556 = vadd.f32 %v6363, %v6555
      %v6557 = vpop.f32.mrf.mxu0
      %v6558 = vadd.f32 %v6365, %v6557
      %v6559 = vpop.f32.mrf.mxu0
      %v6560 = vadd.f32 %v6367, %v6559
      %6561 = vmatprep.mubr.bf16.mxu0 0
      %6562 = vmatmul.mubr.bf16.gmra.mxu0 %v5572
      %v6563 = vpop.f32.mrf.mxu0
      %v6564 = vadd.f32 %v6371, %v6563
      %v6565 = vpop.f32.mrf.mxu0
      %v6566 = vadd.f32 %v6373, %v6565
      %v6567 = vpop.f32.mrf.mxu0
      %v6568 = vadd.f32 %v6375, %v6567
      %v6569 = vpop.f32.mrf.mxu0
      %v6570 = vadd.f32 %v6377, %v6569
      %6571 = vmatprep.mubr.bf16.mxu0 0
      %6572 = vmatmul.mubr.bf16.gmra.mxu0 %v5577
      %v6573 = vpop.f32.mrf.mxu0
      %v6574 = vadd.f32 %v6381, %v6573
      %v6575 = vpop.f32.mrf.mxu0
      %v6576 = vadd.f32 %v6383, %v6575
      %v6577 = vpop.f32.mrf.mxu0
      %v6578 = vadd.f32 %v6385, %v6577
      %v6579 = vpop.f32.mrf.mxu0
      %v6580 = vadd.f32 %v6387, %v6579
      %6581 = vmatprep.mubr.bf16.mxu0 0
      %6582 = vmatmul.mubr.bf16.gmra.mxu0 %v5582
      %v6583 = vpop.f32.mrf.mxu0
      %v6584 = vadd.f32 %v6391, %v6583
      %v6585 = vpop.f32.mrf.mxu0
      %v6586 = vadd.f32 %v6393, %v6585
      %v6587 = vpop.f32.mrf.mxu0
      %v6588 = vadd.f32 %v6395, %v6587
      %v6589 = vpop.f32.mrf.mxu0
      %v6590 = vadd.f32 %v6397, %v6589
      %6591 = vmatprep.mubr.bf16.mxu0 0
      %6592 = vmatmul.mubr.bf16.gmra.mxu0 %v5587
      %v6593 = vpop.f32.mrf.mxu0
      %v6594 = vadd.f32 %v6401, %v6593
      %v6595 = vpop.f32.mrf.mxu0
      %v6596 = vadd.f32 %v6403, %v6595
      %v6597 = vpop.f32.mrf.mxu0
      %v6598 = vadd.f32 %v6405, %v6597
      %v6599 = vpop.f32.mrf.mxu0
      %v6600 = vadd.f32 %v6407, %v6599
      %6601 = vmatprep.mubr.bf16.mxu0 0
      %6602 = vmatmul.mubr.bf16.gmra.mxu0 %v5592
      %v6603 = vpop.f32.mrf.mxu0
      %v6604 = vadd.f32 %v6411, %v6603
      %v6605 = vpop.f32.mrf.mxu0
      %v6606 = vadd.f32 %v6413, %v6605
      %v6607 = vpop.f32.mrf.mxu0
      %v6608 = vadd.f32 %v6415, %v6607
      %v6609 = vpop.f32.mrf.mxu0
      %v6610 = vadd.f32 %v6417, %v6609
      %6611 = vmatprep.mubr.bf16.mxu0 0
      %6612 = vmatmul.mubr.bf16.gmra.mxu0 %v5597
      %v6613 = vpop.f32.mrf.mxu0
      %v6614 = vadd.f32 %v6421, %v6613
      %v6615 = vpop.f32.mrf.mxu0
      %v6616 = vadd.f32 %v6423, %v6615
      %v6617 = vpop.f32.mrf.mxu0
      %v6618 = vadd.f32 %v6425, %v6617
      %v6619 = vpop.f32.mrf.mxu0
      %v6620 = vadd.f32 %v6427, %v6619
      %6621 = vmatprep.mubr.bf16.mxu0 0
      %6622 = vmatmul.mubr.bf16.gmra.mxu0 %v5602
      %v6623 = vpop.f32.mrf.mxu0
      %v6624 = vadd.f32 %v6431, %v6623
      %v6625 = vpop.f32.mrf.mxu0
      %v6626 = vadd.f32 %v6433, %v6625
      %v6627 = vpop.f32.mrf.mxu0
      %v6628 = vadd.f32 %v6435, %v6627
      %v6629 = vpop.f32.mrf.mxu0
      %v6630 = vadd.f32 %v6437, %v6629
      %6631 = vmatprep.mubr.bf16.mxu0 0
      %6632 = vmatmul.mubr.bf16.gmra.mxu0 %v5607
      %v6633 = vpop.f32.mrf.mxu0
      %v6634 = vadd.f32 %v6441, %v6633
      %v6635 = vpop.f32.mrf.mxu0
      %v6636 = vadd.f32 %v6443, %v6635
      %v6637 = vpop.f32.mrf.mxu0
      %v6638 = vadd.f32 %v6445, %v6637
      %v6639 = vpop.f32.mrf.mxu0
      %v6640 = vadd.f32 %v6447, %v6639
      %6641 = vmatprep.mubr.bf16.mxu0 0
      %6642 = vmatmul.mubr.bf16.gmra.mxu0 %v5612
      %v6643 = vpop.f32.mrf.mxu0
      %v6644 = vadd.f32 %v6451, %v6643
      %v6645 = vpop.f32.mrf.mxu0
      %v6646 = vadd.f32 %v6453, %v6645
      %v6647 = vpop.f32.mrf.mxu0
      %v6648 = vadd.f32 %v6455, %v6647
      %v6649 = vpop.f32.mrf.mxu0
      %v6650 = vadd.f32 %v6457, %v6649
      %6651 = vmatprep.mubr.bf16.mxu0 0
      %6652 = vmatmul.mubr.bf16.gmra.mxu0 %v5617
      %v6653 = vpop.f32.mrf.mxu0
      %v6654 = vadd.f32 %v6461, %v6653
      %v6655 = vpop.f32.mrf.mxu0
      %v6656 = vadd.f32 %v6463, %v6655
      %v6657 = vpop.f32.mrf.mxu0
      %v6658 = vadd.f32 %v6465, %v6657
      %v6659 = vpop.f32.mrf.mxu0
      %v6660 = vadd.f32 %v6467, %v6659
      %6661 = vmatprep.mubr.bf16.mxu0 0
      %6662 = vmatmul.mubr.bf16.gmra.mxu0 %v5622
      %v6663 = vpop.f32.mrf.mxu0
      %v6664 = vadd.f32 %v6471, %v6663
      %v6665 = vpop.f32.mrf.mxu0
      %v6666 = vadd.f32 %v6473, %v6665
      %v6667 = vpop.f32.mrf.mxu0
      %v6668 = vadd.f32 %v6475, %v6667
      %v6669 = vpop.f32.mrf.mxu0
      %v6670 = vadd.f32 %v6477, %v6669
      %6671 = vmatprep.mubr.bf16.mxu0 0
      %6672 = vmatmul.mubr.bf16.gmra.mxu0 %v5627
      %v6673 = vpop.f32.mrf.mxu0
      %v6674 = vadd.f32 %v6481, %v6673
      %v6675 = vpop.f32.mrf.mxu0
      %v6676 = vadd.f32 %v6483, %v6675
      %v6677 = vpop.f32.mrf.mxu0
      %v6678 = vadd.f32 %v6485, %v6677
      %v6679 = vpop.f32.mrf.mxu0
      %v6680 = vadd.f32 %v6487, %v6679
      %6681 = vmatprep.mubr.bf16.mxu0 0
      %6682 = vmatmul.mubr.bf16.gmra.mxu0 %v5632
      %v6683 = vpop.f32.mrf.mxu0
      %v6684 = vadd.f32 %v6491, %v6683
      %v6685 = vpop.f32.mrf.mxu0
      %v6686 = vadd.f32 %v6493, %v6685
      %v6687 = vpop.f32.mrf.mxu0
      %v6688 = vadd.f32 %v6495, %v6687
      %v6689 = vpop.f32.mrf.mxu0
      %v6690 = vadd.f32 %v6497, %v6689
      %6691 = vdwg.mxu0
      %v6692 = vmax.f32 %v6534, 0.0
      %v6693 = vmax.f32 %v6536, 0.0
      %v6694 = vmax.f32 %v6538, 0.0
      %v6695 = vmax.f32 %v6540, 0.0
      %v6696 = vmax.f32 %v6544, 0.0
      %v6697 = vmax.f32 %v6546, 0.0
      %v6698 = vmax.f32 %v6548, 0.0
      %v6699 = vmax.f32 %v6550, 0.0
      %v6700 = vmax.f32 %v6554, 0.0
      %v6701 = vmax.f32 %v6556, 0.0
      %v6702 = vmax.f32 %v6558, 0.0
      %v6703 = vmax.f32 %v6560, 0.0
      %v6704 = vmax.f32 %v6564, 0.0
      %v6705 = vmax.f32 %v6566, 0.0
      %v6706 = vmax.f32 %v6568, 0.0
      %v6707 = vmax.f32 %v6570, 0.0
      %v6708 = vmax.f32 %v6574, 0.0
      %v6709 = vmax.f32 %v6576, 0.0
      %v6710 = vmax.f32 %v6578, 0.0
      %v6711 = vmax.f32 %v6580, 0.0
      %v6712 = vmax.f32 %v6584, 0.0
      %v6713 = vmax.f32 %v6586, 0.0
      %v6714 = vmax.f32 %v6588, 0.0
      %v6715 = vmax.f32 %v6590, 0.0
      %v6716 = vmax.f32 %v6594, 0.0
      %v6717 = vmax.f32 %v6596, 0.0
      %v6718 = vmax.f32 %v6598, 0.0
      %v6719 = vmax.f32 %v6600, 0.0
      %v6720 = vmax.f32 %v6604, 0.0
      %v6721 = vmax.f32 %v6606, 0.0
      %v6722 = vmax.f32 %v6608, 0.0
      %v6723 = vmax.f32 %v6610, 0.0
      %v6724 = vmax.f32 %v6614, 0.0
      %v6725 = vmax.f32 %v6616, 0.0
      %v6726 = vmax.f32 %v6618, 0.0
      %v6727 = vmax.f32 %v6620, 0.0
      %v6728 = vmax.f32 %v6624, 0.0
      %v6729 = vmax.f32 %v6626, 0.0
      %v6730 = vmax.f32 %v6628, 0.0
      %v6731 = vmax.f32 %v6630, 0.0
      %v6732 = vmax.f32 %v6634, 0.0
      %v6733 = vmax.f32 %v6636, 0.0
      %v6734 = vmax.f32 %v6638, 0.0
      %v6735 = vmax.f32 %v6640, 0.0
      %v6736 = vmax.f32 %v6644, 0.0
      %v6737 = vmax.f32 %v6646, 0.0
      %v6738 = vmax.f32 %v6648, 0.0
      %v6739 = vmax.f32 %v6650, 0.0
      %v6740 = vmax.f32 %v6654, 0.0
      %v6741 = vmax.f32 %v6656, 0.0
      %v6742 = vmax.f32 %v6658, 0.0
      %v6743 = vmax.f32 %v6660, 0.0
      %v6744 = vmax.f32 %v6664, 0.0
      %v6745 = vmax.f32 %v6666, 0.0
      %v6746 = vmax.f32 %v6668, 0.0
      %v6747 = vmax.f32 %v6670, 0.0
      %v6748 = vmax.f32 %v6674, 0.0
      %v6749 = vmax.f32 %v6676, 0.0
      %v6750 = vmax.f32 %v6678, 0.0
      %v6751 = vmax.f32 %v6680, 0.0
      %v6752 = vmax.f32 %v6684, 0.0
      %v6753 = vmax.f32 %v6686, 0.0
      %v6754 = vmax.f32 %v6688, 0.0
      %v6755 = vmax.f32 %v6690, 0.0
      %v6756 = vpack.c.bf16 %v6694, %v6692
      %v6757 = vpack.c.bf16 %v6695, %v6693
      %v6758 = vpack.c.bf16 %v6698, %v6696
      %v6759 = vpack.c.bf16 %v6699, %v6697
      %v6760 = vpack.c.bf16 %v6702, %v6700
      %v6761 = vpack.c.bf16 %v6703, %v6701
      %v6762 = vpack.c.bf16 %v6706, %v6704
      %v6763 = vpack.c.bf16 %v6707, %v6705
      %v6764 = vpack.c.bf16 %v6710, %v6708
      %v6765 = vpack.c.bf16 %v6711, %v6709
      %v6766 = vpack.c.bf16 %v6714, %v6712
      %v6767 = vpack.c.bf16 %v6715, %v6713
      %v6768 = vpack.c.bf16 %v6718, %v6716
      %v6769 = vpack.c.bf16 %v6719, %v6717
      %v6770 = vpack.c.bf16 %v6722, %v6720
      %v6771 = vpack.c.bf16 %v6723, %v6721
      %v6772 = vpack.c.bf16 %v6726, %v6724
      %v6773 = vpack.c.bf16 %v6727, %v6725
      %v6774 = vpack.c.bf16 %v6730, %v6728
      %v6775 = vpack.c.bf16 %v6731, %v6729
      %v6776 = vpack.c.bf16 %v6734, %v6732
      %v6777 = vpack.c.bf16 %v6735, %v6733
      %v6778 = vpack.c.bf16 %v6738, %v6736
      %v6779 = vpack.c.bf16 %v6739, %v6737
      %v6780 = vpack.c.bf16 %v6742, %v6740
      %v6781 = vpack.c.bf16 %v6743, %v6741
      %v6782 = vpack.c.bf16 %v6746, %v6744
      %v6783 = vpack.c.bf16 %v6747, %v6745
      %v6784 = vpack.c.bf16 %v6750, %v6748
      %v6785 = vpack.c.bf16 %v6751, %v6749
      %v6786 = vpack.c.bf16 %v6754, %v6752
      %v6787 = vpack.c.bf16 %v6755, %v6753
      %v6788 = vld [vmem:[%s11] sm:$0xff]
      %v6789 = vld [vmem:[%s11 + $0x8] sm:$0xff]
      %v6790 = vld [vmem:[%s11 + $0x10] sm:$0xff]
      %v6791 = vld [vmem:[%s11 + $0x18] sm:$0xff]
      %v6792 = vld [vmem:[%s11 + $0x20] sm:$0xff]
      %v6793 = vld [vmem:[%s11 + $0x28] sm:$0xff]
      %v6794 = vld [vmem:[%s11 + $0x30] sm:$0xff]
      %v6795 = vld [vmem:[%s11 + $0x38] sm:$0xff]
      %v6796 = vld [vmem:[%s12] sm:$0xff]
      %v6797 = vld [vmem:[%s12 + $0x8] sm:$0xff]
      %v6798 = vld [vmem:[%s12 + $0x10] sm:$0xff]
      %v6799 = vld [vmem:[%s12 + $0x18] sm:$0xff]
      %v6800 = vld [vmem:[%s12 + $0x20] sm:$0xff]
      %v6801 = vld [vmem:[%s12 + $0x28] sm:$0xff]
      %v6802 = vld [vmem:[%s12 + $0x30] sm:$0xff]
      %v6803 = vld [vmem:[%s12 + $0x38] sm:$0xff]
      %6805 = vset.pattern.permute.xlu0 0
      %6806 = vperm.xlu0 %6805, %v6796
      %v6807 = vpop.permute.xlu0 %6806
      %6810 = vset.pattern.permute.xlu0 0
      %6811 = vperm.xlu0 %6810, %v6797
      %v6812 = vpop.permute.xlu0 %6811
      %6815 = vset.pattern.permute.xlu0 0
      %6816 = vperm.xlu0 %6815, %v6798
      %v6817 = vpop.permute.xlu0 %6816
      %6820 = vset.pattern.permute.xlu0 0
      %6821 = vperm.xlu0 %6820, %v6799
      %v6822 = vpop.permute.xlu0 %6821
      %6825 = vset.pattern.permute.xlu0 0
      %6826 = vperm.xlu0 %6825, %v6800
      %v6827 = vpop.permute.xlu0 %6826
      %6830 = vset.pattern.permute.xlu0 0
      %6831 = vperm.xlu0 %6830, %v6801
      %v6832 = vpop.permute.xlu0 %6831
      %6835 = vset.pattern.permute.xlu0 0
      %6836 = vperm.xlu0 %6835, %v6802
      %v6837 = vpop.permute.xlu0 %6836
      %6840 = vset.pattern.permute.xlu0 0
      %6841 = vperm.xlu0 %6840, %v6803
      %v6842 = vpop.permute.xlu0 %6841
      %v6852 = vunpack.c.l.b16 %v6788
      %v6853 = vunpack.c.h.b16 %v6788
      %v6854 = vunpack.c.l.b16 %v6789
      %v6855 = vunpack.c.h.b16 %v6789
      %v6856 = vunpack.c.l.b16 %v6790
      %v6857 = vunpack.c.h.b16 %v6790
      %v6858 = vunpack.c.l.b16 %v6791
      %v6859 = vunpack.c.h.b16 %v6791
      %v6860 = vunpack.c.l.b16 %v6792
      %v6861 = vunpack.c.h.b16 %v6792
      %v6862 = vunpack.c.l.b16 %v6793
      %v6863 = vunpack.c.h.b16 %v6793
      %v6864 = vunpack.c.l.b16 %v6794
      %v6865 = vunpack.c.h.b16 %v6794
      %v6866 = vunpack.c.l.b16 %v6795
      %v6867 = vunpack.c.h.b16 %v6795
      %v6868 = vpack.c.b16 %v6854, %v6852
      %v6869 = vpack.c.b16 %v6855, %v6853
      %v6870 = vpack.c.b16 %v6858, %v6856
      %v6871 = vpack.c.b16 %v6859, %v6857
      %v6872 = vpack.c.b16 %v6862, %v6860
      %v6873 = vpack.c.b16 %v6863, %v6861
      %v6874 = vpack.c.b16 %v6866, %v6864
      %v6875 = vpack.c.b16 %v6867, %v6865
      %6884 = vmatprep.subr.bf16.mxu0 %v6771
      %6885 = vmatpush1.bf16.msra.mxu0 %v6770
      %6886 = vmatprep.subr.bf16.mxu0 %v6769
      %6887 = vmatpush1.bf16.msra.mxu0 %v6768
      %6888 = vmatprep.subr.bf16.mxu0 %v6767
      %6889 = vmatpush1.bf16.msra.mxu0 %v6766
      %6890 = vmatprep.subr.bf16.mxu0 %v6765
      %6891 = vmatpush1.bf16.msra.mxu0 %v6764
      %6892 = vmatprep.subr.bf16.mxu0 %v6763
      %6893 = vmatpush1.bf16.msra.mxu0 %v6762
      %6894 = vmatprep.subr.bf16.mxu0 %v6761
      %6895 = vmatpush1.bf16.msra.mxu0 %v6760
      %6896 = vmatprep.subr.bf16.mxu0 %v6759
      %6897 = vmatpush1.bf16.msra.mxu0 %v6758
      %6898 = vmatprep.subr.bf16.mxu0 %v6757
      %6899 = vmatpush1.bf16.msra.mxu0 %v6756
      %6900 = vmatprep.subr.bf16.mxu0 %v6787
      %6901 = vmatpush2.bf16.msra.mxu0 %v6786
      %6902 = vmatprep.subr.bf16.mxu0 %v6785
      %6903 = vmatpush2.bf16.msra.mxu0 %v6784
      %6904 = vmatprep.subr.bf16.mxu0 %v6783
      %6905 = vmatpush2.bf16.msra.mxu0 %v6782
      %6906 = vmatprep.subr.bf16.mxu0 %v6781
      %6907 = vmatpush2.bf16.msra.mxu0 %v6780
      %6908 = vmatprep.subr.bf16.mxu0 %v6779
      %6909 = vmatpush2.bf16.msra.mxu0 %v6778
      %6910 = vmatprep.subr.bf16.mxu0 %v6777
      %6911 = vmatpush2.bf16.msra.mxu0 %v6776
      %6912 = vmatprep.subr.bf16.mxu0 %v6775
      %6913 = vmatpush2.bf16.msra.mxu0 %v6774
      %6914 = vmatprep.subr.bf16.mxu0 %v6773
      %6915 = vmatpush2.bf16.msra.mxu0 %v6772
      %6916 = vmatprep.mubr.bf16.mxu0 %v6869
      %6917 = vmatmul.mubr.bf16.gmra.mxu0 %v6868
      %v6918 = vpop.f32.mrf.mxu0
      %v6919 = vadd.f32 %v6807, %v6918
      %v6920 = vpop.f32.mrf.mxu0
      %v6921 = vadd.f32 %v6807, %v6920
      %v6922 = vpop.f32.mrf.mxu0
      %v6923 = vadd.f32 %v6812, %v6922
      %v6924 = vpop.f32.mrf.mxu0
      %v6925 = vadd.f32 %v6812, %v6924
      %6926 = vmatprep.mubr.bf16.mxu0 %v6871
      %6927 = vmatmul.mubr.bf16.gmra.mxu0 %v6870
      %v6928 = vpop.f32.mrf.mxu0
      %v6929 = vadd.f32 %v6817, %v6928
      %v6930 = vpop.f32.mrf.mxu0
      %v6931 = vadd.f32 %v6817, %v6930
      %v6932 = vpop.f32.mrf.mxu0
      %v6933 = vadd.f32 %v6822, %v6932
      %v6934 = vpop.f32.mrf.mxu0
      %v6935 = vadd.f32 %v6822, %v6934
      %6936 = vmatprep.mubr.bf16.mxu0 %v6873
      %6937 = vmatmul.mubr.bf16.gmra.mxu0 %v6872
      %v6938 = vpop.f32.mrf.mxu0
      %v6939 = vadd.f32 %v6827, %v6938
      %v6940 = vpop.f32.mrf.mxu0
      %v6941 = vadd.f32 %v6827, %v6940
      %v6942 = vpop.f32.mrf.mxu0
      %v6943 = vadd.f32 %v6832, %v6942
      %v6944 = vpop.f32.mrf.mxu0
      %v6945 = vadd.f32 %v6832, %v6944
      %6946 = vmatprep.mubr.bf16.mxu0 %v6875
      %6947 = vmatmul.mubr.bf16.gmra.mxu0 %v6874
      %v6948 = vpop.f32.mrf.mxu0
      %v6949 = vadd.f32 %v6837, %v6948
      %v6950 = vpop.f32.mrf.mxu0
      %v6951 = vadd.f32 %v6837, %v6950
      %v6952 = vpop.f32.mrf.mxu0
      %v6953 = vadd.f32 %v6842, %v6952
      %v6954 = vpop.f32.mrf.mxu0
      %v6955 = vadd.f32 %v6842, %v6954
      %6956 = vdwg.mxu0
      %v6957 = vmax.f32 %v6919, 0.0
      %v6958 = vmax.f32 %v6921, 0.0
      %v6959 = vmax.f32 %v6923, 0.0
      %v6960 = vmax.f32 %v6925, 0.0
      %v6961 = vmax.f32 %v6929, 0.0
      %v6962 = vmax.f32 %v6931, 0.0
      %v6963 = vmax.f32 %v6933, 0.0
      %v6964 = vmax.f32 %v6935, 0.0
      %v6965 = vmax.f32 %v6939, 0.0
      %v6966 = vmax.f32 %v6941, 0.0
      %v6967 = vmax.f32 %v6943, 0.0
      %v6968 = vmax.f32 %v6945, 0.0
      %v6969 = vmax.f32 %v6949, 0.0
      %v6970 = vmax.f32 %v6951, 0.0
      %v6971 = vmax.f32 %v6953, 0.0
      %v6972 = vmax.f32 %v6955, 0.0
      %v6973 = vpack.c.bf16 %v6959, %v6957
      %v6974 = vpack.c.bf16 %v6960, %v6958
      %v6975 = vpack.c.bf16 %v6963, %v6961
      %v6976 = vpack.c.bf16 %v6964, %v6962
      %v6977 = vpack.c.bf16 %v6967, %v6965
      %v6978 = vpack.c.bf16 %v6968, %v6966
      %v6979 = vpack.c.bf16 %v6971, %v6969
      %v6980 = vpack.c.bf16 %v6972, %v6970
      %v6989 = vunpack.c.l.b16 %v6973
      %v6990 = vunpack.c.l.b16 %v6974
      %v6991 = vunpack.c.h.b16 %v6973
      %v6992 = vunpack.c.h.b16 %v6974
      %v6993 = vunpack.c.l.b16 %v6975
      %v6994 = vunpack.c.l.b16 %v6976
      %v6995 = vunpack.c.h.b16 %v6975
      %v6996 = vunpack.c.h.b16 %v6976
      %v6997 = vunpack.c.l.b16 %v6977
      %v6998 = vunpack.c.l.b16 %v6978
      %v6999 = vunpack.c.h.b16 %v6977
      %v7000 = vunpack.c.h.b16 %v6978
      %v7001 = vunpack.c.l.b16 %v6979
      %v7002 = vunpack.c.l.b16 %v6980
      %v7003 = vunpack.c.h.b16 %v6979
      %v7004 = vunpack.c.h.b16 %v6980
      %v7005 = vpack.c.b16 %v6990, %v6989
      %v7006 = vpack.c.b16 %v6992, %v6991
      %v7007 = vpack.c.b16 %v6994, %v6993
      %v7008 = vpack.c.b16 %v6996, %v6995
      %v7009 = vpack.c.b16 %v6998, %v6997
      %v7010 = vpack.c.b16 %v7000, %v6999
      %v7011 = vpack.c.b16 %v7002, %v7001
      %v7012 = vpack.c.b16 %v7004, %v7003
      %7021 = vst [vmem:[#allocation2 + $0x280] sm:$0xff] %v7005
      %7022 = vst [vmem:[#allocation2 + $0x288] sm:$0xff] %v7006
      %7023 = vst [vmem:[#allocation2 + $0x290] sm:$0xff] %v7007
      %7024 = vst [vmem:[#allocation2 + $0x298] sm:$0xff] %v7008
      %7025 = vst [vmem:[#allocation2 + $0x2a0] sm:$0xff] %v7009
      %7026 = vst [vmem:[#allocation2 + $0x2a8] sm:$0xff] %v7010
      %7027 = vst [vmem:[#allocation2 + $0x2b0] sm:$0xff] %v7011
      %7028 = vst [vmem:[#allocation2 + $0x2b8] sm:$0xff] %v7012
      %v7029 = vld [vmem:[#allocation2] sm:$0xff]
      %v7030 = vld [vmem:[#allocation2 + $0x8] sm:$0xff]
      %v7031 = vld [vmem:[#allocation2 + $0x10] sm:$0xff]
      %v7032 = vld [vmem:[#allocation2 + $0x18] sm:$0xff]
      %v7033 = vld [vmem:[#allocation2 + $0x20] sm:$0xff]
      %v7034 = vld [vmem:[#allocation2 + $0x28] sm:$0xff]
      %v7035 = vld [vmem:[#allocation2 + $0x30] sm:$0xff]
      %v7036 = vld [vmem:[#allocation2 + $0x38] sm:$0xff]
      %v7037 = vld [vmem:[#allocation2 + $0x40] sm:$0xff]
      %v7038 = vld [vmem:[#allocation2 + $0x48] sm:$0xff]
      %v7039 = vld [vmem:[#allocation2 + $0x50] sm:$0xff]
      %v7040 = vld [vmem:[#allocation2 + $0x58] sm:$0xff]
      %v7041 = vld [vmem:[#allocation2 + $0x60] sm:$0xff]
      %v7042 = vld [vmem:[#allocation2 + $0x68] sm:$0xff]
      %v7043 = vld [vmem:[#allocation2 + $0x70] sm:$0xff]
      %v7044 = vld [vmem:[#allocation2 + $0x78] sm:$0xff]
      %v7045 = vld [vmem:[#allocation2 + $0x80] sm:$0xff]
      %v7046 = vld [vmem:[#allocation2 + $0x88] sm:$0xff]
      %v7047 = vld [vmem:[#allocation2 + $0x90] sm:$0xff]
      %v7048 = vld [vmem:[#allocation2 + $0x98] sm:$0xff]
      %v7049 = vld [vmem:[#allocation2 + $0xa0] sm:$0xff]
      %v7050 = vld [vmem:[#allocation2 + $0xa8] sm:$0xff]
      %v7051 = vld [vmem:[#allocation2 + $0xb0] sm:$0xff]
      %v7052 = vld [vmem:[#allocation2 + $0xb8] sm:$0xff]
      %v7053 = vld [vmem:[#allocation2 + $0xc0] sm:$0xff]
      %v7054 = vld [vmem:[#allocation2 + $0xc8] sm:$0xff]
      %v7055 = vld [vmem:[#allocation2 + $0xd0] sm:$0xff]
      %v7056 = vld [vmem:[#allocation2 + $0xd8] sm:$0xff]
      %v7057 = vld [vmem:[#allocation2 + $0xe0] sm:$0xff]
      %v7058 = vld [vmem:[#allocation2 + $0xe8] sm:$0xff]
      %v7059 = vld [vmem:[#allocation2 + $0xf0] sm:$0xff]
      %v7060 = vld [vmem:[#allocation2 + $0xf8] sm:$0xff]
      %v7061 = vld [vmem:[#allocation2 + $0x100] sm:$0xff]
      %v7062 = vld [vmem:[#allocation2 + $0x108] sm:$0xff]
      %v7063 = vld [vmem:[#allocation2 + $0x110] sm:$0xff]
      %v7064 = vld [vmem:[#allocation2 + $0x118] sm:$0xff]
      %v7065 = vld [vmem:[#allocation2 + $0x120] sm:$0xff]
      %v7066 = vld [vmem:[#allocation2 + $0x128] sm:$0xff]
      %v7067 = vld [vmem:[#allocation2 + $0x130] sm:$0xff]
      %v7068 = vld [vmem:[#allocation2 + $0x138] sm:$0xff]
      %v7069 = vld [vmem:[#allocation2 + $0x140] sm:$0xff]
      %v7070 = vld [vmem:[#allocation2 + $0x148] sm:$0xff]
      %v7071 = vld [vmem:[#allocation2 + $0x150] sm:$0xff]
      %v7072 = vld [vmem:[#allocation2 + $0x158] sm:$0xff]
      %v7073 = vld [vmem:[#allocation2 + $0x160] sm:$0xff]
      %v7074 = vld [vmem:[#allocation2 + $0x168] sm:$0xff]
      %v7075 = vld [vmem:[#allocation2 + $0x170] sm:$0xff]
      %v7076 = vld [vmem:[#allocation2 + $0x178] sm:$0xff]
      %v7077 = vld [vmem:[#allocation2 + $0x180] sm:$0xff]
      %v7078 = vld [vmem:[#allocation2 + $0x188] sm:$0xff]
      %v7079 = vld [vmem:[#allocation2 + $0x190] sm:$0xff]
      %v7080 = vld [vmem:[#allocation2 + $0x198] sm:$0xff]
      %v7081 = vld [vmem:[#allocation2 + $0x1a0] sm:$0xff]
      %v7082 = vld [vmem:[#allocation2 + $0x1a8] sm:$0xff]
      %v7083 = vld [vmem:[#allocation2 + $0x1b0] sm:$0xff]
      %v7084 = vld [vmem:[#allocation2 + $0x1b8] sm:$0xff]
      %v7085 = vld [vmem:[#allocation2 + $0x1c0] sm:$0xff]
      %v7086 = vld [vmem:[#allocation2 + $0x1c8] sm:$0xff]
      %v7087 = vld [vmem:[#allocation2 + $0x1d0] sm:$0xff]
      %v7088 = vld [vmem:[#allocation2 + $0x1d8] sm:$0xff]
      %v7089 = vld [vmem:[#allocation2 + $0x1e0] sm:$0xff]
      %v7090 = vld [vmem:[#allocation2 + $0x1e8] sm:$0xff]
      %v7091 = vld [vmem:[#allocation2 + $0x1f0] sm:$0xff]
      %v7092 = vld [vmem:[#allocation2 + $0x1f8] sm:$0xff]
      %v7093 = vld [vmem:[#allocation2 + $0x200] sm:$0xff]
      %v7094 = vld [vmem:[#allocation2 + $0x208] sm:$0xff]
      %v7095 = vld [vmem:[#allocation2 + $0x210] sm:$0xff]
      %v7096 = vld [vmem:[#allocation2 + $0x218] sm:$0xff]
      %v7097 = vld [vmem:[#allocation2 + $0x220] sm:$0xff]
      %v7098 = vld [vmem:[#allocation2 + $0x228] sm:$0xff]
      %v7099 = vld [vmem:[#allocation2 + $0x230] sm:$0xff]
      %v7100 = vld [vmem:[#allocation2 + $0x238] sm:$0xff]
      %v7101 = vld [vmem:[#allocation2 + $0x240] sm:$0xff]
      %v7102 = vld [vmem:[#allocation2 + $0x248] sm:$0xff]
      %v7103 = vld [vmem:[#allocation2 + $0x250] sm:$0xff]
      %v7104 = vld [vmem:[#allocation2 + $0x258] sm:$0xff]
      %v7105 = vld [vmem:[#allocation2 + $0x260] sm:$0xff]
      %v7106 = vld [vmem:[#allocation2 + $0x268] sm:$0xff]
      %v7107 = vld [vmem:[#allocation2 + $0x270] sm:$0xff]
      %v7108 = vld [vmem:[#allocation2 + $0x278] sm:$0xff]
      %v7109 = vld [vmem:[#allocation2 + $0x280] sm:$0xff]
      %v7110 = vld [vmem:[#allocation2 + $0x288] sm:$0xff]
      %v7111 = vld [vmem:[#allocation2 + $0x290] sm:$0xff]
      %v7112 = vld [vmem:[#allocation2 + $0x298] sm:$0xff]
      %v7113 = vld [vmem:[#allocation2 + $0x2a0] sm:$0xff]
      %v7114 = vld [vmem:[#allocation2 + $0x2a8] sm:$0xff]
      %v7115 = vld [vmem:[#allocation2 + $0x2b0] sm:$0xff]
      %v7116 = vld [vmem:[#allocation2 + $0x2b8] sm:$0xff]
      %v7117 = vld [vmem:[%s13] sm:$0xff]
      %v7118 = vld [vmem:[%s13 + $0x8] sm:$0xff]
      %v7119 = vld [vmem:[%s13 + $0x10] sm:$0xff]
      %v7120 = vld [vmem:[%s13 + $0x18] sm:$0xff]
      %v7121 = vld [vmem:[%s13 + $0x20] sm:$0xff]
      %v7122 = vld [vmem:[%s13 + $0x28] sm:$0xff]
      %v7123 = vld [vmem:[%s13 + $0x30] sm:$0xff]
      %v7124 = vld [vmem:[%s13 + $0x38] sm:$0xff]
      %v7125 = vld [vmem:[%s13 + $0x40] sm:$0xff]
      %v7126 = vld [vmem:[%s13 + $0x48] sm:$0xff]
      %v7127 = vld [vmem:[%s13 + $0x50] sm:$0xff]
      %v7128 = vld [vmem:[%s13 + $0x58] sm:$0xff]
      %v7129 = vld [vmem:[%s13 + $0x60] sm:$0xff]
      %v7130 = vld [vmem:[%s13 + $0x68] sm:$0xff]
      %v7131 = vld [vmem:[%s13 + $0x70] sm:$0xff]
      %v7132 = vld [vmem:[%s13 + $0x78] sm:$0xff]
      %v7133 = vld [vmem:[%s13 + $0x80] sm:$0xff]
      %v7134 = vld [vmem:[%s13 + $0x88] sm:$0xff]
      %v7135 = vld [vmem:[%s13 + $0x90] sm:$0xff]
      %v7136 = vld [vmem:[%s13 + $0x98] sm:$0xff]
      %v7137 = vld [vmem:[%s13 + $0xa0] sm:$0xff]
      %v7138 = vld [vmem:[%s13 + $0xa8] sm:$0xff]
      %v7139 = vld [vmem:[%s13 + $0xb0] sm:$0xff]
      %v7140 = vld [vmem:[%s13 + $0xb8] sm:$0xff]
      %v7141 = vld [vmem:[%s13 + $0xc0] sm:$0xff]
      %v7142 = vld [vmem:[%s13 + $0xc8] sm:$0xff]
      %v7143 = vld [vmem:[%s13 + $0xd0] sm:$0xff]
      %v7144 = vld [vmem:[%s13 + $0xd8] sm:$0xff]
      %v7145 = vld [vmem:[%s13 + $0xe0] sm:$0xff]
      %v7146 = vld [vmem:[%s13 + $0xe8] sm:$0xff]
      %v7147 = vld [vmem:[%s13 + $0xf0] sm:$0xff]
      %v7148 = vld [vmem:[%s13 + $0xf8] sm:$0xff]
      %v7149 = vld [vmem:[%s13 + $0x100] sm:$0xff]
      %v7150 = vld [vmem:[%s13 + $0x108] sm:$0xff]
      %v7151 = vld [vmem:[%s13 + $0x110] sm:$0xff]
      %v7152 = vld [vmem:[%s13 + $0x118] sm:$0xff]
      %v7153 = vld [vmem:[%s13 + $0x120] sm:$0xff]
      %v7154 = vld [vmem:[%s13 + $0x128] sm:$0xff]
      %v7155 = vld [vmem:[%s13 + $0x130] sm:$0xff]
      %v7156 = vld [vmem:[%s13 + $0x138] sm:$0xff]
      %v7157 = vld [vmem:[%s13 + $0x140] sm:$0xff]
      %v7158 = vld [vmem:[%s13 + $0x148] sm:$0xff]
      %v7159 = vld [vmem:[%s13 + $0x150] sm:$0xff]
      %v7160 = vld [vmem:[%s13 + $0x158] sm:$0xff]
      %v7161 = vld [vmem:[%s13 + $0x160] sm:$0xff]
      %v7162 = vld [vmem:[%s13 + $0x168] sm:$0xff]
      %v7163 = vld [vmem:[%s13 + $0x170] sm:$0xff]
      %v7164 = vld [vmem:[%s13 + $0x178] sm:$0xff]
      %v7165 = vld [vmem:[%s13 + $0x180] sm:$0xff]
      %v7166 = vld [vmem:[%s13 + $0x188] sm:$0xff]
      %v7167 = vld [vmem:[%s13 + $0x190] sm:$0xff]
      %v7168 = vld [vmem:[%s13 + $0x198] sm:$0xff]
      %v7169 = vld [vmem:[%s13 + $0x1a0] sm:$0xff]
      %v7170 = vld [vmem:[%s13 + $0x1a8] sm:$0xff]
      %v7171 = vld [vmem:[%s13 + $0x1b0] sm:$0xff]
      %v7172 = vld [vmem:[%s13 + $0x1b8] sm:$0xff]
      %v7173 = vld [vmem:[%s13 + $0x1c0] sm:$0xff]
      %v7174 = vld [vmem:[%s13 + $0x1c8] sm:$0xff]
      %v7175 = vld [vmem:[%s13 + $0x1d0] sm:$0xff]
      %v7176 = vld [vmem:[%s13 + $0x1d8] sm:$0xff]
      %v7177 = vld [vmem:[%s13 + $0x1e0] sm:$0xff]
      %v7178 = vld [vmem:[%s13 + $0x1e8] sm:$0xff]
      %v7179 = vld [vmem:[%s13 + $0x1f0] sm:$0xff]
      %v7180 = vld [vmem:[%s13 + $0x1f8] sm:$0xff]
      %v7181 = vld [vmem:[%s13 + $0x200] sm:$0xff]
      %v7182 = vld [vmem:[%s13 + $0x208] sm:$0xff]
      %v7183 = vld [vmem:[%s13 + $0x210] sm:$0xff]
      %v7184 = vld [vmem:[%s13 + $0x218] sm:$0xff]
      %v7185 = vld [vmem:[%s13 + $0x220] sm:$0xff]
      %v7186 = vld [vmem:[%s13 + $0x228] sm:$0xff]
      %v7187 = vld [vmem:[%s13 + $0x230] sm:$0xff]
      %v7188 = vld [vmem:[%s13 + $0x238] sm:$0xff]
      %v7189 = vld [vmem:[%s13 + $0x240] sm:$0xff]
      %v7190 = vld [vmem:[%s13 + $0x248] sm:$0xff]
      %v7191 = vld [vmem:[%s13 + $0x250] sm:$0xff]
      %v7192 = vld [vmem:[%s13 + $0x258] sm:$0xff]
      %v7193 = vld [vmem:[%s13 + $0x260] sm:$0xff]
      %v7194 = vld [vmem:[%s13 + $0x268] sm:$0xff]
      %v7195 = vld [vmem:[%s13 + $0x270] sm:$0xff]
      %v7196 = vld [vmem:[%s13 + $0x278] sm:$0xff]
      %v7197 = vld [vmem:[%s13 + $0x280] sm:$0xff]
      %v7198 = vld [vmem:[%s13 + $0x288] sm:$0xff]
      %v7199 = vld [vmem:[%s13 + $0x290] sm:$0xff]
      %v7200 = vld [vmem:[%s13 + $0x298] sm:$0xff]
      %v7201 = vld [vmem:[%s13 + $0x2a0] sm:$0xff]
      %v7202 = vld [vmem:[%s13 + $0x2a8] sm:$0xff]
      %v7203 = vld [vmem:[%s13 + $0x2b0] sm:$0xff]
      %v7204 = vld [vmem:[%s13 + $0x2b8] sm:$0xff]
      %v7205 = vld [vmem:[%s13 + $0x2c0] sm:$0xff]
      %v7206 = vld [vmem:[%s13 + $0x2c8] sm:$0xff]
      %v7207 = vld [vmem:[%s13 + $0x2d0] sm:$0xff]
      %v7208 = vld [vmem:[%s13 + $0x2d8] sm:$0xff]
      %v7209 = vld [vmem:[%s13 + $0x2e0] sm:$0xff]
      %v7210 = vld [vmem:[%s13 + $0x2e8] sm:$0xff]
      %v7211 = vld [vmem:[%s13 + $0x2f0] sm:$0xff]
      %v7212 = vld [vmem:[%s13 + $0x2f8] sm:$0xff]
      %v7213 = vld [vmem:[%s13 + $0x300] sm:$0xff]
      %v7214 = vld [vmem:[%s13 + $0x308] sm:$0xff]
      %v7215 = vld [vmem:[%s13 + $0x310] sm:$0xff]
      %v7216 = vld [vmem:[%s13 + $0x318] sm:$0xff]
      %v7217 = vld [vmem:[%s13 + $0x320] sm:$0xff]
      %v7218 = vld [vmem:[%s13 + $0x328] sm:$0xff]
      %v7219 = vld [vmem:[%s13 + $0x330] sm:$0xff]
      %v7220 = vld [vmem:[%s13 + $0x338] sm:$0xff]
      %v7221 = vld [vmem:[%s13 + $0x340] sm:$0xff]
      %v7222 = vld [vmem:[%s13 + $0x348] sm:$0xff]
      %v7223 = vld [vmem:[%s13 + $0x350] sm:$0xff]
      %v7224 = vld [vmem:[%s13 + $0x358] sm:$0xff]
      %v7225 = vld [vmem:[%s13 + $0x360] sm:$0xff]
      %v7226 = vld [vmem:[%s13 + $0x368] sm:$0xff]
      %v7227 = vld [vmem:[%s13 + $0x370] sm:$0xff]
      %v7228 = vld [vmem:[%s13 + $0x378] sm:$0xff]
      %v7229 = vld [vmem:[%s13 + $0x380] sm:$0xff]
      %v7230 = vld [vmem:[%s13 + $0x388] sm:$0xff]
      %v7231 = vld [vmem:[%s13 + $0x390] sm:$0xff]
      %v7232 = vld [vmem:[%s13 + $0x398] sm:$0xff]
      %v7233 = vld [vmem:[%s13 + $0x3a0] sm:$0xff]
      %v7234 = vld [vmem:[%s13 + $0x3a8] sm:$0xff]
      %v7235 = vld [vmem:[%s13 + $0x3b0] sm:$0xff]
      %v7236 = vld [vmem:[%s13 + $0x3b8] sm:$0xff]
      %v7237 = vld [vmem:[%s13 + $0x3c0] sm:$0xff]
      %v7238 = vld [vmem:[%s13 + $0x3c8] sm:$0xff]
      %v7239 = vld [vmem:[%s13 + $0x3d0] sm:$0xff]
      %v7240 = vld [vmem:[%s13 + $0x3d8] sm:$0xff]
      %v7241 = vld [vmem:[%s13 + $0x3e0] sm:$0xff]
      %v7242 = vld [vmem:[%s13 + $0x3e8] sm:$0xff]
      %v7243 = vld [vmem:[%s13 + $0x3f0] sm:$0xff]
      %v7244 = vld [vmem:[%s13 + $0x3f8] sm:$0xff]
      %v7245 = vld [vmem:[%s13 + $0x400] sm:$0xff]
      %v7246 = vld [vmem:[%s13 + $0x408] sm:$0xff]
      %v7247 = vld [vmem:[%s13 + $0x410] sm:$0xff]
      %v7248 = vld [vmem:[%s13 + $0x418] sm:$0xff]
      %v7249 = vld [vmem:[%s13 + $0x420] sm:$0xff]
      %v7250 = vld [vmem:[%s13 + $0x428] sm:$0xff]
      %v7251 = vld [vmem:[%s13 + $0x430] sm:$0xff]
      %v7252 = vld [vmem:[%s13 + $0x438] sm:$0xff]
      %v7253 = vld [vmem:[%s13 + $0x440] sm:$0xff]
      %v7254 = vld [vmem:[%s13 + $0x448] sm:$0xff]
      %v7255 = vld [vmem:[%s13 + $0x450] sm:$0xff]
      %v7256 = vld [vmem:[%s13 + $0x458] sm:$0xff]
      %v7257 = vld [vmem:[%s13 + $0x460] sm:$0xff]
      %v7258 = vld [vmem:[%s13 + $0x468] sm:$0xff]
      %v7259 = vld [vmem:[%s13 + $0x470] sm:$0xff]
      %v7260 = vld [vmem:[%s13 + $0x478] sm:$0xff]
      %v7261 = vld [vmem:[%s13 + $0x480] sm:$0xff]
      %v7262 = vld [vmem:[%s13 + $0x488] sm:$0xff]
      %v7263 = vld [vmem:[%s13 + $0x490] sm:$0xff]
      %v7264 = vld [vmem:[%s13 + $0x498] sm:$0xff]
      %v7265 = vld [vmem:[%s13 + $0x4a0] sm:$0xff]
      %v7266 = vld [vmem:[%s13 + $0x4a8] sm:$0xff]
      %v7267 = vld [vmem:[%s13 + $0x4b0] sm:$0xff]
      %v7268 = vld [vmem:[%s13 + $0x4b8] sm:$0xff]
      %v7269 = vld [vmem:[%s13 + $0x4c0] sm:$0xff]
      %v7270 = vld [vmem:[%s13 + $0x4c8] sm:$0xff]
      %v7271 = vld [vmem:[%s13 + $0x4d0] sm:$0xff]
      %v7272 = vld [vmem:[%s13 + $0x4d8] sm:$0xff]
      %v7273 = vld [vmem:[%s13 + $0x4e0] sm:$0xff]
      %v7274 = vld [vmem:[%s13 + $0x4e8] sm:$0xff]
      %v7275 = vld [vmem:[%s13 + $0x4f0] sm:$0xff]
      %v7276 = vld [vmem:[%s13 + $0x4f8] sm:$0xff]
      %v7277 = vld [vmem:[%s13 + $0x500] sm:$0xff]
      %v7278 = vld [vmem:[%s13 + $0x508] sm:$0xff]
      %v7279 = vld [vmem:[%s13 + $0x510] sm:$0xff]
      %v7280 = vld [vmem:[%s13 + $0x518] sm:$0xff]
      %v7281 = vld [vmem:[%s13 + $0x520] sm:$0xff]
      %v7282 = vld [vmem:[%s13 + $0x528] sm:$0xff]
      %v7283 = vld [vmem:[%s13 + $0x530] sm:$0xff]
      %v7284 = vld [vmem:[%s13 + $0x538] sm:$0xff]
      %v7285 = vld [vmem:[%s13 + $0x540] sm:$0xff]
      %v7286 = vld [vmem:[%s13 + $0x548] sm:$0xff]
      %v7287 = vld [vmem:[%s13 + $0x550] sm:$0xff]
      %v7288 = vld [vmem:[%s13 + $0x558] sm:$0xff]
      %v7289 = vld [vmem:[%s13 + $0x560] sm:$0xff]
      %v7290 = vld [vmem:[%s13 + $0x568] sm:$0xff]
      %v7291 = vld [vmem:[%s13 + $0x570] sm:$0xff]
      %v7292 = vld [vmem:[%s13 + $0x578] sm:$0xff]
      %v7293 = vld [vmem:[%s13 + $0x580] sm:$0xff]
      %v7294 = vld [vmem:[%s13 + $0x588] sm:$0xff]
      %v7295 = vld [vmem:[%s13 + $0x590] sm:$0xff]
      %v7296 = vld [vmem:[%s13 + $0x598] sm:$0xff]
      %v7297 = vld [vmem:[%s13 + $0x5a0] sm:$0xff]
      %v7298 = vld [vmem:[%s13 + $0x5a8] sm:$0xff]
      %v7299 = vld [vmem:[%s13 + $0x5b0] sm:$0xff]
      %v7300 = vld [vmem:[%s13 + $0x5b8] sm:$0xff]
      %v7301 = vld [vmem:[%s13 + $0x5c0] sm:$0xff]
      %v7302 = vld [vmem:[%s13 + $0x5c8] sm:$0xff]
      %v7303 = vld [vmem:[%s13 + $0x5d0] sm:$0xff]
      %v7304 = vld [vmem:[%s13 + $0x5d8] sm:$0xff]
      %v7305 = vld [vmem:[%s13 + $0x5e0] sm:$0xff]
      %v7306 = vld [vmem:[%s13 + $0x5e8] sm:$0xff]
      %v7307 = vld [vmem:[%s13 + $0x5f0] sm:$0xff]
      %v7308 = vld [vmem:[%s13 + $0x5f8] sm:$0xff]
      %v7309 = vld [vmem:[%s14] sm:$0xff]
      %v7310 = vld [vmem:[%s14 + $0x8] sm:$0xff]
      %v7311 = vld [vmem:[%s14 + $0x10] sm:$0xff]
      %v7312 = vld [vmem:[%s14 + $0x18] sm:$0xff]
      %v7313 = vld [vmem:[%s14 + $0x20] sm:$0xff]
      %v7314 = vld [vmem:[%s14 + $0x28] sm:$0xff]
      %v7315 = vld [vmem:[%s14 + $0x30] sm:$0xff]
      %v7316 = vld [vmem:[%s14 + $0x38] sm:$0xff]
      %v7317 = vld [vmem:[%s14 + $0x40] sm:$0xff]
      %v7318 = vld [vmem:[%s14 + $0x48] sm:$0xff]
      %v7319 = vld [vmem:[%s14 + $0x50] sm:$0xff]
      %v7320 = vld [vmem:[%s14 + $0x58] sm:$0xff]
      %v7321 = vld [vmem:[%s14 + $0x60] sm:$0xff]
      %v7322 = vld [vmem:[%s14 + $0x68] sm:$0xff]
      %v7323 = vld [vmem:[%s14 + $0x70] sm:$0xff]
      %v7324 = vld [vmem:[%s14 + $0x78] sm:$0xff]
      %v7325 = vld [vmem:[%s14 + $0x80] sm:$0xff]
      %v7326 = vld [vmem:[%s14 + $0x88] sm:$0xff]
      %v7327 = vld [vmem:[%s14 + $0x90] sm:$0xff]
      %v7328 = vld [vmem:[%s14 + $0x98] sm:$0xff]
      %v7329 = vld [vmem:[%s14 + $0xa0] sm:$0xff]
      %v7330 = vld [vmem:[%s14 + $0xa8] sm:$0xff]
      %v7331 = vld [vmem:[%s14 + $0xb0] sm:$0xff]
      %v7332 = vld [vmem:[%s14 + $0xb8] sm:$0xff]
      %v7333 = vld [vmem:[%s14 + $0xc0] sm:$0xff]
      %v7334 = vld [vmem:[%s14 + $0xc8] sm:$0xff]
      %v7335 = vld [vmem:[%s14 + $0xd0] sm:$0xff]
      %v7336 = vld [vmem:[%s14 + $0xd8] sm:$0xff]
      %v7337 = vld [vmem:[%s14 + $0xe0] sm:$0xff]
      %v7338 = vld [vmem:[%s14 + $0xe8] sm:$0xff]
      %v7339 = vld [vmem:[%s14 + $0xf0] sm:$0xff]
      %v7340 = vld [vmem:[%s14 + $0xf8] sm:$0xff]
      %v7341 = vld [vmem:[%s14 + $0x100] sm:$0xff]
      %v7342 = vld [vmem:[%s14 + $0x108] sm:$0xff]
      %v7343 = vld [vmem:[%s14 + $0x110] sm:$0xff]
      %v7344 = vld [vmem:[%s14 + $0x118] sm:$0xff]
      %v7345 = vld [vmem:[%s14 + $0x120] sm:$0xff]
      %v7346 = vld [vmem:[%s14 + $0x128] sm:$0xff]
      %v7347 = vld [vmem:[%s14 + $0x130] sm:$0xff]
      %v7348 = vld [vmem:[%s14 + $0x138] sm:$0xff]
      %v7349 = vld [vmem:[%s14 + $0x140] sm:$0xff]
      %v7350 = vld [vmem:[%s14 + $0x148] sm:$0xff]
      %v7351 = vld [vmem:[%s14 + $0x150] sm:$0xff]
      %v7352 = vld [vmem:[%s14 + $0x158] sm:$0xff]
      %v7353 = vld [vmem:[%s14 + $0x160] sm:$0xff]
      %v7354 = vld [vmem:[%s14 + $0x168] sm:$0xff]
      %v7355 = vld [vmem:[%s14 + $0x170] sm:$0xff]
      %v7356 = vld [vmem:[%s14 + $0x178] sm:$0xff]
      %v7357 = vld [vmem:[%s14 + $0x180] sm:$0xff]
      %v7358 = vld [vmem:[%s14 + $0x188] sm:$0xff]
      %v7359 = vld [vmem:[%s14 + $0x190] sm:$0xff]
      %v7360 = vld [vmem:[%s14 + $0x198] sm:$0xff]
      %v7361 = vld [vmem:[%s14 + $0x1a0] sm:$0xff]
      %v7362 = vld [vmem:[%s14 + $0x1a8] sm:$0xff]
      %v7363 = vld [vmem:[%s14 + $0x1b0] sm:$0xff]
      %v7364 = vld [vmem:[%s14 + $0x1b8] sm:$0xff]
      %v7365 = vld [vmem:[%s14 + $0x1c0] sm:$0xff]
      %v7366 = vld [vmem:[%s14 + $0x1c8] sm:$0xff]
      %v7367 = vld [vmem:[%s14 + $0x1d0] sm:$0xff]
      %v7368 = vld [vmem:[%s14 + $0x1d8] sm:$0xff]
      %v7369 = vld [vmem:[%s14 + $0x1e0] sm:$0xff]
      %v7370 = vld [vmem:[%s14 + $0x1e8] sm:$0xff]
      %v7371 = vld [vmem:[%s14 + $0x1f0] sm:$0xff]
      %v7372 = vld [vmem:[%s14 + $0x1f8] sm:$0xff]
      %7374 = vset.pattern.permute.xlu0 0
      %7375 = vperm.xlu0 %7374, %v7309
      %v7376 = vpop.permute.xlu0 %7375
      %7379 = vset.pattern.permute.xlu0 0
      %7380 = vperm.xlu0 %7379, %v7310
      %v7381 = vpop.permute.xlu0 %7380
      %7384 = vset.pattern.permute.xlu0 0
      %7385 = vperm.xlu0 %7384, %v7311
      %v7386 = vpop.permute.xlu0 %7385
      %7389 = vset.pattern.permute.xlu0 0
      %7390 = vperm.xlu0 %7389, %v7312
      %v7391 = vpop.permute.xlu0 %7390
      %7394 = vset.pattern.permute.xlu0 0
      %7395 = vperm.xlu0 %7394, %v7313
      %v7396 = vpop.permute.xlu0 %7395
      %7399 = vset.pattern.permute.xlu0 0
      %7400 = vperm.xlu0 %7399, %v7314
      %v7401 = vpop.permute.xlu0 %7400
      %7404 = vset.pattern.permute.xlu0 0
      %7405 = vperm.xlu0 %7404, %v7315
      %v7406 = vpop.permute.xlu0 %7405
      %7409 = vset.pattern.permute.xlu0 0
      %7410 = vperm.xlu0 %7409, %v7316
      %v7411 = vpop.permute.xlu0 %7410
      %7414 = vset.pattern.permute.xlu0 0
      %7415 = vperm.xlu0 %7414, %v7317
      %v7416 = vpop.permute.xlu0 %7415
      %7419 = vset.pattern.permute.xlu0 0
      %7420 = vperm.xlu0 %7419, %v7318
      %v7421 = vpop.permute.xlu0 %7420
      %7424 = vset.pattern.permute.xlu0 0
      %7425 = vperm.xlu0 %7424, %v7319
      %v7426 = vpop.permute.xlu0 %7425
      %7429 = vset.pattern.permute.xlu0 0
      %7430 = vperm.xlu0 %7429, %v7320
      %v7431 = vpop.permute.xlu0 %7430
      %7434 = vset.pattern.permute.xlu0 0
      %7435 = vperm.xlu0 %7434, %v7321
      %v7436 = vpop.permute.xlu0 %7435
      %7439 = vset.pattern.permute.xlu0 0
      %7440 = vperm.xlu0 %7439, %v7322
      %v7441 = vpop.permute.xlu0 %7440
      %7444 = vset.pattern.permute.xlu0 0
      %7445 = vperm.xlu0 %7444, %v7323
      %v7446 = vpop.permute.xlu0 %7445
      %7449 = vset.pattern.permute.xlu0 0
      %7450 = vperm.xlu0 %7449, %v7324
      %v7451 = vpop.permute.xlu0 %7450
      %7454 = vset.pattern.permute.xlu0 0
      %7455 = vperm.xlu0 %7454, %v7325
      %v7456 = vpop.permute.xlu0 %7455
      %7459 = vset.pattern.permute.xlu0 0
      %7460 = vperm.xlu0 %7459, %v7326
      %v7461 = vpop.permute.xlu0 %7460
      %7464 = vset.pattern.permute.xlu0 0
      %7465 = vperm.xlu0 %7464, %v7327
      %v7466 = vpop.permute.xlu0 %7465
      %7469 = vset.pattern.permute.xlu0 0
      %7470 = vperm.xlu0 %7469, %v7328
      %v7471 = vpop.permute.xlu0 %7470
      %7474 = vset.pattern.permute.xlu0 0
      %7475 = vperm.xlu0 %7474, %v7329
      %v7476 = vpop.permute.xlu0 %7475
      %7479 = vset.pattern.permute.xlu0 0
      %7480 = vperm.xlu0 %7479, %v7330
      %v7481 = vpop.permute.xlu0 %7480
      %7484 = vset.pattern.permute.xlu0 0
      %7485 = vperm.xlu0 %7484, %v7331
      %v7486 = vpop.permute.xlu0 %7485
      %7489 = vset.pattern.permute.xlu0 0
      %7490 = vperm.xlu0 %7489, %v7332
      %v7491 = vpop.permute.xlu0 %7490
      %7494 = vset.pattern.permute.xlu0 0
      %7495 = vperm.xlu0 %7494, %v7333
      %v7496 = vpop.permute.xlu0 %7495
      %7499 = vset.pattern.permute.xlu0 0
      %7500 = vperm.xlu0 %7499, %v7334
      %v7501 = vpop.permute.xlu0 %7500
      %7504 = vset.pattern.permute.xlu0 0
      %7505 = vperm.xlu0 %7504, %v7335
      %v7506 = vpop.permute.xlu0 %7505
      %7509 = vset.pattern.permute.xlu0 0
      %7510 = vperm.xlu0 %7509, %v7336
      %v7511 = vpop.permute.xlu0 %7510
      %7514 = vset.pattern.permute.xlu0 0
      %7515 = vperm.xlu0 %7514, %v7337
      %v7516 = vpop.permute.xlu0 %7515
      %7519 = vset.pattern.permute.xlu0 0
      %7520 = vperm.xlu0 %7519, %v7338
      %v7521 = vpop.permute.xlu0 %7520
      %7524 = vset.pattern.permute.xlu0 0
      %7525 = vperm.xlu0 %7524, %v7339
      %v7526 = vpop.permute.xlu0 %7525
      %7529 = vset.pattern.permute.xlu0 0
      %7530 = vperm.xlu0 %7529, %v7340
      %v7531 = vpop.permute.xlu0 %7530
      %7534 = vset.pattern.permute.xlu0 0
      %7535 = vperm.xlu0 %7534, %v7341
      %v7536 = vpop.permute.xlu0 %7535
      %7539 = vset.pattern.permute.xlu0 0
      %7540 = vperm.xlu0 %7539, %v7342
      %v7541 = vpop.permute.xlu0 %7540
      %7544 = vset.pattern.permute.xlu0 0
      %7545 = vperm.xlu0 %7544, %v7343
      %v7546 = vpop.permute.xlu0 %7545
      %7549 = vset.pattern.permute.xlu0 0
      %7550 = vperm.xlu0 %7549, %v7344
      %v7551 = vpop.permute.xlu0 %7550
      %7554 = vset.pattern.permute.xlu0 0
      %7555 = vperm.xlu0 %7554, %v7345
      %v7556 = vpop.permute.xlu0 %7555
      %7559 = vset.pattern.permute.xlu0 0
      %7560 = vperm.xlu0 %7559, %v7346
      %v7561 = vpop.permute.xlu0 %7560
      %7564 = vset.pattern.permute.xlu0 0
      %7565 = vperm.xlu0 %7564, %v7347
      %v7566 = vpop.permute.xlu0 %7565
      %7569 = vset.pattern.permute.xlu0 0
      %7570 = vperm.xlu0 %7569, %v7348
      %v7571 = vpop.permute.xlu0 %7570
      %7574 = vset.pattern.permute.xlu0 0
      %7575 = vperm.xlu0 %7574, %v7349
      %v7576 = vpop.permute.xlu0 %7575
      %7579 = vset.pattern.permute.xlu0 0
      %7580 = vperm.xlu0 %7579, %v7350
      %v7581 = vpop.permute.xlu0 %7580
      %7584 = vset.pattern.permute.xlu0 0
      %7585 = vperm.xlu0 %7584, %v7351
      %v7586 = vpop.permute.xlu0 %7585
      %7589 = vset.pattern.permute.xlu0 0
      %7590 = vperm.xlu0 %7589, %v7352
      %v7591 = vpop.permute.xlu0 %7590
      %7594 = vset.pattern.permute.xlu0 0
      %7595 = vperm.xlu0 %7594, %v7353
      %v7596 = vpop.permute.xlu0 %7595
      %7599 = vset.pattern.permute.xlu0 0
      %7600 = vperm.xlu0 %7599, %v7354
      %v7601 = vpop.permute.xlu0 %7600
      %7604 = vset.pattern.permute.xlu0 0
      %7605 = vperm.xlu0 %7604, %v7355
      %v7606 = vpop.permute.xlu0 %7605
      %7609 = vset.pattern.permute.xlu0 0
      %7610 = vperm.xlu0 %7609, %v7356
      %v7611 = vpop.permute.xlu0 %7610
      %7614 = vset.pattern.permute.xlu0 0
      %7615 = vperm.xlu0 %7614, %v7357
      %v7616 = vpop.permute.xlu0 %7615
      %7619 = vset.pattern.permute.xlu0 0
      %7620 = vperm.xlu0 %7619, %v7358
      %v7621 = vpop.permute.xlu0 %7620
      %7624 = vset.pattern.permute.xlu0 0
      %7625 = vperm.xlu0 %7624, %v7359
      %v7626 = vpop.permute.xlu0 %7625
      %7629 = vset.pattern.permute.xlu0 0
      %7630 = vperm.xlu0 %7629, %v7360
      %v7631 = vpop.permute.xlu0 %7630
      %7634 = vset.pattern.permute.xlu0 0
      %7635 = vperm.xlu0 %7634, %v7361
      %v7636 = vpop.permute.xlu0 %7635
      %7639 = vset.pattern.permute.xlu0 0
      %7640 = vperm.xlu0 %7639, %v7362
      %v7641 = vpop.permute.xlu0 %7640
      %7644 = vset.pattern.permute.xlu0 0
      %7645 = vperm.xlu0 %7644, %v7363
      %v7646 = vpop.permute.xlu0 %7645
      %7649 = vset.pattern.permute.xlu0 0
      %7650 = vperm.xlu0 %7649, %v7364
      %v7651 = vpop.permute.xlu0 %7650
      %7654 = vset.pattern.permute.xlu0 0
      %7655 = vperm.xlu0 %7654, %v7365
      %v7656 = vpop.permute.xlu0 %7655
      %7659 = vset.pattern.permute.xlu0 0
      %7660 = vperm.xlu0 %7659, %v7366
      %v7661 = vpop.permute.xlu0 %7660
      %7664 = vset.pattern.permute.xlu0 0
      %7665 = vperm.xlu0 %7664, %v7367
      %v7666 = vpop.permute.xlu0 %7665
      %7669 = vset.pattern.permute.xlu0 0
      %7670 = vperm.xlu0 %7669, %v7368
      %v7671 = vpop.permute.xlu0 %7670
      %7674 = vset.pattern.permute.xlu0 0
      %7675 = vperm.xlu0 %7674, %v7369
      %v7676 = vpop.permute.xlu0 %7675
      %7679 = vset.pattern.permute.xlu0 0
      %7680 = vperm.xlu0 %7679, %v7370
      %v7681 = vpop.permute.xlu0 %7680
      %7684 = vset.pattern.permute.xlu0 0
      %7685 = vperm.xlu0 %7684, %v7371
      %v7686 = vpop.permute.xlu0 %7685
      %7689 = vset.pattern.permute.xlu0 0
      %7690 = vperm.xlu0 %7689, %v7372
      %v7691 = vpop.permute.xlu0 %7690
      %v7885 = vunpack.c.l.b16 %v7117
      %v7886 = vunpack.c.h.b16 %v7117
      %v7887 = vunpack.c.l.b16 %v7118
      %v7888 = vunpack.c.h.b16 %v7118
      %v7889 = vunpack.c.l.b16 %v7119
      %v7890 = vunpack.c.h.b16 %v7119
      %v7891 = vunpack.c.l.b16 %v7120
      %v7892 = vunpack.c.h.b16 %v7120
      %v7893 = vunpack.c.l.b16 %v7121
      %v7894 = vunpack.c.h.b16 %v7121
      %v7895 = vunpack.c.l.b16 %v7122
      %v7896 = vunpack.c.h.b16 %v7122
      %v7897 = vunpack.c.l.b16 %v7123
      %v7898 = vunpack.c.h.b16 %v7123
      %v7899 = vunpack.c.l.b16 %v7124
      %v7900 = vunpack.c.h.b16 %v7124
      %v7901 = vunpack.c.l.b16 %v7125
      %v7902 = vunpack.c.h.b16 %v7125
      %v7903 = vunpack.c.l.b16 %v7126
      %v7904 = vunpack.c.h.b16 %v7126
      %v7905 = vunpack.c.l.b16 %v7127
      %v7906 = vunpack.c.h.b16 %v7127
      %v7907 = vunpack.c.l.b16 %v7128
      %v7908 = vunpack.c.h.b16 %v7128
      %v7909 = vunpack.c.l.b16 %v7129
      %v7910 = vunpack.c.h.b16 %v7129
      %v7911 = vunpack.c.l.b16 %v7130
      %v7912 = vunpack.c.h.b16 %v7130
      %v7913 = vunpack.c.l.b16 %v7131
      %v7914 = vunpack.c.h.b16 %v7131
      %v7915 = vunpack.c.l.b16 %v7132
      %v7916 = vunpack.c.h.b16 %v7132
      %v7917 = vunpack.c.l.b16 %v7133
      %v7918 = vunpack.c.h.b16 %v7133
      %v7919 = vunpack.c.l.b16 %v7134
      %v7920 = vunpack.c.h.b16 %v7134
      %v7921 = vunpack.c.l.b16 %v7135
      %v7922 = vunpack.c.h.b16 %v7135
      %v7923 = vunpack.c.l.b16 %v7136
      %v7924 = vunpack.c.h.b16 %v7136
      %v7925 = vunpack.c.l.b16 %v7137
      %v7926 = vunpack.c.h.b16 %v7137
      %v7927 = vunpack.c.l.b16 %v7138
      %v7928 = vunpack.c.h.b16 %v7138
      %v7929 = vunpack.c.l.b16 %v7139
      %v7930 = vunpack.c.h.b16 %v7139
      %v7931 = vunpack.c.l.b16 %v7140
      %v7932 = vunpack.c.h.b16 %v7140
      %v7933 = vunpack.c.l.b16 %v7141
      %v7934 = vunpack.c.h.b16 %v7141
      %v7935 = vunpack.c.l.b16 %v7142
      %v7936 = vunpack.c.h.b16 %v7142
      %v7937 = vunpack.c.l.b16 %v7143
      %v7938 = vunpack.c.h.b16 %v7143
      %v7939 = vunpack.c.l.b16 %v7144
      %v7940 = vunpack.c.h.b16 %v7144
      %v7941 = vunpack.c.l.b16 %v7145
      %v7942 = vunpack.c.h.b16 %v7145
      %v7943 = vunpack.c.l.b16 %v7146
      %v7944 = vunpack.c.h.b16 %v7146
      %v7945 = vunpack.c.l.b16 %v7147
      %v7946 = vunpack.c.h.b16 %v7147
      %v7947 = vunpack.c.l.b16 %v7148
      %v7948 = vunpack.c.h.b16 %v7148
      %v7949 = vunpack.c.l.b16 %v7149
      %v7950 = vunpack.c.h.b16 %v7149
      %v7951 = vunpack.c.l.b16 %v7150
      %v7952 = vunpack.c.h.b16 %v7150
      %v7953 = vunpack.c.l.b16 %v7151
      %v7954 = vunpack.c.h.b16 %v7151
      %v7955 = vunpack.c.l.b16 %v7152
      %v7956 = vunpack.c.h.b16 %v7152
      %v7957 = vunpack.c.l.b16 %v7153
      %v7958 = vunpack.c.h.b16 %v7153
      %v7959 = vunpack.c.l.b16 %v7154
      %v7960 = vunpack.c.h.b16 %v7154
      %v7961 = vunpack.c.l.b16 %v7155
      %v7962 = vunpack.c.h.b16 %v7155
      %v7963 = vunpack.c.l.b16 %v7156
      %v7964 = vunpack.c.h.b16 %v7156
      %v7965 = vunpack.c.l.b16 %v7157
      %v7966 = vunpack.c.h.b16 %v7157
      %v7967 = vunpack.c.l.b16 %v7158
      %v7968 = vunpack.c.h.b16 %v7158
      %v7969 = vunpack.c.l.b16 %v7159
      %v7970 = vunpack.c.h.b16 %v7159
      %v7971 = vunpack.c.l.b16 %v7160
      %v7972 = vunpack.c.h.b16 %v7160
      %v7973 = vunpack.c.l.b16 %v7161
      %v7974 = vunpack.c.h.b16 %v7161
      %v7975 = vunpack.c.l.b16 %v7162
      %v7976 = vunpack.c.h.b16 %v7162
      %v7977 = vunpack.c.l.b16 %v7163
      %v7978 = vunpack.c.h.b16 %v7163
      %v7979 = vunpack.c.l.b16 %v7164
      %v7980 = vunpack.c.h.b16 %v7164
      %v7981 = vunpack.c.l.b16 %v7165
      %v7982 = vunpack.c.h.b16 %v7165
      %v7983 = vunpack.c.l.b16 %v7166
      %v7984 = vunpack.c.h.b16 %v7166
      %v7985 = vunpack.c.l.b16 %v7167
      %v7986 = vunpack.c.h.b16 %v7167
      %v7987 = vunpack.c.l.b16 %v7168
      %v7988 = vunpack.c.h.b16 %v7168
      %v7989 = vunpack.c.l.b16 %v7169
      %v7990 = vunpack.c.h.b16 %v7169
      %v7991 = vunpack.c.l.b16 %v7170
      %v7992 = vunpack.c.h.b16 %v7170
      %v7993 = vunpack.c.l.b16 %v7171
      %v7994 = vunpack.c.h.b16 %v7171
      %v7995 = vunpack.c.l.b16 %v7172
      %v7996 = vunpack.c.h.b16 %v7172
      %v7997 = vunpack.c.l.b16 %v7173
      %v7998 = vunpack.c.h.b16 %v7173
      %v7999 = vunpack.c.l.b16 %v7174
      %v8000 = vunpack.c.h.b16 %v7174
      %v8001 = vunpack.c.l.b16 %v7175
      %v8002 = vunpack.c.h.b16 %v7175
      %v8003 = vunpack.c.l.b16 %v7176
      %v8004 = vunpack.c.h.b16 %v7176
      %v8005 = vunpack.c.l.b16 %v7177
      %v8006 = vunpack.c.h.b16 %v7177
      %v8007 = vunpack.c.l.b16 %v7178
      %v8008 = vunpack.c.h.b16 %v7178
      %v8009 = vunpack.c.l.b16 %v7179
      %v8010 = vunpack.c.h.b16 %v7179
      %v8011 = vunpack.c.l.b16 %v7180
      %v8012 = vunpack.c.h.b16 %v7180
      %v8013 = vunpack.c.l.b16 %v7181
      %v8014 = vunpack.c.h.b16 %v7181
      %v8015 = vunpack.c.l.b16 %v7182
      %v8016 = vunpack.c.h.b16 %v7182
      %v8017 = vunpack.c.l.b16 %v7183
      %v8018 = vunpack.c.h.b16 %v7183
      %v8019 = vunpack.c.l.b16 %v7184
      %v8020 = vunpack.c.h.b16 %v7184
      %v8021 = vunpack.c.l.b16 %v7185
      %v8022 = vunpack.c.h.b16 %v7185
      %v8023 = vunpack.c.l.b16 %v7186
      %v8024 = vunpack.c.h.b16 %v7186
      %v8025 = vunpack.c.l.b16 %v7187
      %v8026 = vunpack.c.h.b16 %v7187
      %v8027 = vunpack.c.l.b16 %v7188
      %v8028 = vunpack.c.h.b16 %v7188
      %v8029 = vunpack.c.l.b16 %v7189
      %v8030 = vunpack.c.h.b16 %v7189
      %v8031 = vunpack.c.l.b16 %v7190
      %v8032 = vunpack.c.h.b16 %v7190
      %v8033 = vunpack.c.l.b16 %v7191
      %v8034 = vunpack.c.h.b16 %v7191
      %v8035 = vunpack.c.l.b16 %v7192
      %v8036 = vunpack.c.h.b16 %v7192
      %v8037 = vunpack.c.l.b16 %v7193
      %v8038 = vunpack.c.h.b16 %v7193
      %v8039 = vunpack.c.l.b16 %v7194
      %v8040 = vunpack.c.h.b16 %v7194
      %v8041 = vunpack.c.l.b16 %v7195
      %v8042 = vunpack.c.h.b16 %v7195
      %v8043 = vunpack.c.l.b16 %v7196
      %v8044 = vunpack.c.h.b16 %v7196
      %v8045 = vunpack.c.l.b16 %v7197
      %v8046 = vunpack.c.h.b16 %v7197
      %v8047 = vunpack.c.l.b16 %v7198
      %v8048 = vunpack.c.h.b16 %v7198
      %v8049 = vunpack.c.l.b16 %v7199
      %v8050 = vunpack.c.h.b16 %v7199
      %v8051 = vunpack.c.l.b16 %v7200
      %v8052 = vunpack.c.h.b16 %v7200
      %v8053 = vunpack.c.l.b16 %v7201
      %v8054 = vunpack.c.h.b16 %v7201
      %v8055 = vunpack.c.l.b16 %v7202
      %v8056 = vunpack.c.h.b16 %v7202
      %v8057 = vunpack.c.l.b16 %v7203
      %v8058 = vunpack.c.h.b16 %v7203
      %v8059 = vunpack.c.l.b16 %v7204
      %v8060 = vunpack.c.h.b16 %v7204
      %v8061 = vunpack.c.l.b16 %v7205
      %v8062 = vunpack.c.h.b16 %v7205
      %v8063 = vunpack.c.l.b16 %v7206
      %v8064 = vunpack.c.h.b16 %v7206
      %v8065 = vunpack.c.l.b16 %v7207
      %v8066 = vunpack.c.h.b16 %v7207
      %v8067 = vunpack.c.l.b16 %v7208
      %v8068 = vunpack.c.h.b16 %v7208
      %v8069 = vunpack.c.l.b16 %v7209
      %v8070 = vunpack.c.h.b16 %v7209
      %v8071 = vunpack.c.l.b16 %v7210
      %v8072 = vunpack.c.h.b16 %v7210
      %v8073 = vunpack.c.l.b16 %v7211
      %v8074 = vunpack.c.h.b16 %v7211
      %v8075 = vunpack.c.l.b16 %v7212
      %v8076 = vunpack.c.h.b16 %v7212
      %v8077 = vunpack.c.l.b16 %v7213
      %v8078 = vunpack.c.h.b16 %v7213
      %v8079 = vunpack.c.l.b16 %v7214
      %v8080 = vunpack.c.h.b16 %v7214
      %v8081 = vunpack.c.l.b16 %v7215
      %v8082 = vunpack.c.h.b16 %v7215
      %v8083 = vunpack.c.l.b16 %v7216
      %v8084 = vunpack.c.h.b16 %v7216
      %v8085 = vunpack.c.l.b16 %v7217
      %v8086 = vunpack.c.h.b16 %v7217
      %v8087 = vunpack.c.l.b16 %v7218
      %v8088 = vunpack.c.h.b16 %v7218
      %v8089 = vunpack.c.l.b16 %v7219
      %v8090 = vunpack.c.h.b16 %v7219
      %v8091 = vunpack.c.l.b16 %v7220
      %v8092 = vunpack.c.h.b16 %v7220
      %v8093 = vunpack.c.l.b16 %v7221
      %v8094 = vunpack.c.h.b16 %v7221
      %v8095 = vunpack.c.l.b16 %v7222
      %v8096 = vunpack.c.h.b16 %v7222
      %v8097 = vunpack.c.l.b16 %v7223
      %v8098 = vunpack.c.h.b16 %v7223
      %v8099 = vunpack.c.l.b16 %v7224
      %v8100 = vunpack.c.h.b16 %v7224
      %v8101 = vunpack.c.l.b16 %v7225
      %v8102 = vunpack.c.h.b16 %v7225
      %v8103 = vunpack.c.l.b16 %v7226
      %v8104 = vunpack.c.h.b16 %v7226
      %v8105 = vunpack.c.l.b16 %v7227
      %v8106 = vunpack.c.h.b16 %v7227
      %v8107 = vunpack.c.l.b16 %v7228
      %v8108 = vunpack.c.h.b16 %v7228
      %v8109 = vunpack.c.l.b16 %v7229
      %v8110 = vunpack.c.h.b16 %v7229
      %v8111 = vunpack.c.l.b16 %v7230
      %v8112 = vunpack.c.h.b16 %v7230
      %v8113 = vunpack.c.l.b16 %v7231
      %v8114 = vunpack.c.h.b16 %v7231
      %v8115 = vunpack.c.l.b16 %v7232
      %v8116 = vunpack.c.h.b16 %v7232
      %v8117 = vunpack.c.l.b16 %v7233
      %v8118 = vunpack.c.h.b16 %v7233
      %v8119 = vunpack.c.l.b16 %v7234
      %v8120 = vunpack.c.h.b16 %v7234
      %v8121 = vunpack.c.l.b16 %v7235
      %v8122 = vunpack.c.h.b16 %v7235
      %v8123 = vunpack.c.l.b16 %v7236
      %v8124 = vunpack.c.h.b16 %v7236
      %v8125 = vunpack.c.l.b16 %v7237
      %v8126 = vunpack.c.h.b16 %v7237
      %v8127 = vunpack.c.l.b16 %v7238
      %v8128 = vunpack.c.h.b16 %v7238
      %v8129 = vunpack.c.l.b16 %v7239
      %v8130 = vunpack.c.h.b16 %v7239
      %v8131 = vunpack.c.l.b16 %v7240
      %v8132 = vunpack.c.h.b16 %v7240
      %v8133 = vunpack.c.l.b16 %v7241
      %v8134 = vunpack.c.h.b16 %v7241
      %v8135 = vunpack.c.l.b16 %v7242
      %v8136 = vunpack.c.h.b16 %v7242
      %v8137 = vunpack.c.l.b16 %v7243
      %v8138 = vunpack.c.h.b16 %v7243
      %v8139 = vunpack.c.l.b16 %v7244
      %v8140 = vunpack.c.h.b16 %v7244
      %v8141 = vunpack.c.l.b16 %v7245
      %v8142 = vunpack.c.h.b16 %v7245
      %v8143 = vunpack.c.l.b16 %v7246
      %v8144 = vunpack.c.h.b16 %v7246
      %v8145 = vunpack.c.l.b16 %v7247
      %v8146 = vunpack.c.h.b16 %v7247
      %v8147 = vunpack.c.l.b16 %v7248
      %v8148 = vunpack.c.h.b16 %v7248
      %v8149 = vunpack.c.l.b16 %v7249
      %v8150 = vunpack.c.h.b16 %v7249
      %v8151 = vunpack.c.l.b16 %v7250
      %v8152 = vunpack.c.h.b16 %v7250
      %v8153 = vunpack.c.l.b16 %v7251
      %v8154 = vunpack.c.h.b16 %v7251
      %v8155 = vunpack.c.l.b16 %v7252
      %v8156 = vunpack.c.h.b16 %v7252
      %v8157 = vunpack.c.l.b16 %v7253
      %v8158 = vunpack.c.h.b16 %v7253
      %v8159 = vunpack.c.l.b16 %v7254
      %v8160 = vunpack.c.h.b16 %v7254
      %v8161 = vunpack.c.l.b16 %v7255
      %v8162 = vunpack.c.h.b16 %v7255
      %v8163 = vunpack.c.l.b16 %v7256
      %v8164 = vunpack.c.h.b16 %v7256
      %v8165 = vunpack.c.l.b16 %v7257
      %v8166 = vunpack.c.h.b16 %v7257
      %v8167 = vunpack.c.l.b16 %v7258
      %v8168 = vunpack.c.h.b16 %v7258
      %v8169 = vunpack.c.l.b16 %v7259
      %v8170 = vunpack.c.h.b16 %v7259
      %v8171 = vunpack.c.l.b16 %v7260
      %v8172 = vunpack.c.h.b16 %v7260
      %v8173 = vunpack.c.l.b16 %v7261
      %v8174 = vunpack.c.h.b16 %v7261
      %v8175 = vunpack.c.l.b16 %v7262
      %v8176 = vunpack.c.h.b16 %v7262
      %v8177 = vunpack.c.l.b16 %v7263
      %v8178 = vunpack.c.h.b16 %v7263
      %v8179 = vunpack.c.l.b16 %v7264
      %v8180 = vunpack.c.h.b16 %v7264
      %v8181 = vunpack.c.l.b16 %v7265
      %v8182 = vunpack.c.h.b16 %v7265
      %v8183 = vunpack.c.l.b16 %v7266
      %v8184 = vunpack.c.h.b16 %v7266
      %v8185 = vunpack.c.l.b16 %v7267
      %v8186 = vunpack.c.h.b16 %v7267
      %v8187 = vunpack.c.l.b16 %v7268
      %v8188 = vunpack.c.h.b16 %v7268
      %v8189 = vunpack.c.l.b16 %v7269
      %v8190 = vunpack.c.h.b16 %v7269
      %v8191 = vunpack.c.l.b16 %v7270
      %v8192 = vunpack.c.h.b16 %v7270
      %v8193 = vunpack.c.l.b16 %v7271
      %v8194 = vunpack.c.h.b16 %v7271
      %v8195 = vunpack.c.l.b16 %v7272
      %v8196 = vunpack.c.h.b16 %v7272
      %v8197 = vunpack.c.l.b16 %v7273
      %v8198 = vunpack.c.h.b16 %v7273
      %v8199 = vunpack.c.l.b16 %v7274
      %v8200 = vunpack.c.h.b16 %v7274
      %v8201 = vunpack.c.l.b16 %v7275
      %v8202 = vunpack.c.h.b16 %v7275
      %v8203 = vunpack.c.l.b16 %v7276
      %v8204 = vunpack.c.h.b16 %v7276
      %v8205 = vunpack.c.l.b16 %v7277
      %v8206 = vunpack.c.h.b16 %v7277
      %v8207 = vunpack.c.l.b16 %v7278
      %v8208 = vunpack.c.h.b16 %v7278
      %v8209 = vunpack.c.l.b16 %v7279
      %v8210 = vunpack.c.h.b16 %v7279
      %v8211 = vunpack.c.l.b16 %v7280
      %v8212 = vunpack.c.h.b16 %v7280
      %v8213 = vunpack.c.l.b16 %v7281
      %v8214 = vunpack.c.h.b16 %v7281
      %v8215 = vunpack.c.l.b16 %v7282
      %v8216 = vunpack.c.h.b16 %v7282
      %v8217 = vunpack.c.l.b16 %v7283
      %v8218 = vunpack.c.h.b16 %v7283
      %v8219 = vunpack.c.l.b16 %v7284
      %v8220 = vunpack.c.h.b16 %v7284
      %v8221 = vunpack.c.l.b16 %v7285
      %v8222 = vunpack.c.h.b16 %v7285
      %v8223 = vunpack.c.l.b16 %v7286
      %v8224 = vunpack.c.h.b16 %v7286
      %v8225 = vunpack.c.l.b16 %v7287
      %v8226 = vunpack.c.h.b16 %v7287
      %v8227 = vunpack.c.l.b16 %v7288
      %v8228 = vunpack.c.h.b16 %v7288
      %v8229 = vunpack.c.l.b16 %v7289
      %v8230 = vunpack.c.h.b16 %v7289
      %v8231 = vunpack.c.l.b16 %v7290
      %v8232 = vunpack.c.h.b16 %v7290
      %v8233 = vunpack.c.l.b16 %v7291
      %v8234 = vunpack.c.h.b16 %v7291
      %v8235 = vunpack.c.l.b16 %v7292
      %v8236 = vunpack.c.h.b16 %v7292
      %v8237 = vunpack.c.l.b16 %v7293
      %v8238 = vunpack.c.h.b16 %v7293
      %v8239 = vunpack.c.l.b16 %v7294
      %v8240 = vunpack.c.h.b16 %v7294
      %v8241 = vunpack.c.l.b16 %v7295
      %v8242 = vunpack.c.h.b16 %v7295
      %v8243 = vunpack.c.l.b16 %v7296
      %v8244 = vunpack.c.h.b16 %v7296
      %v8245 = vunpack.c.l.b16 %v7297
      %v8246 = vunpack.c.h.b16 %v7297
      %v8247 = vunpack.c.l.b16 %v7298
      %v8248 = vunpack.c.h.b16 %v7298
      %v8249 = vunpack.c.l.b16 %v7299
      %v8250 = vunpack.c.h.b16 %v7299
      %v8251 = vunpack.c.l.b16 %v7300
      %v8252 = vunpack.c.h.b16 %v7300
      %v8253 = vunpack.c.l.b16 %v7301
      %v8254 = vunpack.c.h.b16 %v7301
      %v8255 = vunpack.c.l.b16 %v7302
      %v8256 = vunpack.c.h.b16 %v7302
      %v8257 = vunpack.c.l.b16 %v7303
      %v8258 = vunpack.c.h.b16 %v7303
      %v8259 = vunpack.c.l.b16 %v7304
      %v8260 = vunpack.c.h.b16 %v7304
      %v8261 = vunpack.c.l.b16 %v7305
      %v8262 = vunpack.c.h.b16 %v7305
      %v8263 = vunpack.c.l.b16 %v7306
      %v8264 = vunpack.c.h.b16 %v7306
      %v8265 = vunpack.c.l.b16 %v7307
      %v8266 = vunpack.c.h.b16 %v7307
      %v8267 = vunpack.c.l.b16 %v7308
      %v8268 = vunpack.c.h.b16 %v7308
      %v8269 = vpack.c.b16 %v7891, %v7885
      %v8270 = vpack.c.b16 %v7892, %v7886
      %v8271 = vpack.c.b16 %v7893, %v7887
      %v8272 = vpack.c.b16 %v7894, %v7888
      %v8273 = vpack.c.b16 %v7895, %v7889
      %v8274 = vpack.c.b16 %v7896, %v7890
      %v8275 = vpack.c.b16 %v7903, %v7897
      %v8276 = vpack.c.b16 %v7904, %v7898
      %v8277 = vpack.c.b16 %v7905, %v7899
      %v8278 = vpack.c.b16 %v7906, %v7900
      %v8279 = vpack.c.b16 %v7907, %v7901
      %v8280 = vpack.c.b16 %v7908, %v7902
      %v8281 = vpack.c.b16 %v7915, %v7909
      %v8282 = vpack.c.b16 %v7916, %v7910
      %v8283 = vpack.c.b16 %v7917, %v7911
      %v8284 = vpack.c.b16 %v7918, %v7912
      %v8285 = vpack.c.b16 %v7919, %v7913
      %v8286 = vpack.c.b16 %v7920, %v7914
      %v8287 = vpack.c.b16 %v7927, %v7921
      %v8288 = vpack.c.b16 %v7928, %v7922
      %v8289 = vpack.c.b16 %v7929, %v7923
      %v8290 = vpack.c.b16 %v7930, %v7924
      %v8291 = vpack.c.b16 %v7931, %v7925
      %v8292 = vpack.c.b16 %v7932, %v7926
      %v8293 = vpack.c.b16 %v7939, %v7933
      %v8294 = vpack.c.b16 %v7940, %v7934
      %v8295 = vpack.c.b16 %v7941, %v7935
      %v8296 = vpack.c.b16 %v7942, %v7936
      %v8297 = vpack.c.b16 %v7943, %v7937
      %v8298 = vpack.c.b16 %v7944, %v7938
      %v8299 = vpack.c.b16 %v7951, %v7945
      %v8300 = vpack.c.b16 %v7952, %v7946
      %v8301 = vpack.c.b16 %v7953, %v7947
      %v8302 = vpack.c.b16 %v7954, %v7948
      %v8303 = vpack.c.b16 %v7955, %v7949
      %v8304 = vpack.c.b16 %v7956, %v7950
      %v8305 = vpack.c.b16 %v7963, %v7957
      %v8306 = vpack.c.b16 %v7964, %v7958
      %v8307 = vpack.c.b16 %v7965, %v7959
      %v8308 = vpack.c.b16 %v7966, %v7960
      %v8309 = vpack.c.b16 %v7967, %v7961
      %v8310 = vpack.c.b16 %v7968, %v7962
      %v8311 = vpack.c.b16 %v7975, %v7969
      %v8312 = vpack.c.b16 %v7976, %v7970
      %v8313 = vpack.c.b16 %v7977, %v7971
      %v8314 = vpack.c.b16 %v7978, %v7972
      %v8315 = vpack.c.b16 %v7979, %v7973
      %v8316 = vpack.c.b16 %v7980, %v7974
      %v8317 = vpack.c.b16 %v7987, %v7981
      %v8318 = vpack.c.b16 %v7988, %v7982
      %v8319 = vpack.c.b16 %v7989, %v7983
      %v8320 = vpack.c.b16 %v7990, %v7984
      %v8321 = vpack.c.b16 %v7991, %v7985
      %v8322 = vpack.c.b16 %v7992, %v7986
      %v8323 = vpack.c.b16 %v7999, %v7993
      %v8324 = vpack.c.b16 %v8000, %v7994
      %v8325 = vpack.c.b16 %v8001, %v7995
      %v8326 = vpack.c.b16 %v8002, %v7996
      %v8327 = vpack.c.b16 %v8003, %v7997
      %v8328 = vpack.c.b16 %v8004, %v7998
      %v8329 = vpack.c.b16 %v8011, %v8005
      %v8330 = vpack.c.b16 %v8012, %v8006
      %v8331 = vpack.c.b16 %v8013, %v8007
      %v8332 = vpack.c.b16 %v8014, %v8008
      %v8333 = vpack.c.b16 %v8015, %v8009
      %v8334 = vpack.c.b16 %v8016, %v8010
      %v8335 = vpack.c.b16 %v8023, %v8017
      %v8336 = vpack.c.b16 %v8024, %v8018
      %v8337 = vpack.c.b16 %v8025, %v8019
      %v8338 = vpack.c.b16 %v8026, %v8020
      %v8339 = vpack.c.b16 %v8027, %v8021
      %v8340 = vpack.c.b16 %v8028, %v8022
      %v8341 = vpack.c.b16 %v8035, %v8029
      %v8342 = vpack.c.b16 %v8036, %v8030
      %v8343 = vpack.c.b16 %v8037, %v8031
      %v8344 = vpack.c.b16 %v8038, %v8032
      %v8345 = vpack.c.b16 %v8039, %v8033
      %v8346 = vpack.c.b16 %v8040, %v8034
      %v8347 = vpack.c.b16 %v8047, %v8041
      %v8348 = vpack.c.b16 %v8048, %v8042
      %v8349 = vpack.c.b16 %v8049, %v8043
      %v8350 = vpack.c.b16 %v8050, %v8044
      %v8351 = vpack.c.b16 %v8051, %v8045
      %v8352 = vpack.c.b16 %v8052, %v8046
      %v8353 = vpack.c.b16 %v8059, %v8053
      %v8354 = vpack.c.b16 %v8060, %v8054
      %v8355 = vpack.c.b16 %v8061, %v8055
      %v8356 = vpack.c.b16 %v8062, %v8056
      %v8357 = vpack.c.b16 %v8063, %v8057
      %v8358 = vpack.c.b16 %v8064, %v8058
      %v8359 = vpack.c.b16 %v8071, %v8065
      %v8360 = vpack.c.b16 %v8072, %v8066
      %v8361 = vpack.c.b16 %v8073, %v8067
      %v8362 = vpack.c.b16 %v8074, %v8068
      %v8363 = vpack.c.b16 %v8075, %v8069
      %v8364 = vpack.c.b16 %v8076, %v8070
      %v8365 = vpack.c.b16 %v8083, %v8077
      %v8366 = vpack.c.b16 %v8084, %v8078
      %v8367 = vpack.c.b16 %v8085, %v8079
      %v8368 = vpack.c.b16 %v8086, %v8080
      %v8369 = vpack.c.b16 %v8087, %v8081
      %v8370 = vpack.c.b16 %v8088, %v8082
      %v8371 = vpack.c.b16 %v8095, %v8089
      %v8372 = vpack.c.b16 %v8096, %v8090
      %v8373 = vpack.c.b16 %v8097, %v8091
      %v8374 = vpack.c.b16 %v8098, %v8092
      %v8375 = vpack.c.b16 %v8099, %v8093
      %v8376 = vpack.c.b16 %v8100, %v8094
      %v8377 = vpack.c.b16 %v8107, %v8101
      %v8378 = vpack.c.b16 %v8108, %v8102
      %v8379 = vpack.c.b16 %v8109, %v8103
      %v8380 = vpack.c.b16 %v8110, %v8104
      %v8381 = vpack.c.b16 %v8111, %v8105
      %v8382 = vpack.c.b16 %v8112, %v8106
      %v8383 = vpack.c.b16 %v8119, %v8113
      %v8384 = vpack.c.b16 %v8120, %v8114
      %v8385 = vpack.c.b16 %v8121, %v8115
      %v8386 = vpack.c.b16 %v8122, %v8116
      %v8387 = vpack.c.b16 %v8123, %v8117
      %v8388 = vpack.c.b16 %v8124, %v8118
      %v8389 = vpack.c.b16 %v8131, %v8125
      %v8390 = vpack.c.b16 %v8132, %v8126
      %v8391 = vpack.c.b16 %v8133, %v8127
      %v8392 = vpack.c.b16 %v8134, %v8128
      %v8393 = vpack.c.b16 %v8135, %v8129
      %v8394 = vpack.c.b16 %v8136, %v8130
      %v8395 = vpack.c.b16 %v8143, %v8137
      %v8396 = vpack.c.b16 %v8144, %v8138
      %v8397 = vpack.c.b16 %v8145, %v8139
      %v8398 = vpack.c.b16 %v8146, %v8140
      %v8399 = vpack.c.b16 %v8147, %v8141
      %v8400 = vpack.c.b16 %v8148, %v8142
      %v8401 = vpack.c.b16 %v8155, %v8149
      %v8402 = vpack.c.b16 %v8156, %v8150
      %v8403 = vpack.c.b16 %v8157, %v8151
      %v8404 = vpack.c.b16 %v8158, %v8152
      %v8405 = vpack.c.b16 %v8159, %v8153
      %v8406 = vpack.c.b16 %v8160, %v8154
      %v8407 = vpack.c.b16 %v8167, %v8161
      %v8408 = vpack.c.b16 %v8168, %v8162
      %v8409 = vpack.c.b16 %v8169, %v8163
      %v8410 = vpack.c.b16 %v8170, %v8164
      %v8411 = vpack.c.b16 %v8171, %v8165
      %v8412 = vpack.c.b16 %v8172, %v8166
      %v8413 = vpack.c.b16 %v8179, %v8173
      %v8414 = vpack.c.b16 %v8180, %v8174
      %v8415 = vpack.c.b16 %v8181, %v8175
      %v8416 = vpack.c.b16 %v8182, %v8176
      %v8417 = vpack.c.b16 %v8183, %v8177
      %v8418 = vpack.c.b16 %v8184, %v8178
      %v8419 = vpack.c.b16 %v8191, %v8185
      %v8420 = vpack.c.b16 %v8192, %v8186
      %v8421 = vpack.c.b16 %v8193, %v8187
      %v8422 = vpack.c.b16 %v8194, %v8188
      %v8423 = vpack.c.b16 %v8195, %v8189
      %v8424 = vpack.c.b16 %v8196, %v8190
      %v8425 = vpack.c.b16 %v8203, %v8197
      %v8426 = vpack.c.b16 %v8204, %v8198
      %v8427 = vpack.c.b16 %v8205, %v8199
      %v8428 = vpack.c.b16 %v8206, %v8200
      %v8429 = vpack.c.b16 %v8207, %v8201
      %v8430 = vpack.c.b16 %v8208, %v8202
      %v8431 = vpack.c.b16 %v8215, %v8209
      %v8432 = vpack.c.b16 %v8216, %v8210
      %v8433 = vpack.c.b16 %v8217, %v8211
      %v8434 = vpack.c.b16 %v8218, %v8212
      %v8435 = vpack.c.b16 %v8219, %v8213
      %v8436 = vpack.c.b16 %v8220, %v8214
      %v8437 = vpack.c.b16 %v8227, %v8221
      %v8438 = vpack.c.b16 %v8228, %v8222
      %v8439 = vpack.c.b16 %v8229, %v8223
      %v8440 = vpack.c.b16 %v8230, %v8224
      %v8441 = vpack.c.b16 %v8231, %v8225
      %v8442 = vpack.c.b16 %v8232, %v8226
      %v8443 = vpack.c.b16 %v8239, %v8233
      %v8444 = vpack.c.b16 %v8240, %v8234
      %v8445 = vpack.c.b16 %v8241, %v8235
      %v8446 = vpack.c.b16 %v8242, %v8236
      %v8447 = vpack.c.b16 %v8243, %v8237
      %v8448 = vpack.c.b16 %v8244, %v8238
      %v8449 = vpack.c.b16 %v8251, %v8245
      %v8450 = vpack.c.b16 %v8252, %v8246
      %v8451 = vpack.c.b16 %v8253, %v8247
      %v8452 = vpack.c.b16 %v8254, %v8248
      %v8453 = vpack.c.b16 %v8255, %v8249
      %v8454 = vpack.c.b16 %v8256, %v8250
      %v8455 = vpack.c.b16 %v8263, %v8257
      %v8456 = vpack.c.b16 %v8264, %v8258
      %v8457 = vpack.c.b16 %v8265, %v8259
      %v8458 = vpack.c.b16 %v8266, %v8260
      %v8459 = vpack.c.b16 %v8267, %v8261
      %v8460 = vpack.c.b16 %v8268, %v8262
      %v8709 = vunpack.c.l.b16 %v7029
      %v8710 = vunpack.c.h.b16 %v7029
      %v8711 = vunpack.c.l.b16 %v7030
      %v8712 = vunpack.c.h.b16 %v7030
      %v8713 = vunpack.c.l.b16 %v7031
      %v8714 = vunpack.c.h.b16 %v7031
      %v8715 = vunpack.c.l.b16 %v7032
      %v8716 = vunpack.c.h.b16 %v7032
      %v8717 = vunpack.c.l.b16 %v7033
      %v8718 = vunpack.c.h.b16 %v7033
      %v8719 = vunpack.c.l.b16 %v7034
      %v8720 = vunpack.c.h.b16 %v7034
      %v8721 = vunpack.c.l.b16 %v7035
      %v8722 = vunpack.c.h.b16 %v7035
      %v8723 = vunpack.c.l.b16 %v7036
      %v8724 = vunpack.c.h.b16 %v7036
      %v8725 = vunpack.c.l.b16 %v7037
      %v8726 = vunpack.c.h.b16 %v7037
      %v8727 = vunpack.c.l.b16 %v7038
      %v8728 = vunpack.c.h.b16 %v7038
      %v8729 = vunpack.c.l.b16 %v7039
      %v8730 = vunpack.c.h.b16 %v7039
      %v8731 = vunpack.c.l.b16 %v7040
      %v8732 = vunpack.c.h.b16 %v7040
      %v8733 = vunpack.c.l.b16 %v7041
      %v8734 = vunpack.c.h.b16 %v7041
      %v8735 = vunpack.c.l.b16 %v7042
      %v8736 = vunpack.c.h.b16 %v7042
      %v8737 = vunpack.c.l.b16 %v7043
      %v8738 = vunpack.c.h.b16 %v7043
      %v8739 = vunpack.c.l.b16 %v7044
      %v8740 = vunpack.c.h.b16 %v7044
      %v8741 = vunpack.c.l.b16 %v7045
      %v8742 = vunpack.c.h.b16 %v7045
      %v8743 = vunpack.c.l.b16 %v7046
      %v8744 = vunpack.c.h.b16 %v7046
      %v8745 = vunpack.c.l.b16 %v7047
      %v8746 = vunpack.c.h.b16 %v7047
      %v8747 = vunpack.c.l.b16 %v7048
      %v8748 = vunpack.c.h.b16 %v7048
      %v8749 = vunpack.c.l.b16 %v7049
      %v8750 = vunpack.c.h.b16 %v7049
      %v8751 = vunpack.c.l.b16 %v7050
      %v8752 = vunpack.c.h.b16 %v7050
      %v8753 = vunpack.c.l.b16 %v7051
      %v8754 = vunpack.c.h.b16 %v7051
      %v8755 = vunpack.c.l.b16 %v7052
      %v8756 = vunpack.c.h.b16 %v7052
      %v8757 = vunpack.c.l.b16 %v7053
      %v8758 = vunpack.c.h.b16 %v7053
      %v8759 = vunpack.c.l.b16 %v7054
      %v8760 = vunpack.c.h.b16 %v7054
      %v8761 = vunpack.c.l.b16 %v7055
      %v8762 = vunpack.c.h.b16 %v7055
      %v8763 = vunpack.c.l.b16 %v7056
      %v8764 = vunpack.c.h.b16 %v7056
      %v8765 = vunpack.c.l.b16 %v7057
      %v8766 = vunpack.c.h.b16 %v7057
      %v8767 = vunpack.c.l.b16 %v7058
      %v8768 = vunpack.c.h.b16 %v7058
      %v8769 = vunpack.c.l.b16 %v7059
      %v8770 = vunpack.c.h.b16 %v7059
      %v8771 = vunpack.c.l.b16 %v7060
      %v8772 = vunpack.c.h.b16 %v7060
      %v8773 = vunpack.c.l.b16 %v7061
      %v8774 = vunpack.c.h.b16 %v7061
      %v8775 = vunpack.c.l.b16 %v7062
      %v8776 = vunpack.c.h.b16 %v7062
      %v8777 = vunpack.c.l.b16 %v7063
      %v8778 = vunpack.c.h.b16 %v7063
      %v8779 = vunpack.c.l.b16 %v7064
      %v8780 = vunpack.c.h.b16 %v7064
      %v8781 = vunpack.c.l.b16 %v7065
      %v8782 = vunpack.c.h.b16 %v7065
      %v8783 = vunpack.c.l.b16 %v7066
      %v8784 = vunpack.c.h.b16 %v7066
      %v8785 = vunpack.c.l.b16 %v7067
      %v8786 = vunpack.c.h.b16 %v7067
      %v8787 = vunpack.c.l.b16 %v7068
      %v8788 = vunpack.c.h.b16 %v7068
      %v8789 = vunpack.c.l.b16 %v7069
      %v8790 = vunpack.c.h.b16 %v7069
      %v8791 = vunpack.c.l.b16 %v7070
      %v8792 = vunpack.c.h.b16 %v7070
      %v8793 = vunpack.c.l.b16 %v7071
      %v8794 = vunpack.c.h.b16 %v7071
      %v8795 = vunpack.c.l.b16 %v7072
      %v8796 = vunpack.c.h.b16 %v7072
      %v8797 = vunpack.c.l.b16 %v7073
      %v8798 = vunpack.c.h.b16 %v7073
      %v8799 = vunpack.c.l.b16 %v7074
      %v8800 = vunpack.c.h.b16 %v7074
      %v8801 = vunpack.c.l.b16 %v7075
      %v8802 = vunpack.c.h.b16 %v7075
      %v8803 = vunpack.c.l.b16 %v7076
      %v8804 = vunpack.c.h.b16 %v7076
      %v8805 = vunpack.c.l.b16 %v7077
      %v8806 = vunpack.c.h.b16 %v7077
      %v8807 = vunpack.c.l.b16 %v7078
      %v8808 = vunpack.c.h.b16 %v7078
      %v8809 = vunpack.c.l.b16 %v7079
      %v8810 = vunpack.c.h.b16 %v7079
      %v8811 = vunpack.c.l.b16 %v7080
      %v8812 = vunpack.c.h.b16 %v7080
      %v8813 = vunpack.c.l.b16 %v7081
      %v8814 = vunpack.c.h.b16 %v7081
      %v8815 = vunpack.c.l.b16 %v7082
      %v8816 = vunpack.c.h.b16 %v7082
      %v8817 = vunpack.c.l.b16 %v7083
      %v8818 = vunpack.c.h.b16 %v7083
      %v8819 = vunpack.c.l.b16 %v7084
      %v8820 = vunpack.c.h.b16 %v7084
      %v8821 = vunpack.c.l.b16 %v7085
      %v8822 = vunpack.c.h.b16 %v7085
      %v8823 = vunpack.c.l.b16 %v7086
      %v8824 = vunpack.c.h.b16 %v7086
      %v8825 = vunpack.c.l.b16 %v7087
      %v8826 = vunpack.c.h.b16 %v7087
      %v8827 = vunpack.c.l.b16 %v7088
      %v8828 = vunpack.c.h.b16 %v7088
      %v8829 = vunpack.c.l.b16 %v7089
      %v8830 = vunpack.c.h.b16 %v7089
      %v8831 = vunpack.c.l.b16 %v7090
      %v8832 = vunpack.c.h.b16 %v7090
      %v8833 = vunpack.c.l.b16 %v7091
      %v8834 = vunpack.c.h.b16 %v7091
      %v8835 = vunpack.c.l.b16 %v7092
      %v8836 = vunpack.c.h.b16 %v7092
      %v8837 = vunpack.c.l.b16 %v7093
      %v8838 = vunpack.c.h.b16 %v7093
      %v8839 = vunpack.c.l.b16 %v7094
      %v8840 = vunpack.c.h.b16 %v7094
      %v8841 = vunpack.c.l.b16 %v7095
      %v8842 = vunpack.c.h.b16 %v7095
      %v8843 = vunpack.c.l.b16 %v7096
      %v8844 = vunpack.c.h.b16 %v7096
      %v8845 = vunpack.c.l.b16 %v7097
      %v8846 = vunpack.c.h.b16 %v7097
      %v8847 = vunpack.c.l.b16 %v7098
      %v8848 = vunpack.c.h.b16 %v7098
      %v8849 = vunpack.c.l.b16 %v7099
      %v8850 = vunpack.c.h.b16 %v7099
      %v8851 = vunpack.c.l.b16 %v7100
      %v8852 = vunpack.c.h.b16 %v7100
      %v8853 = vunpack.c.l.b16 %v7101
      %v8854 = vunpack.c.h.b16 %v7101
      %v8855 = vunpack.c.l.b16 %v7102
      %v8856 = vunpack.c.h.b16 %v7102
      %v8857 = vunpack.c.l.b16 %v7103
      %v8858 = vunpack.c.h.b16 %v7103
      %v8859 = vunpack.c.l.b16 %v7104
      %v8860 = vunpack.c.h.b16 %v7104
      %v8861 = vunpack.c.l.b16 %v7105
      %v8862 = vunpack.c.h.b16 %v7105
      %v8863 = vunpack.c.l.b16 %v7106
      %v8864 = vunpack.c.h.b16 %v7106
      %v8865 = vunpack.c.l.b16 %v7107
      %v8866 = vunpack.c.h.b16 %v7107
      %v8867 = vunpack.c.l.b16 %v7108
      %v8868 = vunpack.c.h.b16 %v7108
      %v8869 = vunpack.c.l.b16 %v7109
      %v8870 = vunpack.c.h.b16 %v7109
      %v8871 = vunpack.c.l.b16 %v7110
      %v8872 = vunpack.c.h.b16 %v7110
      %v8873 = vunpack.c.l.b16 %v7111
      %v8874 = vunpack.c.h.b16 %v7111
      %v8875 = vunpack.c.l.b16 %v7112
      %v8876 = vunpack.c.h.b16 %v7112
      %v8877 = vunpack.c.l.b16 %v7113
      %v8878 = vunpack.c.h.b16 %v7113
      %v8879 = vunpack.c.l.b16 %v7114
      %v8880 = vunpack.c.h.b16 %v7114
      %v8881 = vunpack.c.l.b16 %v7115
      %v8882 = vunpack.c.h.b16 %v7115
      %v8883 = vunpack.c.l.b16 %v7116
      %v8884 = vunpack.c.h.b16 %v7116
      %v8885 = vpack.c.b16 %v8711, %v8709
      %v8886 = vpack.c.b16 %v8712, %v8710
      %v8887 = vpack.c.b16 %v8715, %v8713
      %v8888 = vpack.c.b16 %v8716, %v8714
      %v8889 = vpack.c.b16 %v8719, %v8717
      %v8890 = vpack.c.b16 %v8720, %v8718
      %v8891 = vpack.c.b16 %v8723, %v8721
      %v8892 = vpack.c.b16 %v8724, %v8722
      %v8893 = vpack.c.b16 %v8727, %v8725
      %v8894 = vpack.c.b16 %v8728, %v8726
      %v8895 = vpack.c.b16 %v8731, %v8729
      %v8896 = vpack.c.b16 %v8732, %v8730
      %v8897 = vpack.c.b16 %v8735, %v8733
      %v8898 = vpack.c.b16 %v8736, %v8734
      %v8899 = vpack.c.b16 %v8739, %v8737
      %v8900 = vpack.c.b16 %v8740, %v8738
      %v8901 = vpack.c.b16 %v8743, %v8741
      %v8902 = vpack.c.b16 %v8744, %v8742
      %v8903 = vpack.c.b16 %v8747, %v8745
      %v8904 = vpack.c.b16 %v8748, %v8746
      %v8905 = vpack.c.b16 %v8751, %v8749
      %v8906 = vpack.c.b16 %v8752, %v8750
      %v8907 = vpack.c.b16 %v8755, %v8753
      %v8908 = vpack.c.b16 %v8756, %v8754
      %v8909 = vpack.c.b16 %v8759, %v8757
      %v8910 = vpack.c.b16 %v8760, %v8758
      %v8911 = vpack.c.b16 %v8763, %v8761
      %v8912 = vpack.c.b16 %v8764, %v8762
      %v8913 = vpack.c.b16 %v8767, %v8765
      %v8914 = vpack.c.b16 %v8768, %v8766
      %v8915 = vpack.c.b16 %v8771, %v8769
      %v8916 = vpack.c.b16 %v8772, %v8770
      %v8917 = vpack.c.b16 %v8775, %v8773
      %v8918 = vpack.c.b16 %v8776, %v8774
      %v8919 = vpack.c.b16 %v8779, %v8777
      %v8920 = vpack.c.b16 %v8780, %v8778
      %v8921 = vpack.c.b16 %v8783, %v8781
      %v8922 = vpack.c.b16 %v8784, %v8782
      %v8923 = vpack.c.b16 %v8787, %v8785
      %v8924 = vpack.c.b16 %v8788, %v8786
      %v8925 = vpack.c.b16 %v8791, %v8789
      %v8926 = vpack.c.b16 %v8792, %v8790
      %v8927 = vpack.c.b16 %v8795, %v8793
      %v8928 = vpack.c.b16 %v8796, %v8794
      %v8929 = vpack.c.b16 %v8799, %v8797
      %v8930 = vpack.c.b16 %v8800, %v8798
      %v8931 = vpack.c.b16 %v8803, %v8801
      %v8932 = vpack.c.b16 %v8804, %v8802
      %v8933 = vpack.c.b16 %v8807, %v8805
      %v8934 = vpack.c.b16 %v8808, %v8806
      %v8935 = vpack.c.b16 %v8811, %v8809
      %v8936 = vpack.c.b16 %v8812, %v8810
      %v8937 = vpack.c.b16 %v8815, %v8813
      %v8938 = vpack.c.b16 %v8816, %v8814
      %v8939 = vpack.c.b16 %v8819, %v8817
      %v8940 = vpack.c.b16 %v8820, %v8818
      %v8941 = vpack.c.b16 %v8823, %v8821
      %v8942 = vpack.c.b16 %v8824, %v8822
      %v8943 = vpack.c.b16 %v8827, %v8825
      %v8944 = vpack.c.b16 %v8828, %v8826
      %v8945 = vpack.c.b16 %v8831, %v8829
      %v8946 = vpack.c.b16 %v8832, %v8830
      %v8947 = vpack.c.b16 %v8835, %v8833
      %v8948 = vpack.c.b16 %v8836, %v8834
      %v8949 = vpack.c.b16 %v8839, %v8837
      %v8950 = vpack.c.b16 %v8840, %v8838
      %v8951 = vpack.c.b16 %v8843, %v8841
      %v8952 = vpack.c.b16 %v8844, %v8842
      %v8953 = vpack.c.b16 %v8847, %v8845
      %v8954 = vpack.c.b16 %v8848, %v8846
      %v8955 = vpack.c.b16 %v8851, %v8849
      %v8956 = vpack.c.b16 %v8852, %v8850
      %v8957 = vpack.c.b16 %v8855, %v8853
      %v8958 = vpack.c.b16 %v8856, %v8854
      %v8959 = vpack.c.b16 %v8859, %v8857
      %v8960 = vpack.c.b16 %v8860, %v8858
      %v8961 = vpack.c.b16 %v8863, %v8861
      %v8962 = vpack.c.b16 %v8864, %v8862
      %v8963 = vpack.c.b16 %v8867, %v8865
      %v8964 = vpack.c.b16 %v8868, %v8866
      %v8965 = vpack.c.b16 %v8871, %v8869
      %v8966 = vpack.c.b16 %v8872, %v8870
      %v8967 = vpack.c.b16 %v8875, %v8873
      %v8968 = vpack.c.b16 %v8876, %v8874
      %v8969 = vpack.c.b16 %v8879, %v8877
      %v8970 = vpack.c.b16 %v8880, %v8878
      %v8971 = vpack.c.b16 %v8883, %v8881
      %v8972 = vpack.c.b16 %v8884, %v8882
      %v9062 = vsel %vm3964, %v8274, 0
      %v9065 = vsel %vm3964, %v8280, 0
      %v9068 = vsel %vm3964, %v8286, 0
      %v9071 = vsel %vm3964, %v8292, 0
      %v9074 = vsel %vm3964, %v8298, 0
      %v9077 = vsel %vm3964, %v8304, 0
      %v9080 = vsel %vm3964, %v8310, 0
      %v9083 = vsel %vm3964, %v8316, 0
      %v9086 = vsel %vm3964, %v8322, 0
      %v9089 = vsel %vm3964, %v8328, 0
      %v9092 = vsel %vm3964, %v8334, 0
      %v9095 = vsel %vm3964, %v8340, 0
      %v9098 = vsel %vm3964, %v8346, 0
      %v9101 = vsel %vm3964, %v8352, 0
      %v9104 = vsel %vm3964, %v8358, 0
      %v9107 = vsel %vm3964, %v8364, 0
      %v9110 = vsel %vm3964, %v8370, 0
      %v9113 = vsel %vm3964, %v8376, 0
      %v9116 = vsel %vm3964, %v8382, 0
      %v9119 = vsel %vm3964, %v8388, 0
      %v9122 = vsel %vm3964, %v8394, 0
      %v9125 = vsel %vm3964, %v8400, 0
      %v9128 = vsel %vm3964, %v8406, 0
      %v9131 = vsel %vm3964, %v8412, 0
      %v9134 = vsel %vm3964, %v8418, 0
      %v9137 = vsel %vm3964, %v8424, 0
      %v9140 = vsel %vm3964, %v8430, 0
      %v9143 = vsel %vm3964, %v8436, 0
      %v9146 = vsel %vm3964, %v8442, 0
      %v9149 = vsel %vm3964, %v8448, 0
      %v9152 = vsel %vm3964, %v8454, 0
      %v9155 = vsel %vm3964, %v8460, 0
      %9157 = vmatprep.subr.bf16.mxu0 %v8900
      %9158 = vmatpush1.bf16.msra.mxu0 %v8899
      %9159 = vmatprep.subr.bf16.mxu0 %v8898
      %9160 = vmatpush1.bf16.msra.mxu0 %v8897
      %9161 = vmatprep.subr.bf16.mxu0 %v8896
      %9162 = vmatpush1.bf16.msra.mxu0 %v8895
      %9163 = vmatprep.subr.bf16.mxu0 %v8894
      %9164 = vmatpush1.bf16.msra.mxu0 %v8893
      %9165 = vmatprep.subr.bf16.mxu0 %v8892
      %9166 = vmatpush1.bf16.msra.mxu0 %v8891
      %9167 = vmatprep.subr.bf16.mxu0 %v8890
      %9168 = vmatpush1.bf16.msra.mxu0 %v8889
      %9169 = vmatprep.subr.bf16.mxu0 %v8888
      %9170 = vmatpush1.bf16.msra.mxu0 %v8887
      %9171 = vmatprep.subr.bf16.mxu0 %v8886
      %9172 = vmatpush1.bf16.msra.mxu0 %v8885
      %9173 = vmatprep.subr.bf16.mxu0 %v8916
      %9174 = vmatpush2.bf16.msra.mxu0 %v8915
      %9175 = vmatprep.subr.bf16.mxu0 %v8914
      %9176 = vmatpush2.bf16.msra.mxu0 %v8913
      %9177 = vmatprep.subr.bf16.mxu0 %v8912
      %9178 = vmatpush2.bf16.msra.mxu0 %v8911
      %9179 = vmatprep.subr.bf16.mxu0 %v8910
      %9180 = vmatpush2.bf16.msra.mxu0 %v8909
      %9181 = vmatprep.subr.bf16.mxu0 %v8908
      %9182 = vmatpush2.bf16.msra.mxu0 %v8907
      %9183 = vmatprep.subr.bf16.mxu0 %v8906
      %9184 = vmatpush2.bf16.msra.mxu0 %v8905
      %9185 = vmatprep.subr.bf16.mxu0 %v8904
      %9186 = vmatpush2.bf16.msra.mxu0 %v8903
      %9187 = vmatprep.subr.bf16.mxu0 %v8902
      %9188 = vmatpush2.bf16.msra.mxu0 %v8901
      %9189 = vmatprep.mubr.bf16.mxu0 %v8270
      %9190 = vmatmul.mubr.bf16.gmra.mxu0 %v8269
      %v9191 = vpop.f32.mrf.mxu0
      %v9192 = vadd.f32 %v7376, %v9191
      %v9193 = vpop.f32.mrf.mxu0
      %v9194 = vadd.f32 %v7376, %v9193
      %v9195 = vpop.f32.mrf.mxu0
      %v9196 = vadd.f32 %v7381, %v9195
      %v9197 = vpop.f32.mrf.mxu0
      %v9198 = vadd.f32 %v7381, %v9197
      %9199 = vmatprep.mubr.bf16.mxu0 %v8276
      %9200 = vmatmul.mubr.bf16.gmra.mxu0 %v8275
      %v9201 = vpop.f32.mrf.mxu0
      %v9202 = vadd.f32 %v7386, %v9201
      %v9203 = vpop.f32.mrf.mxu0
      %v9204 = vadd.f32 %v7386, %v9203
      %v9205 = vpop.f32.mrf.mxu0
      %v9206 = vadd.f32 %v7391, %v9205
      %v9207 = vpop.f32.mrf.mxu0
      %v9208 = vadd.f32 %v7391, %v9207
      %9209 = vmatprep.mubr.bf16.mxu0 %v8282
      %9210 = vmatmul.mubr.bf16.gmra.mxu0 %v8281
      %v9211 = vpop.f32.mrf.mxu0
      %v9212 = vadd.f32 %v7396, %v9211
      %v9213 = vpop.f32.mrf.mxu0
      %v9214 = vadd.f32 %v7396, %v9213
      %v9215 = vpop.f32.mrf.mxu0
      %v9216 = vadd.f32 %v7401, %v9215
      %v9217 = vpop.f32.mrf.mxu0
      %v9218 = vadd.f32 %v7401, %v9217
      %9219 = vmatprep.mubr.bf16.mxu0 %v8288
      %9220 = vmatmul.mubr.bf16.gmra.mxu0 %v8287
      %v9221 = vpop.f32.mrf.mxu0
      %v9222 = vadd.f32 %v7406, %v9221
      %v9223 = vpop.f32.mrf.mxu0
      %v9224 = vadd.f32 %v7406, %v9223
      %v9225 = vpop.f32.mrf.mxu0
      %v9226 = vadd.f32 %v7411, %v9225
      %v9227 = vpop.f32.mrf.mxu0
      %v9228 = vadd.f32 %v7411, %v9227
      %9229 = vmatprep.mubr.bf16.mxu0 %v8294
      %9230 = vmatmul.mubr.bf16.gmra.mxu0 %v8293
      %v9231 = vpop.f32.mrf.mxu0
      %v9232 = vadd.f32 %v7416, %v9231
      %v9233 = vpop.f32.mrf.mxu0
      %v9234 = vadd.f32 %v7416, %v9233
      %v9235 = vpop.f32.mrf.mxu0
      %v9236 = vadd.f32 %v7421, %v9235
      %v9237 = vpop.f32.mrf.mxu0
      %v9238 = vadd.f32 %v7421, %v9237
      %9239 = vmatprep.mubr.bf16.mxu0 %v8300
      %9240 = vmatmul.mubr.bf16.gmra.mxu0 %v8299
      %v9241 = vpop.f32.mrf.mxu0
      %v9242 = vadd.f32 %v7426, %v9241
      %v9243 = vpop.f32.mrf.mxu0
      %v9244 = vadd.f32 %v7426, %v9243
      %v9245 = vpop.f32.mrf.mxu0
      %v9246 = vadd.f32 %v7431, %v9245
      %v9247 = vpop.f32.mrf.mxu0
      %v9248 = vadd.f32 %v7431, %v9247
      %9249 = vmatprep.mubr.bf16.mxu0 %v8306
      %9250 = vmatmul.mubr.bf16.gmra.mxu0 %v8305
      %v9251 = vpop.f32.mrf.mxu0
      %v9252 = vadd.f32 %v7436, %v9251
      %v9253 = vpop.f32.mrf.mxu0
      %v9254 = vadd.f32 %v7436, %v9253
      %v9255 = vpop.f32.mrf.mxu0
      %v9256 = vadd.f32 %v7441, %v9255
      %v9257 = vpop.f32.mrf.mxu0
      %v9258 = vadd.f32 %v7441, %v9257
      %9259 = vmatprep.mubr.bf16.mxu0 %v8312
      %9260 = vmatmul.mubr.bf16.gmra.mxu0 %v8311
      %v9261 = vpop.f32.mrf.mxu0
      %v9262 = vadd.f32 %v7446, %v9261
      %v9263 = vpop.f32.mrf.mxu0
      %v9264 = vadd.f32 %v7446, %v9263
      %v9265 = vpop.f32.mrf.mxu0
      %v9266 = vadd.f32 %v7451, %v9265
      %v9267 = vpop.f32.mrf.mxu0
      %v9268 = vadd.f32 %v7451, %v9267
      %9269 = vmatprep.mubr.bf16.mxu0 %v8318
      %9270 = vmatmul.mubr.bf16.gmra.mxu0 %v8317
      %v9271 = vpop.f32.mrf.mxu0
      %v9272 = vadd.f32 %v7456, %v9271
      %v9273 = vpop.f32.mrf.mxu0
      %v9274 = vadd.f32 %v7456, %v9273
      %v9275 = vpop.f32.mrf.mxu0
      %v9276 = vadd.f32 %v7461, %v9275
      %v9277 = vpop.f32.mrf.mxu0
      %v9278 = vadd.f32 %v7461, %v9277
      %9279 = vmatprep.mubr.bf16.mxu0 %v8324
      %9280 = vmatmul.mubr.bf16.gmra.mxu0 %v8323
      %v9281 = vpop.f32.mrf.mxu0
      %v9282 = vadd.f32 %v7466, %v9281
      %v9283 = vpop.f32.mrf.mxu0
      %v9284 = vadd.f32 %v7466, %v9283
      %v9285 = vpop.f32.mrf.mxu0
      %v9286 = vadd.f32 %v7471, %v9285
      %v9287 = vpop.f32.mrf.mxu0
      %v9288 = vadd.f32 %v7471, %v9287
      %9289 = vmatprep.mubr.bf16.mxu0 %v8330
      %9290 = vmatmul.mubr.bf16.gmra.mxu0 %v8329
      %v9291 = vpop.f32.mrf.mxu0
      %v9292 = vadd.f32 %v7476, %v9291
      %v9293 = vpop.f32.mrf.mxu0
      %v9294 = vadd.f32 %v7476, %v9293
      %v9295 = vpop.f32.mrf.mxu0
      %v9296 = vadd.f32 %v7481, %v9295
      %v9297 = vpop.f32.mrf.mxu0
      %v9298 = vadd.f32 %v7481, %v9297
      %9299 = vmatprep.mubr.bf16.mxu0 %v8336
      %9300 = vmatmul.mubr.bf16.gmra.mxu0 %v8335
      %v9301 = vpop.f32.mrf.mxu0
      %v9302 = vadd.f32 %v7486, %v9301
      %v9303 = vpop.f32.mrf.mxu0
      %v9304 = vadd.f32 %v7486, %v9303
      %v9305 = vpop.f32.mrf.mxu0
      %v9306 = vadd.f32 %v7491, %v9305
      %v9307 = vpop.f32.mrf.mxu0
      %v9308 = vadd.f32 %v7491, %v9307
      %9309 = vmatprep.mubr.bf16.mxu0 %v8342
      %9310 = vmatmul.mubr.bf16.gmra.mxu0 %v8341
      %v9311 = vpop.f32.mrf.mxu0
      %v9312 = vadd.f32 %v7496, %v9311
      %v9313 = vpop.f32.mrf.mxu0
      %v9314 = vadd.f32 %v7496, %v9313
      %v9315 = vpop.f32.mrf.mxu0
      %v9316 = vadd.f32 %v7501, %v9315
      %v9317 = vpop.f32.mrf.mxu0
      %v9318 = vadd.f32 %v7501, %v9317
      %9319 = vmatprep.mubr.bf16.mxu0 %v8348
      %9320 = vmatmul.mubr.bf16.gmra.mxu0 %v8347
      %v9321 = vpop.f32.mrf.mxu0
      %v9322 = vadd.f32 %v7506, %v9321
      %v9323 = vpop.f32.mrf.mxu0
      %v9324 = vadd.f32 %v7506, %v9323
      %v9325 = vpop.f32.mrf.mxu0
      %v9326 = vadd.f32 %v7511, %v9325
      %v9327 = vpop.f32.mrf.mxu0
      %v9328 = vadd.f32 %v7511, %v9327
      %9329 = vmatprep.mubr.bf16.mxu0 %v8354
      %9330 = vmatmul.mubr.bf16.gmra.mxu0 %v8353
      %v9331 = vpop.f32.mrf.mxu0
      %v9332 = vadd.f32 %v7516, %v9331
      %v9333 = vpop.f32.mrf.mxu0
      %v9334 = vadd.f32 %v7516, %v9333
      %v9335 = vpop.f32.mrf.mxu0
      %v9336 = vadd.f32 %v7521, %v9335
      %v9337 = vpop.f32.mrf.mxu0
      %v9338 = vadd.f32 %v7521, %v9337
      %9339 = vmatprep.mubr.bf16.mxu0 %v8360
      %9340 = vmatmul.mubr.bf16.gmra.mxu0 %v8359
      %v9341 = vpop.f32.mrf.mxu0
      %v9342 = vadd.f32 %v7526, %v9341
      %v9343 = vpop.f32.mrf.mxu0
      %v9344 = vadd.f32 %v7526, %v9343
      %v9345 = vpop.f32.mrf.mxu0
      %v9346 = vadd.f32 %v7531, %v9345
      %v9347 = vpop.f32.mrf.mxu0
      %v9348 = vadd.f32 %v7531, %v9347
      %9349 = vmatprep.mubr.bf16.mxu0 %v8366
      %9350 = vmatmul.mubr.bf16.gmra.mxu0 %v8365
      %v9351 = vpop.f32.mrf.mxu0
      %v9352 = vadd.f32 %v7536, %v9351
      %v9353 = vpop.f32.mrf.mxu0
      %v9354 = vadd.f32 %v7536, %v9353
      %v9355 = vpop.f32.mrf.mxu0
      %v9356 = vadd.f32 %v7541, %v9355
      %v9357 = vpop.f32.mrf.mxu0
      %v9358 = vadd.f32 %v7541, %v9357
      %9359 = vmatprep.mubr.bf16.mxu0 %v8372
      %9360 = vmatmul.mubr.bf16.gmra.mxu0 %v8371
      %v9361 = vpop.f32.mrf.mxu0
      %v9362 = vadd.f32 %v7546, %v9361
      %v9363 = vpop.f32.mrf.mxu0
      %v9364 = vadd.f32 %v7546, %v9363
      %v9365 = vpop.f32.mrf.mxu0
      %v9366 = vadd.f32 %v7551, %v9365
      %v9367 = vpop.f32.mrf.mxu0
      %v9368 = vadd.f32 %v7551, %v9367
      %9369 = vmatprep.mubr.bf16.mxu0 %v8378
      %9370 = vmatmul.mubr.bf16.gmra.mxu0 %v8377
      %v9371 = vpop.f32.mrf.mxu0
      %v9372 = vadd.f32 %v7556, %v9371
      %v9373 = vpop.f32.mrf.mxu0
      %v9374 = vadd.f32 %v7556, %v9373
      %v9375 = vpop.f32.mrf.mxu0
      %v9376 = vadd.f32 %v7561, %v9375
      %v9377 = vpop.f32.mrf.mxu0
      %v9378 = vadd.f32 %v7561, %v9377
      %9379 = vmatprep.mubr.bf16.mxu0 %v8384
      %9380 = vmatmul.mubr.bf16.gmra.mxu0 %v8383
      %v9381 = vpop.f32.mrf.mxu0
      %v9382 = vadd.f32 %v7566, %v9381
      %v9383 = vpop.f32.mrf.mxu0
      %v9384 = vadd.f32 %v7566, %v9383
      %v9385 = vpop.f32.mrf.mxu0
      %v9386 = vadd.f32 %v7571, %v9385
      %v9387 = vpop.f32.mrf.mxu0
      %v9388 = vadd.f32 %v7571, %v9387
      %9389 = vmatprep.mubr.bf16.mxu0 %v8390
      %9390 = vmatmul.mubr.bf16.gmra.mxu0 %v8389
      %v9391 = vpop.f32.mrf.mxu0
      %v9392 = vadd.f32 %v7576, %v9391
      %v9393 = vpop.f32.mrf.mxu0
      %v9394 = vadd.f32 %v7576, %v9393
      %v9395 = vpop.f32.mrf.mxu0
      %v9396 = vadd.f32 %v7581, %v9395
      %v9397 = vpop.f32.mrf.mxu0
      %v9398 = vadd.f32 %v7581, %v9397
      %9399 = vmatprep.mubr.bf16.mxu0 %v8396
      %9400 = vmatmul.mubr.bf16.gmra.mxu0 %v8395
      %v9401 = vpop.f32.mrf.mxu0
      %v9402 = vadd.f32 %v7586, %v9401
      %v9403 = vpop.f32.mrf.mxu0
      %v9404 = vadd.f32 %v7586, %v9403
      %v9405 = vpop.f32.mrf.mxu0
      %v9406 = vadd.f32 %v7591, %v9405
      %v9407 = vpop.f32.mrf.mxu0
      %v9408 = vadd.f32 %v7591, %v9407
      %9409 = vmatprep.mubr.bf16.mxu0 %v8402
      %9410 = vmatmul.mubr.bf16.gmra.mxu0 %v8401
      %v9411 = vpop.f32.mrf.mxu0
      %v9412 = vadd.f32 %v7596, %v9411
      %v9413 = vpop.f32.mrf.mxu0
      %v9414 = vadd.f32 %v7596, %v9413
      %v9415 = vpop.f32.mrf.mxu0
      %v9416 = vadd.f32 %v7601, %v9415
      %v9417 = vpop.f32.mrf.mxu0
      %v9418 = vadd.f32 %v7601, %v9417
      %9419 = vmatprep.mubr.bf16.mxu0 %v8408
      %9420 = vmatmul.mubr.bf16.gmra.mxu0 %v8407
      %v9421 = vpop.f32.mrf.mxu0
      %v9422 = vadd.f32 %v7606, %v9421
      %v9423 = vpop.f32.mrf.mxu0
      %v9424 = vadd.f32 %v7606, %v9423
      %v9425 = vpop.f32.mrf.mxu0
      %v9426 = vadd.f32 %v7611, %v9425
      %v9427 = vpop.f32.mrf.mxu0
      %v9428 = vadd.f32 %v7611, %v9427
      %9429 = vmatprep.mubr.bf16.mxu0 %v8414
      %9430 = vmatmul.mubr.bf16.gmra.mxu0 %v8413
      %v9431 = vpop.f32.mrf.mxu0
      %v9432 = vadd.f32 %v7616, %v9431
      %v9433 = vpop.f32.mrf.mxu0
      %v9434 = vadd.f32 %v7616, %v9433
      %v9435 = vpop.f32.mrf.mxu0
      %v9436 = vadd.f32 %v7621, %v9435
      %v9437 = vpop.f32.mrf.mxu0
      %v9438 = vadd.f32 %v7621, %v9437
      %9439 = vmatprep.mubr.bf16.mxu0 %v8420
      %9440 = vmatmul.mubr.bf16.gmra.mxu0 %v8419
      %v9441 = vpop.f32.mrf.mxu0
      %v9442 = vadd.f32 %v7626, %v9441
      %v9443 = vpop.f32.mrf.mxu0
      %v9444 = vadd.f32 %v7626, %v9443
      %v9445 = vpop.f32.mrf.mxu0
      %v9446 = vadd.f32 %v7631, %v9445
      %v9447 = vpop.f32.mrf.mxu0
      %v9448 = vadd.f32 %v7631, %v9447
      %9449 = vmatprep.mubr.bf16.mxu0 %v8426
      %9450 = vmatmul.mubr.bf16.gmra.mxu0 %v8425
      %v9451 = vpop.f32.mrf.mxu0
      %v9452 = vadd.f32 %v7636, %v9451
      %v9453 = vpop.f32.mrf.mxu0
      %v9454 = vadd.f32 %v7636, %v9453
      %v9455 = vpop.f32.mrf.mxu0
      %v9456 = vadd.f32 %v7641, %v9455
      %v9457 = vpop.f32.mrf.mxu0
      %v9458 = vadd.f32 %v7641, %v9457
      %9459 = vmatprep.mubr.bf16.mxu0 %v8432
      %9460 = vmatmul.mubr.bf16.gmra.mxu0 %v8431
      %v9461 = vpop.f32.mrf.mxu0
      %v9462 = vadd.f32 %v7646, %v9461
      %v9463 = vpop.f32.mrf.mxu0
      %v9464 = vadd.f32 %v7646, %v9463
      %v9465 = vpop.f32.mrf.mxu0
      %v9466 = vadd.f32 %v7651, %v9465
      %v9467 = vpop.f32.mrf.mxu0
      %v9468 = vadd.f32 %v7651, %v9467
      %9469 = vmatprep.mubr.bf16.mxu0 %v8438
      %9470 = vmatmul.mubr.bf16.gmra.mxu0 %v8437
      %v9471 = vpop.f32.mrf.mxu0
      %v9472 = vadd.f32 %v7656, %v9471
      %v9473 = vpop.f32.mrf.mxu0
      %v9474 = vadd.f32 %v7656, %v9473
      %v9475 = vpop.f32.mrf.mxu0
      %v9476 = vadd.f32 %v7661, %v9475
      %v9477 = vpop.f32.mrf.mxu0
      %v9478 = vadd.f32 %v7661, %v9477
      %9479 = vmatprep.mubr.bf16.mxu0 %v8444
      %9480 = vmatmul.mubr.bf16.gmra.mxu0 %v8443
      %v9481 = vpop.f32.mrf.mxu0
      %v9482 = vadd.f32 %v7666, %v9481
      %v9483 = vpop.f32.mrf.mxu0
      %v9484 = vadd.f32 %v7666, %v9483
      %v9485 = vpop.f32.mrf.mxu0
      %v9486 = vadd.f32 %v7671, %v9485
      %v9487 = vpop.f32.mrf.mxu0
      %v9488 = vadd.f32 %v7671, %v9487
      %9489 = vmatprep.mubr.bf16.mxu0 %v8450
      %9490 = vmatmul.mubr.bf16.gmra.mxu0 %v8449
      %v9491 = vpop.f32.mrf.mxu0
      %v9492 = vadd.f32 %v7676, %v9491
      %v9493 = vpop.f32.mrf.mxu0
      %v9494 = vadd.f32 %v7676, %v9493
      %v9495 = vpop.f32.mrf.mxu0
      %v9496 = vadd.f32 %v7681, %v9495
      %v9497 = vpop.f32.mrf.mxu0
      %v9498 = vadd.f32 %v7681, %v9497
      %9499 = vmatprep.mubr.bf16.mxu0 %v8456
      %9500 = vmatmul.mubr.bf16.gmra.mxu0 %v8455
      %v9501 = vpop.f32.mrf.mxu0
      %v9502 = vadd.f32 %v7686, %v9501
      %v9503 = vpop.f32.mrf.mxu0
      %v9504 = vadd.f32 %v7686, %v9503
      %v9505 = vpop.f32.mrf.mxu0
      %v9506 = vadd.f32 %v7691, %v9505
      %v9507 = vpop.f32.mrf.mxu0
      %v9508 = vadd.f32 %v7691, %v9507
      %9509 = vdwg.mxu0
      %9510 = vmatprep.subr.bf16.mxu0 %v8932
      %9511 = vmatpush1.bf16.msra.mxu0 %v8931
      %9512 = vmatprep.subr.bf16.mxu0 %v8930
      %9513 = vmatpush1.bf16.msra.mxu0 %v8929
      %9514 = vmatprep.subr.bf16.mxu0 %v8928
      %9515 = vmatpush1.bf16.msra.mxu0 %v8927
      %9516 = vmatprep.subr.bf16.mxu0 %v8926
      %9517 = vmatpush1.bf16.msra.mxu0 %v8925
      %9518 = vmatprep.subr.bf16.mxu0 %v8924
      %9519 = vmatpush1.bf16.msra.mxu0 %v8923
      %9520 = vmatprep.subr.bf16.mxu0 %v8922
      %9521 = vmatpush1.bf16.msra.mxu0 %v8921
      %9522 = vmatprep.subr.bf16.mxu0 %v8920
      %9523 = vmatpush1.bf16.msra.mxu0 %v8919
      %9524 = vmatprep.subr.bf16.mxu0 %v8918
      %9525 = vmatpush1.bf16.msra.mxu0 %v8917
      %9526 = vmatprep.subr.bf16.mxu0 %v8948
      %9527 = vmatpush2.bf16.msra.mxu0 %v8947
      %9528 = vmatprep.subr.bf16.mxu0 %v8946
      %9529 = vmatpush2.bf16.msra.mxu0 %v8945
      %9530 = vmatprep.subr.bf16.mxu0 %v8944
      %9531 = vmatpush2.bf16.msra.mxu0 %v8943
      %9532 = vmatprep.subr.bf16.mxu0 %v8942
      %9533 = vmatpush2.bf16.msra.mxu0 %v8941
      %9534 = vmatprep.subr.bf16.mxu0 %v8940
      %9535 = vmatpush2.bf16.msra.mxu0 %v8939
      %9536 = vmatprep.subr.bf16.mxu0 %v8938
      %9537 = vmatpush2.bf16.msra.mxu0 %v8937
      %9538 = vmatprep.subr.bf16.mxu0 %v8936
      %9539 = vmatpush2.bf16.msra.mxu0 %v8935
      %9540 = vmatprep.subr.bf16.mxu0 %v8934
      %9541 = vmatpush2.bf16.msra.mxu0 %v8933
      %9542 = vmatprep.mubr.bf16.mxu0 %v8272
      %9543 = vmatmul.mubr.bf16.gmra.mxu0 %v8271
      %v9544 = vpop.f32.mrf.mxu0
      %v9545 = vadd.f32 %v9192, %v9544
      %v9546 = vpop.f32.mrf.mxu0
      %v9547 = vadd.f32 %v9194, %v9546
      %v9548 = vpop.f32.mrf.mxu0
      %v9549 = vadd.f32 %v9196, %v9548
      %v9550 = vpop.f32.mrf.mxu0
      %v9551 = vadd.f32 %v9198, %v9550
      %9552 = vmatprep.mubr.bf16.mxu0 %v8278
      %9553 = vmatmul.mubr.bf16.gmra.mxu0 %v8277
      %v9554 = vpop.f32.mrf.mxu0
      %v9555 = vadd.f32 %v9202, %v9554
      %v9556 = vpop.f32.mrf.mxu0
      %v9557 = vadd.f32 %v9204, %v9556
      %v9558 = vpop.f32.mrf.mxu0
      %v9559 = vadd.f32 %v9206, %v9558
      %v9560 = vpop.f32.mrf.mxu0
      %v9561 = vadd.f32 %v9208, %v9560
      %9562 = vmatprep.mubr.bf16.mxu0 %v8284
      %9563 = vmatmul.mubr.bf16.gmra.mxu0 %v8283
      %v9564 = vpop.f32.mrf.mxu0
      %v9565 = vadd.f32 %v9212, %v9564
      %v9566 = vpop.f32.mrf.mxu0
      %v9567 = vadd.f32 %v9214, %v9566
      %v9568 = vpop.f32.mrf.mxu0
      %v9569 = vadd.f32 %v9216, %v9568
      %v9570 = vpop.f32.mrf.mxu0
      %v9571 = vadd.f32 %v9218, %v9570
      %9572 = vmatprep.mubr.bf16.mxu0 %v8290
      %9573 = vmatmul.mubr.bf16.gmra.mxu0 %v8289
      %v9574 = vpop.f32.mrf.mxu0
      %v9575 = vadd.f32 %v9222, %v9574
      %v9576 = vpop.f32.mrf.mxu0
      %v9577 = vadd.f32 %v9224, %v9576
      %v9578 = vpop.f32.mrf.mxu0
      %v9579 = vadd.f32 %v9226, %v9578
      %v9580 = vpop.f32.mrf.mxu0
      %v9581 = vadd.f32 %v9228, %v9580
      %9582 = vmatprep.mubr.bf16.mxu0 %v8296
      %9583 = vmatmul.mubr.bf16.gmra.mxu0 %v8295
      %v9584 = vpop.f32.mrf.mxu0
      %v9585 = vadd.f32 %v9232, %v9584
      %v9586 = vpop.f32.mrf.mxu0
      %v9587 = vadd.f32 %v9234, %v9586
      %v9588 = vpop.f32.mrf.mxu0
      %v9589 = vadd.f32 %v9236, %v9588
      %v9590 = vpop.f32.mrf.mxu0
      %v9591 = vadd.f32 %v9238, %v9590
      %9592 = vmatprep.mubr.bf16.mxu0 %v8302
      %9593 = vmatmul.mubr.bf16.gmra.mxu0 %v8301
      %v9594 = vpop.f32.mrf.mxu0
      %v9595 = vadd.f32 %v9242, %v9594
      %v9596 = vpop.f32.mrf.mxu0
      %v9597 = vadd.f32 %v9244, %v9596
      %v9598 = vpop.f32.mrf.mxu0
      %v9599 = vadd.f32 %v9246, %v9598
      %v9600 = vpop.f32.mrf.mxu0
      %v9601 = vadd.f32 %v9248, %v9600
      %9602 = vmatprep.mubr.bf16.mxu0 %v8308
      %9603 = vmatmul.mubr.bf16.gmra.mxu0 %v8307
      %v9604 = vpop.f32.mrf.mxu0
      %v9605 = vadd.f32 %v9252, %v9604
      %v9606 = vpop.f32.mrf.mxu0
      %v9607 = vadd.f32 %v9254, %v9606
      %v9608 = vpop.f32.mrf.mxu0
      %v9609 = vadd.f32 %v9256, %v9608
      %v9610 = vpop.f32.mrf.mxu0
      %v9611 = vadd.f32 %v9258, %v9610
      %9612 = vmatprep.mubr.bf16.mxu0 %v8314
      %9613 = vmatmul.mubr.bf16.gmra.mxu0 %v8313
      %v9614 = vpop.f32.mrf.mxu0
      %v9615 = vadd.f32 %v9262, %v9614
      %v9616 = vpop.f32.mrf.mxu0
      %v9617 = vadd.f32 %v9264, %v9616
      %v9618 = vpop.f32.mrf.mxu0
      %v9619 = vadd.f32 %v9266, %v9618
      %v9620 = vpop.f32.mrf.mxu0
      %v9621 = vadd.f32 %v9268, %v9620
      %9622 = vmatprep.mubr.bf16.mxu0 %v8320
      %9623 = vmatmul.mubr.bf16.gmra.mxu0 %v8319
      %v9624 = vpop.f32.mrf.mxu0
      %v9625 = vadd.f32 %v9272, %v9624
      %v9626 = vpop.f32.mrf.mxu0
      %v9627 = vadd.f32 %v9274, %v9626
      %v9628 = vpop.f32.mrf.mxu0
      %v9629 = vadd.f32 %v9276, %v9628
      %v9630 = vpop.f32.mrf.mxu0
      %v9631 = vadd.f32 %v9278, %v9630
      %9632 = vmatprep.mubr.bf16.mxu0 %v8326
      %9633 = vmatmul.mubr.bf16.gmra.mxu0 %v8325
      %v9634 = vpop.f32.mrf.mxu0
      %v9635 = vadd.f32 %v9282, %v9634
      %v9636 = vpop.f32.mrf.mxu0
      %v9637 = vadd.f32 %v9284, %v9636
      %v9638 = vpop.f32.mrf.mxu0
      %v9639 = vadd.f32 %v9286, %v9638
      %v9640 = vpop.f32.mrf.mxu0
      %v9641 = vadd.f32 %v9288, %v9640
      %9642 = vmatprep.mubr.bf16.mxu0 %v8332
      %9643 = vmatmul.mubr.bf16.gmra.mxu0 %v8331
      %v9644 = vpop.f32.mrf.mxu0
      %v9645 = vadd.f32 %v9292, %v9644
      %v9646 = vpop.f32.mrf.mxu0
      %v9647 = vadd.f32 %v9294, %v9646
      %v9648 = vpop.f32.mrf.mxu0
      %v9649 = vadd.f32 %v9296, %v9648
      %v9650 = vpop.f32.mrf.mxu0
      %v9651 = vadd.f32 %v9298, %v9650
      %9652 = vmatprep.mubr.bf16.mxu0 %v8338
      %9653 = vmatmul.mubr.bf16.gmra.mxu0 %v8337
      %v9654 = vpop.f32.mrf.mxu0
      %v9655 = vadd.f32 %v9302, %v9654
      %v9656 = vpop.f32.mrf.mxu0
      %v9657 = vadd.f32 %v9304, %v9656
      %v9658 = vpop.f32.mrf.mxu0
      %v9659 = vadd.f32 %v9306, %v9658
      %v9660 = vpop.f32.mrf.mxu0
      %v9661 = vadd.f32 %v9308, %v9660
      %9662 = vmatprep.mubr.bf16.mxu0 %v8344
      %9663 = vmatmul.mubr.bf16.gmra.mxu0 %v8343
      %v9664 = vpop.f32.mrf.mxu0
      %v9665 = vadd.f32 %v9312, %v9664
      %v9666 = vpop.f32.mrf.mxu0
      %v9667 = vadd.f32 %v9314, %v9666
      %v9668 = vpop.f32.mrf.mxu0
      %v9669 = vadd.f32 %v9316, %v9668
      %v9670 = vpop.f32.mrf.mxu0
      %v9671 = vadd.f32 %v9318, %v9670
      %9672 = vmatprep.mubr.bf16.mxu0 %v8350
      %9673 = vmatmul.mubr.bf16.gmra.mxu0 %v8349
      %v9674 = vpop.f32.mrf.mxu0
      %v9675 = vadd.f32 %v9322, %v9674
      %v9676 = vpop.f32.mrf.mxu0
      %v9677 = vadd.f32 %v9324, %v9676
      %v9678 = vpop.f32.mrf.mxu0
      %v9679 = vadd.f32 %v9326, %v9678
      %v9680 = vpop.f32.mrf.mxu0
      %v9681 = vadd.f32 %v9328, %v9680
      %9682 = vmatprep.mubr.bf16.mxu0 %v8356
      %9683 = vmatmul.mubr.bf16.gmra.mxu0 %v8355
      %v9684 = vpop.f32.mrf.mxu0
      %v9685 = vadd.f32 %v9332, %v9684
      %v9686 = vpop.f32.mrf.mxu0
      %v9687 = vadd.f32 %v9334, %v9686
      %v9688 = vpop.f32.mrf.mxu0
      %v9689 = vadd.f32 %v9336, %v9688
      %v9690 = vpop.f32.mrf.mxu0
      %v9691 = vadd.f32 %v9338, %v9690
      %9692 = vmatprep.mubr.bf16.mxu0 %v8362
      %9693 = vmatmul.mubr.bf16.gmra.mxu0 %v8361
      %v9694 = vpop.f32.mrf.mxu0
      %v9695 = vadd.f32 %v9342, %v9694
      %v9696 = vpop.f32.mrf.mxu0
      %v9697 = vadd.f32 %v9344, %v9696
      %v9698 = vpop.f32.mrf.mxu0
      %v9699 = vadd.f32 %v9346, %v9698
      %v9700 = vpop.f32.mrf.mxu0
      %v9701 = vadd.f32 %v9348, %v9700
      %9702 = vmatprep.mubr.bf16.mxu0 %v8368
      %9703 = vmatmul.mubr.bf16.gmra.mxu0 %v8367
      %v9704 = vpop.f32.mrf.mxu0
      %v9705 = vadd.f32 %v9352, %v9704
      %v9706 = vpop.f32.mrf.mxu0
      %v9707 = vadd.f32 %v9354, %v9706
      %v9708 = vpop.f32.mrf.mxu0
      %v9709 = vadd.f32 %v9356, %v9708
      %v9710 = vpop.f32.mrf.mxu0
      %v9711 = vadd.f32 %v9358, %v9710
      %9712 = vmatprep.mubr.bf16.mxu0 %v8374
      %9713 = vmatmul.mubr.bf16.gmra.mxu0 %v8373
      %v9714 = vpop.f32.mrf.mxu0
      %v9715 = vadd.f32 %v9362, %v9714
      %v9716 = vpop.f32.mrf.mxu0
      %v9717 = vadd.f32 %v9364, %v9716
      %v9718 = vpop.f32.mrf.mxu0
      %v9719 = vadd.f32 %v9366, %v9718
      %v9720 = vpop.f32.mrf.mxu0
      %v9721 = vadd.f32 %v9368, %v9720
      %9722 = vmatprep.mubr.bf16.mxu0 %v8380
      %9723 = vmatmul.mubr.bf16.gmra.mxu0 %v8379
      %v9724 = vpop.f32.mrf.mxu0
      %v9725 = vadd.f32 %v9372, %v9724
      %v9726 = vpop.f32.mrf.mxu0
      %v9727 = vadd.f32 %v9374, %v9726
      %v9728 = vpop.f32.mrf.mxu0
      %v9729 = vadd.f32 %v9376, %v9728
      %v9730 = vpop.f32.mrf.mxu0
      %v9731 = vadd.f32 %v9378, %v9730
      %9732 = vmatprep.mubr.bf16.mxu0 %v8386
      %9733 = vmatmul.mubr.bf16.gmra.mxu0 %v8385
      %v9734 = vpop.f32.mrf.mxu0
      %v9735 = vadd.f32 %v9382, %v9734
      %v9736 = vpop.f32.mrf.mxu0
      %v9737 = vadd.f32 %v9384, %v9736
      %v9738 = vpop.f32.mrf.mxu0
      %v9739 = vadd.f32 %v9386, %v9738
      %v9740 = vpop.f32.mrf.mxu0
      %v9741 = vadd.f32 %v9388, %v9740
      %9742 = vmatprep.mubr.bf16.mxu0 %v8392
      %9743 = vmatmul.mubr.bf16.gmra.mxu0 %v8391
      %v9744 = vpop.f32.mrf.mxu0
      %v9745 = vadd.f32 %v9392, %v9744
      %v9746 = vpop.f32.mrf.mxu0
      %v9747 = vadd.f32 %v9394, %v9746
      %v9748 = vpop.f32.mrf.mxu0
      %v9749 = vadd.f32 %v9396, %v9748
      %v9750 = vpop.f32.mrf.mxu0
      %v9751 = vadd.f32 %v9398, %v9750
      %9752 = vmatprep.mubr.bf16.mxu0 %v8398
      %9753 = vmatmul.mubr.bf16.gmra.mxu0 %v8397
      %v9754 = vpop.f32.mrf.mxu0
      %v9755 = vadd.f32 %v9402, %v9754
      %v9756 = vpop.f32.mrf.mxu0
      %v9757 = vadd.f32 %v9404, %v9756
      %v9758 = vpop.f32.mrf.mxu0
      %v9759 = vadd.f32 %v9406, %v9758
      %v9760 = vpop.f32.mrf.mxu0
      %v9761 = vadd.f32 %v9408, %v9760
      %9762 = vmatprep.mubr.bf16.mxu0 %v8404
      %9763 = vmatmul.mubr.bf16.gmra.mxu0 %v8403
      %v9764 = vpop.f32.mrf.mxu0
      %v9765 = vadd.f32 %v9412, %v9764
      %v9766 = vpop.f32.mrf.mxu0
      %v9767 = vadd.f32 %v9414, %v9766
      %v9768 = vpop.f32.mrf.mxu0
      %v9769 = vadd.f32 %v9416, %v9768
      %v9770 = vpop.f32.mrf.mxu0
      %v9771 = vadd.f32 %v9418, %v9770
      %9772 = vmatprep.mubr.bf16.mxu0 %v8410
      %9773 = vmatmul.mubr.bf16.gmra.mxu0 %v8409
      %v9774 = vpop.f32.mrf.mxu0
      %v9775 = vadd.f32 %v9422, %v9774
      %v9776 = vpop.f32.mrf.mxu0
      %v9777 = vadd.f32 %v9424, %v9776
      %v9778 = vpop.f32.mrf.mxu0
      %v9779 = vadd.f32 %v9426, %v9778
      %v9780 = vpop.f32.mrf.mxu0
      %v9781 = vadd.f32 %v9428, %v9780
      %9782 = vmatprep.mubr.bf16.mxu0 %v8416
      %9783 = vmatmul.mubr.bf16.gmra.mxu0 %v8415
      %v9784 = vpop.f32.mrf.mxu0
      %v9785 = vadd.f32 %v9432, %v9784
      %v9786 = vpop.f32.mrf.mxu0
      %v9787 = vadd.f32 %v9434, %v9786
      %v9788 = vpop.f32.mrf.mxu0
      %v9789 = vadd.f32 %v9436, %v9788
      %v9790 = vpop.f32.mrf.mxu0
      %v9791 = vadd.f32 %v9438, %v9790
      %9792 = vmatprep.mubr.bf16.mxu0 %v8422
      %9793 = vmatmul.mubr.bf16.gmra.mxu0 %v8421
      %v9794 = vpop.f32.mrf.mxu0
      %v9795 = vadd.f32 %v9442, %v9794
      %v9796 = vpop.f32.mrf.mxu0
      %v9797 = vadd.f32 %v9444, %v9796
      %v9798 = vpop.f32.mrf.mxu0
      %v9799 = vadd.f32 %v9446, %v9798
      %v9800 = vpop.f32.mrf.mxu0
      %v9801 = vadd.f32 %v9448, %v9800
      %9802 = vmatprep.mubr.bf16.mxu0 %v8428
      %9803 = vmatmul.mubr.bf16.gmra.mxu0 %v8427
      %v9804 = vpop.f32.mrf.mxu0
      %v9805 = vadd.f32 %v9452, %v9804
      %v9806 = vpop.f32.mrf.mxu0
      %v9807 = vadd.f32 %v9454, %v9806
      %v9808 = vpop.f32.mrf.mxu0
      %v9809 = vadd.f32 %v9456, %v9808
      %v9810 = vpop.f32.mrf.mxu0
      %v9811 = vadd.f32 %v9458, %v9810
      %9812 = vmatprep.mubr.bf16.mxu0 %v8434
      %9813 = vmatmul.mubr.bf16.gmra.mxu0 %v8433
      %v9814 = vpop.f32.mrf.mxu0
      %v9815 = vadd.f32 %v9462, %v9814
      %v9816 = vpop.f32.mrf.mxu0
      %v9817 = vadd.f32 %v9464, %v9816
      %v9818 = vpop.f32.mrf.mxu0
      %v9819 = vadd.f32 %v9466, %v9818
      %v9820 = vpop.f32.mrf.mxu0
      %v9821 = vadd.f32 %v9468, %v9820
      %9822 = vmatprep.mubr.bf16.mxu0 %v8440
      %9823 = vmatmul.mubr.bf16.gmra.mxu0 %v8439
      %v9824 = vpop.f32.mrf.mxu0
      %v9825 = vadd.f32 %v9472, %v9824
      %v9826 = vpop.f32.mrf.mxu0
      %v9827 = vadd.f32 %v9474, %v9826
      %v9828 = vpop.f32.mrf.mxu0
      %v9829 = vadd.f32 %v9476, %v9828
      %v9830 = vpop.f32.mrf.mxu0
      %v9831 = vadd.f32 %v9478, %v9830
      %9832 = vmatprep.mubr.bf16.mxu0 %v8446
      %9833 = vmatmul.mubr.bf16.gmra.mxu0 %v8445
      %v9834 = vpop.f32.mrf.mxu0
      %v9835 = vadd.f32 %v9482, %v9834
      %v9836 = vpop.f32.mrf.mxu0
      %v9837 = vadd.f32 %v9484, %v9836
      %v9838 = vpop.f32.mrf.mxu0
      %v9839 = vadd.f32 %v9486, %v9838
      %v9840 = vpop.f32.mrf.mxu0
      %v9841 = vadd.f32 %v9488, %v9840
      %9842 = vmatprep.mubr.bf16.mxu0 %v8452
      %9843 = vmatmul.mubr.bf16.gmra.mxu0 %v8451
      %v9844 = vpop.f32.mrf.mxu0
      %v9845 = vadd.f32 %v9492, %v9844
      %v9846 = vpop.f32.mrf.mxu0
      %v9847 = vadd.f32 %v9494, %v9846
      %v9848 = vpop.f32.mrf.mxu0
      %v9849 = vadd.f32 %v9496, %v9848
      %v9850 = vpop.f32.mrf.mxu0
      %v9851 = vadd.f32 %v9498, %v9850
      %9852 = vmatprep.mubr.bf16.mxu0 %v8458
      %9853 = vmatmul.mubr.bf16.gmra.mxu0 %v8457
      %v9854 = vpop.f32.mrf.mxu0
      %v9855 = vadd.f32 %v9502, %v9854
      %v9856 = vpop.f32.mrf.mxu0
      %v9857 = vadd.f32 %v9504, %v9856
      %v9858 = vpop.f32.mrf.mxu0
      %v9859 = vadd.f32 %v9506, %v9858
      %v9860 = vpop.f32.mrf.mxu0
      %v9861 = vadd.f32 %v9508, %v9860
      %9862 = vdwg.mxu0
      %9863 = vmatprep.subr.bf16.mxu0 %v8964
      %9864 = vmatpush1.bf16.msra.mxu0 %v8963
      %9865 = vmatprep.subr.bf16.mxu0 %v8962
      %9866 = vmatpush1.bf16.msra.mxu0 %v8961
      %9867 = vmatprep.subr.bf16.mxu0 %v8960
      %9868 = vmatpush1.bf16.msra.mxu0 %v8959
      %9869 = vmatprep.subr.bf16.mxu0 %v8958
      %9870 = vmatpush1.bf16.msra.mxu0 %v8957
      %9871 = vmatprep.subr.bf16.mxu0 %v8956
      %9872 = vmatpush1.bf16.msra.mxu0 %v8955
      %9873 = vmatprep.subr.bf16.mxu0 %v8954
      %9874 = vmatpush1.bf16.msra.mxu0 %v8953
      %9875 = vmatprep.subr.bf16.mxu0 %v8952
      %9876 = vmatpush1.bf16.msra.mxu0 %v8951
      %9877 = vmatprep.subr.bf16.mxu0 %v8950
      %9878 = vmatpush1.bf16.msra.mxu0 %v8949
      %9879 = vmatprep.subr.bf16.mxu0 0
      %9880 = vmatpush2.bf16.msra.mxu0 0
      %9881 = vmatprep.subr.bf16.mxu0 0
      %9882 = vmatpush2.bf16.msra.mxu0 0
      %9883 = vmatprep.subr.bf16.mxu0 0
      %9884 = vmatpush2.bf16.msra.mxu0 0
      %9885 = vmatprep.subr.bf16.mxu0 0
      %9886 = vmatpush2.bf16.msra.mxu0 0
      %9887 = vmatprep.subr.bf16.mxu0 %v8972
      %9888 = vmatpush2.bf16.msra.mxu0 %v8971
      %9889 = vmatprep.subr.bf16.mxu0 %v8970
      %9890 = vmatpush2.bf16.msra.mxu0 %v8969
      %9891 = vmatprep.subr.bf16.mxu0 %v8968
      %9892 = vmatpush2.bf16.msra.mxu0 %v8967
      %9893 = vmatprep.subr.bf16.mxu0 %v8966
      %9894 = vmatpush2.bf16.msra.mxu0 %v8965
      %9895 = vmatprep.mubr.bf16.mxu0 %v9062
      %9896 = vmatmul.mubr.bf16.gmra.mxu0 %v8273
      %v9897 = vpop.f32.mrf.mxu0
      %v9898 = vadd.f32 %v9545, %v9897
      %v9899 = vpop.f32.mrf.mxu0
      %v9900 = vadd.f32 %v9547, %v9899
      %v9901 = vpop.f32.mrf.mxu0
      %v9902 = vadd.f32 %v9549, %v9901
      %v9903 = vpop.f32.mrf.mxu0
      %v9904 = vadd.f32 %v9551, %v9903
      %9905 = vmatprep.mubr.bf16.mxu0 %v9065
      %9906 = vmatmul.mubr.bf16.gmra.mxu0 %v8279
      %v9907 = vpop.f32.mrf.mxu0
      %v9908 = vadd.f32 %v9555, %v9907
      %v9909 = vpop.f32.mrf.mxu0
      %v9910 = vadd.f32 %v9557, %v9909
      %v9911 = vpop.f32.mrf.mxu0
      %v9912 = vadd.f32 %v9559, %v9911
      %v9913 = vpop.f32.mrf.mxu0
      %v9914 = vadd.f32 %v9561, %v9913
      %9915 = vmatprep.mubr.bf16.mxu0 %v9068
      %9916 = vmatmul.mubr.bf16.gmra.mxu0 %v8285
      %v9917 = vpop.f32.mrf.mxu0
      %v9918 = vadd.f32 %v9565, %v9917
      %v9919 = vpop.f32.mrf.mxu0
      %v9920 = vadd.f32 %v9567, %v9919
      %v9921 = vpop.f32.mrf.mxu0
      %v9922 = vadd.f32 %v9569, %v9921
      %v9923 = vpop.f32.mrf.mxu0
      %v9924 = vadd.f32 %v9571, %v9923
      %9925 = vmatprep.mubr.bf16.mxu0 %v9071
      %9926 = vmatmul.mubr.bf16.gmra.mxu0 %v8291
      %v9927 = vpop.f32.mrf.mxu0
      %v9928 = vadd.f32 %v9575, %v9927
      %v9929 = vpop.f32.mrf.mxu0
      %v9930 = vadd.f32 %v9577, %v9929
      %v9931 = vpop.f32.mrf.mxu0
      %v9932 = vadd.f32 %v9579, %v9931
      %v9933 = vpop.f32.mrf.mxu0
      %v9934 = vadd.f32 %v9581, %v9933
      %9935 = vmatprep.mubr.bf16.mxu0 %v9074
      %9936 = vmatmul.mubr.bf16.gmra.mxu0 %v8297
      %v9937 = vpop.f32.mrf.mxu0
      %v9938 = vadd.f32 %v9585, %v9937
      %v9939 = vpop.f32.mrf.mxu0
      %v9940 = vadd.f32 %v9587, %v9939
      %v9941 = vpop.f32.mrf.mxu0
      %v9942 = vadd.f32 %v9589, %v9941
      %v9943 = vpop.f32.mrf.mxu0
      %v9944 = vadd.f32 %v9591, %v9943
      %9945 = vmatprep.mubr.bf16.mxu0 %v9077
      %9946 = vmatmul.mubr.bf16.gmra.mxu0 %v8303
      %v9947 = vpop.f32.mrf.mxu0
      %v9948 = vadd.f32 %v9595, %v9947
      %v9949 = vpop.f32.mrf.mxu0
      %v9950 = vadd.f32 %v9597, %v9949
      %v9951 = vpop.f32.mrf.mxu0
      %v9952 = vadd.f32 %v9599, %v9951
      %v9953 = vpop.f32.mrf.mxu0
      %v9954 = vadd.f32 %v9601, %v9953
      %9955 = vmatprep.mubr.bf16.mxu0 %v9080
      %9956 = vmatmul.mubr.bf16.gmra.mxu0 %v8309
      %v9957 = vpop.f32.mrf.mxu0
      %v9958 = vadd.f32 %v9605, %v9957
      %v9959 = vpop.f32.mrf.mxu0
      %v9960 = vadd.f32 %v9607, %v9959
      %v9961 = vpop.f32.mrf.mxu0
      %v9962 = vadd.f32 %v9609, %v9961
      %v9963 = vpop.f32.mrf.mxu0
      %v9964 = vadd.f32 %v9611, %v9963
      %9965 = vmatprep.mubr.bf16.mxu0 %v9083
      %9966 = vmatmul.mubr.bf16.gmra.mxu0 %v8315
      %v9967 = vpop.f32.mrf.mxu0
      %v9968 = vadd.f32 %v9615, %v9967
      %v9969 = vpop.f32.mrf.mxu0
      %v9970 = vadd.f32 %v9617, %v9969
      %v9971 = vpop.f32.mrf.mxu0
      %v9972 = vadd.f32 %v9619, %v9971
      %v9973 = vpop.f32.mrf.mxu0
      %v9974 = vadd.f32 %v9621, %v9973
      %9975 = vmatprep.mubr.bf16.mxu0 %v9086
      %9976 = vmatmul.mubr.bf16.gmra.mxu0 %v8321
      %v9977 = vpop.f32.mrf.mxu0
      %v9978 = vadd.f32 %v9625, %v9977
      %v9979 = vpop.f32.mrf.mxu0
      %v9980 = vadd.f32 %v9627, %v9979
      %v9981 = vpop.f32.mrf.mxu0
      %v9982 = vadd.f32 %v9629, %v9981
      %v9983 = vpop.f32.mrf.mxu0
      %v9984 = vadd.f32 %v9631, %v9983
      %9985 = vmatprep.mubr.bf16.mxu0 %v9089
      %9986 = vmatmul.mubr.bf16.gmra.mxu0 %v8327
      %v9987 = vpop.f32.mrf.mxu0
      %v9988 = vadd.f32 %v9635, %v9987
      %v9989 = vpop.f32.mrf.mxu0
      %v9990 = vadd.f32 %v9637, %v9989
      %v9991 = vpop.f32.mrf.mxu0
      %v9992 = vadd.f32 %v9639, %v9991
      %v9993 = vpop.f32.mrf.mxu0
      %v9994 = vadd.f32 %v9641, %v9993
      %9995 = vmatprep.mubr.bf16.mxu0 %v9092
      %9996 = vmatmul.mubr.bf16.gmra.mxu0 %v8333
      %v9997 = vpop.f32.mrf.mxu0
      %v9998 = vadd.f32 %v9645, %v9997
      %v9999 = vpop.f32.mrf.mxu0
      %v10000 = vadd.f32 %v9647, %v9999
      %v10001 = vpop.f32.mrf.mxu0
      %v10002 = vadd.f32 %v9649, %v10001
      %v10003 = vpop.f32.mrf.mxu0
      %v10004 = vadd.f32 %v9651, %v10003
      %10005 = vmatprep.mubr.bf16.mxu0 %v9095
      %10006 = vmatmul.mubr.bf16.gmra.mxu0 %v8339
      %v10007 = vpop.f32.mrf.mxu0
      %v10008 = vadd.f32 %v9655, %v10007
      %v10009 = vpop.f32.mrf.mxu0
      %v10010 = vadd.f32 %v9657, %v10009
      %v10011 = vpop.f32.mrf.mxu0
      %v10012 = vadd.f32 %v9659, %v10011
      %v10013 = vpop.f32.mrf.mxu0
      %v10014 = vadd.f32 %v9661, %v10013
      %10015 = vmatprep.mubr.bf16.mxu0 %v9098
      %10016 = vmatmul.mubr.bf16.gmra.mxu0 %v8345
      %v10017 = vpop.f32.mrf.mxu0
      %v10018 = vadd.f32 %v9665, %v10017
      %v10019 = vpop.f32.mrf.mxu0
      %v10020 = vadd.f32 %v9667, %v10019
      %v10021 = vpop.f32.mrf.mxu0
      %v10022 = vadd.f32 %v9669, %v10021
      %v10023 = vpop.f32.mrf.mxu0
      %v10024 = vadd.f32 %v9671, %v10023
      %10025 = vmatprep.mubr.bf16.mxu0 %v9101
      %10026 = vmatmul.mubr.bf16.gmra.mxu0 %v8351
      %v10027 = vpop.f32.mrf.mxu0
      %v10028 = vadd.f32 %v9675, %v10027
      %v10029 = vpop.f32.mrf.mxu0
      %v10030 = vadd.f32 %v9677, %v10029
      %v10031 = vpop.f32.mrf.mxu0
      %v10032 = vadd.f32 %v9679, %v10031
      %v10033 = vpop.f32.mrf.mxu0
      %v10034 = vadd.f32 %v9681, %v10033
      %10035 = vmatprep.mubr.bf16.mxu0 %v9104
      %10036 = vmatmul.mubr.bf16.gmra.mxu0 %v8357
      %v10037 = vpop.f32.mrf.mxu0
      %v10038 = vadd.f32 %v9685, %v10037
      %v10039 = vpop.f32.mrf.mxu0
      %v10040 = vadd.f32 %v9687, %v10039
      %v10041 = vpop.f32.mrf.mxu0
      %v10042 = vadd.f32 %v9689, %v10041
      %v10043 = vpop.f32.mrf.mxu0
      %v10044 = vadd.f32 %v9691, %v10043
      %10045 = vmatprep.mubr.bf16.mxu0 %v9107
      %10046 = vmatmul.mubr.bf16.gmra.mxu0 %v8363
      %v10047 = vpop.f32.mrf.mxu0
      %v10048 = vadd.f32 %v9695, %v10047
      %v10049 = vpop.f32.mrf.mxu0
      %v10050 = vadd.f32 %v9697, %v10049
      %v10051 = vpop.f32.mrf.mxu0
      %v10052 = vadd.f32 %v9699, %v10051
      %v10053 = vpop.f32.mrf.mxu0
      %v10054 = vadd.f32 %v9701, %v10053
      %10055 = vmatprep.mubr.bf16.mxu0 %v9110
      %10056 = vmatmul.mubr.bf16.gmra.mxu0 %v8369
      %v10057 = vpop.f32.mrf.mxu0
      %v10058 = vadd.f32 %v9705, %v10057
      %v10059 = vpop.f32.mrf.mxu0
      %v10060 = vadd.f32 %v9707, %v10059
      %v10061 = vpop.f32.mrf.mxu0
      %v10062 = vadd.f32 %v9709, %v10061
      %v10063 = vpop.f32.mrf.mxu0
      %v10064 = vadd.f32 %v9711, %v10063
      %10065 = vmatprep.mubr.bf16.mxu0 %v9113
      %10066 = vmatmul.mubr.bf16.gmra.mxu0 %v8375
      %v10067 = vpop.f32.mrf.mxu0
      %v10068 = vadd.f32 %v9715, %v10067
      %v10069 = vpop.f32.mrf.mxu0
      %v10070 = vadd.f32 %v9717, %v10069
      %v10071 = vpop.f32.mrf.mxu0
      %v10072 = vadd.f32 %v9719, %v10071
      %v10073 = vpop.f32.mrf.mxu0
      %v10074 = vadd.f32 %v9721, %v10073
      %10075 = vmatprep.mubr.bf16.mxu0 %v9116
      %10076 = vmatmul.mubr.bf16.gmra.mxu0 %v8381
      %v10077 = vpop.f32.mrf.mxu0
      %v10078 = vadd.f32 %v9725, %v10077
      %v10079 = vpop.f32.mrf.mxu0
      %v10080 = vadd.f32 %v9727, %v10079
      %v10081 = vpop.f32.mrf.mxu0
      %v10082 = vadd.f32 %v9729, %v10081
      %v10083 = vpop.f32.mrf.mxu0
      %v10084 = vadd.f32 %v9731, %v10083
      %10085 = vmatprep.mubr.bf16.mxu0 %v9119
      %10086 = vmatmul.mubr.bf16.gmra.mxu0 %v8387
      %v10087 = vpop.f32.mrf.mxu0
      %v10088 = vadd.f32 %v9735, %v10087
      %v10089 = vpop.f32.mrf.mxu0
      %v10090 = vadd.f32 %v9737, %v10089
      %v10091 = vpop.f32.mrf.mxu0
      %v10092 = vadd.f32 %v9739, %v10091
      %v10093 = vpop.f32.mrf.mxu0
      %v10094 = vadd.f32 %v9741, %v10093
      %10095 = vmatprep.mubr.bf16.mxu0 %v9122
      %10096 = vmatmul.mubr.bf16.gmra.mxu0 %v8393
      %v10097 = vpop.f32.mrf.mxu0
      %v10098 = vadd.f32 %v9745, %v10097
      %v10099 = vpop.f32.mrf.mxu0
      %v10100 = vadd.f32 %v9747, %v10099
      %v10101 = vpop.f32.mrf.mxu0
      %v10102 = vadd.f32 %v9749, %v10101
      %v10103 = vpop.f32.mrf.mxu0
      %v10104 = vadd.f32 %v9751, %v10103
      %10105 = vmatprep.mubr.bf16.mxu0 %v9125
      %10106 = vmatmul.mubr.bf16.gmra.mxu0 %v8399
      %v10107 = vpop.f32.mrf.mxu0
      %v10108 = vadd.f32 %v9755, %v10107
      %v10109 = vpop.f32.mrf.mxu0
      %v10110 = vadd.f32 %v9757, %v10109
      %v10111 = vpop.f32.mrf.mxu0
      %v10112 = vadd.f32 %v9759, %v10111
      %v10113 = vpop.f32.mrf.mxu0
      %v10114 = vadd.f32 %v9761, %v10113
      %10115 = vmatprep.mubr.bf16.mxu0 %v9128
      %10116 = vmatmul.mubr.bf16.gmra.mxu0 %v8405
      %v10117 = vpop.f32.mrf.mxu0
      %v10118 = vadd.f32 %v9765, %v10117
      %v10119 = vpop.f32.mrf.mxu0
      %v10120 = vadd.f32 %v9767, %v10119
      %v10121 = vpop.f32.mrf.mxu0
      %v10122 = vadd.f32 %v9769, %v10121
      %v10123 = vpop.f32.mrf.mxu0
      %v10124 = vadd.f32 %v9771, %v10123
      %10125 = vmatprep.mubr.bf16.mxu0 %v9131
      %10126 = vmatmul.mubr.bf16.gmra.mxu0 %v8411
      %v10127 = vpop.f32.mrf.mxu0
      %v10128 = vadd.f32 %v9775, %v10127
      %v10129 = vpop.f32.mrf.mxu0
      %v10130 = vadd.f32 %v9777, %v10129
      %v10131 = vpop.f32.mrf.mxu0
      %v10132 = vadd.f32 %v9779, %v10131
      %v10133 = vpop.f32.mrf.mxu0
      %v10134 = vadd.f32 %v9781, %v10133
      %10135 = vmatprep.mubr.bf16.mxu0 %v9134
      %10136 = vmatmul.mubr.bf16.gmra.mxu0 %v8417
      %v10137 = vpop.f32.mrf.mxu0
      %v10138 = vadd.f32 %v9785, %v10137
      %v10139 = vpop.f32.mrf.mxu0
      %v10140 = vadd.f32 %v9787, %v10139
      %v10141 = vpop.f32.mrf.mxu0
      %v10142 = vadd.f32 %v9789, %v10141
      %v10143 = vpop.f32.mrf.mxu0
      %v10144 = vadd.f32 %v9791, %v10143
      %10145 = vmatprep.mubr.bf16.mxu0 %v9137
      %10146 = vmatmul.mubr.bf16.gmra.mxu0 %v8423
      %v10147 = vpop.f32.mrf.mxu0
      %v10148 = vadd.f32 %v9795, %v10147
      %v10149 = vpop.f32.mrf.mxu0
      %v10150 = vadd.f32 %v9797, %v10149
      %v10151 = vpop.f32.mrf.mxu0
      %v10152 = vadd.f32 %v9799, %v10151
      %v10153 = vpop.f32.mrf.mxu0
      %v10154 = vadd.f32 %v9801, %v10153
      %10155 = vmatprep.mubr.bf16.mxu0 %v9140
      %10156 = vmatmul.mubr.bf16.gmra.mxu0 %v8429
      %v10157 = vpop.f32.mrf.mxu0
      %v10158 = vadd.f32 %v9805, %v10157
      %v10159 = vpop.f32.mrf.mxu0
      %v10160 = vadd.f32 %v9807, %v10159
      %v10161 = vpop.f32.mrf.mxu0
      %v10162 = vadd.f32 %v9809, %v10161
      %v10163 = vpop.f32.mrf.mxu0
      %v10164 = vadd.f32 %v9811, %v10163
      %10165 = vmatprep.mubr.bf16.mxu0 %v9143
      %10166 = vmatmul.mubr.bf16.gmra.mxu0 %v8435
      %v10167 = vpop.f32.mrf.mxu0
      %v10168 = vadd.f32 %v9815, %v10167
      %v10169 = vpop.f32.mrf.mxu0
      %v10170 = vadd.f32 %v9817, %v10169
      %v10171 = vpop.f32.mrf.mxu0
      %v10172 = vadd.f32 %v9819, %v10171
      %v10173 = vpop.f32.mrf.mxu0
      %v10174 = vadd.f32 %v9821, %v10173
      %10175 = vmatprep.mubr.bf16.mxu0 %v9146
      %10176 = vmatmul.mubr.bf16.gmra.mxu0 %v8441
      %v10177 = vpop.f32.mrf.mxu0
      %v10178 = vadd.f32 %v9825, %v10177
      %v10179 = vpop.f32.mrf.mxu0
      %v10180 = vadd.f32 %v9827, %v10179
      %v10181 = vpop.f32.mrf.mxu0
      %v10182 = vadd.f32 %v9829, %v10181
      %v10183 = vpop.f32.mrf.mxu0
      %v10184 = vadd.f32 %v9831, %v10183
      %10185 = vmatprep.mubr.bf16.mxu0 %v9149
      %10186 = vmatmul.mubr.bf16.gmra.mxu0 %v8447
      %v10187 = vpop.f32.mrf.mxu0
      %v10188 = vadd.f32 %v9835, %v10187
      %v10189 = vpop.f32.mrf.mxu0
      %v10190 = vadd.f32 %v9837, %v10189
      %v10191 = vpop.f32.mrf.mxu0
      %v10192 = vadd.f32 %v9839, %v10191
      %v10193 = vpop.f32.mrf.mxu0
      %v10194 = vadd.f32 %v9841, %v10193
      %10195 = vmatprep.mubr.bf16.mxu0 %v9152
      %10196 = vmatmul.mubr.bf16.gmra.mxu0 %v8453
      %v10197 = vpop.f32.mrf.mxu0
      %v10198 = vadd.f32 %v9845, %v10197
      %v10199 = vpop.f32.mrf.mxu0
      %v10200 = vadd.f32 %v9847, %v10199
      %v10201 = vpop.f32.mrf.mxu0
      %v10202 = vadd.f32 %v9849, %v10201
      %v10203 = vpop.f32.mrf.mxu0
      %v10204 = vadd.f32 %v9851, %v10203
      %10205 = vmatprep.mubr.bf16.mxu0 %v9155
      %10206 = vmatmul.mubr.bf16.gmra.mxu0 %v8459
      %v10207 = vpop.f32.mrf.mxu0
      %v10208 = vadd.f32 %v9855, %v10207
      %v10209 = vpop.f32.mrf.mxu0
      %v10210 = vadd.f32 %v9857, %v10209
      %v10211 = vpop.f32.mrf.mxu0
      %v10212 = vadd.f32 %v9859, %v10211
      %v10213 = vpop.f32.mrf.mxu0
      %v10214 = vadd.f32 %v9861, %v10213
      %10215 = vdwg.mxu0
      %v10216 = vmax.f32 %v9898, 0.0
      %v10217 = vmax.f32 %v9900, 0.0
      %v10218 = vmax.f32 %v9902, 0.0
      %v10219 = vmax.f32 %v9904, 0.0
      %v10220 = vmax.f32 %v9908, 0.0
      %v10221 = vmax.f32 %v9910, 0.0
      %v10222 = vmax.f32 %v9912, 0.0
      %v10223 = vmax.f32 %v9914, 0.0
      %v10224 = vmax.f32 %v9918, 0.0
      %v10225 = vmax.f32 %v9920, 0.0
      %v10226 = vmax.f32 %v9922, 0.0
      %v10227 = vmax.f32 %v9924, 0.0
      %v10228 = vmax.f32 %v9928, 0.0
      %v10229 = vmax.f32 %v9930, 0.0
      %v10230 = vmax.f32 %v9932, 0.0
      %v10231 = vmax.f32 %v9934, 0.0
      %v10232 = vmax.f32 %v9938, 0.0
      %v10233 = vmax.f32 %v9940, 0.0
      %v10234 = vmax.f32 %v9942, 0.0
      %v10235 = vmax.f32 %v9944, 0.0
      %v10236 = vmax.f32 %v9948, 0.0
      %v10237 = vmax.f32 %v9950, 0.0
      %v10238 = vmax.f32 %v9952, 0.0
      %v10239 = vmax.f32 %v9954, 0.0
      %v10240 = vmax.f32 %v9958, 0.0
      %v10241 = vmax.f32 %v9960, 0.0
      %v10242 = vmax.f32 %v9962, 0.0
      %v10243 = vmax.f32 %v9964, 0.0
      %v10244 = vmax.f32 %v9968, 0.0
      %v10245 = vmax.f32 %v9970, 0.0
      %v10246 = vmax.f32 %v9972, 0.0
      %v10247 = vmax.f32 %v9974, 0.0
      %v10248 = vmax.f32 %v9978, 0.0
      %v10249 = vmax.f32 %v9980, 0.0
      %v10250 = vmax.f32 %v9982, 0.0
      %v10251 = vmax.f32 %v9984, 0.0
      %v10252 = vmax.f32 %v9988, 0.0
      %v10253 = vmax.f32 %v9990, 0.0
      %v10254 = vmax.f32 %v9992, 0.0
      %v10255 = vmax.f32 %v9994, 0.0
      %v10256 = vmax.f32 %v9998, 0.0
      %v10257 = vmax.f32 %v10000, 0.0
      %v10258 = vmax.f32 %v10002, 0.0
      %v10259 = vmax.f32 %v10004, 0.0
      %v10260 = vmax.f32 %v10008, 0.0
      %v10261 = vmax.f32 %v10010, 0.0
      %v10262 = vmax.f32 %v10012, 0.0
      %v10263 = vmax.f32 %v10014, 0.0
      %v10264 = vmax.f32 %v10018, 0.0
      %v10265 = vmax.f32 %v10020, 0.0
      %v10266 = vmax.f32 %v10022, 0.0
      %v10267 = vmax.f32 %v10024, 0.0
      %v10268 = vmax.f32 %v10028, 0.0
      %v10269 = vmax.f32 %v10030, 0.0
      %v10270 = vmax.f32 %v10032, 0.0
      %v10271 = vmax.f32 %v10034, 0.0
      %v10272 = vmax.f32 %v10038, 0.0
      %v10273 = vmax.f32 %v10040, 0.0
      %v10274 = vmax.f32 %v10042, 0.0
      %v10275 = vmax.f32 %v10044, 0.0
      %v10276 = vmax.f32 %v10048, 0.0
      %v10277 = vmax.f32 %v10050, 0.0
      %v10278 = vmax.f32 %v10052, 0.0
      %v10279 = vmax.f32 %v10054, 0.0
      %v10280 = vmax.f32 %v10058, 0.0
      %v10281 = vmax.f32 %v10060, 0.0
      %v10282 = vmax.f32 %v10062, 0.0
      %v10283 = vmax.f32 %v10064, 0.0
      %v10284 = vmax.f32 %v10068, 0.0
      %v10285 = vmax.f32 %v10070, 0.0
      %v10286 = vmax.f32 %v10072, 0.0
      %v10287 = vmax.f32 %v10074, 0.0
      %v10288 = vmax.f32 %v10078, 0.0
      %v10289 = vmax.f32 %v10080, 0.0
      %v10290 = vmax.f32 %v10082, 0.0
      %v10291 = vmax.f32 %v10084, 0.0
      %v10292 = vmax.f32 %v10088, 0.0
      %v10293 = vmax.f32 %v10090, 0.0
      %v10294 = vmax.f32 %v10092, 0.0
      %v10295 = vmax.f32 %v10094, 0.0
      %v10296 = vmax.f32 %v10098, 0.0
      %v10297 = vmax.f32 %v10100, 0.0
      %v10298 = vmax.f32 %v10102, 0.0
      %v10299 = vmax.f32 %v10104, 0.0
      %v10300 = vmax.f32 %v10108, 0.0
      %v10301 = vmax.f32 %v10110, 0.0
      %v10302 = vmax.f32 %v10112, 0.0
      %v10303 = vmax.f32 %v10114, 0.0
      %v10304 = vmax.f32 %v10118, 0.0
      %v10305 = vmax.f32 %v10120, 0.0
      %v10306 = vmax.f32 %v10122, 0.0
      %v10307 = vmax.f32 %v10124, 0.0
      %v10308 = vmax.f32 %v10128, 0.0
      %v10309 = vmax.f32 %v10130, 0.0
      %v10310 = vmax.f32 %v10132, 0.0
      %v10311 = vmax.f32 %v10134, 0.0
      %v10312 = vmax.f32 %v10138, 0.0
      %v10313 = vmax.f32 %v10140, 0.0
      %v10314 = vmax.f32 %v10142, 0.0
      %v10315 = vmax.f32 %v10144, 0.0
      %v10316 = vmax.f32 %v10148, 0.0
      %v10317 = vmax.f32 %v10150, 0.0
      %v10318 = vmax.f32 %v10152, 0.0
      %v10319 = vmax.f32 %v10154, 0.0
      %v10320 = vmax.f32 %v10158, 0.0
      %v10321 = vmax.f32 %v10160, 0.0
      %v10322 = vmax.f32 %v10162, 0.0
      %v10323 = vmax.f32 %v10164, 0.0
      %v10324 = vmax.f32 %v10168, 0.0
      %v10325 = vmax.f32 %v10170, 0.0
      %v10326 = vmax.f32 %v10172, 0.0
      %v10327 = vmax.f32 %v10174, 0.0
      %v10328 = vmax.f32 %v10178, 0.0
      %v10329 = vmax.f32 %v10180, 0.0
      %v10330 = vmax.f32 %v10182, 0.0
      %v10331 = vmax.f32 %v10184, 0.0
      %v10332 = vmax.f32 %v10188, 0.0
      %v10333 = vmax.f32 %v10190, 0.0
      %v10334 = vmax.f32 %v10192, 0.0
      %v10335 = vmax.f32 %v10194, 0.0
      %v10336 = vmax.f32 %v10198, 0.0
      %v10337 = vmax.f32 %v10200, 0.0
      %v10338 = vmax.f32 %v10202, 0.0
      %v10339 = vmax.f32 %v10204, 0.0
      %v10340 = vmax.f32 %v10208, 0.0
      %v10341 = vmax.f32 %v10210, 0.0
      %v10342 = vmax.f32 %v10212, 0.0
      %v10343 = vmax.f32 %v10214, 0.0
      %v10344 = vpack.c.bf16 %v10218, %v10216
      %v10345 = vpack.c.bf16 %v10219, %v10217
      %v10346 = vpack.c.bf16 %v10222, %v10220
      %v10347 = vpack.c.bf16 %v10223, %v10221
      %v10348 = vpack.c.bf16 %v10226, %v10224
      %v10349 = vpack.c.bf16 %v10227, %v10225
      %v10350 = vpack.c.bf16 %v10230, %v10228
      %v10351 = vpack.c.bf16 %v10231, %v10229
      %v10352 = vpack.c.bf16 %v10234, %v10232
      %v10353 = vpack.c.bf16 %v10235, %v10233
      %v10354 = vpack.c.bf16 %v10238, %v10236
      %v10355 = vpack.c.bf16 %v10239, %v10237
      %v10356 = vpack.c.bf16 %v10242, %v10240
      %v10357 = vpack.c.bf16 %v10243, %v10241
      %v10358 = vpack.c.bf16 %v10246, %v10244
      %v10359 = vpack.c.bf16 %v10247, %v10245
      %v10360 = vpack.c.bf16 %v10250, %v10248
      %v10361 = vpack.c.bf16 %v10251, %v10249
      %v10362 = vpack.c.bf16 %v10254, %v10252
      %v10363 = vpack.c.bf16 %v10255, %v10253
      %v10364 = vpack.c.bf16 %v10258, %v10256
      %v10365 = vpack.c.bf16 %v10259, %v10257
      %v10366 = vpack.c.bf16 %v10262, %v10260
      %v10367 = vpack.c.bf16 %v10263, %v10261
      %v10368 = vpack.c.bf16 %v10266, %v10264
      %v10369 = vpack.c.bf16 %v10267, %v10265
      %v10370 = vpack.c.bf16 %v10270, %v10268
      %v10371 = vpack.c.bf16 %v10271, %v10269
      %v10372 = vpack.c.bf16 %v10274, %v10272
      %v10373 = vpack.c.bf16 %v10275, %v10273
      %v10374 = vpack.c.bf16 %v10278, %v10276
      %v10375 = vpack.c.bf16 %v10279, %v10277
      %v10376 = vpack.c.bf16 %v10282, %v10280
      %v10377 = vpack.c.bf16 %v10283, %v10281
      %v10378 = vpack.c.bf16 %v10286, %v10284
      %v10379 = vpack.c.bf16 %v10287, %v10285
      %v10380 = vpack.c.bf16 %v10290, %v10288
      %v10381 = vpack.c.bf16 %v10291, %v10289
      %v10382 = vpack.c.bf16 %v10294, %v10292
      %v10383 = vpack.c.bf16 %v10295, %v10293
      %v10384 = vpack.c.bf16 %v10298, %v10296
      %v10385 = vpack.c.bf16 %v10299, %v10297
      %v10386 = vpack.c.bf16 %v10302, %v10300
      %v10387 = vpack.c.bf16 %v10303, %v10301
      %v10388 = vpack.c.bf16 %v10306, %v10304
      %v10389 = vpack.c.bf16 %v10307, %v10305
      %v10390 = vpack.c.bf16 %v10310, %v10308
      %v10391 = vpack.c.bf16 %v10311, %v10309
      %v10392 = vpack.c.bf16 %v10314, %v10312
      %v10393 = vpack.c.bf16 %v10315, %v10313
      %v10394 = vpack.c.bf16 %v10318, %v10316
      %v10395 = vpack.c.bf16 %v10319, %v10317
      %v10396 = vpack.c.bf16 %v10322, %v10320
      %v10397 = vpack.c.bf16 %v10323, %v10321
      %v10398 = vpack.c.bf16 %v10326, %v10324
      %v10399 = vpack.c.bf16 %v10327, %v10325
      %v10400 = vpack.c.bf16 %v10330, %v10328
      %v10401 = vpack.c.bf16 %v10331, %v10329
      %v10402 = vpack.c.bf16 %v10334, %v10332
      %v10403 = vpack.c.bf16 %v10335, %v10333
      %v10404 = vpack.c.bf16 %v10338, %v10336
      %v10405 = vpack.c.bf16 %v10339, %v10337
      %v10406 = vpack.c.bf16 %v10342, %v10340
      %v10407 = vpack.c.bf16 %v10343, %v10341
      %v10472 = vunpack.c.l.b16 %v10344
      %v10473 = vunpack.c.l.b16 %v10345
      %v10474 = vunpack.c.h.b16 %v10344
      %v10475 = vunpack.c.h.b16 %v10345
      %v10476 = vunpack.c.l.b16 %v10346
      %v10477 = vunpack.c.l.b16 %v10347
      %v10478 = vunpack.c.h.b16 %v10346
      %v10479 = vunpack.c.h.b16 %v10347
      %v10480 = vunpack.c.l.b16 %v10348
      %v10481 = vunpack.c.l.b16 %v10349
      %v10482 = vunpack.c.h.b16 %v10348
      %v10483 = vunpack.c.h.b16 %v10349
      %v10484 = vunpack.c.l.b16 %v10350
      %v10485 = vunpack.c.l.b16 %v10351
      %v10486 = vunpack.c.h.b16 %v10350
      %v10487 = vunpack.c.h.b16 %v10351
      %v10488 = vunpack.c.l.b16 %v10352
      %v10489 = vunpack.c.l.b16 %v10353
      %v10490 = vunpack.c.h.b16 %v10352
      %v10491 = vunpack.c.h.b16 %v10353
      %v10492 = vunpack.c.l.b16 %v10354
      %v10493 = vunpack.c.l.b16 %v10355
      %v10494 = vunpack.c.h.b16 %v10354
      %v10495 = vunpack.c.h.b16 %v10355
      %v10496 = vunpack.c.l.b16 %v10356
      %v10497 = vunpack.c.l.b16 %v10357
      %v10498 = vunpack.c.h.b16 %v10356
      %v10499 = vunpack.c.h.b16 %v10357
      %v10500 = vunpack.c.l.b16 %v10358
      %v10501 = vunpack.c.l.b16 %v10359
      %v10502 = vunpack.c.h.b16 %v10358
      %v10503 = vunpack.c.h.b16 %v10359
      %v10504 = vunpack.c.l.b16 %v10360
      %v10505 = vunpack.c.l.b16 %v10361
      %v10506 = vunpack.c.h.b16 %v10360
      %v10507 = vunpack.c.h.b16 %v10361
      %v10508 = vunpack.c.l.b16 %v10362
      %v10509 = vunpack.c.l.b16 %v10363
      %v10510 = vunpack.c.h.b16 %v10362
      %v10511 = vunpack.c.h.b16 %v10363
      %v10512 = vunpack.c.l.b16 %v10364
      %v10513 = vunpack.c.l.b16 %v10365
      %v10514 = vunpack.c.h.b16 %v10364
      %v10515 = vunpack.c.h.b16 %v10365
      %v10516 = vunpack.c.l.b16 %v10366
      %v10517 = vunpack.c.l.b16 %v10367
      %v10518 = vunpack.c.h.b16 %v10366
      %v10519 = vunpack.c.h.b16 %v10367
      %v10520 = vunpack.c.l.b16 %v10368
      %v10521 = vunpack.c.l.b16 %v10369
      %v10522 = vunpack.c.h.b16 %v10368
      %v10523 = vunpack.c.h.b16 %v10369
      %v10524 = vunpack.c.l.b16 %v10370
      %v10525 = vunpack.c.l.b16 %v10371
      %v10526 = vunpack.c.h.b16 %v10370
      %v10527 = vunpack.c.h.b16 %v10371
      %v10528 = vunpack.c.l.b16 %v10372
      %v10529 = vunpack.c.l.b16 %v10373
      %v10530 = vunpack.c.h.b16 %v10372
      %v10531 = vunpack.c.h.b16 %v10373
      %v10532 = vunpack.c.l.b16 %v10374
      %v10533 = vunpack.c.l.b16 %v10375
      %v10534 = vunpack.c.h.b16 %v10374
      %v10535 = vunpack.c.h.b16 %v10375
      %v10536 = vunpack.c.l.b16 %v10376
      %v10537 = vunpack.c.l.b16 %v10377
      %v10538 = vunpack.c.h.b16 %v10376
      %v10539 = vunpack.c.h.b16 %v10377
      %v10540 = vunpack.c.l.b16 %v10378
      %v10541 = vunpack.c.l.b16 %v10379
      %v10542 = vunpack.c.h.b16 %v10378
      %v10543 = vunpack.c.h.b16 %v10379
      %v10544 = vunpack.c.l.b16 %v10380
      %v10545 = vunpack.c.l.b16 %v10381
      %v10546 = vunpack.c.h.b16 %v10380
      %v10547 = vunpack.c.h.b16 %v10381
      %v10548 = vunpack.c.l.b16 %v10382
      %v10549 = vunpack.c.l.b16 %v10383
      %v10550 = vunpack.c.h.b16 %v10382
      %v10551 = vunpack.c.h.b16 %v10383
      %v10552 = vunpack.c.l.b16 %v10384
      %v10553 = vunpack.c.l.b16 %v10385
      %v10554 = vunpack.c.h.b16 %v10384
      %v10555 = vunpack.c.h.b16 %v10385
      %v10556 = vunpack.c.l.b16 %v10386
      %v10557 = vunpack.c.l.b16 %v10387
      %v10558 = vunpack.c.h.b16 %v10386
      %v10559 = vunpack.c.h.b16 %v10387
      %v10560 = vunpack.c.l.b16 %v10388
      %v10561 = vunpack.c.l.b16 %v10389
      %v10562 = vunpack.c.h.b16 %v10388
      %v10563 = vunpack.c.h.b16 %v10389
      %v10564 = vunpack.c.l.b16 %v10390
      %v10565 = vunpack.c.l.b16 %v10391
      %v10566 = vunpack.c.h.b16 %v10390
      %v10567 = vunpack.c.h.b16 %v10391
      %v10568 = vunpack.c.l.b16 %v10392
      %v10569 = vunpack.c.l.b16 %v10393
      %v10570 = vunpack.c.h.b16 %v10392
      %v10571 = vunpack.c.h.b16 %v10393
      %v10572 = vunpack.c.l.b16 %v10394
      %v10573 = vunpack.c.l.b16 %v10395
      %v10574 = vunpack.c.h.b16 %v10394
      %v10575 = vunpack.c.h.b16 %v10395
      %v10576 = vunpack.c.l.b16 %v10396
      %v10577 = vunpack.c.l.b16 %v10397
      %v10578 = vunpack.c.h.b16 %v10396
      %v10579 = vunpack.c.h.b16 %v10397
      %v10580 = vunpack.c.l.b16 %v10398
      %v10581 = vunpack.c.l.b16 %v10399
      %v10582 = vunpack.c.h.b16 %v10398
      %v10583 = vunpack.c.h.b16 %v10399
      %v10584 = vunpack.c.l.b16 %v10400
      %v10585 = vunpack.c.l.b16 %v10401
      %v10586 = vunpack.c.h.b16 %v10400
      %v10587 = vunpack.c.h.b16 %v10401
      %v10588 = vunpack.c.l.b16 %v10402
      %v10589 = vunpack.c.l.b16 %v10403
      %v10590 = vunpack.c.h.b16 %v10402
      %v10591 = vunpack.c.h.b16 %v10403
      %v10592 = vunpack.c.l.b16 %v10404
      %v10593 = vunpack.c.l.b16 %v10405
      %v10594 = vunpack.c.h.b16 %v10404
      %v10595 = vunpack.c.h.b16 %v10405
      %v10596 = vunpack.c.l.b16 %v10406
      %v10597 = vunpack.c.l.b16 %v10407
      %v10598 = vunpack.c.h.b16 %v10406
      %v10599 = vunpack.c.h.b16 %v10407
      %v10600 = vpack.c.b16 %v10473, %v10472
      %v10601 = vpack.c.b16 %v10475, %v10474
      %v10602 = vpack.c.b16 %v10477, %v10476
      %v10603 = vpack.c.b16 %v10479, %v10478
      %v10604 = vpack.c.b16 %v10481, %v10480
      %v10605 = vpack.c.b16 %v10483, %v10482
      %v10606 = vpack.c.b16 %v10485, %v10484
      %v10607 = vpack.c.b16 %v10487, %v10486
      %v10608 = vpack.c.b16 %v10489, %v10488
      %v10609 = vpack.c.b16 %v10491, %v10490
      %v10610 = vpack.c.b16 %v10493, %v10492
      %v10611 = vpack.c.b16 %v10495, %v10494
      %v10612 = vpack.c.b16 %v10497, %v10496
      %v10613 = vpack.c.b16 %v10499, %v10498
      %v10614 = vpack.c.b16 %v10501, %v10500
      %v10615 = vpack.c.b16 %v10503, %v10502
      %v10616 = vpack.c.b16 %v10505, %v10504
      %v10617 = vpack.c.b16 %v10507, %v10506
      %v10618 = vpack.c.b16 %v10509, %v10508
      %v10619 = vpack.c.b16 %v10511, %v10510
      %v10620 = vpack.c.b16 %v10513, %v10512
      %v10621 = vpack.c.b16 %v10515, %v10514
      %v10622 = vpack.c.b16 %v10517, %v10516
      %v10623 = vpack.c.b16 %v10519, %v10518
      %v10624 = vpack.c.b16 %v10521, %v10520
      %v10625 = vpack.c.b16 %v10523, %v10522
      %v10626 = vpack.c.b16 %v10525, %v10524
      %v10627 = vpack.c.b16 %v10527, %v10526
      %v10628 = vpack.c.b16 %v10529, %v10528
      %v10629 = vpack.c.b16 %v10531, %v10530
      %v10630 = vpack.c.b16 %v10533, %v10532
      %v10631 = vpack.c.b16 %v10535, %v10534
      %v10632 = vpack.c.b16 %v10537, %v10536
      %v10633 = vpack.c.b16 %v10539, %v10538
      %v10634 = vpack.c.b16 %v10541, %v10540
      %v10635 = vpack.c.b16 %v10543, %v10542
      %v10636 = vpack.c.b16 %v10545, %v10544
      %v10637 = vpack.c.b16 %v10547, %v10546
      %v10638 = vpack.c.b16 %v10549, %v10548
      %v10639 = vpack.c.b16 %v10551, %v10550
      %v10640 = vpack.c.b16 %v10553, %v10552
      %v10641 = vpack.c.b16 %v10555, %v10554
      %v10642 = vpack.c.b16 %v10557, %v10556
      %v10643 = vpack.c.b16 %v10559, %v10558
      %v10644 = vpack.c.b16 %v10561, %v10560
      %v10645 = vpack.c.b16 %v10563, %v10562
      %v10646 = vpack.c.b16 %v10565, %v10564
      %v10647 = vpack.c.b16 %v10567, %v10566
      %v10648 = vpack.c.b16 %v10569, %v10568
      %v10649 = vpack.c.b16 %v10571, %v10570
      %v10650 = vpack.c.b16 %v10573, %v10572
      %v10651 = vpack.c.b16 %v10575, %v10574
      %v10652 = vpack.c.b16 %v10577, %v10576
      %v10653 = vpack.c.b16 %v10579, %v10578
      %v10654 = vpack.c.b16 %v10581, %v10580
      %v10655 = vpack.c.b16 %v10583, %v10582
      %v10656 = vpack.c.b16 %v10585, %v10584
      %v10657 = vpack.c.b16 %v10587, %v10586
      %v10658 = vpack.c.b16 %v10589, %v10588
      %v10659 = vpack.c.b16 %v10591, %v10590
      %v10660 = vpack.c.b16 %v10593, %v10592
      %v10661 = vpack.c.b16 %v10595, %v10594
      %v10662 = vpack.c.b16 %v10597, %v10596
      %v10663 = vpack.c.b16 %v10599, %v10598
      %10728 = vst [vmem:[%s573] sm:$0xff] %v10600
      %10729 = vst [vmem:[%s573 + $0x8] sm:$0xff] %v10601
      %10730 = vst [vmem:[%s573 + $0x10] sm:$0xff] %v10602
      %10731 = vst [vmem:[%s573 + $0x18] sm:$0xff] %v10603
      %10732 = vst [vmem:[%s573 + $0x20] sm:$0xff] %v10604
      %10733 = vst [vmem:[%s573 + $0x28] sm:$0xff] %v10605
      %10734 = vst [vmem:[%s573 + $0x30] sm:$0xff] %v10606
      %10735 = vst [vmem:[%s573 + $0x38] sm:$0xff] %v10607
      %10736 = vst [vmem:[%s573 + $0x40] sm:$0xff] %v10608
      %10737 = vst [vmem:[%s573 + $0x48] sm:$0xff] %v10609
      %10738 = vst [vmem:[%s573 + $0x50] sm:$0xff] %v10610
      %10739 = vst [vmem:[%s573 + $0x58] sm:$0xff] %v10611
      %10740 = vst [vmem:[%s573 + $0x60] sm:$0xff] %v10612
      %10741 = vst [vmem:[%s573 + $0x68] sm:$0xff] %v10613
      %10742 = vst [vmem:[%s573 + $0x70] sm:$0xff] %v10614
      %10743 = vst [vmem:[%s573 + $0x78] sm:$0xff] %v10615
      %10744 = vst [vmem:[%s573 + $0x80] sm:$0xff] %v10616
      %10745 = vst [vmem:[%s573 + $0x88] sm:$0xff] %v10617
      %10746 = vst [vmem:[%s573 + $0x90] sm:$0xff] %v10618
      %10747 = vst [vmem:[%s573 + $0x98] sm:$0xff] %v10619
      %10748 = vst [vmem:[%s573 + $0xa0] sm:$0xff] %v10620
      %10749 = vst [vmem:[%s573 + $0xa8] sm:$0xff] %v10621
      %10750 = vst [vmem:[%s573 + $0xb0] sm:$0xff] %v10622
      %10751 = vst [vmem:[%s573 + $0xb8] sm:$0xff] %v10623
      %10752 = vst [vmem:[%s573 + $0xc0] sm:$0xff] %v10624
      %10753 = vst [vmem:[%s573 + $0xc8] sm:$0xff] %v10625
      %10754 = vst [vmem:[%s573 + $0xd0] sm:$0xff] %v10626
      %10755 = vst [vmem:[%s573 + $0xd8] sm:$0xff] %v10627
      %10756 = vst [vmem:[%s573 + $0xe0] sm:$0xff] %v10628
      %10757 = vst [vmem:[%s573 + $0xe8] sm:$0xff] %v10629
      %10758 = vst [vmem:[%s573 + $0xf0] sm:$0xff] %v10630
      %10759 = vst [vmem:[%s573 + $0xf8] sm:$0xff] %v10631
      %10760 = vst [vmem:[%s573 + $0x100] sm:$0xff] %v10632
      %10761 = vst [vmem:[%s573 + $0x108] sm:$0xff] %v10633
      %10762 = vst [vmem:[%s573 + $0x110] sm:$0xff] %v10634
      %10763 = vst [vmem:[%s573 + $0x118] sm:$0xff] %v10635
      %10764 = vst [vmem:[%s573 + $0x120] sm:$0xff] %v10636
      %10765 = vst [vmem:[%s573 + $0x128] sm:$0xff] %v10637
      %10766 = vst [vmem:[%s573 + $0x130] sm:$0xff] %v10638
      %10767 = vst [vmem:[%s573 + $0x138] sm:$0xff] %v10639
      %10768 = vst [vmem:[%s573 + $0x140] sm:$0xff] %v10640
      %10769 = vst [vmem:[%s573 + $0x148] sm:$0xff] %v10641
      %10770 = vst [vmem:[%s573 + $0x150] sm:$0xff] %v10642
      %10771 = vst [vmem:[%s573 + $0x158] sm:$0xff] %v10643
      %10772 = vst [vmem:[%s573 + $0x160] sm:$0xff] %v10644
      %10773 = vst [vmem:[%s573 + $0x168] sm:$0xff] %v10645
      %10774 = vst [vmem:[%s573 + $0x170] sm:$0xff] %v10646
      %10775 = vst [vmem:[%s573 + $0x178] sm:$0xff] %v10647
      %10776 = vst [vmem:[%s573 + $0x180] sm:$0xff] %v10648
      %10777 = vst [vmem:[%s573 + $0x188] sm:$0xff] %v10649
      %10778 = vst [vmem:[%s573 + $0x190] sm:$0xff] %v10650
      %10779 = vst [vmem:[%s573 + $0x198] sm:$0xff] %v10651
      %10780 = vst [vmem:[%s573 + $0x1a0] sm:$0xff] %v10652
      %10781 = vst [vmem:[%s573 + $0x1a8] sm:$0xff] %v10653
      %10782 = vst [vmem:[%s573 + $0x1b0] sm:$0xff] %v10654
      %10783 = vst [vmem:[%s573 + $0x1b8] sm:$0xff] %v10655
      %10784 = vst [vmem:[%s573 + $0x1c0] sm:$0xff] %v10656
      %10785 = vst [vmem:[%s573 + $0x1c8] sm:$0xff] %v10657
      %10786 = vst [vmem:[%s573 + $0x1d0] sm:$0xff] %v10658
      %10787 = vst [vmem:[%s573 + $0x1d8] sm:$0xff] %v10659
      %10788 = vst [vmem:[%s573 + $0x1e0] sm:$0xff] %v10660
      %10789 = vst [vmem:[%s573 + $0x1e8] sm:$0xff] %v10661
      %10790 = vst [vmem:[%s573 + $0x1f0] sm:$0xff] %v10662
      %10791 = vst [vmem:[%s573 + $0x1f8] sm:$0xff] %v10663
      %v10792 = vadd.f32 %v10216, %v10217
      %10793 = vadd.xlane.f32.xlu0 %v10792
      %v10794 = vpop.xlane.xlu0 %10793
      %v10795 = vadd.f32 %v10218, %v10219
      %10796 = vadd.xlane.f32.xlu0 %v10795
      %v10797 = vpop.xlane.xlu0 %10796
      %v10798 = vadd.f32 %v10220, %v10221
      %10799 = vadd.xlane.f32.xlu0 %v10798
      %v10800 = vpop.xlane.xlu0 %10799
      %v10801 = vadd.f32 %v10222, %v10223
      %10802 = vadd.xlane.f32.xlu0 %v10801
      %v10803 = vpop.xlane.xlu0 %10802
      %v10804 = vadd.f32 %v10224, %v10225
      %10805 = vadd.xlane.f32.xlu0 %v10804
      %v10806 = vpop.xlane.xlu0 %10805
      %v10807 = vadd.f32 %v10226, %v10227
      %10808 = vadd.xlane.f32.xlu0 %v10807
      %v10809 = vpop.xlane.xlu0 %10808
      %v10810 = vadd.f32 %v10228, %v10229
      %10811 = vadd.xlane.f32.xlu0 %v10810
      %v10812 = vpop.xlane.xlu0 %10811
      %v10813 = vadd.f32 %v10230, %v10231
      %10814 = vadd.xlane.f32.xlu0 %v10813
      %v10815 = vpop.xlane.xlu0 %10814
      %v10816 = vadd.f32 %v10232, %v10233
      %10817 = vadd.xlane.f32.xlu0 %v10816
      %v10818 = vpop.xlane.xlu0 %10817
      %v10819 = vadd.f32 %v10234, %v10235
      %10820 = vadd.xlane.f32.xlu0 %v10819
      %v10821 = vpop.xlane.xlu0 %10820
      %v10822 = vadd.f32 %v10236, %v10237
      %10823 = vadd.xlane.f32.xlu0 %v10822
      %v10824 = vpop.xlane.xlu0 %10823
      %v10825 = vadd.f32 %v10238, %v10239
      %10826 = vadd.xlane.f32.xlu0 %v10825
      %v10827 = vpop.xlane.xlu0 %10826
      %v10828 = vadd.f32 %v10240, %v10241
      %10829 = vadd.xlane.f32.xlu0 %v10828
      %v10830 = vpop.xlane.xlu0 %10829
      %v10831 = vadd.f32 %v10242, %v10243
      %10832 = vadd.xlane.f32.xlu0 %v10831
      %v10833 = vpop.xlane.xlu0 %10832
      %v10834 = vadd.f32 %v10244, %v10245
      %10835 = vadd.xlane.f32.xlu0 %v10834
      %v10836 = vpop.xlane.xlu0 %10835
      %v10837 = vadd.f32 %v10246, %v10247
      %10838 = vadd.xlane.f32.xlu0 %v10837
      %v10839 = vpop.xlane.xlu0 %10838
      %v10840 = vadd.f32 %v10248, %v10249
      %10841 = vadd.xlane.f32.xlu0 %v10840
      %v10842 = vpop.xlane.xlu0 %10841
      %v10843 = vadd.f32 %v10250, %v10251
      %10844 = vadd.xlane.f32.xlu0 %v10843
      %v10845 = vpop.xlane.xlu0 %10844
      %v10846 = vadd.f32 %v10252, %v10253
      %10847 = vadd.xlane.f32.xlu0 %v10846
      %v10848 = vpop.xlane.xlu0 %10847
      %v10849 = vadd.f32 %v10254, %v10255
      %10850 = vadd.xlane.f32.xlu0 %v10849
      %v10851 = vpop.xlane.xlu0 %10850
      %v10852 = vadd.f32 %v10256, %v10257
      %10853 = vadd.xlane.f32.xlu0 %v10852
      %v10854 = vpop.xlane.xlu0 %10853
      %v10855 = vadd.f32 %v10258, %v10259
      %10856 = vadd.xlane.f32.xlu0 %v10855
      %v10857 = vpop.xlane.xlu0 %10856
      %v10858 = vadd.f32 %v10260, %v10261
      %10859 = vadd.xlane.f32.xlu0 %v10858
      %v10860 = vpop.xlane.xlu0 %10859
      %v10861 = vadd.f32 %v10262, %v10263
      %10862 = vadd.xlane.f32.xlu0 %v10861
      %v10863 = vpop.xlane.xlu0 %10862
      %v10864 = vadd.f32 %v10264, %v10265
      %10865 = vadd.xlane.f32.xlu0 %v10864
      %v10866 = vpop.xlane.xlu0 %10865
      %v10867 = vadd.f32 %v10266, %v10267
      %10868 = vadd.xlane.f32.xlu0 %v10867
      %v10869 = vpop.xlane.xlu0 %10868
      %v10870 = vadd.f32 %v10268, %v10269
      %10871 = vadd.xlane.f32.xlu0 %v10870
      %v10872 = vpop.xlane.xlu0 %10871
      %v10873 = vadd.f32 %v10270, %v10271
      %10874 = vadd.xlane.f32.xlu0 %v10873
      %v10875 = vpop.xlane.xlu0 %10874
      %v10876 = vadd.f32 %v10272, %v10273
      %10877 = vadd.xlane.f32.xlu0 %v10876
      %v10878 = vpop.xlane.xlu0 %10877
      %v10879 = vadd.f32 %v10274, %v10275
      %10880 = vadd.xlane.f32.xlu0 %v10879
      %v10881 = vpop.xlane.xlu0 %10880
      %v10882 = vadd.f32 %v10276, %v10277
      %10883 = vadd.xlane.f32.xlu0 %v10882
      %v10884 = vpop.xlane.xlu0 %10883
      %v10885 = vadd.f32 %v10278, %v10279
      %10886 = vadd.xlane.f32.xlu0 %v10885
      %v10887 = vpop.xlane.xlu0 %10886
      %v10888 = vadd.f32 %v10280, %v10281
      %10889 = vadd.xlane.f32.xlu0 %v10888
      %v10890 = vpop.xlane.xlu0 %10889
      %v10891 = vadd.f32 %v10282, %v10283
      %10892 = vadd.xlane.f32.xlu0 %v10891
      %v10893 = vpop.xlane.xlu0 %10892
      %v10894 = vadd.f32 %v10284, %v10285
      %10895 = vadd.xlane.f32.xlu0 %v10894
      %v10896 = vpop.xlane.xlu0 %10895
      %v10897 = vadd.f32 %v10286, %v10287
      %10898 = vadd.xlane.f32.xlu0 %v10897
      %v10899 = vpop.xlane.xlu0 %10898
      %v10900 = vadd.f32 %v10288, %v10289
      %10901 = vadd.xlane.f32.xlu0 %v10900
      %v10902 = vpop.xlane.xlu0 %10901
      %v10903 = vadd.f32 %v10290, %v10291
      %10904 = vadd.xlane.f32.xlu0 %v10903
      %v10905 = vpop.xlane.xlu0 %10904
      %v10906 = vadd.f32 %v10292, %v10293
      %10907 = vadd.xlane.f32.xlu0 %v10906
      %v10908 = vpop.xlane.xlu0 %10907
      %v10909 = vadd.f32 %v10294, %v10295
      %10910 = vadd.xlane.f32.xlu0 %v10909
      %v10911 = vpop.xlane.xlu0 %10910
      %v10912 = vadd.f32 %v10296, %v10297
      %10913 = vadd.xlane.f32.xlu0 %v10912
      %v10914 = vpop.xlane.xlu0 %10913
      %v10915 = vadd.f32 %v10298, %v10299
      %10916 = vadd.xlane.f32.xlu0 %v10915
      %v10917 = vpop.xlane.xlu0 %10916
      %v10918 = vadd.f32 %v10300, %v10301
      %10919 = vadd.xlane.f32.xlu0 %v10918
      %v10920 = vpop.xlane.xlu0 %10919
      %v10921 = vadd.f32 %v10302, %v10303
      %10922 = vadd.xlane.f32.xlu0 %v10921
      %v10923 = vpop.xlane.xlu0 %10922
      %v10924 = vadd.f32 %v10304, %v10305
      %10925 = vadd.xlane.f32.xlu0 %v10924
      %v10926 = vpop.xlane.xlu0 %10925
      %v10927 = vadd.f32 %v10306, %v10307
      %10928 = vadd.xlane.f32.xlu0 %v10927
      %v10929 = vpop.xlane.xlu0 %10928
      %v10930 = vadd.f32 %v10308, %v10309
      %10931 = vadd.xlane.f32.xlu0 %v10930
      %v10932 = vpop.xlane.xlu0 %10931
      %v10933 = vadd.f32 %v10310, %v10311
      %10934 = vadd.xlane.f32.xlu0 %v10933
      %v10935 = vpop.xlane.xlu0 %10934
      %v10936 = vadd.f32 %v10312, %v10313
      %10937 = vadd.xlane.f32.xlu0 %v10936
      %v10938 = vpop.xlane.xlu0 %10937
      %v10939 = vadd.f32 %v10314, %v10315
      %10940 = vadd.xlane.f32.xlu0 %v10939
      %v10941 = vpop.xlane.xlu0 %10940
      %v10942 = vadd.f32 %v10316, %v10317
      %10943 = vadd.xlane.f32.xlu0 %v10942
      %v10944 = vpop.xlane.xlu0 %10943
      %v10945 = vadd.f32 %v10318, %v10319
      %10946 = vadd.xlane.f32.xlu0 %v10945
      %v10947 = vpop.xlane.xlu0 %10946
      %v10948 = vadd.f32 %v10320, %v10321
      %10949 = vadd.xlane.f32.xlu0 %v10948
      %v10950 = vpop.xlane.xlu0 %10949
      %v10951 = vadd.f32 %v10322, %v10323
      %10952 = vadd.xlane.f32.xlu0 %v10951
      %v10953 = vpop.xlane.xlu0 %10952
      %v10954 = vadd.f32 %v10324, %v10325
      %10955 = vadd.xlane.f32.xlu0 %v10954
      %v10956 = vpop.xlane.xlu0 %10955
      %v10957 = vadd.f32 %v10326, %v10327
      %10958 = vadd.xlane.f32.xlu0 %v10957
      %v10959 = vpop.xlane.xlu0 %10958
      %v10960 = vadd.f32 %v10328, %v10329
      %10961 = vadd.xlane.f32.xlu0 %v10960
      %v10962 = vpop.xlane.xlu0 %10961
      %v10963 = vadd.f32 %v10330, %v10331
      %10964 = vadd.xlane.f32.xlu0 %v10963
      %v10965 = vpop.xlane.xlu0 %10964
      %v10966 = vadd.f32 %v10332, %v10333
      %10967 = vadd.xlane.f32.xlu0 %v10966
      %v10968 = vpop.xlane.xlu0 %10967
      %v10969 = vadd.f32 %v10334, %v10335
      %10970 = vadd.xlane.f32.xlu0 %v10969
      %v10971 = vpop.xlane.xlu0 %10970
      %v10972 = vadd.f32 %v10336, %v10337
      %10973 = vadd.xlane.f32.xlu0 %v10972
      %v10974 = vpop.xlane.xlu0 %10973
      %v10975 = vadd.f32 %v10338, %v10339
      %10976 = vadd.xlane.f32.xlu0 %v10975
      %v10977 = vpop.xlane.xlu0 %10976
      %v10978 = vadd.f32 %v10340, %v10341
      %10979 = vadd.xlane.f32.xlu0 %v10978
      %v10980 = vpop.xlane.xlu0 %10979
      %v10981 = vadd.f32 %v10342, %v10343
      %10982 = vadd.xlane.f32.xlu0 %v10981
      %v10983 = vpop.xlane.xlu0 %10982
      %vm10984 = vcmask 7168
      %10985 = vst.msk [vmem:[%s583] sm:$0xff] %vm10984, %v10794
      %10986 = vst.msk [vmem:[%s583 + $0x8] sm:$0xff] %vm10984, %v10797
      %10987 = vst.msk [vmem:[%s583 + $0x10] sm:$0xff] %vm10984, %v10800
      %10988 = vst.msk [vmem:[%s583 + $0x18] sm:$0xff] %vm10984, %v10803
      %10989 = vst.msk [vmem:[%s583 + $0x20] sm:$0xff] %vm10984, %v10806
      %10990 = vst.msk [vmem:[%s583 + $0x28] sm:$0xff] %vm10984, %v10809
      %10991 = vst.msk [vmem:[%s583 + $0x30] sm:$0xff] %vm10984, %v10812
      %10992 = vst.msk [vmem:[%s583 + $0x38] sm:$0xff] %vm10984, %v10815
      %10993 = vst.msk [vmem:[%s583 + $0x40] sm:$0xff] %vm10984, %v10818
      %10994 = vst.msk [vmem:[%s583 + $0x48] sm:$0xff] %vm10984, %v10821
      %10995 = vst.msk [vmem:[%s583 + $0x50] sm:$0xff] %vm10984, %v10824
      %10996 = vst.msk [vmem:[%s583 + $0x58] sm:$0xff] %vm10984, %v10827
      %10997 = vst.msk [vmem:[%s583 + $0x60] sm:$0xff] %vm10984, %v10830
      %10998 = vst.msk [vmem:[%s583 + $0x68] sm:$0xff] %vm10984, %v10833
      %10999 = vst.msk [vmem:[%s583 + $0x70] sm:$0xff] %vm10984, %v10836
      %11000 = vst.msk [vmem:[%s583 + $0x78] sm:$0xff] %vm10984, %v10839
      %11001 = vst.msk [vmem:[%s583 + $0x80] sm:$0xff] %vm10984, %v10842
      %11002 = vst.msk [vmem:[%s583 + $0x88] sm:$0xff] %vm10984, %v10845
      %11003 = vst.msk [vmem:[%s583 + $0x90] sm:$0xff] %vm10984, %v10848
      %11004 = vst.msk [vmem:[%s583 + $0x98] sm:$0xff] %vm10984, %v10851
      %11005 = vst.msk [vmem:[%s583 + $0xa0] sm:$0xff] %vm10984, %v10854
      %11006 = vst.msk [vmem:[%s583 + $0xa8] sm:$0xff] %vm10984, %v10857
      %11007 = vst.msk [vmem:[%s583 + $0xb0] sm:$0xff] %vm10984, %v10860
      %11008 = vst.msk [vmem:[%s583 + $0xb8] sm:$0xff] %vm10984, %v10863
      %11009 = vst.msk [vmem:[%s583 + $0xc0] sm:$0xff] %vm10984, %v10866
      %11010 = vst.msk [vmem:[%s583 + $0xc8] sm:$0xff] %vm10984, %v10869
      %11011 = vst.msk [vmem:[%s583 + $0xd0] sm:$0xff] %vm10984, %v10872
      %11012 = vst.msk [vmem:[%s583 + $0xd8] sm:$0xff] %vm10984, %v10875
      %11013 = vst.msk [vmem:[%s583 + $0xe0] sm:$0xff] %vm10984, %v10878
      %11014 = vst.msk [vmem:[%s583 + $0xe8] sm:$0xff] %vm10984, %v10881
      %11015 = vst.msk [vmem:[%s583 + $0xf0] sm:$0xff] %vm10984, %v10884
      %11016 = vst.msk [vmem:[%s583 + $0xf8] sm:$0xff] %vm10984, %v10887
      %11017 = vst.msk [vmem:[%s583 + $0x100] sm:$0xff] %vm10984, %v10890
      %11018 = vst.msk [vmem:[%s583 + $0x108] sm:$0xff] %vm10984, %v10893
      %11019 = vst.msk [vmem:[%s583 + $0x110] sm:$0xff] %vm10984, %v10896
      %11020 = vst.msk [vmem:[%s583 + $0x118] sm:$0xff] %vm10984, %v10899
      %11021 = vst.msk [vmem:[%s583 + $0x120] sm:$0xff] %vm10984, %v10902
      %11022 = vst.msk [vmem:[%s583 + $0x128] sm:$0xff] %vm10984, %v10905
      %11023 = vst.msk [vmem:[%s583 + $0x130] sm:$0xff] %vm10984, %v10908
      %11024 = vst.msk [vmem:[%s583 + $0x138] sm:$0xff] %vm10984, %v10911
      %11025 = vst.msk [vmem:[%s583 + $0x140] sm:$0xff] %vm10984, %v10914
      %11026 = vst.msk [vmem:[%s583 + $0x148] sm:$0xff] %vm10984, %v10917
      %11027 = vst.msk [vmem:[%s583 + $0x150] sm:$0xff] %vm10984, %v10920
      %11028 = vst.msk [vmem:[%s583 + $0x158] sm:$0xff] %vm10984, %v10923
      %11029 = vst.msk [vmem:[%s583 + $0x160] sm:$0xff] %vm10984, %v10926
      %11030 = vst.msk [vmem:[%s583 + $0x168] sm:$0xff] %vm10984, %v10929
      %11031 = vst.msk [vmem:[%s583 + $0x170] sm:$0xff] %vm10984, %v10932
      %11032 = vst.msk [vmem:[%s583 + $0x178] sm:$0xff] %vm10984, %v10935
      %11033 = vst.msk [vmem:[%s583 + $0x180] sm:$0xff] %vm10984, %v10938
      %11034 = vst.msk [vmem:[%s583 + $0x188] sm:$0xff] %vm10984, %v10941
      %11035 = vst.msk [vmem:[%s583 + $0x190] sm:$0xff] %vm10984, %v10944
      %11036 = vst.msk [vmem:[%s583 + $0x198] sm:$0xff] %vm10984, %v10947
      %11037 = vst.msk [vmem:[%s583 + $0x1a0] sm:$0xff] %vm10984, %v10950
      %11038 = vst.msk [vmem:[%s583 + $0x1a8] sm:$0xff] %vm10984, %v10953
      %11039 = vst.msk [vmem:[%s583 + $0x1b0] sm:$0xff] %vm10984, %v10956
      %11040 = vst.msk [vmem:[%s583 + $0x1b8] sm:$0xff] %vm10984, %v10959
      %11041 = vst.msk [vmem:[%s583 + $0x1c0] sm:$0xff] %vm10984, %v10962
      %11042 = vst.msk [vmem:[%s583 + $0x1c8] sm:$0xff] %vm10984, %v10965
      %11043 = vst.msk [vmem:[%s583 + $0x1d0] sm:$0xff] %vm10984, %v10968
      %11044 = vst.msk [vmem:[%s583 + $0x1d8] sm:$0xff] %vm10984, %v10971
      %11045 = vst.msk [vmem:[%s583 + $0x1e0] sm:$0xff] %vm10984, %v10974
      %11046 = vst.msk [vmem:[%s583 + $0x1e8] sm:$0xff] %vm10984, %v10977
      %11047 = vst.msk [vmem:[%s583 + $0x1f0] sm:$0xff] %vm10984, %v10980
      %11048 = vst.msk [vmem:[%s583 + $0x1f8] sm:$0xff] %vm10984, %v10983
      %s11049 = smul.u32 2, %s33
      %p11050 = scmp.lt.s32.totalorder %s32, 1
      %s11051 = scalar_select %p11050, %s32, 1
      %p11052 = scmp.lt.s32.totalorder %s11049, 1
      %s11053 = scalar_select %p11052, %s11049, 1
      %s11054 = smul.addr %s11051, 128
      %s11055 = sadd.s32 %s11053, %s11054
      %s11056 = smul.addr %s11055, 4
      %s11057 = scalar_lea.vmem %s15, %s11056
      %p11058 = scmp.lt.s32.totalorder %s32, 1
      %s11059 = scalar_select %p11058, %s32, 1
      %p11060 = scmp.lt.s32.totalorder %s33, 0
      %s11061 = scalar_select %p11060, %s33, 0
      %s11062 = smul.addr %s11061, 64
      %s11063 = smul.addr %s11059, 64
      %s11064 = sadd.s32 %s11062, %s11063
      %s11065 = smul.addr %s11064, 8
      %s11066 = scalar_lea.vmem %s16, %s11065
      // Predicated region
      $region81: #{spatial_block.2} parent=79 // pred_check
        %p11067 = pneg %p382
      $region82: #{spatial_block.2} parent=79 // pred_check_branch
        %11069 = sbr.rel (%p11067) target = $region84
      $region83: #{spatial_block.2} parent=79 // pred_region
        %s11070 = smul.u32 2, %s33
      $region84: #{spatial_block.2} parent=79 // pred_fallthru
        _
      // Predicated region
      $region85: #{spatial_block.2} parent=79 // pred_check
        %p11071 = pneg %p410
      $region86: #{spatial_block.2} parent=79 // pred_check_branch
        %11073 = sbr.rel (%p11071) target = $region88
      $region87: #{spatial_block.2} parent=79 // pred_region
        _
      $region88: #{spatial_block.2} parent=79 // pred_fallthru
        _
    $region80: #{spatial_block.2} parent=5 // pred_fallthru
      _
    %p11074 = scmp.le.s32.totalorder 2, %s23
    // Predicated region
    $region89: #{spatial_block.2} parent=5 // pred_check
      %p11075 = pneg %p11074
    $region90: #{spatial_block.2} parent=5 // pred_check_branch
      %11077 = sbr.rel (%p11075) target = $region92
    $region91: #{spatial_block.2} parent=5 // pred_region
      %s11078 = ssub.s32 %s23, 2
      // Predicated region
      $region93: #{spatial_block.2} parent=91 // pred_check
        %p11079 = pneg %p388
      $region94: #{spatial_block.2} parent=91 // pred_check_branch
        %11081 = sbr.rel (%p11079) target = $region96
      $region95: #{spatial_block.2} parent=91 // pred_region
        %s11082 = smul.u32 2, %s35
        %p11083 = scmp.lt.s32.totalorder %s34, 1
        %s11084 = scalar_select %p11083, %s34, 1
        %p11085 = scmp.lt.s32.totalorder %s11082, 1
        %s11086 = scalar_select %p11085, %s11082, 1
        %s11087 = smul.addr %s11084, 128
        %s11088 = sadd.s32 %s11086, %s11087
        %s11089 = smul.addr %s11088, 4
        %s11090 = scalar_lea.vmem %s15, %s11089
      $region96: #{spatial_block.2} parent=91 // pred_fallthru
        _
      // Predicated region
      $region97: #{spatial_block.2} parent=91 // pred_check
        %p11091 = pneg %p416
      $region98: #{spatial_block.2} parent=91 // pred_check_branch
        %11093 = sbr.rel (%p11091) target = $region100
      $region99: #{spatial_block.2} parent=91 // pred_region
        %p11094 = scmp.lt.s32.totalorder %s34, 1
        %s11095 = scalar_select %p11094, %s34, 1
        %p11096 = scmp.lt.s32.totalorder %s35, 0
        %s11097 = scalar_select %p11096, %s35, 0
        %s11098 = smul.addr %s11097, 64
        %s11099 = smul.addr %s11095, 64
        %s11100 = sadd.s32 %s11098, %s11099
        %s11101 = smul.addr %s11100, 8
        %s11102 = scalar_lea.vmem %s16, %s11101
      $region100: #{spatial_block.2} parent=91 // pred_fallthru
        _
    $region92: #{spatial_block.2} parent=5 // pred_fallthru
      _
  $region6: #{spatial_block.2} parent=0 // loop_footer
    %s27 = sadd.s32 1, %s23
  $region7: #{spatial_block.2} parent=0 // loop_footer_branch
    %22 = sbr.rel target = $region3
  $region8: #{spatial_block.2} parent=0 // loop_exit
    _

</llo_original>
